<compile_context>
chip_gen: v7x
topology: tpu7x:2x2x1
jax: 0.10.0
libtpu: 0.0.40
codegen_flags: <defaults>
</compile_context>

<pallas_src>
import functools

import jax
import jax.numpy as jnp
from jax.experimental import pallas as pl
from jax.experimental.pallas import tpu as pltpu

VMEM_LIMIT_BYTES = 32 * 1024 * 1024
COMPUTE_DTYPE = jnp.bfloat16        # MXU input dtype; accumulation is f32.

STAGE_SPECS = [          # (name, cin, cout, stride)
    ("stage0", 8, 8, 1),
    ("stage1", 8, 16, 2),
    ("stage2", 16, 32, 2),
    ("stage3", 32, 32, 2),
]
EMBED_CIN, EMBED_COUT = 3, 8
NUM_CLASSES = 8


# ----------------------------- Pallas kernels ------------------------------

def _dual_conv_kernel(w_ref, p_ref, o_ref, *, apply_relu):
    # w_ref: [Cout, Kp]    (net axis squeezed by BlockSpec)
    # p_ref: [Kp, TILE_M]  (M = B*Ho*Wo on the lane axis -> lane-dense output)
    acc = jnp.dot(w_ref[...], p_ref[...], preferred_element_type=jnp.float32)
    if apply_relu:
        acc = jnp.maximum(acc, 0.0)
    o_ref[...] = acc.astype(o_ref.dtype)


def _pick_tile_m(M, cap=2048):
    # Largest multiple of 128 <= cap that divides M, else the whole extent.
    if M <= cap:
        return M
    t = (cap // 128) * 128
    while t >= 128:
        if M % t == 0:
            return t
        t -= 128
    return M


def pallas_dual_conv_matmul(w_mat, patches, apply_relu=True,
                            out_dtype=COMPUTE_DTYPE):
    """out[n] = relu(w_mat[n] @ patches[n]) for n in {student, teacher}."""
    Nn, Cout, Kp = w_mat.shape
    Nn2, Kp2, M = patches.shape
    assert Nn == Nn2 and Kp == Kp2
    tile_m = _pick_tile_m(M)
    grid = (Nn, M // tile_m)
    return pl.pallas_call(
        functools.partial(_dual_conv_kernel, apply_relu=apply_relu),
        out_shape=jax.ShapeDtypeStruct((Nn, Cout, M), out_dtype),
        grid=grid,
        in_specs=[
            pl.BlockSpec((None, Cout, Kp), lambda n, m: (n, 0, 0)),
            pl.BlockSpec((None, Kp, tile_m), lambda n, m: (n, 0, m)),
        ],
        out_specs=pl.BlockSpec((None, Cout, tile_m), lambda n, m: (n, 0, m)),
        compiler_params=pltpu.CompilerParams(
            dimension_semantics=("parallel", "parallel"),
            vmem_limit_bytes=VMEM_LIMIT_BYTES),
    )(w_mat, patches)


def _head_kd_kernel(feat_ref, pm_ref, w_ref, b_ref, oh_ref,
                    logits_ref, hard_ref, soft_ref, *, temp):
    # feat_ref: [2, B*HW, C]; pm_ref: [B, B*HW]; w_ref: [2, C, NCLS];
    # b_ref:    [2, 1, NCLS]; oh_ref: [B, NCLS].
    pm = pm_ref[...]
    # global average pool rides the MXU (pooling matrix), fused with the FC.
    pooled_s = jnp.dot(pm, feat_ref[0].astype(jnp.float32),
                       preferred_element_type=jnp.float32)          # [B, C]
    pooled_t = jnp.dot(pm, feat_ref[1].astype(jnp.float32),
                       preferred_element_type=jnp.float32)          # [B, C]
    ls = jnp.dot(pooled_s, w_ref[0], preferred_element_type=jnp.float32) + b_ref[0]
    lt = jnp.dot(pooled_t, w_ref[1], preferred_element_type=jnp.float32) + b_ref[1]
    logits_ref[...] = ls

    oh = oh_ref[...]
    bsz = ls.shape[0]
    inv_b = 1.0 / bsz
    inv_t = 1.0 / temp

    # hard cross-entropy (mean over batch) — matches nn.CrossEntropyLoss
    m_s = jnp.max(ls, axis=-1, keepdims=True)
    lse_s = jnp.log(jnp.sum(jnp.exp(ls - m_s), axis=-1, keepdims=True)) + m_s
    per_ex = lse_s - jnp.sum(oh * ls, axis=-1, keepdims=True)        # [B, 1]
    hard_ref[...] = jnp.sum(per_ex, axis=0, keepdims=True) * inv_b

    # soft KD: F.kl_div(log_softmax(ls/T), softmax(lt/T), 'batchmean') * T^2
    ls_t = ls * inv_t
    lt_t = lt * inv_t
    m_st = m_s * inv_t                       # max(x/T) == max(x)/T: reuse CE max
    m_tt = jnp.max(lt_t, axis=-1, keepdims=True)
    log_ps = ls_t - (jnp.log(jnp.sum(jnp.exp(ls_t - m_st), axis=-1,
                                     keepdims=True)) + m_st)
    log_pt = lt_t - (jnp.log(jnp.sum(jnp.exp(lt_t - m_tt), axis=-1,
                                     keepdims=True)) + m_tt)
    pt = jnp.exp(log_pt)
    kl_rows = jnp.sum(pt * (log_pt - log_ps), axis=-1, keepdims=True)  # [B, 1]
    soft_ref[...] = jnp.sum(kl_rows, axis=0, keepdims=True) * (inv_b * temp * temp)


def pallas_head_kd(feat, pm, w, b, onehot, temp):
    Nn, BHW, C = feat.shape
    B, NCLS = onehot.shape
    return pl.pallas_call(
        functools.partial(_head_kd_kernel, temp=float(temp)),
        out_shape=(jax.ShapeDtypeStruct((B, NCLS), jnp.float32),
                   jax.ShapeDtypeStruct((1, 1), jnp.float32),
                   jax.ShapeDtypeStruct((1, 1), jnp.float32)),
        grid=(1,),
        in_specs=[pl.BlockSpec((Nn, BHW, C), lambda i: (0, 0, 0)),
                  pl.BlockSpec((B, BHW), lambda i: (0, 0)),
                  pl.BlockSpec((Nn, C, NCLS), lambda i: (0, 0, 0)),
                  pl.BlockSpec((Nn, 1, NCLS), lambda i: (0, 0, 0)),
                  pl.BlockSpec((B, NCLS), lambda i: (0, 0))],
        out_specs=(pl.BlockSpec((B, NCLS), lambda i: (0, 0)),
                   pl.BlockSpec((1, 1), lambda i: (0, 0)),
                   pl.BlockSpec((1, 1), lambda i: (0, 0))),
        compiler_params=pltpu.CompilerParams(
            dimension_semantics=("arbitrary",),
            vmem_limit_bytes=VMEM_LIMIT_BYTES),
    )(feat, pm, w, b, onehot)


def _wmse_kernel(a_ref, b_ref, w_ref, o_ref):
    @pl.when(pl.program_id(0) == 0)
    def _():
        o_ref[...] = jnp.zeros_like(o_ref)
    d = a_ref[...].astype(jnp.float32) - b_ref[...].astype(jnp.float32)
    part = jnp.sum(w_ref[...] * d * d, axis=-1, keepdims=True)   # [tile_r, 1]
    o_ref[...] += jnp.sum(part, axis=0, keepdims=True)           # accumulate


def pallas_weighted_sq_sum(a, b, w, tile_r):
    R, L = a.shape
    return pl.pallas_call(
        _wmse_kernel,
        out_shape=jax.ShapeDtypeStruct((1, 1), jnp.float32),
        grid=(R // tile_r,),
        in_specs=[pl.BlockSpec((tile_r, L), lambda i: (i, 0)),
                  pl.BlockSpec((tile_r, L), lambda i: (i, 0)),
                  pl.BlockSpec((tile_r, L), lambda i: (i, 0))],
        out_specs=pl.BlockSpec((1, 1), lambda i: (0, 0)),
        compiler_params=pltpu.CompilerParams(
            dimension_semantics=("arbitrary",),
            vmem_limit_bytes=VMEM_LIMIT_BYTES),
    )(a, b, w)


# ------------------------------ JAX glue ------------------------------------

def _pad_axis_to(x, axis, mult):
    n = x.shape[axis]
    n_pad = -(-n // mult) * mult
    if n_pad == n:
        return x
    pads = [(0, 0)] * x.ndim
    pads[axis] = (0, n_pad - n)
    return jnp.pad(x, pads)


def _im2col_cm(x, ksize, stride, pad):
    # x: [Nn, C, B, H, W] (channel-major) -> patches_T [Nn, K*K*C, B*Ho*Wo]
    Nn, C, B, H, W = x.shape
    xp = jnp.pad(x, ((0, 0), (0, 0), (0, 0), (pad, pad), (pad, pad)))
    Ho = (H + 2 * pad - ksize) // stride + 1
    Wo = (W + 2 * pad - ksize) // stride + 1
    taps = []
    for i in range(ksize):
        for j in range(ksize):
            taps.append(xp[:, :, :, i:i + stride * Ho:stride,
                           j:j + stride * Wo:stride])
    p = jnp.concatenate(taps, axis=1)              # [Nn, 9C, B, Ho, Wo]
    return p.reshape(Nn, ksize * ksize * C, B * Ho * Wo), Ho, Wo


def dual_conv3x3_relu(x_cm, w_stacked, stride):
    # x_cm: [2, Cin, B, H, W]; w_stacked: [2, Cout, Cin, 3, 3] (PyTorch layout)
    Nn, Cout, Cin, K, _ = w_stacked.shape
    # K ordering must match im2col tap order: (i*3 + j)*Cin + ci
    w_mat = jnp.transpose(w_stacked, (0, 1, 3, 4, 2)).reshape(Nn, Cout, K * K * Cin)
    w_mat = _pad_axis_to(w_mat, 2, 16).astype(COMPUTE_DTYPE)
    patches, Ho, Wo = _im2col_cm(x_cm, K, stride, pad=1)
    patches = _pad_axis_to(patches, 1, 16).astype(COMPUTE_DTYPE)
    out = pallas_dual_conv_matmul(w_mat, patches, apply_relu=True)  # [2, Cout, M]
    B = x_cm.shape[2]
    return out.reshape(Nn, Cout, B, Ho, Wo)


# ---------------------------- synthetic ResNet -------------------------------

def init_resnet_params(key):
    ks = jax.random.split(key, len(STAGE_SPECS) + 2)
    params = {
        "embed": jax.random.normal(ks[0], (EMBED_COUT, EMBED_CIN, 3, 3),
                                   jnp.float32) * (1.0 / (9 * EMBED_CIN) ** 0.5)
    }
    for idx, (name, cin, cout, _) in enumerate(STAGE_SPECS):
        params[name] = (jax.random.normal(ks[idx + 1], (cout, cin, 3, 3),
                                          jnp.float32) * (1.0 / (9 * cin) ** 0.5))
    c_last = STAGE_SPECS[-1][2]
    params["fc_w"] = (jax.random.normal(ks[-1], (c_last, NUM_CLASSES), jnp.float32)
                      * (1.0 / c_last ** 0.5))
    params["fc_b"] = jnp.zeros((1, NUM_CLASSES), jnp.float32)
    return params


def dual_resnet_forward(params_s, params_t, pixel_values_nchw):
    # NCHW -> channel-major [C, B, H, W], replicated over net = {student, teacher}.
    x = jnp.transpose(pixel_values_nchw, (1, 0, 2, 3))[None]
    x = jnp.broadcast_to(x, (2,) + x.shape[1:])
    feats = {}
    h = dual_conv3x3_relu(x, jnp.stack([params_s["embed"], params_t["embed"]]),
                          stride=1)
    for name, _cin, _cout, stride in STAGE_SPECS:
        w = jnp.stack([params_s[name], params_t[name]])
        h = dual_conv3x3_relu(h, w, stride=stride)
        feats[name] = h                    # forward-hook equivalent: [2, C, B, Ho, Wo]
    return h, feats


# ----------------------------- distiller forward -----------------------------

def dual_head_and_kd(h_last, params_s, params_t, onehot, temp):
    Nn, C, B, Hh, Wh = h_last.shape
    HW = Hh * Wh
    feat = jnp.transpose(h_last.reshape(Nn, C, B, HW),
                         (0, 2, 3, 1)).reshape(Nn, B * HW, C)      # [2, B*HW, C]
    pm = jnp.repeat(jnp.eye(B, dtype=jnp.float32), HW, axis=1) * (1.0 / HW)
    w = jnp.stack([params_s["fc_w"], params_t["fc_w"]])            # [2, C, NCLS]
    bias = jnp.stack([params_s["fc_b"], params_t["fc_b"]])         # [2, 1, NCLS]
    logits_s, hard, soft = pallas_head_kd(feat, pm, w, bias, onehot, temp)
    return logits_s, hard[0, 0], soft[0, 0]


def feature_mse_loss(feats):
    # loss_feat = mean over stages of per-stage MSE(f_s, f_t); all stages packed
    # into ONE lane-dense [R, 128] slab with per-element weights
    # 1/(numel_stage * n_stages); zero-padded tail gets weight 0.
    n_stage = len(feats)
    parts_a, parts_b, parts_w = [], [], []
    for name in feats:
        f = feats[name]
        fs = f[0].reshape(-1)
        ft = jax.lax.stop_gradient(f[1]).reshape(-1)   # teacher: no grad
        n = fs.shape[0]
        parts_a.append(fs)
        parts_b.append(ft)
        parts_w.append(jnp.full((n,), 1.0 / (n * n_stage), jnp.float32))
    a = jnp.concatenate(parts_a)
    b = jnp.concatenate(parts_b)
    w = jnp.concatenate(parts_w)
    lanes = 128
    rows = -(-a.shape[0] // lanes)
    tile_r = min(256, -(-rows // 8) * 8)
    rows_p = -(-rows // tile_r) * tile_r
    pad = rows_p * lanes - a.shape[0]
    a = jnp.pad(a, (0, pad)).reshape(rows_p, lanes)
    b = jnp.pad(b, (0, pad)).reshape(rows_p, lanes)
    w = jnp.pad(w, (0, pad)).reshape(rows_p, lanes)
    return pallas_weighted_sq_sum(a, b, w, tile_r)[0, 0]


def distiller_forward(student_params, teacher_params, pixel_values, labels,
                      temp=4.0, alpha=0.5, beta=0.5):
    # Student and teacher run fused in the same Pallas calls (teacher is forward
    # only; stop_gradient semantics only matter for backward, not implemented here).
    h_last, feats = dual_resnet_forward(student_params, teacher_params,
                                        pixel_values)
    onehot = jax.nn.one_hot(labels, NUM_CLASSES, dtype=jnp.float32)
    logits_s, loss_hard, loss_soft = dual_head_and_kd(
        h_last, student_params, teacher_params, onehot, temp)

    # TODO(synk): the F.interpolate(bilinear) + channel-pad branch for mismatched
    # teacher/student feature shapes is not implemented; student & teacher share
    # stage shapes here (the `f_s.shape == f_t.shape` path of the PyTorch module).
    loss_feat = feature_mse_loss(feats)

    loss = (alpha * loss_hard
            + (1.0 - alpha - beta) * loss_soft
            + beta * loss_feat)
    return {"loss": loss, "logits": logits_s}


# ---------------------------------- main --------------------------------------

if __name__ == "__main__":
    key = jax.random.PRNGKey(0)
    k_img, k_lab, k_s, k_t = jax.random.split(key, 4)

    pixel_values = jax.random.normal(k_img, (2, 3, 16, 16), jnp.float32)   # NCHW
    labels = jax.random.randint(k_lab, (2,), 0, NUM_CLASSES)

    student_params = init_resnet_params(k_s)
    teacher_params = init_resnet_params(k_t)

    fwd = jax.jit(functools.partial(distiller_forward,
                                    temp=4.0, alpha=0.5, beta=0.5))
    out = fwd(student_params, teacher_params, pixel_values, labels)
    jax.block_until_ready(out)
    assert out["logits"].shape == (2, NUM_CLASSES)
    assert out["loss"].shape == ()
    print("KERNEL_OK")
</pallas_src>

<mosaic_0001>
module attributes {stable_mosaic.version = 11 : i64} {
  func.func @_dual_conv_kernel(%arg0: i32, %arg1: i32, %arg2: memref<1x8x32xbf16, #tpu.memory_space<vmem>>, %arg3: memref<1x32x512xbf16, #tpu.memory_space<vmem>>, %arg4: memref<1x8x512xbf16, #tpu.memory_space<vmem>>) attributes {dimension_semantics = [#tpu.dimension_semantics<parallel>, #tpu.dimension_semantics<parallel>], iteration_bounds = array<i64: 2, 1>, scalar_prefetch = 0 : i64, scratch_operands = 0 : i64, tpu.core_type = #tpu.core_type<tc>, window_params = [{transform_indices = @transform_0, window_bounds = array<i64: 1, 8, 32>}, {transform_indices = @transform_1, window_bounds = array<i64: 1, 32, 512>}, {transform_indices = @transform_2, window_bounds = array<i64: 1, 8, 512>}]} {
    %c0 = arith.constant 0 : index
    %c0_0 = arith.constant 0 : index
    %c0_1 = arith.constant 0 : index
    %0 = vector.load %arg2[%c0, %c0_0, %c0_1] : memref<1x8x32xbf16, #tpu.memory_space<vmem>>, vector<1x8x32xbf16>
    %1 = vector.shape_cast %0 : vector<1x8x32xbf16> to vector<8x32xbf16>
    %c0_2 = arith.constant 0 : index
    %c0_3 = arith.constant 0 : index
    %c0_4 = arith.constant 0 : index
    %2 = vector.load %arg3[%c0_2, %c0_3, %c0_4] : memref<1x32x512xbf16, #tpu.memory_space<vmem>>, vector<1x32x512xbf16>
    %3 = vector.shape_cast %2 : vector<1x32x512xbf16> to vector<32x512xbf16>
    %cst = arith.constant dense<0.000000e+00> : vector<8x512xf32>
    %4 = tpu.matmul %1, %3, %cst {dimension_numbers = #tpu.dot_dimension_numbers<[1], [0], [0], [1], [0, 0, 1, 1], [], []>} : vector<8x32xbf16>, vector<32x512xbf16>, vector<8x512xf32> -> vector<8x512xf32>
    %cst_5 = arith.constant 0.000000e+00 : f32
    %5 = vector.broadcast %cst_5 : f32 to vector<8x512xf32>
    %6 = arith.maximumf %4, %5 : vector<8x512xf32>
    %7 = arith.truncf %6 : vector<8x512xf32> to vector<8x512xbf16>
    %c0_6 = arith.constant 0 : index
    %c0_7 = arith.constant 0 : index
    %c0_8 = arith.constant 0 : index
    %8 = vector.load %arg4[%c0_6, %c0_7, %c0_8] : memref<1x8x512xbf16, #tpu.memory_space<vmem>>, vector<1x8x512xbf16>
    %9 = vector.shape_cast %8 : vector<1x8x512xbf16> to vector<8x512xbf16>
    %10 = vector.shape_cast %7 : vector<8x512xbf16> to vector<1x8x512xbf16>
    tpu.vector_store %arg4[%c0_6, %c0_7, %c0_8], %10 {strides = array<i32>} : memref<1x8x512xbf16, #tpu.memory_space<vmem>>, vector<1x8x512xbf16>,
    return
  }
  func.func @transform_0(%arg0: i32, %arg1: i32) -> (i32, i32, i32) {
    %c0_i32 = arith.constant 0 : i32
    %c0_i32_0 = arith.constant 0 : i32
    %c0_i32_1 = arith.constant 0 : i32
    return %arg0, %c0_i32, %c0_i32_0 : i32, i32, i32
  }
  func.func @transform_1(%arg0: i32, %arg1: i32) -> (i32, i32, i32) {
    %c0_i32 = arith.constant 0 : i32
    %c0_i32_0 = arith.constant 0 : i32
    return %arg0, %c0_i32, %arg1 : i32, i32, i32
  }
  func.func @transform_2(%arg0: i32, %arg1: i32) -> (i32, i32, i32) {
    %c0_i32 = arith.constant 0 : i32
    %c0_i32_0 = arith.constant 0 : i32
    return %arg0, %c0_i32, %arg1 : i32, i32, i32
  }
}

module attributes {stable_mosaic.version = 11 : i64} {
  func.func @_dual_conv_kernel(%arg0: i32, %arg1: i32, %arg2: memref<1x8x80xbf16, #tpu.memory_space<vmem>>, %arg3: memref<1x80x512xbf16, #tpu.memory_space<vmem>>, %arg4: memref<1x8x512xbf16, #tpu.memory_space<vmem>>) attributes {dimension_semantics = [#tpu.dimension_semantics<parallel>, #tpu.dimension_semantics<parallel>], iteration_bounds = array<i64: 2, 1>, scalar_prefetch = 0 : i64, scratch_operands = 0 : i64, tpu.core_type = #tpu.core_type<tc>, window_params = [{transform_indices = @transform_0, window_bounds = array<i64: 1, 8, 80>}, {transform_indices = @transform_1, window_bounds = array<i64: 1, 80, 512>}, {transform_indices = @transform_2, window_bounds = array<i64: 1, 8, 512>}]} {
    %c0 = arith.constant 0 : index
    %c0_0 = arith.constant 0 : index
    %c0_1 = arith.constant 0 : index
    %0 = vector.load %arg2[%c0, %c0_0, %c0_1] : memref<1x8x80xbf16, #tpu.memory_space<vmem>>, vector<1x8x80xbf16>
    %1 = vector.shape_cast %0 : vector<1x8x80xbf16> to vector<8x80xbf16>
    %c0_2 = arith.constant 0 : index
    %c0_3 = arith.constant 0 : index
    %c0_4 = arith.constant 0 : index
    %2 = vector.load %arg3[%c0_2, %c0_3, %c0_4] : memref<1x80x512xbf16, #tpu.memory_space<vmem>>, vector<1x80x512xbf16>
    %3 = vector.shape_cast %2 : vector<1x80x512xbf16> to vector<80x512xbf16>
    %cst = arith.constant dense<0.000000e+00> : vector<8x512xf32>
    %4 = tpu.matmul %1, %3, %cst {dimension_numbers = #tpu.dot_dimension_numbers<[1], [0], [0], [1], [0, 0, 1, 1], [], []>} : vector<8x80xbf16>, vector<80x512xbf16>, vector<8x512xf32> -> vector<8x512xf32>
    %cst_5 = arith.constant 0.000000e+00 : f32
    %5 = vector.broadcast %cst_5 : f32 to vector<8x512xf32>
    %6 = arith.maximumf %4, %5 : vector<8x512xf32>
    %7 = arith.truncf %6 : vector<8x512xf32> to vector<8x512xbf16>
    %c0_6 = arith.constant 0 : index
    %c0_7 = arith.constant 0 : index
    %c0_8 = arith.constant 0 : index
    %8 = vector.load %arg4[%c0_6, %c0_7, %c0_8] : memref<1x8x512xbf16, #tpu.memory_space<vmem>>, vector<1x8x512xbf16>
    %9 = vector.shape_cast %8 : vector<1x8x512xbf16> to vector<8x512xbf16>
    %10 = vector.shape_cast %7 : vector<8x512xbf16> to vector<1x8x512xbf16>
    tpu.vector_store %arg4[%c0_6, %c0_7, %c0_8], %10 {strides = array<i32>} : memref<1x8x512xbf16, #tpu.memory_space<vmem>>, vector<1x8x512xbf16>,
    return
  }
  func.func @transform_0(%arg0: i32, %arg1: i32) -> (i32, i32, i32) {
    %c0_i32 = arith.constant 0 : i32
    %c0_i32_0 = arith.constant 0 : i32
    %c0_i32_1 = arith.constant 0 : i32
    return %arg0, %c0_i32, %c0_i32_0 : i32, i32, i32
  }
  func.func @transform_1(%arg0: i32, %arg1: i32) -> (i32, i32, i32) {
    %c0_i32 = arith.constant 0 : i32
    %c0_i32_0 = arith.constant 0 : i32
    return %arg0, %c0_i32, %arg1 : i32, i32, i32
  }
  func.func @transform_2(%arg0: i32, %arg1: i32) -> (i32, i32, i32) {
    %c0_i32 = arith.constant 0 : i32
    %c0_i32_0 = arith.constant 0 : i32
    return %arg0, %c0_i32, %arg1 : i32, i32, i32
  }
}

module attributes {stable_mosaic.version = 11 : i64} {
  func.func @_dual_conv_kernel(%arg0: i32, %arg1: i32, %arg2: memref<1x16x80xbf16, #tpu.memory_space<vmem>>, %arg3: memref<1x80x128xbf16, #tpu.memory_space<vmem>>, %arg4: memref<1x16x128xbf16, #tpu.memory_space<vmem>>) attributes {dimension_semantics = [#tpu.dimension_semantics<parallel>, #tpu.dimension_semantics<parallel>], iteration_bounds = array<i64: 2, 1>, scalar_prefetch = 0 : i64, scratch_operands = 0 : i64, tpu.core_type = #tpu.core_type<tc>, window_params = [{transform_indices = @transform_0, window_bounds = array<i64: 1, 16, 80>}, {transform_indices = @transform_1, window_bounds = array<i64: 1, 80, 128>}, {transform_indices = @transform_2, window_bounds = array<i64: 1, 16, 128>}]} {
    %c0 = arith.constant 0 : index
    %c0_0 = arith.constant 0 : index
    %c0_1 = arith.constant 0 : index
    %0 = vector.load %arg2[%c0, %c0_0, %c0_1] : memref<1x16x80xbf16, #tpu.memory_space<vmem>>, vector<1x16x80xbf16>
    %1 = vector.shape_cast %0 : vector<1x16x80xbf16> to vector<16x80xbf16>
    %c0_2 = arith.constant 0 : index
    %c0_3 = arith.constant 0 : index
    %c0_4 = arith.constant 0 : index
    %2 = vector.load %arg3[%c0_2, %c0_3, %c0_4] : memref<1x80x128xbf16, #tpu.memory_space<vmem>>, vector<1x80x128xbf16>
    %3 = vector.shape_cast %2 : vector<1x80x128xbf16> to vector<80x128xbf16>
    %cst = arith.constant dense<0.000000e+00> : vector<16x128xf32>
    %4 = tpu.matmul %1, %3, %cst {dimension_numbers = #tpu.dot_dimension_numbers<[1], [0], [0], [1], [0, 0, 1, 1], [], []>} : vector<16x80xbf16>, vector<80x128xbf16>, vector<16x128xf32> -> vector<16x128xf32>
    %cst_5 = arith.constant 0.000000e+00 : f32
    %5 = vector.broadcast %cst_5 : f32 to vector<16x128xf32>
    %6 = arith.maximumf %4, %5 : vector<16x128xf32>
    %7 = arith.truncf %6 : vector<16x128xf32> to vector<16x128xbf16>
    %c0_6 = arith.constant 0 : index
    %c0_7 = arith.constant 0 : index
    %c0_8 = arith.constant 0 : index
    %8 = vector.load %arg4[%c0_6, %c0_7, %c0_8] : memref<1x16x128xbf16, #tpu.memory_space<vmem>>, vector<1x16x128xbf16>
    %9 = vector.shape_cast %8 : vector<1x16x128xbf16> to vector<16x128xbf16>
    %10 = vector.shape_cast %7 : vector<16x128xbf16> to vector<1x16x128xbf16>
    tpu.vector_store %arg4[%c0_6, %c0_7, %c0_8], %10 {strides = array<i32>} : memref<1x16x128xbf16, #tpu.memory_space<vmem>>, vector<1x16x128xbf16>,
    return
  }
  func.func @transform_0(%arg0: i32, %arg1: i32) -> (i32, i32, i32) {
    %c0_i32 = arith.constant 0 : i32
    %c0_i32_0 = arith.constant 0 : i32
    %c0_i32_1 = arith.constant 0 : i32
    return %arg0, %c0_i32, %c0_i32_0 : i32, i32, i32
  }
  func.func @transform_1(%arg0: i32, %arg1: i32) -> (i32, i32, i32) {
    %c0_i32 = arith.constant 0 : i32
    %c0_i32_0 = arith.constant 0 : i32
    return %arg0, %c0_i32, %arg1 : i32, i32, i32
  }
  func.func @transform_2(%arg0: i32, %arg1: i32) -> (i32, i32, i32) {
    %c0_i32 = arith.constant 0 : i32
    %c0_i32_0 = arith.constant 0 : i32
    return %arg0, %c0_i32, %arg1 : i32, i32, i32
  }
}

module attributes {stable_mosaic.version = 11 : i64} {
  func.func @_dual_conv_kernel(%arg0: i32, %arg1: i32, %arg2: memref<1x32x144xbf16, #tpu.memory_space<vmem>>, %arg3: memref<1x144x32xbf16, #tpu.memory_space<vmem>>, %arg4: memref<1x32x32xbf16, #tpu.memory_space<vmem>>) attributes {dimension_semantics = [#tpu.dimension_semantics<parallel>, #tpu.dimension_semantics<parallel>], iteration_bounds = array<i64: 2, 1>, scalar_prefetch = 0 : i64, scratch_operands = 0 : i64, tpu.core_type = #tpu.core_type<tc>, window_params = [{transform_indices = @transform_0, window_bounds = array<i64: 1, 32, 144>}, {transform_indices = @transform_1, window_bounds = array<i64: 1, 144, 32>}, {transform_indices = @transform_2, window_bounds = array<i64: 1, 32, 32>}]} {
    %c0 = arith.constant 0 : index
    %c0_0 = arith.constant 0 : index
    %c0_1 = arith.constant 0 : index
    %0 = vector.load %arg2[%c0, %c0_0, %c0_1] : memref<1x32x144xbf16, #tpu.memory_space<vmem>>, vector<1x32x144xbf16>
    %1 = vector.shape_cast %0 : vector<1x32x144xbf16> to vector<32x144xbf16>
    %c0_2 = arith.constant 0 : index
    %c0_3 = arith.constant 0 : index
    %c0_4 = arith.constant 0 : index
    %2 = vector.load %arg3[%c0_2, %c0_3, %c0_4] : memref<1x144x32xbf16, #tpu.memory_space<vmem>>, vector<1x144x32xbf16>
    %3 = vector.shape_cast %2 : vector<1x144x32xbf16> to vector<144x32xbf16>
    %cst = arith.constant dense<0.000000e+00> : vector<32x32xf32>
    %4 = tpu.matmul %1, %3, %cst {dimension_numbers = #tpu.dot_dimension_numbers<[1], [0], [0], [1], [0, 0, 1, 1], [], []>} : vector<32x144xbf16>, vector<144x32xbf16>, vector<32x32xf32> -> vector<32x32xf32>
    %cst_5 = arith.constant 0.000000e+00 : f32
    %5 = vector.broadcast %cst_5 : f32 to vector<32x32xf32>
    %6 = arith.maximumf %4, %5 : vector<32x32xf32>
    %7 = arith.truncf %6 : vector<32x32xf32> to vector<32x32xbf16>
    %c0_6 = arith.constant 0 : index
    %c0_7 = arith.constant 0 : index
    %c0_8 = arith.constant 0 : index
    %8 = vector.load %arg4[%c0_6, %c0_7, %c0_8] : memref<1x32x32xbf16, #tpu.memory_space<vmem>>, vector<1x32x32xbf16>
    %9 = vector.shape_cast %8 : vector<1x32x32xbf16> to vector<32x32xbf16>
    %10 = vector.shape_cast %7 : vector<32x32xbf16> to vector<1x32x32xbf16>
    tpu.vector_store %arg4[%c0_6, %c0_7, %c0_8], %10 {strides = array<i32>} : memref<1x32x32xbf16, #tpu.memory_space<vmem>>, vector<1x32x32xbf16>,
    return
  }
  func.func @transform_0(%arg0: i32, %arg1: i32) -> (i32, i32, i32) {
    %c0_i32 = arith.constant 0 : i32
    %c0_i32_0 = arith.constant 0 : i32
    %c0_i32_1 = arith.constant 0 : i32
    return %arg0, %c0_i32, %c0_i32_0 : i32, i32, i32
  }
  func.func @transform_1(%arg0: i32, %arg1: i32) -> (i32, i32, i32) {
    %c0_i32 = arith.constant 0 : i32
    %c0_i32_0 = arith.constant 0 : i32
    return %arg0, %c0_i32, %arg1 : i32, i32, i32
  }
  func.func @transform_2(%arg0: i32, %arg1: i32) -> (i32, i32, i32) {
    %c0_i32 = arith.constant 0 : i32
    %c0_i32_0 = arith.constant 0 : i32
    return %arg0, %c0_i32, %arg1 : i32, i32, i32
  }
}

module attributes {stable_mosaic.version = 11 : i64} {
  func.func @_dual_conv_kernel(%arg0: i32, %arg1: i32, %arg2: memref<1x32x288xbf16, #tpu.memory_space<vmem>>, %arg3: memref<1x288x8xbf16, #tpu.memory_space<vmem>>, %arg4: memref<1x32x8xbf16, #tpu.memory_space<vmem>>) attributes {dimension_semantics = [#tpu.dimension_semantics<parallel>, #tpu.dimension_semantics<parallel>], iteration_bounds = array<i64: 2, 1>, scalar_prefetch = 0 : i64, scratch_operands = 0 : i64, tpu.core_type = #tpu.core_type<tc>, window_params = [{transform_indices = @transform_0, window_bounds = array<i64: 1, 32, 288>}, {transform_indices = @transform_1, window_bounds = array<i64: 1, 288, 8>}, {transform_indices = @transform_2, window_bounds = array<i64: 1, 32, 8>}]} {
    %c0 = arith.constant 0 : index
    %c0_0 = arith.constant 0 : index
    %c0_1 = arith.constant 0 : index
    %0 = vector.load %arg2[%c0, %c0_0, %c0_1] : memref<1x32x288xbf16, #tpu.memory_space<vmem>>, vector<1x32x288xbf16>
    %1 = vector.shape_cast %0 : vector<1x32x288xbf16> to vector<32x288xbf16>
    %c0_2 = arith.constant 0 : index
    %c0_3 = arith.constant 0 : index
    %c0_4 = arith.constant 0 : index
    %2 = vector.load %arg3[%c0_2, %c0_3, %c0_4] : memref<1x288x8xbf16, #tpu.memory_space<vmem>>, vector<1x288x8xbf16>
    %3 = vector.shape_cast %2 : vector<1x288x8xbf16> to vector<288x8xbf16>
    %cst = arith.constant dense<0.000000e+00> : vector<32x8xf32>
    %4 = tpu.matmul %1, %3, %cst {dimension_numbers = #tpu.dot_dimension_numbers<[1], [0], [0], [1], [0, 0, 1, 1], [], []>} : vector<32x288xbf16>, vector<288x8xbf16>, vector<32x8xf32> -> vector<32x8xf32>
    %cst_5 = arith.constant 0.000000e+00 : f32
    %5 = vector.broadcast %cst_5 : f32 to vector<32x8xf32>
    %6 = arith.maximumf %4, %5 : vector<32x8xf32>
    %7 = arith.truncf %6 : vector<32x8xf32> to vector<32x8xbf16>
    %c0_6 = arith.constant 0 : index
    %c0_7 = arith.constant 0 : index
    %c0_8 = arith.constant 0 : index
    %8 = vector.load %arg4[%c0_6, %c0_7, %c0_8] : memref<1x32x8xbf16, #tpu.memory_space<vmem>>, vector<1x32x8xbf16>
    %9 = vector.shape_cast %8 : vector<1x32x8xbf16> to vector<32x8xbf16>
    %10 = vector.shape_cast %7 : vector<32x8xbf16> to vector<1x32x8xbf16>
    tpu.vector_store %arg4[%c0_6, %c0_7, %c0_8], %10 {strides = array<i32>} : memref<1x32x8xbf16, #tpu.memory_space<vmem>>, vector<1x32x8xbf16>,
    return
  }
  func.func @transform_0(%arg0: i32, %arg1: i32) -> (i32, i32, i32) {
    %c0_i32 = arith.constant 0 : i32
    %c0_i32_0 = arith.constant 0 : i32
    %c0_i32_1 = arith.constant 0 : i32
    return %arg0, %c0_i32, %c0_i32_0 : i32, i32, i32
  }
  func.func @transform_1(%arg0: i32, %arg1: i32) -> (i32, i32, i32) {
    %c0_i32 = arith.constant 0 : i32
    %c0_i32_0 = arith.constant 0 : i32
    return %arg0, %c0_i32, %arg1 : i32, i32, i32
  }
  func.func @transform_2(%arg0: i32, %arg1: i32) -> (i32, i32, i32) {
    %c0_i32 = arith.constant 0 : i32
    %c0_i32_0 = arith.constant 0 : i32
    return %arg0, %c0_i32, %arg1 : i32, i32, i32
  }
}

module attributes {stable_mosaic.version = 11 : i64} {
  func.func @_wmse_kernel(%arg0: i32, %arg1: memref<64x128xbf16, #tpu.memory_space<vmem>>, %arg2: memref<64x128xbf16, #tpu.memory_space<vmem>>, %arg3: memref<64x128xf32, #tpu.memory_space<vmem>>, %arg4: memref<1x1xf32, #tpu.memory_space<vmem>>) attributes {dimension_semantics = [#tpu.dimension_semantics<arbitrary>], iteration_bounds = array<i64: 1>, scalar_prefetch = 0 : i64, scratch_operands = 0 : i64, tpu.core_type = #tpu.core_type<tc>, window_params = [{transform_indices = @transform_0, window_bounds = array<i64: 64, 128>}, {transform_indices = @transform_1, window_bounds = array<i64: 64, 128>}, {transform_indices = @transform_2, window_bounds = array<i64: 64, 128>}, {pipeline_mode = #tpu.pipeline_mode<synchronous>, transform_indices = @transform_3, window_bounds = array<i64: 1, 1>}]} {
    %c0_i32 = arith.constant 0 : i32
    %0 = arith.cmpi eq, %arg0, %c0_i32 : i32
    %1 = arith.extui %0 : i1 to i32
    %c0_i32_0 = arith.constant 0 : i32
    %2 = arith.cmpi ne, %1, %c0_i32_0 : i32
    scf.if %2 {
      %cst_11 = arith.constant 0.000000e+00 : f32
      %18 = vector.broadcast %cst_11 : f32 to vector<1x1xf32>
      %c0_12 = arith.constant 0 : index
      %c0_13 = arith.constant 0 : index
      %19 = vector.load %arg4[%c0_12, %c0_13] : memref<1x1xf32, #tpu.memory_space<vmem>>, vector<1x1xf32>
      tpu.vector_store %arg4[%c0_12, %c0_13], %18 {strides = array<i32>} : memref<1x1xf32, #tpu.memory_space<vmem>>, vector<1x1xf32>,
    } else {
    }
    %c0 = arith.constant 0 : index
    %c0_1 = arith.constant 0 : index
    %3 = vector.load %arg1[%c0, %c0_1] : memref<64x128xbf16, #tpu.memory_space<vmem>>, vector<64x128xbf16>
    %4 = arith.extf %3 : vector<64x128xbf16> to vector<64x128xf32>
    %c0_2 = arith.constant 0 : index
    %c0_3 = arith.constant 0 : index
    %5 = vector.load %arg2[%c0_2, %c0_3] : memref<64x128xbf16, #tpu.memory_space<vmem>>, vector<64x128xbf16>
    %6 = arith.extf %5 : vector<64x128xbf16> to vector<64x128xf32>
    %7 = arith.subf %4, %6 : vector<64x128xf32>
    %c0_4 = arith.constant 0 : index
    %c0_5 = arith.constant 0 : index
    %8 = vector.load %arg3[%c0_4, %c0_5] : memref<64x128xf32, #tpu.memory_space<vmem>>, vector<64x128xf32>
    %9 = arith.mulf %8, %7 : vector<64x128xf32>
    %10 = arith.mulf %9, %7 : vector<64x128xf32>
    %cst = arith.constant dense<0.000000e+00> : vector<64xf32>
    %11 = vector.multi_reduction <add>, %10, %cst [1] : vector<64x128xf32> to vector<64xf32>
    %12 = vector.shape_cast %11 : vector<64xf32> to vector<64x1xf32>
    %c0_6 = arith.constant 0 : index
    %c0_7 = arith.constant 0 : index
    %13 = vector.load %arg4[%c0_6, %c0_7] : memref<1x1xf32, #tpu.memory_space<vmem>>, vector<1x1xf32>
    %cst_8 = arith.constant dense<0.000000e+00> : vector<1xf32>
    %14 = vector.multi_reduction <add>, %12, %cst_8 [0] : vector<64x1xf32> to vector<1xf32>
    %15 = vector.shape_cast %14 : vector<1xf32> to vector<1x1xf32>
    %16 = arith.addf %13, %15 : vector<1x1xf32>
    %c0_9 = arith.constant 0 : index
    %c0_10 = arith.constant 0 : index
    %17 = vector.load %arg4[%c0_9, %c0_10] : memref<1x1xf32, #tpu.memory_space<vmem>>, vector<1x1xf32>
    tpu.vector_store %arg4[%c0_9, %c0_10], %16 {strides = array<i32>} : memref<1x1xf32, #tpu.memory_space<vmem>>, vector<1x1xf32>,
    return
  }
  func.func @transform_0(%arg0: i32) -> (i32, i32) {
    %c0_i32 = arith.constant 0 : i32
    %c0_i32_0 = arith.constant 0 : i32
    return %arg0, %c0_i32 : i32, i32
  }
  func.func @transform_1(%arg0: i32) -> (i32, i32) {
    %c0_i32 = arith.constant 0 : i32
    %c0_i32_0 = arith.constant 0 : i32
    return %arg0, %c0_i32 : i32, i32
  }
  func.func @transform_2(%arg0: i32) -> (i32, i32) {
    %c0_i32 = arith.constant 0 : i32
    %c0_i32_0 = arith.constant 0 : i32
    return %arg0, %c0_i32 : i32, i32
  }
  func.func @transform_3(%arg0: i32) -> (i32, i32) {
    %c0_i32 = arith.constant 0 : i32
    %c0_i32_0 = arith.constant 0 : i32
    %c0_i32_1 = arith.constant 0 : i32
    return %c0_i32, %c0_i32_0 : i32, i32
  }
}

module attributes {stable_mosaic.version = 11 : i64} {
  func.func @_head_kd_kernel(%arg0: i32, %arg1: memref<2x8x32xbf16, #tpu.memory_space<vmem>>, %arg2: memref<2x8xf32, #tpu.memory_space<vmem>>, %arg3: memref<2x32x8xf32, #tpu.memory_space<vmem>>, %arg4: memref<2x1x8xf32, #tpu.memory_space<vmem>>, %arg5: memref<2x8xf32, #tpu.memory_space<vmem>>, %arg6: memref<2x8xf32, #tpu.memory_space<vmem>>, %arg7: memref<1x1xf32, #tpu.memory_space<vmem>>, %arg8: memref<1x1xf32, #tpu.memory_space<vmem>>) attributes {dimension_semantics = [#tpu.dimension_semantics<arbitrary>], iteration_bounds = array<i64: 1>, scalar_prefetch = 0 : i64, scratch_operands = 0 : i64, tpu.core_type = #tpu.core_type<tc>, window_params = [{pipeline_mode = #tpu.pipeline_mode<synchronous>, transform_indices = @transform_0, window_bounds = array<i64: 2, 8, 32>}, {pipeline_mode = #tpu.pipeline_mode<synchronous>, transform_indices = @transform_1, window_bounds = array<i64: 2, 8>}, {pipeline_mode = #tpu.pipeline_mode<synchronous>, transform_indices = @transform_2, window_bounds = array<i64: 2, 32, 8>}, {pipeline_mode = #tpu.pipeline_mode<synchronous>, transform_indices = @transform_3, window_bounds = array<i64: 2, 1, 8>}, {pipeline_mode = #tpu.pipeline_mode<synchronous>, transform_indices = @transform_4, window_bounds = array<i64: 2, 8>}, {pipeline_mode = #tpu.pipeline_mode<synchronous>, transform_indices = @transform_5, window_bounds = array<i64: 2, 8>}, {pipeline_mode = #tpu.pipeline_mode<synchronous>, transform_indices = @transform_6, window_bounds = array<i64: 1, 1>}, {pipeline_mode = #tpu.pipeline_mode<synchronous>, transform_indices = @transform_7, window_bounds = array<i64: 1, 1>}]} {
    %c0 = arith.constant 0 : index
    %c0_0 = arith.constant 0 : index
    %0 = vector.load %arg2[%c0, %c0_0] : memref<2x8xf32, #tpu.memory_space<vmem>>, vector<2x8xf32>
    %c0_1 = arith.constant 0 : index
    %c0_2 = arith.constant 0 : index
    %c0_3 = arith.constant 0 : index
    %1 = vector.load %arg1[%c0_1, %c0_2, %c0_3] : memref<2x8x32xbf16, #tpu.memory_space<vmem>>, vector<1x8x32xbf16>
    %2 = vector.shape_cast %1 : vector<1x8x32xbf16> to vector<8x32xbf16>
    %3 = arith.extf %2 : vector<8x32xbf16> to vector<8x32xf32>
    %cst = arith.constant dense<0.000000e+00> : vector<2x32xf32>
    %4 = tpu.matmul %0, %3, %cst {dimension_numbers = #tpu.dot_dimension_numbers<[1], [0], [0], [1], [0, 0, 1, 1], [], []>} : vector<2x8xf32>, vector<8x32xf32>, vector<2x32xf32> -> vector<2x32xf32>
    %c1 = arith.constant 1 : index
    %c0_4 = arith.constant 0 : index
    %c0_5 = arith.constant 0 : index
    %5 = vector.load %arg1[%c1, %c0_4, %c0_5] : memref<2x8x32xbf16, #tpu.memory_space<vmem>>, vector<1x8x32xbf16>
    %6 = vector.shape_cast %5 : vector<1x8x32xbf16> to vector<8x32xbf16>
    %7 = arith.extf %6 : vector<8x32xbf16> to vector<8x32xf32>
    %cst_6 = arith.constant dense<0.000000e+00> : vector<2x32xf32>
    %8 = tpu.matmul %0, %7, %cst_6 {dimension_numbers = #tpu.dot_dimension_numbers<[1], [0], [0], [1], [0, 0, 1, 1], [], []>} : vector<2x8xf32>, vector<8x32xf32>, vector<2x32xf32> -> vector<2x32xf32>
    %c0_7 = arith.constant 0 : index
    %c0_8 = arith.constant 0 : index
    %c0_9 = arith.constant 0 : index
    %9 = vector.load %arg3[%c0_7, %c0_8, %c0_9] : memref<2x32x8xf32, #tpu.memory_space<vmem>>, vector<1x32x8xf32>
    %10 = vector.shape_cast %9 : vector<1x32x8xf32> to vector<32x8xf32>
    %cst_10 = arith.constant dense<0.000000e+00> : vector<2x8xf32>
    %11 = tpu.matmul %4, %10, %cst_10 {dimension_numbers = #tpu.dot_dimension_numbers<[1], [0], [0], [1], [0, 0, 1, 1], [], []>} : vector<2x32xf32>, vector<32x8xf32>, vector<2x8xf32> -> vector<2x8xf32>
    %c0_11 = arith.constant 0 : index
    %c0_12 = arith.constant 0 : index
    %c0_13 = arith.constant 0 : index
    %12 = vector.load %arg4[%c0_11, %c0_12, %c0_13] : memref<2x1x8xf32, #tpu.memory_space<vmem>>, vector<1x1x8xf32>
    %13 = vector.shape_cast %12 : vector<1x1x8xf32> to vector<1x8xf32>
    %14 = vector.broadcast %13 : vector<1x8xf32> to vector<2x8xf32>
    %15 = arith.addf %11, %14 : vector<2x8xf32>
    %c1_14 = arith.constant 1 : index
    %c0_15 = arith.constant 0 : index
    %c0_16 = arith.constant 0 : index
    %16 = vector.load %arg3[%c1_14, %c0_15, %c0_16] : memref<2x32x8xf32, #tpu.memory_space<vmem>>, vector<1x32x8xf32>
    %17 = vector.shape_cast %16 : vector<1x32x8xf32> to vector<32x8xf32>
    %cst_17 = arith.constant dense<0.000000e+00> : vector<2x8xf32>
    %18 = tpu.matmul %8, %17, %cst_17 {dimension_numbers = #tpu.dot_dimension_numbers<[1], [0], [0], [1], [0, 0, 1, 1], [], []>} : vector<2x32xf32>, vector<32x8xf32>, vector<2x8xf32> -> vector<2x8xf32>
    %c1_18 = arith.constant 1 : index
    %c0_19 = arith.constant 0 : index
    %c0_20 = arith.constant 0 : index
    %19 = vector.load %arg4[%c1_18, %c0_19, %c0_20] : memref<2x1x8xf32, #tpu.memory_space<vmem>>, vector<1x1x8xf32>
    %20 = vector.shape_cast %19 : vector<1x1x8xf32> to vector<1x8xf32>
    %21 = vector.broadcast %20 : vector<1x8xf32> to vector<2x8xf32>
    %22 = arith.addf %18, %21 : vector<2x8xf32>
    %c0_21 = arith.constant 0 : index
    %c0_22 = arith.constant 0 : index
    %23 = vector.load %arg6[%c0_21, %c0_22] : memref<2x8xf32, #tpu.memory_space<vmem>>, vector<2x8xf32>
    tpu.vector_store %arg6[%c0_21, %c0_22], %15 {strides = array<i32>} : memref<2x8xf32, #tpu.memory_space<vmem>>, vector<2x8xf32>,
    %c0_23 = arith.constant 0 : index
    %c0_24 = arith.constant 0 : index
    %24 = vector.load %arg5[%c0_23, %c0_24] : memref<2x8xf32, #tpu.memory_space<vmem>>, vector<2x8xf32>
    %cst_25 = arith.constant dense<0xFF800000> : vector<2xf32>
    %25 = vector.multi_reduction <maximumf>, %15, %cst_25 [1] : vector<2x8xf32> to vector<2xf32>
    %26 = vector.shape_cast %25 : vector<2xf32> to vector<2x1xf32>
    %27 = vector.broadcast %26 : vector<2x1xf32> to vector<2x8xf32>
    %28 = arith.subf %15, %27 : vector<2x8xf32>
    %29 = math.exp %28 : vector<2x8xf32>
    %cst_26 = arith.constant dense<0.000000e+00> : vector<2xf32>
    %30 = vector.multi_reduction <add>, %29, %cst_26 [1] : vector<2x8xf32> to vector<2xf32>
    %31 = vector.shape_cast %30 : vector<2xf32> to vector<2x1xf32>
    %32 = math.log %31 : vector<2x1xf32>
    %33 = arith.addf %32, %26 : vector<2x1xf32>
    %34 = arith.mulf %24, %15 : vector<2x8xf32>
    %cst_27 = arith.constant dense<0.000000e+00> : vector<2xf32>
    %35 = vector.multi_reduction <add>, %34, %cst_27 [1] : vector<2x8xf32> to vector<2xf32>
    %36 = vector.shape_cast %35 : vector<2xf32> to vector<2x1xf32>
    %37 = arith.subf %33, %36 : vector<2x1xf32>
    %cst_28 = arith.constant dense<0.000000e+00> : vector<1xf32>
    %38 = vector.multi_reduction <add>, %37, %cst_28 [0] : vector<2x1xf32> to vector<1xf32>
    %39 = vector.shape_cast %38 : vector<1xf32> to vector<1x1xf32>
    %cst_29 = arith.constant 5.000000e-01 : f32
    %40 = vector.broadcast %cst_29 : f32 to vector<1x1xf32>
    %41 = arith.mulf %39, %40 : vector<1x1xf32>
    %c0_30 = arith.constant 0 : index
    %c0_31 = arith.constant 0 : index
    %42 = vector.load %arg7[%c0_30, %c0_31] : memref<1x1xf32, #tpu.memory_space<vmem>>, vector<1x1xf32>
    tpu.vector_store %arg7[%c0_30, %c0_31], %41 {strides = array<i32>} : memref<1x1xf32, #tpu.memory_space<vmem>>, vector<1x1xf32>,
    %cst_32 = arith.constant 2.500000e-01 : f32
    %43 = vector.broadcast %cst_32 : f32 to vector<2x8xf32>
    %44 = arith.mulf %15, %43 : vector<2x8xf32>
    %cst_33 = arith.constant 2.500000e-01 : f32
    %45 = vector.broadcast %cst_33 : f32 to vector<2x8xf32>
    %46 = arith.mulf %22, %45 : vector<2x8xf32>
    %cst_34 = arith.constant 2.500000e-01 : f32
    %47 = vector.broadcast %cst_34 : f32 to vector<2x1xf32>
    %48 = arith.mulf %26, %47 : vector<2x1xf32>
    %cst_35 = arith.constant dense<0xFF800000> : vector<2xf32>
    %49 = vector.multi_reduction <maximumf>, %46, %cst_35 [1] : vector<2x8xf32> to vector<2xf32>
    %50 = vector.shape_cast %49 : vector<2xf32> to vector<2x1xf32>
    %51 = vector.broadcast %48 : vector<2x1xf32> to vector<2x8xf32>
    %52 = arith.subf %44, %51 : vector<2x8xf32>
    %53 = math.exp %52 : vector<2x8xf32>
    %cst_36 = arith.constant dense<0.000000e+00> : vector<2xf32>
    %54 = vector.multi_reduction <add>, %53, %cst_36 [1] : vector<2x8xf32> to vector<2xf32>
    %55 = vector.shape_cast %54 : vector<2xf32> to vector<2x1xf32>
    %56 = math.log %55 : vector<2x1xf32>
    %57 = arith.addf %56, %48 : vector<2x1xf32>
    %58 = vector.broadcast %57 : vector<2x1xf32> to vector<2x8xf32>
    %59 = arith.subf %44, %58 : vector<2x8xf32>
    %60 = vector.broadcast %50 : vector<2x1xf32> to vector<2x8xf32>
    %61 = arith.subf %46, %60 : vector<2x8xf32>
    %62 = math.exp %61 : vector<2x8xf32>
    %cst_37 = arith.constant dense<0.000000e+00> : vector<2xf32>
    %63 = vector.multi_reduction <add>, %62, %cst_37 [1] : vector<2x8xf32> to vector<2xf32>
    %64 = vector.shape_cast %63 : vector<2xf32> to vector<2x1xf32>
    %65 = math.log %64 : vector<2x1xf32>
    %66 = arith.addf %65, %50 : vector<2x1xf32>
    %67 = vector.broadcast %66 : vector<2x1xf32> to vector<2x8xf32>
    %68 = arith.subf %46, %67 : vector<2x8xf32>
    %69 = math.exp %68 : vector<2x8xf32>
    %70 = arith.subf %68, %59 : vector<2x8xf32>
    %71 = arith.mulf %69, %70 : vector<2x8xf32>
    %cst_38 = arith.constant dense<0.000000e+00> : vector<2xf32>
    %72 = vector.multi_reduction <add>, %71, %cst_38 [1] : vector<2x8xf32> to vector<2xf32>
    %73 = vector.shape_cast %72 : vector<2xf32> to vector<2x1xf32>
    %cst_39 = arith.constant dense<0.000000e+00> : vector<1xf32>
    %74 = vector.multi_reduction <add>, %73, %cst_39 [0] : vector<2x1xf32> to vector<1xf32>
    %75 = vector.shape_cast %74 : vector<1xf32> to vector<1x1xf32>
    %cst_40 = arith.constant 8.000000e+00 : f32
    %76 = vector.broadcast %cst_40 : f32 to vector<1x1xf32>
    %77 = arith.mulf %75, %76 : vector<1x1xf32>
    %c0_41 = arith.constant 0 : index
    %c0_42 = arith.constant 0 : index
    %78 = vector.load %arg8[%c0_41, %c0_42] : memref<1x1xf32, #tpu.memory_space<vmem>>, vector<1x1xf32>
    tpu.vector_store %arg8[%c0_41, %c0_42], %77 {strides = array<i32>} : memref<1x1xf32, #tpu.memory_space<vmem>>, vector<1x1xf32>,
    return
  }
  func.func @transform_0(%arg0: i32) -> (i32, i32, i32) {
    %c0_i32 = arith.constant 0 : i32
    %c0_i32_0 = arith.constant 0 : i32
    %c0_i32_1 = arith.constant 0 : i32
    %c0_i32_2 = arith.constant 0 : i32
    return %c0_i32, %c0_i32_0, %c0_i32_1 : i32, i32, i32
  }
  func.func @transform_1(%arg0: i32) -> (i32, i32) {
    %c0_i32 = arith.constant 0 : i32
    %c0_i32_0 = arith.constant 0 : i32
    %c0_i32_1 = arith.constant 0 : i32
    return %c0_i32, %c0_i32_0 : i32, i32
  }
  func.func @transform_2(%arg0: i32) -> (i32, i32, i32) {
    %c0_i32 = arith.constant 0 : i32
    %c0_i32_0 = arith.constant 0 : i32
    %c0_i32_1 = arith.constant 0 : i32
    %c0_i32_2 = arith.constant 0 : i32
    return %c0_i32, %c0_i32_0, %c0_i32_1 : i32, i32, i32
  }
  func.func @transform_3(%arg0: i32) -> (i32, i32, i32) {
    %c0_i32 = arith.constant 0 : i32
    %c0_i32_0 = arith.constant 0 : i32
    %c0_i32_1 = arith.constant 0 : i32
    %c0_i32_2 = arith.constant 0 : i32
    return %c0_i32, %c0_i32_0, %c0_i32_1 : i32, i32, i32
  }
  func.func @transform_4(%arg0: i32) -> (i32, i32) {
    %c0_i32 = arith.constant 0 : i32
    %c0_i32_0 = arith.constant 0 : i32
    %c0_i32_1 = arith.constant 0 : i32
    return %c0_i32, %c0_i32_0 : i32, i32
  }
  func.func @transform_5(%arg0: i32) -> (i32, i32) {
    %c0_i32 = arith.constant 0 : i32
    %c0_i32_0 = arith.constant 0 : i32
    %c0_i32_1 = arith.constant 0 : i32
    return %c0_i32, %c0_i32_0 : i32, i32
  }
  func.func @transform_6(%arg0: i32) -> (i32, i32) {
    %c0_i32 = arith.constant 0 : i32
    %c0_i32_0 = arith.constant 0 : i32
    %c0_i32_1 = arith.constant 0 : i32
    return %c0_i32, %c0_i32_0 : i32, i32
  }
  func.func @transform_7(%arg0: i32) -> (i32, i32) {
    %c0_i32 = arith.constant 0 : i32
    %c0_i32_0 = arith.constant 0 : i32
    %c0_i32_1 = arith.constant 0 : i32
    return %c0_i32, %c0_i32_0 : i32, i32
  }
}

</mosaic_0001>

<llo_original>
// kernel: distiller_forward.7
$region0: #{distiller_forward.7}
  #allocation0 [shape = 'u32[]', space=smem, size = 0x4, offset = 0x4, fixed_abs, tag = 'smem constant byte address 0x4 - core index']
  #allocation1 [shape = 'u32[144,128]{1,0:T(1,128)}', space=vmem, size = 0x12000, scoped, tag = 'internal scratch']
  %s0 = inlined_call_operand.vmem [shape: bf16[2,8,32], index: 0, kind: input, shape index: {}]
  %s1 = inlined_call_operand.vmem [shape: bf16[2,32,512], index: 1, kind: input, shape index: {}]
  %s2 = inlined_call_operand.vmem [shape: bf16[2,8,512], index: 2, kind: output, shape index: {}]
  %s3 = sld [smem:[#allocation0]]
  $region41: #{distiller_forward.7} parent=0
    _
  %s5 = ssub.s32 1, %s3
  %s6 = scalar_select 0, %s5, %s3
  loop: start=0, step=1, limit=4
  $region2: #{distiller_forward.7} parent=0 // loop_pre_header
    _
  $region3: #{distiller_forward.7} parent=0 // loop_header
    %s8 = sphi 0, %s12
    %p9 = scmp.ge.s32.totalorder %s8, 4
    %s15 = sphi 0, %s27
    %s16 = sphi 0, %s23
    %s17 = sphi 0, %s15
    %s18 = sphi 0, %s16
    %s19 = sphi 0, %s17
    %s20 = sphi 0, %s18
    %s30 = sphi 0, %s32
    %s33 = sphi 0, %s30
    %s34 = sphi 0, %s33
    %s50 = sphi 0, %s34
    %s58 = sphi 0, %s60
    %s61 = sphi 0, %s58
    %s62 = sphi 0, %s61
    %s78 = sphi 0, %s62
    %s86 = sphi 0, %s88
    %s89 = sphi 0, %s86
    %s90 = sphi 0, %s89
    %s106 = sphi 0, %s90
  $region4: #{distiller_forward.7} parent=0 // loop_header_branch
    %11 = sbr.rel (%p9) target = $region8
  $region5: #{distiller_forward.7} parent=0 // loop_body
    %s13 = ssub.s32 %s8, 1
    %s14 = ssub.s32 %s8, 2
    %s21 = sadd.s32 1, %s16
    %p22 = scmp.ge.s32.totalorder %s21, 1
    %s23 = scalar_select %p22, 0, %s21
    %s24 = sadd.s32 1, %s15
    %s25 = scalar_select %p22, %s24, %s15
    %p26 = scmp.ge.s32.totalorder %s25, 2
    %s27 = scalar_select %p26, 0, %s25
    %s28 = ssub.s32 %s15, %s27
    %p29 = scmp.eq.s32.totalorder %s28, 0
    %s31 = sadd.s32 %s30, 1
    %s32 = scalar_select %p29, %s30, %s31
    %p35 = pneg %p29
    %p36 = scmp.eq.s32.totalorder %s8, 1
    %p37 = por %p35, %p36
    %p38 = scmp.ne.s32.totalorder %s30, %s33
    %p39 = scmp.eq.s32.totalorder %s8, 0
    %p40 = por %p38, %p39
    %p41 = scmp.ne.s32.totalorder %s30, %s33
    %p42 = scmp.eq.s32.totalorder %s13, 1
    %p43 = por %p41, %p42
    %p44 = scmp.ne.s32.totalorder %s33, %s34
    %p45 = scmp.eq.s32.totalorder %s13, 0
    %p46 = por %p44, %p45
    %p47 = scmp.ne.s32.totalorder %s33, %s34
    %p48 = scmp.eq.s32.totalorder %s14, 1
    %p49 = por %p47, %p48
    %p51 = scmp.ne.s32.totalorder %s34, %s50
    %p52 = scmp.eq.s32.totalorder %s14, 0
    %p53 = por %p51, %p52
    %s54 = ssub.s32 %s15, %s27
    %s55 = ssub.s32 %s16, %s23
    %s56 = sor.u32 %s54, %s55
    %p57 = scmp.eq.s32.totalorder %s56, 0
    %s59 = sadd.s32 %s58, 1
    %s60 = scalar_select %p57, %s58, %s59
    %p63 = pneg %p57
    %p64 = scmp.eq.s32.totalorder %s8, 1
    %p65 = por %p63, %p64
    %p66 = scmp.ne.s32.totalorder %s58, %s61
    %p67 = scmp.eq.s32.totalorder %s8, 0
    %p68 = por %p66, %p67
    %p69 = scmp.ne.s32.totalorder %s58, %s61
    %p70 = scmp.eq.s32.totalorder %s13, 1
    %p71 = por %p69, %p70
    %p72 = scmp.ne.s32.totalorder %s61, %s62
    %p73 = scmp.eq.s32.totalorder %s13, 0
    %p74 = por %p72, %p73
    %p75 = scmp.ne.s32.totalorder %s61, %s62
    %p76 = scmp.eq.s32.totalorder %s14, 1
    %p77 = por %p75, %p76
    %p79 = scmp.ne.s32.totalorder %s62, %s78
    %p80 = scmp.eq.s32.totalorder %s14, 0
    %p81 = por %p79, %p80
    %s82 = ssub.s32 %s15, %s27
    %s83 = ssub.s32 %s16, %s23
    %s84 = sor.u32 %s82, %s83
    %p85 = scmp.eq.s32.totalorder %s84, 0
    %s87 = sadd.s32 %s86, 1
    %s88 = scalar_select %p85, %s86, %s87
    %p91 = pneg %p85
    %p92 = scmp.eq.s32.totalorder %s8, 1
    %p93 = por %p91, %p92
    %p94 = scmp.ne.s32.totalorder %s86, %s89
    %p95 = scmp.eq.s32.totalorder %s8, 0
    %p96 = por %p94, %p95
    %p97 = scmp.ne.s32.totalorder %s86, %s89
    %p98 = scmp.eq.s32.totalorder %s13, 1
    %p99 = por %p97, %p98
    %p100 = scmp.ne.s32.totalorder %s89, %s90
    %p101 = scmp.eq.s32.totalorder %s13, 0
    %p102 = por %p100, %p101
    %p103 = scmp.ne.s32.totalorder %s89, %s90
    %p104 = scmp.eq.s32.totalorder %s14, 1
    %p105 = por %p103, %p104
    %p107 = scmp.ne.s32.totalorder %s90, %s106
    %p108 = scmp.eq.s32.totalorder %s14, 0
    %p109 = por %p107, %p108
    %p110 = scmp.le.s32.totalorder 1, %s8
    %p111 = scmp.lt.s32.totalorder %s8, 3
    %p112 = pnand %p110, %p111
    %p113 = pneg %p112
    // Predicated region
    $region9: #{distiller_forward.7} parent=5 // pred_check
      _
    $region10: #{distiller_forward.7} parent=5 // pred_check_branch
      %115 = sbr.rel (%p112) target = $region12
    $region11: #{distiller_forward.7} parent=5 // pred_region
      %s116 = ssub.s32 %s8, 1
    $region12: #{distiller_forward.7} parent=5 // pred_fallthru
      _
    %p117 = scmp.lt.s32.totalorder %s8, 2
    // Predicated region
    $region13: #{distiller_forward.7} parent=5 // pred_check
      %p118 = pneg %p117
    $region14: #{distiller_forward.7} parent=5 // pred_check_branch
      %120 = sbr.rel (%p118) target = $region16
    $region15: #{distiller_forward.7} parent=5 // pred_region
      // Predicated region
      $region17: #{distiller_forward.7} parent=15 // pred_check
        %p121 = pneg %p40
      $region18: #{distiller_forward.7} parent=15 // pred_check_branch
        %123 = sbr.rel (%p121) target = $region20
      $region19: #{distiller_forward.7} parent=15 // pred_region
        %p124 = scmp.lt.s32.totalorder %s15, 1
        %s125 = scalar_select %p124, %s15, 1
        %s126 = smul.addr %s125, 4
        %s127 = scalar_lea.vmem %s0, %s126
      $region20: #{distiller_forward.7} parent=15 // pred_fallthru
        _
      // Predicated region
      $region21: #{distiller_forward.7} parent=15 // pred_check
        %p128 = pneg %p68
      $region22: #{distiller_forward.7} parent=15 // pred_check_branch
        %130 = sbr.rel (%p128) target = $region24
      $region23: #{distiller_forward.7} parent=15 // pred_region
        %s131 = smul.u32 4, %s16
        %p132 = scmp.lt.s32.totalorder %s15, 1
        %s133 = scalar_select %p132, %s15, 1
        %p134 = scmp.lt.s32.totalorder %s131, 3
        %s135 = scalar_select %p134, %s131, 3
        %s136 = smul.addr %s133, 16
        %s137 = sadd.s32 %s135, %s136
        %s138 = smul.addr %s137, 4
        %s139 = scalar_lea.vmem %s1, %s138
        %s140 = smul.u32 4, %s16
      $region24: #{distiller_forward.7} parent=15 // pred_fallthru
        _
    $region16: #{distiller_forward.7} parent=5 // pred_fallthru
      _
    %p141 = scmp.le.s32.totalorder 1, %s8
    %p142 = scmp.lt.s32.totalorder %s8, 3
    %p143 = pnand %p141, %p142
    %p144 = pneg %p143
    // Predicated region
    $region25: #{distiller_forward.7} parent=5 // pred_check
      _
    $region26: #{distiller_forward.7} parent=5 // pred_check_branch
      %146 = sbr.rel (%p143) target = $region28
    $region27: #{distiller_forward.7} parent=5 // pred_region
      %s147 = ssub.s32 %s8, 1
      %p148 = scmp.lt.s32.totalorder %s17, 1
      %s149 = scalar_select %p148, %s17, 1
      %s150 = smul.addr %s149, 4
      %s151 = scalar_lea.vmem %s0, %s150
      %p152 = pneg %p46
      %p153 = pneg %p43
      %s154 = smul.u32 4, %s18
      %p155 = scmp.lt.s32.totalorder %s17, 1
      %s156 = scalar_select %p155, %s17, 1
      %p157 = scmp.lt.s32.totalorder %s154, 3
      %s158 = scalar_select %p157, %s154, 3
      %s159 = smul.addr %s156, 16
      %s160 = sadd.s32 %s158, %s159
      %s161 = smul.addr %s160, 4
      %s162 = scalar_lea.vmem %s1, %s161
      %p163 = pneg %p74
      %p164 = pneg %p71
      %p165 = pneg %p102
      %p166 = pneg %p99
      %s167 = smul.u32 4, %s18
      %p168 = scmp.lt.s32.totalorder %s17, 1
      %s169 = scalar_select %p168, %s17, 1
      %p170 = scmp.lt.s32.totalorder %s167, 3
      %s171 = scalar_select %p170, %s167, 3
      %s172 = smul.addr %s169, 4
      %s173 = sadd.s32 %s171, %s172
      %s174 = smul.addr %s173, 4
      %s175 = scalar_lea.vmem %s2, %s174
      %p176 = scmp.lt.s32.totalorder %s17, 1
      %s177 = scalar_select %p176, %s17, 1
      %s178 = smul.addr %s177, 4
      %s179 = scalar_lea.vmem %s0, %s178
      %s180 = smul.u32 4, %s18
      %p181 = scmp.lt.s32.totalorder %s17, 1
      %s182 = scalar_select %p181, %s17, 1
      %p183 = scmp.lt.s32.totalorder %s180, 3
      %s184 = scalar_select %p183, %s180, 3
      %s185 = smul.addr %s182, 16
      %s186 = sadd.s32 %s184, %s185
      %s187 = smul.addr %s186, 4
      %s188 = scalar_lea.vmem %s1, %s187
      %s189 = smul.u32 4, %s18
      %s190 = smul.u32 4, %s18
      %p191 = scmp.lt.s32.totalorder %s17, 1
      %s192 = scalar_select %p191, %s17, 1
      %p193 = scmp.lt.s32.totalorder %s190, 3
      %s194 = scalar_select %p193, %s190, 3
      %s195 = smul.addr %s192, 4
      %s196 = sadd.s32 %s194, %s195
      %s197 = smul.addr %s196, 4
      %s198 = scalar_lea.vmem %s2, %s197
      %s199 = smul.u32 4, %s18
      %v201 = vld [vmem:[%s179] sm:$0xf]
      %v202 = vld [vmem:[%s188] sm:$0xff]
      %v203 = vld [vmem:[%s188 + $0x8] sm:$0xff]
      %v204 = vld [vmem:[%s188 + $0x10] sm:$0xff]
      %v205 = vld [vmem:[%s188 + $0x18] sm:$0xff]
      %v206 = vld [vmem:[%s188 + $0x20] sm:$0xff]
      %v207 = vld [vmem:[%s188 + $0x28] sm:$0xff]
      %v208 = vld [vmem:[%s188 + $0x30] sm:$0xff]
      %v209 = vld [vmem:[%s188 + $0x38] sm:$0xff]
      %v218 = vunpack.c.l.b16 %v202
      %v219 = vunpack.c.h.b16 %v202
      %v220 = vunpack.c.l.b16 %v203
      %v221 = vunpack.c.h.b16 %v203
      %v222 = vunpack.c.l.b16 %v204
      %v223 = vunpack.c.h.b16 %v204
      %v224 = vunpack.c.l.b16 %v205
      %v225 = vunpack.c.h.b16 %v205
      %v226 = vunpack.c.l.b16 %v206
      %v227 = vunpack.c.h.b16 %v206
      %v228 = vunpack.c.l.b16 %v207
      %v229 = vunpack.c.h.b16 %v207
      %v230 = vunpack.c.l.b16 %v208
      %v231 = vunpack.c.h.b16 %v208
      %v232 = vunpack.c.l.b16 %v209
      %v233 = vunpack.c.h.b16 %v209
      %v234 = vpack.c.b16 %v222, %v218
      %v235 = vpack.c.b16 %v223, %v219
      %v236 = vpack.c.b16 %v224, %v220
      %v237 = vpack.c.b16 %v225, %v221
      %v238 = vpack.c.b16 %v230, %v226
      %v239 = vpack.c.b16 %v231, %v227
      %v240 = vpack.c.b16 %v232, %v228
      %v241 = vpack.c.b16 %v233, %v229
      %vm250 = vcmask 261120
      %v252 = vsel %vm250, %v201, 0
      %254 = vmatprep.subr.bf16.mxu0 %v235
      %255 = vmatpush1.bf16.msra.mxu0 %v234
      %256 = vmatprep.subr.bf16.mxu0 %v239
      %257 = vmatpush1.bf16.msra.mxu0 %v238
      %258 = vmatprep.subr.bf16.mxu0 0
      %259 = vmatpush1.bf16.msra.mxu0 0
      %260 = vmatprep.subr.bf16.mxu0 0
      %261 = vmatpush1.bf16.msra.mxu0 0
      %262 = vmatprep.subr.bf16.mxu0 0
      %263 = vmatpush1.bf16.msra.mxu0 0
      %264 = vmatprep.subr.bf16.mxu0 0
      %265 = vmatpush1.bf16.msra.mxu0 0
      %266 = vmatprep.subr.bf16.mxu0 0
      %267 = vmatpush1.bf16.msra.mxu0 0
      %268 = vmatprep.subr.bf16.mxu0 0
      %269 = vmatpush1.bf16.msra.mxu0 0
      %270 = vmatprep.subr.bf16.mxu0 0
      %271 = vmatpush1.bf16.msra.mxu0 0
      %272 = vmatprep.subr.bf16.mxu0 0
      %273 = vmatpush1.bf16.msra.mxu0 0
      %274 = vmatprep.subr.bf16.mxu0 0
      %275 = vmatpush1.bf16.msra.mxu0 0
      %276 = vmatprep.subr.bf16.mxu0 0
      %277 = vmatpush1.bf16.msra.mxu0 0
      %278 = vmatprep.subr.bf16.mxu0 0
      %279 = vmatpush1.bf16.msra.mxu0 0
      %280 = vmatprep.subr.bf16.mxu0 0
      %281 = vmatpush1.bf16.msra.mxu0 0
      %282 = vmatprep.subr.bf16.mxu0 0
      %283 = vmatpush1.bf16.msra.mxu0 0
      %284 = vmatprep.subr.bf16.mxu0 0
      %285 = vmatpush1.bf16.msra.mxu0 0
      %286 = vmatprep.mubr.bf16.mxu0 0
      %287 = vmatmul.mubr.bf16.gmra.mrb[0].mxu0 %v252
      %v288 = vpop.f32.mrb[0].mxu0
      %v289 = vadd.f32 0.0, %v288
      %v290 = vpop.f32.mrb[0].mxu0
      %v291 = vadd.f32 0.0, %v290
      %v292 = vpop.f32.mrb[0].mxu0
      %v293 = vpop.f32.mrb[0].mxu0
      %294 = vdwg.mxu0
      %295 = vmatprep.subr.bf16.mxu0 %v237
      %296 = vmatpush1.bf16.msra.mxu0 %v236
      %297 = vmatprep.subr.bf16.mxu0 %v241
      %298 = vmatpush1.bf16.msra.mxu0 %v240
      %299 = vmatprep.subr.bf16.mxu0 0
      %300 = vmatpush1.bf16.msra.mxu0 0
      %301 = vmatprep.subr.bf16.mxu0 0
      %302 = vmatpush1.bf16.msra.mxu0 0
      %303 = vmatprep.subr.bf16.mxu0 0
      %304 = vmatpush1.bf16.msra.mxu0 0
      %305 = vmatprep.subr.bf16.mxu0 0
      %306 = vmatpush1.bf16.msra.mxu0 0
      %307 = vmatprep.subr.bf16.mxu0 0
      %308 = vmatpush1.bf16.msra.mxu0 0
      %309 = vmatprep.subr.bf16.mxu0 0
      %310 = vmatpush1.bf16.msra.mxu0 0
      %311 = vmatprep.subr.bf16.mxu0 0
      %312 = vmatpush1.bf16.msra.mxu0 0
      %313 = vmatprep.subr.bf16.mxu0 0
      %314 = vmatpush1.bf16.msra.mxu0 0
      %315 = vmatprep.subr.bf16.mxu0 0
      %316 = vmatpush1.bf16.msra.mxu0 0
      %317 = vmatprep.subr.bf16.mxu0 0
      %318 = vmatpush1.bf16.msra.mxu0 0
      %319 = vmatprep.subr.bf16.mxu0 0
      %320 = vmatpush1.bf16.msra.mxu0 0
      %321 = vmatprep.subr.bf16.mxu0 0
      %322 = vmatpush1.bf16.msra.mxu0 0
      %323 = vmatprep.subr.bf16.mxu0 0
      %324 = vmatpush1.bf16.msra.mxu0 0
      %325 = vmatprep.subr.bf16.mxu0 0
      %326 = vmatpush1.bf16.msra.mxu0 0
      %327 = vmatprep.mubr.bf16.mxu0 0
      %328 = vmatmul.mubr.bf16.gmra.mrb[0].mxu0 %v252
      %v329 = vpop.f32.mrb[0].mxu0
      %v330 = vadd.f32 0.0, %v329
      %v331 = vpop.f32.mrb[0].mxu0
      %v332 = vadd.f32 0.0, %v331
      %v333 = vpop.f32.mrb[0].mxu0
      %v334 = vpop.f32.mrb[0].mxu0
      %335 = vdwg.mxu0
      %v336 = vmax.f32 %v289, 0.0
      %v337 = vmax.f32 %v291, 0.0
      %v338 = vmax.f32 %v330, 0.0
      %v339 = vmax.f32 %v332, 0.0
      %v340 = vpack.c.bf16 %v336, %v336
      %v341 = vpack.c.bf16 %v337, %v337
      %v342 = vpack.c.bf16 %v338, %v338
      %v343 = vpack.c.bf16 %v339, %v339
      %v348 = vunpack.c.l.b16 %v340
      %v349 = vunpack.c.l.b16 %v341
      %v350 = vunpack.c.l.b16 %v342
      %v351 = vunpack.c.l.b16 %v343
      %v352 = vpack.c.b16 %v349, %v348
      %v353 = vpack.c.b16 %v351, %v350
      %356 = vst [vmem:[%s198] sm:$0xff] %v352
      %357 = vst [vmem:[%s198 + $0x8] sm:$0xff] %v353
      %s358 = smul.u32 4, %s18
      %p359 = scmp.lt.s32.totalorder %s17, 1
      %s360 = scalar_select %p359, %s17, 1
      %p361 = scmp.lt.s32.totalorder %s358, 3
      %s362 = scalar_select %p361, %s358, 3
      %s363 = smul.addr %s360, 4
      %s364 = sadd.s32 %s362, %s363
      %s365 = smul.addr %s364, 4
      %s366 = scalar_lea.vmem %s2, %s365
      // Predicated region
      $region29: #{distiller_forward.7} parent=27 // pred_check
        %p367 = pneg %p99
      $region30: #{distiller_forward.7} parent=27 // pred_check_branch
        %369 = sbr.rel (%p367) target = $region32
      $region31: #{distiller_forward.7} parent=27 // pred_region
        %s370 = smul.u32 4, %s18
      $region32: #{distiller_forward.7} parent=27 // pred_fallthru
        _
    $region28: #{distiller_forward.7} parent=5 // pred_fallthru
      _
    %p371 = scmp.le.s32.totalorder 2, %s8
    // Predicated region
    $region33: #{distiller_forward.7} parent=5 // pred_check
      %p372 = pneg %p371
    $region34: #{distiller_forward.7} parent=5 // pred_check_branch
      %374 = sbr.rel (%p372) target = $region36
    $region35: #{distiller_forward.7} parent=5 // pred_region
      %s375 = ssub.s32 %s8, 2
      // Predicated region
      $region37: #{distiller_forward.7} parent=35 // pred_check
        %p376 = pneg %p105
      $region38: #{distiller_forward.7} parent=35 // pred_check_branch
        %378 = sbr.rel (%p376) target = $region40
      $region39: #{distiller_forward.7} parent=35 // pred_region
        %s379 = smul.u32 4, %s20
        %p380 = scmp.lt.s32.totalorder %s19, 1
        %s381 = scalar_select %p380, %s19, 1
        %p382 = scmp.lt.s32.totalorder %s379, 3
        %s383 = scalar_select %p382, %s379, 3
        %s384 = smul.addr %s381, 4
        %s385 = sadd.s32 %s383, %s384
        %s386 = smul.addr %s385, 4
        %s387 = scalar_lea.vmem %s2, %s386
      $region40: #{distiller_forward.7} parent=35 // pred_fallthru
        _
    $region36: #{distiller_forward.7} parent=5 // pred_fallthru
      _
  $region6: #{distiller_forward.7} parent=0 // loop_footer
    %s12 = sadd.s32 1, %s8
  $region7: #{distiller_forward.7} parent=0 // loop_footer_branch
    %7 = sbr.rel target = $region3
  $region8: #{distiller_forward.7} parent=0 // loop_exit
    _

// kernel: distiller_forward.8
$region0: #{distiller_forward.8}
  #allocation0 [shape = 'u32[]', space=smem, size = 0x4, offset = 0x4, fixed_abs, tag = 'smem constant byte address 0x4 - core index']
  #allocation1 [shape = 'u32[144,128]{1,0:T(1,128)}', space=vmem, size = 0x12000, scoped, tag = 'internal scratch']
  %s0 = inlined_call_operand.vmem [shape: bf16[2,8,80], index: 0, kind: input, shape index: {}]
  %s1 = inlined_call_operand.vmem [shape: bf16[2,80,512], index: 1, kind: input, shape index: {}]
  %s2 = inlined_call_operand.vmem [shape: bf16[2,8,512], index: 2, kind: output, shape index: {}]
  %s3 = sld [smem:[#allocation0]]
  $region41: #{distiller_forward.8} parent=0
    _
  %s5 = ssub.s32 1, %s3
  %s6 = scalar_select 0, %s5, %s3
  loop: start=0, step=1, limit=4
  $region2: #{distiller_forward.8} parent=0 // loop_pre_header
    _
  $region3: #{distiller_forward.8} parent=0 // loop_header
    %s8 = sphi 0, %s12
    %p9 = scmp.ge.s32.totalorder %s8, 4
    %s15 = sphi 0, %s27
    %s16 = sphi 0, %s23
    %s17 = sphi 0, %s15
    %s18 = sphi 0, %s16
    %s19 = sphi 0, %s17
    %s20 = sphi 0, %s18
    %s30 = sphi 0, %s32
    %s33 = sphi 0, %s30
    %s34 = sphi 0, %s33
    %s50 = sphi 0, %s34
    %s58 = sphi 0, %s60
    %s61 = sphi 0, %s58
    %s62 = sphi 0, %s61
    %s78 = sphi 0, %s62
    %s86 = sphi 0, %s88
    %s89 = sphi 0, %s86
    %s90 = sphi 0, %s89
    %s106 = sphi 0, %s90
  $region4: #{distiller_forward.8} parent=0 // loop_header_branch
    %11 = sbr.rel (%p9) target = $region8
  $region5: #{distiller_forward.8} parent=0 // loop_body
    %s13 = ssub.s32 %s8, 1
    %s14 = ssub.s32 %s8, 2
    %s21 = sadd.s32 1, %s16
    %p22 = scmp.ge.s32.totalorder %s21, 1
    %s23 = scalar_select %p22, 0, %s21
    %s24 = sadd.s32 1, %s15
    %s25 = scalar_select %p22, %s24, %s15
    %p26 = scmp.ge.s32.totalorder %s25, 2
    %s27 = scalar_select %p26, 0, %s25
    %s28 = ssub.s32 %s15, %s27
    %p29 = scmp.eq.s32.totalorder %s28, 0
    %s31 = sadd.s32 %s30, 1
    %s32 = scalar_select %p29, %s30, %s31
    %p35 = pneg %p29
    %p36 = scmp.eq.s32.totalorder %s8, 1
    %p37 = por %p35, %p36
    %p38 = scmp.ne.s32.totalorder %s30, %s33
    %p39 = scmp.eq.s32.totalorder %s8, 0
    %p40 = por %p38, %p39
    %p41 = scmp.ne.s32.totalorder %s30, %s33
    %p42 = scmp.eq.s32.totalorder %s13, 1
    %p43 = por %p41, %p42
    %p44 = scmp.ne.s32.totalorder %s33, %s34
    %p45 = scmp.eq.s32.totalorder %s13, 0
    %p46 = por %p44, %p45
    %p47 = scmp.ne.s32.totalorder %s33, %s34
    %p48 = scmp.eq.s32.totalorder %s14, 1
    %p49 = por %p47, %p48
    %p51 = scmp.ne.s32.totalorder %s34, %s50
    %p52 = scmp.eq.s32.totalorder %s14, 0
    %p53 = por %p51, %p52
    %s54 = ssub.s32 %s15, %s27
    %s55 = ssub.s32 %s16, %s23
    %s56 = sor.u32 %s54, %s55
    %p57 = scmp.eq.s32.totalorder %s56, 0
    %s59 = sadd.s32 %s58, 1
    %s60 = scalar_select %p57, %s58, %s59
    %p63 = pneg %p57
    %p64 = scmp.eq.s32.totalorder %s8, 1
    %p65 = por %p63, %p64
    %p66 = scmp.ne.s32.totalorder %s58, %s61
    %p67 = scmp.eq.s32.totalorder %s8, 0
    %p68 = por %p66, %p67
    %p69 = scmp.ne.s32.totalorder %s58, %s61
    %p70 = scmp.eq.s32.totalorder %s13, 1
    %p71 = por %p69, %p70
    %p72 = scmp.ne.s32.totalorder %s61, %s62
    %p73 = scmp.eq.s32.totalorder %s13, 0
    %p74 = por %p72, %p73
    %p75 = scmp.ne.s32.totalorder %s61, %s62
    %p76 = scmp.eq.s32.totalorder %s14, 1
    %p77 = por %p75, %p76
    %p79 = scmp.ne.s32.totalorder %s62, %s78
    %p80 = scmp.eq.s32.totalorder %s14, 0
    %p81 = por %p79, %p80
    %s82 = ssub.s32 %s15, %s27
    %s83 = ssub.s32 %s16, %s23
    %s84 = sor.u32 %s82, %s83
    %p85 = scmp.eq.s32.totalorder %s84, 0
    %s87 = sadd.s32 %s86, 1
    %s88 = scalar_select %p85, %s86, %s87
    %p91 = pneg %p85
    %p92 = scmp.eq.s32.totalorder %s8, 1
    %p93 = por %p91, %p92
    %p94 = scmp.ne.s32.totalorder %s86, %s89
    %p95 = scmp.eq.s32.totalorder %s8, 0
    %p96 = por %p94, %p95
    %p97 = scmp.ne.s32.totalorder %s86, %s89
    %p98 = scmp.eq.s32.totalorder %s13, 1
    %p99 = por %p97, %p98
    %p100 = scmp.ne.s32.totalorder %s89, %s90
    %p101 = scmp.eq.s32.totalorder %s13, 0
    %p102 = por %p100, %p101
    %p103 = scmp.ne.s32.totalorder %s89, %s90
    %p104 = scmp.eq.s32.totalorder %s14, 1
    %p105 = por %p103, %p104
    %p107 = scmp.ne.s32.totalorder %s90, %s106
    %p108 = scmp.eq.s32.totalorder %s14, 0
    %p109 = por %p107, %p108
    %p110 = scmp.le.s32.totalorder 1, %s8
    %p111 = scmp.lt.s32.totalorder %s8, 3
    %p112 = pnand %p110, %p111
    %p113 = pneg %p112
    // Predicated region
    $region9: #{distiller_forward.8} parent=5 // pred_check
      _
    $region10: #{distiller_forward.8} parent=5 // pred_check_branch
      %115 = sbr.rel (%p112) target = $region12
    $region11: #{distiller_forward.8} parent=5 // pred_region
      %s116 = ssub.s32 %s8, 1
    $region12: #{distiller_forward.8} parent=5 // pred_fallthru
      _
    %p117 = scmp.lt.s32.totalorder %s8, 2
    // Predicated region
    $region13: #{distiller_forward.8} parent=5 // pred_check
      %p118 = pneg %p117
    $region14: #{distiller_forward.8} parent=5 // pred_check_branch
      %120 = sbr.rel (%p118) target = $region16
    $region15: #{distiller_forward.8} parent=5 // pred_region
      // Predicated region
      $region17: #{distiller_forward.8} parent=15 // pred_check
        %p121 = pneg %p40
      $region18: #{distiller_forward.8} parent=15 // pred_check_branch
        %123 = sbr.rel (%p121) target = $region20
      $region19: #{distiller_forward.8} parent=15 // pred_region
        %p124 = scmp.lt.s32.totalorder %s15, 1
        %s125 = scalar_select %p124, %s15, 1
        %s126 = smul.addr %s125, 4
        %s127 = scalar_lea.vmem %s0, %s126
      $region20: #{distiller_forward.8} parent=15 // pred_fallthru
        _
      // Predicated region
      $region21: #{distiller_forward.8} parent=15 // pred_check
        %p128 = pneg %p68
      $region22: #{distiller_forward.8} parent=15 // pred_check_branch
        %130 = sbr.rel (%p128) target = $region24
      $region23: #{distiller_forward.8} parent=15 // pred_region
        %s131 = smul.u32 4, %s16
        %p132 = scmp.lt.s32.totalorder %s15, 1
        %s133 = scalar_select %p132, %s15, 1
        %p134 = scmp.lt.s32.totalorder %s131, 3
        %s135 = scalar_select %p134, %s131, 3
        %s136 = smul.addr %s133, 40
        %s137 = sadd.s32 %s135, %s136
        %s138 = smul.addr %s137, 4
        %s139 = scalar_lea.vmem %s1, %s138
        %s140 = smul.u32 4, %s16
      $region24: #{distiller_forward.8} parent=15 // pred_fallthru
        _
    $region16: #{distiller_forward.8} parent=5 // pred_fallthru
      _
    %p141 = scmp.le.s32.totalorder 1, %s8
    %p142 = scmp.lt.s32.totalorder %s8, 3
    %p143 = pnand %p141, %p142
    %p144 = pneg %p143
    // Predicated region
    $region25: #{distiller_forward.8} parent=5 // pred_check
      _
    $region26: #{distiller_forward.8} parent=5 // pred_check_branch
      %146 = sbr.rel (%p143) target = $region28
    $region27: #{distiller_forward.8} parent=5 // pred_region
      %s147 = ssub.s32 %s8, 1
      %p148 = scmp.lt.s32.totalorder %s17, 1
      %s149 = scalar_select %p148, %s17, 1
      %s150 = smul.addr %s149, 4
      %s151 = scalar_lea.vmem %s0, %s150
      %p152 = pneg %p46
      %p153 = pneg %p43
      %s154 = smul.u32 4, %s18
      %p155 = scmp.lt.s32.totalorder %s17, 1
      %s156 = scalar_select %p155, %s17, 1
      %p157 = scmp.lt.s32.totalorder %s154, 3
      %s158 = scalar_select %p157, %s154, 3
      %s159 = smul.addr %s156, 40
      %s160 = sadd.s32 %s158, %s159
      %s161 = smul.addr %s160, 4
      %s162 = scalar_lea.vmem %s1, %s161
      %p163 = pneg %p74
      %p164 = pneg %p71
      %p165 = pneg %p102
      %p166 = pneg %p99
      %s167 = smul.u32 4, %s18
      %p168 = scmp.lt.s32.totalorder %s17, 1
      %s169 = scalar_select %p168, %s17, 1
      %p170 = scmp.lt.s32.totalorder %s167, 3
      %s171 = scalar_select %p170, %s167, 3
      %s172 = smul.addr %s169, 4
      %s173 = sadd.s32 %s171, %s172
      %s174 = smul.addr %s173, 4
      %s175 = scalar_lea.vmem %s2, %s174
      %p176 = scmp.lt.s32.totalorder %s17, 1
      %s177 = scalar_select %p176, %s17, 1
      %s178 = smul.addr %s177, 4
      %s179 = scalar_lea.vmem %s0, %s178
      %s180 = smul.u32 4, %s18
      %p181 = scmp.lt.s32.totalorder %s17, 1
      %s182 = scalar_select %p181, %s17, 1
      %p183 = scmp.lt.s32.totalorder %s180, 3
      %s184 = scalar_select %p183, %s180, 3
      %s185 = smul.addr %s182, 40
      %s186 = sadd.s32 %s184, %s185
      %s187 = smul.addr %s186, 4
      %s188 = scalar_lea.vmem %s1, %s187
      %s189 = smul.u32 4, %s18
      %s190 = smul.u32 4, %s18
      %p191 = scmp.lt.s32.totalorder %s17, 1
      %s192 = scalar_select %p191, %s17, 1
      %p193 = scmp.lt.s32.totalorder %s190, 3
      %s194 = scalar_select %p193, %s190, 3
      %s195 = smul.addr %s192, 4
      %s196 = sadd.s32 %s194, %s195
      %s197 = smul.addr %s196, 4
      %s198 = scalar_lea.vmem %s2, %s197
      %s199 = smul.u32 4, %s18
      %v201 = vld [vmem:[%s179] sm:$0xf]
      %v202 = vld [vmem:[%s188] sm:$0xff]
      %v203 = vld [vmem:[%s188 + $0x8] sm:$0xff]
      %v204 = vld [vmem:[%s188 + $0x10] sm:$0xff]
      %v205 = vld [vmem:[%s188 + $0x18] sm:$0xff]
      %v206 = vld [vmem:[%s188 + $0x20] sm:$0xff]
      %v207 = vld [vmem:[%s188 + $0x28] sm:$0xff]
      %v208 = vld [vmem:[%s188 + $0x30] sm:$0xff]
      %v209 = vld [vmem:[%s188 + $0x38] sm:$0xff]
      %v210 = vld [vmem:[%s188 + $0x40] sm:$0xff]
      %v211 = vld [vmem:[%s188 + $0x48] sm:$0xff]
      %v212 = vld [vmem:[%s188 + $0x50] sm:$0xff]
      %v213 = vld [vmem:[%s188 + $0x58] sm:$0xff]
      %v214 = vld [vmem:[%s188 + $0x60] sm:$0xff]
      %v215 = vld [vmem:[%s188 + $0x68] sm:$0xff]
      %v216 = vld [vmem:[%s188 + $0x70] sm:$0xff]
      %v217 = vld [vmem:[%s188 + $0x78] sm:$0xff]
      %v218 = vld [vmem:[%s188 + $0x80] sm:$0xff]
      %v219 = vld [vmem:[%s188 + $0x88] sm:$0xff]
      %v220 = vld [vmem:[%s188 + $0x90] sm:$0xff]
      %v221 = vld [vmem:[%s188 + $0x98] sm:$0xff]
      %v242 = vunpack.c.l.b16 %v202
      %v243 = vunpack.c.h.b16 %v202
      %v244 = vunpack.c.l.b16 %v203
      %v245 = vunpack.c.h.b16 %v203
      %v246 = vunpack.c.l.b16 %v204
      %v247 = vunpack.c.h.b16 %v204
      %v248 = vunpack.c.l.b16 %v205
      %v249 = vunpack.c.h.b16 %v205
      %v250 = vunpack.c.l.b16 %v206
      %v251 = vunpack.c.h.b16 %v206
      %v252 = vunpack.c.l.b16 %v207
      %v253 = vunpack.c.h.b16 %v207
      %v254 = vunpack.c.l.b16 %v208
      %v255 = vunpack.c.h.b16 %v208
      %v256 = vunpack.c.l.b16 %v209
      %v257 = vunpack.c.h.b16 %v209
      %v258 = vunpack.c.l.b16 %v210
      %v259 = vunpack.c.h.b16 %v210
      %v260 = vunpack.c.l.b16 %v211
      %v261 = vunpack.c.h.b16 %v211
      %v262 = vunpack.c.l.b16 %v212
      %v263 = vunpack.c.h.b16 %v212
      %v264 = vunpack.c.l.b16 %v213
      %v265 = vunpack.c.h.b16 %v213
      %v266 = vunpack.c.l.b16 %v214
      %v267 = vunpack.c.h.b16 %v214
      %v268 = vunpack.c.l.b16 %v215
      %v269 = vunpack.c.h.b16 %v215
      %v270 = vunpack.c.l.b16 %v216
      %v271 = vunpack.c.h.b16 %v216
      %v272 = vunpack.c.l.b16 %v217
      %v273 = vunpack.c.h.b16 %v217
      %v274 = vunpack.c.l.b16 %v218
      %v275 = vunpack.c.h.b16 %v218
      %v276 = vunpack.c.l.b16 %v219
      %v277 = vunpack.c.h.b16 %v219
      %v278 = vunpack.c.l.b16 %v220
      %v279 = vunpack.c.h.b16 %v220
      %v280 = vunpack.c.l.b16 %v221
      %v281 = vunpack.c.h.b16 %v221
      %v282 = vpack.c.b16 %v246, %v242
      %v283 = vpack.c.b16 %v247, %v243
      %v284 = vpack.c.b16 %v248, %v244
      %v285 = vpack.c.b16 %v249, %v245
      %v286 = vpack.c.b16 %v254, %v250
      %v287 = vpack.c.b16 %v255, %v251
      %v288 = vpack.c.b16 %v256, %v252
      %v289 = vpack.c.b16 %v257, %v253
      %v290 = vpack.c.b16 %v262, %v258
      %v291 = vpack.c.b16 %v263, %v259
      %v292 = vpack.c.b16 %v264, %v260
      %v293 = vpack.c.b16 %v265, %v261
      %v294 = vpack.c.b16 %v270, %v266
      %v295 = vpack.c.b16 %v271, %v267
      %v296 = vpack.c.b16 %v272, %v268
      %v297 = vpack.c.b16 %v273, %v269
      %v298 = vpack.c.b16 %v278, %v274
      %v299 = vpack.c.b16 %v279, %v275
      %v300 = vpack.c.b16 %v280, %v276
      %v301 = vpack.c.b16 %v281, %v277
      %vm322 = vcmask 654336
      %v324 = vsel %vm322, %v201, 0
      %326 = vmatprep.subr.bf16.mxu0 %v283
      %327 = vmatpush1.bf16.msra.mxu0 %v282
      %328 = vmatprep.subr.bf16.mxu0 %v287
      %329 = vmatpush1.bf16.msra.mxu0 %v286
      %330 = vmatprep.subr.bf16.mxu0 %v291
      %331 = vmatpush1.bf16.msra.mxu0 %v290
      %332 = vmatprep.subr.bf16.mxu0 %v295
      %333 = vmatpush1.bf16.msra.mxu0 %v294
      %334 = vmatprep.subr.bf16.mxu0 %v299
      %335 = vmatpush1.bf16.msra.mxu0 %v298
      %336 = vmatprep.subr.bf16.mxu0 0
      %337 = vmatpush1.bf16.msra.mxu0 0
      %338 = vmatprep.subr.bf16.mxu0 0
      %339 = vmatpush1.bf16.msra.mxu0 0
      %340 = vmatprep.subr.bf16.mxu0 0
      %341 = vmatpush1.bf16.msra.mxu0 0
      %342 = vmatprep.subr.bf16.mxu0 0
      %343 = vmatpush1.bf16.msra.mxu0 0
      %344 = vmatprep.subr.bf16.mxu0 0
      %345 = vmatpush1.bf16.msra.mxu0 0
      %346 = vmatprep.subr.bf16.mxu0 0
      %347 = vmatpush1.bf16.msra.mxu0 0
      %348 = vmatprep.subr.bf16.mxu0 0
      %349 = vmatpush1.bf16.msra.mxu0 0
      %350 = vmatprep.subr.bf16.mxu0 0
      %351 = vmatpush1.bf16.msra.mxu0 0
      %352 = vmatprep.subr.bf16.mxu0 0
      %353 = vmatpush1.bf16.msra.mxu0 0
      %354 = vmatprep.subr.bf16.mxu0 0
      %355 = vmatpush1.bf16.msra.mxu0 0
      %356 = vmatprep.subr.bf16.mxu0 0
      %357 = vmatpush1.bf16.msra.mxu0 0
      %358 = vmatprep.mubr.bf16.mxu0 0
      %359 = vmatmul.mubr.bf16.gmra.mrb[0].mxu0 %v324
      %v360 = vpop.f32.mrb[0].mxu0
      %v361 = vadd.f32 0.0, %v360
      %v362 = vpop.f32.mrb[0].mxu0
      %v363 = vadd.f32 0.0, %v362
      %v364 = vpop.f32.mrb[0].mxu0
      %v365 = vpop.f32.mrb[0].mxu0
      %366 = vdwg.mxu0
      %367 = vmatprep.subr.bf16.mxu0 %v285
      %368 = vmatpush1.bf16.msra.mxu0 %v284
      %369 = vmatprep.subr.bf16.mxu0 %v289
      %370 = vmatpush1.bf16.msra.mxu0 %v288
      %371 = vmatprep.subr.bf16.mxu0 %v293
      %372 = vmatpush1.bf16.msra.mxu0 %v292
      %373 = vmatprep.subr.bf16.mxu0 %v297
      %374 = vmatpush1.bf16.msra.mxu0 %v296
      %375 = vmatprep.subr.bf16.mxu0 %v301
      %376 = vmatpush1.bf16.msra.mxu0 %v300
      %377 = vmatprep.subr.bf16.mxu0 0
      %378 = vmatpush1.bf16.msra.mxu0 0
      %379 = vmatprep.subr.bf16.mxu0 0
      %380 = vmatpush1.bf16.msra.mxu0 0
      %381 = vmatprep.subr.bf16.mxu0 0
      %382 = vmatpush1.bf16.msra.mxu0 0
      %383 = vmatprep.subr.bf16.mxu0 0
      %384 = vmatpush1.bf16.msra.mxu0 0
      %385 = vmatprep.subr.bf16.mxu0 0
      %386 = vmatpush1.bf16.msra.mxu0 0
      %387 = vmatprep.subr.bf16.mxu0 0
      %388 = vmatpush1.bf16.msra.mxu0 0
      %389 = vmatprep.subr.bf16.mxu0 0
      %390 = vmatpush1.bf16.msra.mxu0 0
      %391 = vmatprep.subr.bf16.mxu0 0
      %392 = vmatpush1.bf16.msra.mxu0 0
      %393 = vmatprep.subr.bf16.mxu0 0
      %394 = vmatpush1.bf16.msra.mxu0 0
      %395 = vmatprep.subr.bf16.mxu0 0
      %396 = vmatpush1.bf16.msra.mxu0 0
      %397 = vmatprep.subr.bf16.mxu0 0
      %398 = vmatpush1.bf16.msra.mxu0 0
      %399 = vmatprep.mubr.bf16.mxu0 0
      %400 = vmatmul.mubr.bf16.gmra.mrb[0].mxu0 %v324
      %v401 = vpop.f32.mrb[0].mxu0
      %v402 = vadd.f32 0.0, %v401
      %v403 = vpop.f32.mrb[0].mxu0
      %v404 = vadd.f32 0.0, %v403
      %v405 = vpop.f32.mrb[0].mxu0
      %v406 = vpop.f32.mrb[0].mxu0
      %407 = vdwg.mxu0
      %v408 = vmax.f32 %v361, 0.0
      %v409 = vmax.f32 %v363, 0.0
      %v410 = vmax.f32 %v402, 0.0
      %v411 = vmax.f32 %v404, 0.0
      %v412 = vpack.c.bf16 %v408, %v408
      %v413 = vpack.c.bf16 %v409, %v409
      %v414 = vpack.c.bf16 %v410, %v410
      %v415 = vpack.c.bf16 %v411, %v411
      %v420 = vunpack.c.l.b16 %v412
      %v421 = vunpack.c.l.b16 %v413
      %v422 = vunpack.c.l.b16 %v414
      %v423 = vunpack.c.l.b16 %v415
      %v424 = vpack.c.b16 %v421, %v420
      %v425 = vpack.c.b16 %v423, %v422
      %428 = vst [vmem:[%s198] sm:$0xff] %v424
      %429 = vst [vmem:[%s198 + $0x8] sm:$0xff] %v425
      %s430 = smul.u32 4, %s18
      %p431 = scmp.lt.s32.totalorder %s17, 1
      %s432 = scalar_select %p431, %s17, 1
      %p433 = scmp.lt.s32.totalorder %s430, 3
      %s434 = scalar_select %p433, %s430, 3
      %s435 = smul.addr %s432, 4
      %s436 = sadd.s32 %s434, %s435
      %s437 = smul.addr %s436, 4
      %s438 = scalar_lea.vmem %s2, %s437
      // Predicated region
      $region29: #{distiller_forward.8} parent=27 // pred_check
        %p439 = pneg %p99
      $region30: #{distiller_forward.8} parent=27 // pred_check_branch
        %441 = sbr.rel (%p439) target = $region32
      $region31: #{distiller_forward.8} parent=27 // pred_region
        %s442 = smul.u32 4, %s18
      $region32: #{distiller_forward.8} parent=27 // pred_fallthru
        _
    $region28: #{distiller_forward.8} parent=5 // pred_fallthru
      _
    %p443 = scmp.le.s32.totalorder 2, %s8
    // Predicated region
    $region33: #{distiller_forward.8} parent=5 // pred_check
      %p444 = pneg %p443
    $region34: #{distiller_forward.8} parent=5 // pred_check_branch
      %446 = sbr.rel (%p444) target = $region36
    $region35: #{distiller_forward.8} parent=5 // pred_region
      %s447 = ssub.s32 %s8, 2
      // Predicated region
      $region37: #{distiller_forward.8} parent=35 // pred_check
        %p448 = pneg %p105
      $region38: #{distiller_forward.8} parent=35 // pred_check_branch
        %450 = sbr.rel (%p448) target = $region40
      $region39: #{distiller_forward.8} parent=35 // pred_region
        %s451 = smul.u32 4, %s20
        %p452 = scmp.lt.s32.totalorder %s19, 1
        %s453 = scalar_select %p452, %s19, 1
        %p454 = scmp.lt.s32.totalorder %s451, 3
        %s455 = scalar_select %p454, %s451, 3
        %s456 = smul.addr %s453, 4
        %s457 = sadd.s32 %s455, %s456
        %s458 = smul.addr %s457, 4
        %s459 = scalar_lea.vmem %s2, %s458
      $region40: #{distiller_forward.8} parent=35 // pred_fallthru
        _
    $region36: #{distiller_forward.8} parent=5 // pred_fallthru
      _
  $region6: #{distiller_forward.8} parent=0 // loop_footer
    %s12 = sadd.s32 1, %s8
  $region7: #{distiller_forward.8} parent=0 // loop_footer_branch
    %7 = sbr.rel target = $region3
  $region8: #{distiller_forward.8} parent=0 // loop_exit
    _

// kernel: distiller_forward.9
$region0: #{distiller_forward.9}
  #allocation0 [shape = 'u32[]', space=smem, size = 0x4, offset = 0x4, fixed_abs, tag = 'smem constant byte address 0x4 - core index']
  #allocation1 [shape = 'u32[144,128]{1,0:T(1,128)}', space=vmem, size = 0x12000, scoped, tag = 'internal scratch']
  %s0 = inlined_call_operand.vmem [shape: bf16[2,16,80], index: 0, kind: input, shape index: {}]
  %s1 = inlined_call_operand.vmem [shape: bf16[2,80,128], index: 1, kind: input, shape index: {}]
  %s2 = inlined_call_operand.vmem [shape: bf16[2,16,128], index: 2, kind: output, shape index: {}]
  %s3 = sld [smem:[#allocation0]]
  $region41: #{distiller_forward.9} parent=0
    _
  %s5 = ssub.s32 1, %s3
  %s6 = scalar_select 0, %s5, %s3
  loop: start=0, step=1, limit=4
  $region2: #{distiller_forward.9} parent=0 // loop_pre_header
    _
  $region3: #{distiller_forward.9} parent=0 // loop_header
    %s8 = sphi 0, %s12
    %p9 = scmp.ge.s32.totalorder %s8, 4
    %s15 = sphi 0, %s27
    %s16 = sphi 0, %s23
    %s17 = sphi 0, %s15
    %s18 = sphi 0, %s16
    %s19 = sphi 0, %s17
    %s20 = sphi 0, %s18
    %s30 = sphi 0, %s32
    %s33 = sphi 0, %s30
    %s34 = sphi 0, %s33
    %s50 = sphi 0, %s34
    %s58 = sphi 0, %s60
    %s61 = sphi 0, %s58
    %s62 = sphi 0, %s61
    %s78 = sphi 0, %s62
    %s86 = sphi 0, %s88
    %s89 = sphi 0, %s86
    %s90 = sphi 0, %s89
    %s106 = sphi 0, %s90
  $region4: #{distiller_forward.9} parent=0 // loop_header_branch
    %11 = sbr.rel (%p9) target = $region8
  $region5: #{distiller_forward.9} parent=0 // loop_body
    %s13 = ssub.s32 %s8, 1
    %s14 = ssub.s32 %s8, 2
    %s21 = sadd.s32 1, %s16
    %p22 = scmp.ge.s32.totalorder %s21, 1
    %s23 = scalar_select %p22, 0, %s21
    %s24 = sadd.s32 1, %s15
    %s25 = scalar_select %p22, %s24, %s15
    %p26 = scmp.ge.s32.totalorder %s25, 2
    %s27 = scalar_select %p26, 0, %s25
    %s28 = ssub.s32 %s15, %s27
    %p29 = scmp.eq.s32.totalorder %s28, 0
    %s31 = sadd.s32 %s30, 1
    %s32 = scalar_select %p29, %s30, %s31
    %p35 = pneg %p29
    %p36 = scmp.eq.s32.totalorder %s8, 1
    %p37 = por %p35, %p36
    %p38 = scmp.ne.s32.totalorder %s30, %s33
    %p39 = scmp.eq.s32.totalorder %s8, 0
    %p40 = por %p38, %p39
    %p41 = scmp.ne.s32.totalorder %s30, %s33
    %p42 = scmp.eq.s32.totalorder %s13, 1
    %p43 = por %p41, %p42
    %p44 = scmp.ne.s32.totalorder %s33, %s34
    %p45 = scmp.eq.s32.totalorder %s13, 0
    %p46 = por %p44, %p45
    %p47 = scmp.ne.s32.totalorder %s33, %s34
    %p48 = scmp.eq.s32.totalorder %s14, 1
    %p49 = por %p47, %p48
    %p51 = scmp.ne.s32.totalorder %s34, %s50
    %p52 = scmp.eq.s32.totalorder %s14, 0
    %p53 = por %p51, %p52
    %s54 = ssub.s32 %s15, %s27
    %s55 = ssub.s32 %s16, %s23
    %s56 = sor.u32 %s54, %s55
    %p57 = scmp.eq.s32.totalorder %s56, 0
    %s59 = sadd.s32 %s58, 1
    %s60 = scalar_select %p57, %s58, %s59
    %p63 = pneg %p57
    %p64 = scmp.eq.s32.totalorder %s8, 1
    %p65 = por %p63, %p64
    %p66 = scmp.ne.s32.totalorder %s58, %s61
    %p67 = scmp.eq.s32.totalorder %s8, 0
    %p68 = por %p66, %p67
    %p69 = scmp.ne.s32.totalorder %s58, %s61
    %p70 = scmp.eq.s32.totalorder %s13, 1
    %p71 = por %p69, %p70
    %p72 = scmp.ne.s32.totalorder %s61, %s62
    %p73 = scmp.eq.s32.totalorder %s13, 0
    %p74 = por %p72, %p73
    %p75 = scmp.ne.s32.totalorder %s61, %s62
    %p76 = scmp.eq.s32.totalorder %s14, 1
    %p77 = por %p75, %p76
    %p79 = scmp.ne.s32.totalorder %s62, %s78
    %p80 = scmp.eq.s32.totalorder %s14, 0
    %p81 = por %p79, %p80
    %s82 = ssub.s32 %s15, %s27
    %s83 = ssub.s32 %s16, %s23
    %s84 = sor.u32 %s82, %s83
    %p85 = scmp.eq.s32.totalorder %s84, 0
    %s87 = sadd.s32 %s86, 1
    %s88 = scalar_select %p85, %s86, %s87
    %p91 = pneg %p85
    %p92 = scmp.eq.s32.totalorder %s8, 1
    %p93 = por %p91, %p92
    %p94 = scmp.ne.s32.totalorder %s86, %s89
    %p95 = scmp.eq.s32.totalorder %s8, 0
    %p96 = por %p94, %p95
    %p97 = scmp.ne.s32.totalorder %s86, %s89
    %p98 = scmp.eq.s32.totalorder %s13, 1
    %p99 = por %p97, %p98
    %p100 = scmp.ne.s32.totalorder %s89, %s90
    %p101 = scmp.eq.s32.totalorder %s13, 0
    %p102 = por %p100, %p101
    %p103 = scmp.ne.s32.totalorder %s89, %s90
    %p104 = scmp.eq.s32.totalorder %s14, 1
    %p105 = por %p103, %p104
    %p107 = scmp.ne.s32.totalorder %s90, %s106
    %p108 = scmp.eq.s32.totalorder %s14, 0
    %p109 = por %p107, %p108
    %p110 = scmp.le.s32.totalorder 1, %s8
    %p111 = scmp.lt.s32.totalorder %s8, 3
    %p112 = pnand %p110, %p111
    %p113 = pneg %p112
    // Predicated region
    $region9: #{distiller_forward.9} parent=5 // pred_check
      _
    $region10: #{distiller_forward.9} parent=5 // pred_check_branch
      %115 = sbr.rel (%p112) target = $region12
    $region11: #{distiller_forward.9} parent=5 // pred_region
      %s116 = ssub.s32 %s8, 1
    $region12: #{distiller_forward.9} parent=5 // pred_fallthru
      _
    %p117 = scmp.lt.s32.totalorder %s8, 2
    // Predicated region
    $region13: #{distiller_forward.9} parent=5 // pred_check
      %p118 = pneg %p117
    $region14: #{distiller_forward.9} parent=5 // pred_check_branch
      %120 = sbr.rel (%p118) target = $region16
    $region15: #{distiller_forward.9} parent=5 // pred_region
      // Predicated region
      $region17: #{distiller_forward.9} parent=15 // pred_check
        %p121 = pneg %p40
      $region18: #{distiller_forward.9} parent=15 // pred_check_branch
        %123 = sbr.rel (%p121) target = $region20
      $region19: #{distiller_forward.9} parent=15 // pred_region
        %p124 = scmp.lt.s32.totalorder %s15, 1
        %s125 = scalar_select %p124, %s15, 1
        %s126 = smul.addr %s125, 2
        %s127 = smul.addr %s126, 4
        %s128 = scalar_lea.vmem %s0, %s127
      $region20: #{distiller_forward.9} parent=15 // pred_fallthru
        _
      // Predicated region
      $region21: #{distiller_forward.9} parent=15 // pred_check
        %p129 = pneg %p68
      $region22: #{distiller_forward.9} parent=15 // pred_check_branch
        %131 = sbr.rel (%p129) target = $region24
      $region23: #{distiller_forward.9} parent=15 // pred_region
        %p132 = scmp.lt.s32.totalorder %s15, 1
        %s133 = scalar_select %p132, %s15, 1
        %p134 = scmp.lt.s32.totalorder %s16, 0
        %s135 = scalar_select %p134, %s16, 0
        %s136 = smul.addr %s133, 10
        %s137 = sadd.s32 %s135, %s136
        %s138 = smul.addr %s137, 4
        %s139 = scalar_lea.vmem %s1, %s138
      $region24: #{distiller_forward.9} parent=15 // pred_fallthru
        _
    $region16: #{distiller_forward.9} parent=5 // pred_fallthru
      _
    %p140 = scmp.le.s32.totalorder 1, %s8
    %p141 = scmp.lt.s32.totalorder %s8, 3
    %p142 = pnand %p140, %p141
    %p143 = pneg %p142
    // Predicated region
    $region25: #{distiller_forward.9} parent=5 // pred_check
      _
    $region26: #{distiller_forward.9} parent=5 // pred_check_branch
      %145 = sbr.rel (%p142) target = $region28
    $region27: #{distiller_forward.9} parent=5 // pred_region
      %s146 = ssub.s32 %s8, 1
      %p147 = scmp.lt.s32.totalorder %s17, 1
      %s148 = scalar_select %p147, %s17, 1
      %s149 = smul.addr %s148, 2
      %s150 = smul.addr %s149, 4
      %s151 = scalar_lea.vmem %s0, %s150
      %p152 = pneg %p46
      %p153 = pneg %p43
      %p154 = scmp.lt.s32.totalorder %s17, 1
      %s155 = scalar_select %p154, %s17, 1
      %p156 = scmp.lt.s32.totalorder %s18, 0
      %s157 = scalar_select %p156, %s18, 0
      %s158 = smul.addr %s155, 10
      %s159 = sadd.s32 %s157, %s158
      %s160 = smul.addr %s159, 4
      %s161 = scalar_lea.vmem %s1, %s160
      %p162 = pneg %p74
      %p163 = pneg %p71
      %p164 = pneg %p102
      %p165 = pneg %p99
      %p166 = scmp.lt.s32.totalorder %s17, 1
      %s167 = scalar_select %p166, %s17, 1
      %p168 = scmp.lt.s32.totalorder %s18, 0
      %s169 = scalar_select %p168, %s18, 0
      %s170 = smul.addr %s167, 2
      %s171 = sadd.s32 %s169, %s170
      %s172 = smul.addr %s171, 4
      %s173 = scalar_lea.vmem %s2, %s172
      %p174 = scmp.lt.s32.totalorder %s17, 1
      %s175 = scalar_select %p174, %s17, 1
      %s176 = smul.addr %s175, 2
      %s177 = smul.addr %s176, 4
      %s178 = scalar_lea.vmem %s0, %s177
      %p179 = scmp.lt.s32.totalorder %s17, 1
      %s180 = scalar_select %p179, %s17, 1
      %p181 = scmp.lt.s32.totalorder %s18, 0
      %s182 = scalar_select %p181, %s18, 0
      %s183 = smul.addr %s180, 10
      %s184 = sadd.s32 %s182, %s183
      %s185 = smul.addr %s184, 4
      %s186 = scalar_lea.vmem %s1, %s185
      %p187 = scmp.lt.s32.totalorder %s17, 1
      %s188 = scalar_select %p187, %s17, 1
      %p189 = scmp.lt.s32.totalorder %s18, 0
      %s190 = scalar_select %p189, %s18, 0
      %s191 = smul.addr %s188, 2
      %s192 = sadd.s32 %s190, %s191
      %s193 = smul.addr %s192, 4
      %s194 = scalar_lea.vmem %s2, %s193
      %v196 = vld [vmem:[%s178] sm:$0xf]
      %v197 = vld [vmem:[%s178 + $0x4] sm:$0xf]
      %v198 = vld [vmem:[%s186] sm:$0xf]
      %v199 = vld [vmem:[%s186 + $0x4] sm:$0xf]
      %v200 = vld [vmem:[%s186 + $0x8] sm:$0xf]
      %v201 = vld [vmem:[%s186 + $0xc] sm:$0xf]
      %v202 = vld [vmem:[%s186 + $0x10] sm:$0xf]
      %v203 = vld [vmem:[%s186 + $0x14] sm:$0xf]
      %v204 = vld [vmem:[%s186 + $0x18] sm:$0xf]
      %v205 = vld [vmem:[%s186 + $0x1c] sm:$0xf]
      %v206 = vld [vmem:[%s186 + $0x20] sm:$0xf]
      %v207 = vld [vmem:[%s186 + $0x24] sm:$0xf]
      %v210 = vunpack.c.l.b16 %v196
      %v211 = vunpack.c.l.b16 %v197
      %v212 = vpack.c.b16 %v211, %v210
      %v223 = vunpack.c.l.b16 %v198
      %v224 = vunpack.c.l.b16 %v199
      %v225 = vunpack.c.l.b16 %v200
      %v226 = vunpack.c.l.b16 %v201
      %v227 = vunpack.c.l.b16 %v202
      %v228 = vunpack.c.l.b16 %v203
      %v229 = vunpack.c.l.b16 %v204
      %v230 = vunpack.c.l.b16 %v205
      %v231 = vunpack.c.l.b16 %v206
      %v232 = vunpack.c.l.b16 %v207
      %v233 = vpack.c.b16 %v224, %v223
      %v234 = vpack.c.b16 %v226, %v225
      %v235 = vpack.c.b16 %v228, %v227
      %v236 = vpack.c.b16 %v230, %v229
      %v237 = vpack.c.b16 %v232, %v231
      %vm243 = vcmask 654336
      %v245 = vsel %vm243, %v212, 0
      %247 = vmatprep.subr.bf16.mxu0 0
      %248 = vmatpush1.bf16.msra.mxu0 %v233
      %249 = vmatprep.subr.bf16.mxu0 0
      %250 = vmatpush1.bf16.msra.mxu0 %v234
      %251 = vmatprep.subr.bf16.mxu0 0
      %252 = vmatpush1.bf16.msra.mxu0 %v235
      %253 = vmatprep.subr.bf16.mxu0 0
      %254 = vmatpush1.bf16.msra.mxu0 %v236
      %255 = vmatprep.subr.bf16.mxu0 0
      %256 = vmatpush1.bf16.msra.mxu0 %v237
      %257 = vmatprep.subr.bf16.mxu0 0
      %258 = vmatpush1.bf16.msra.mxu0 0
      %259 = vmatprep.subr.bf16.mxu0 0
      %260 = vmatpush1.bf16.msra.mxu0 0
      %261 = vmatprep.subr.bf16.mxu0 0
      %262 = vmatpush1.bf16.msra.mxu0 0
      %263 = vmatprep.subr.bf16.mxu0 0
      %264 = vmatpush1.bf16.msra.mxu0 0
      %265 = vmatprep.subr.bf16.mxu0 0
      %266 = vmatpush1.bf16.msra.mxu0 0
      %267 = vmatprep.subr.bf16.mxu0 0
      %268 = vmatpush1.bf16.msra.mxu0 0
      %269 = vmatprep.subr.bf16.mxu0 0
      %270 = vmatpush1.bf16.msra.mxu0 0
      %271 = vmatprep.subr.bf16.mxu0 0
      %272 = vmatpush1.bf16.msra.mxu0 0
      %273 = vmatprep.subr.bf16.mxu0 0
      %274 = vmatpush1.bf16.msra.mxu0 0
      %275 = vmatprep.subr.bf16.mxu0 0
      %276 = vmatpush1.bf16.msra.mxu0 0
      %277 = vmatprep.subr.bf16.mxu0 0
      %278 = vmatpush1.bf16.msra.mxu0 0
      %279 = vmatprep.mubr.bf16.mxu0 0
      %280 = vmatmul.mubr.bf16.gmra.mrb[0].mxu0 %v245
      %v281 = vpop.f32.mrb[0].mxu0
      %v282 = vadd.f32 0.0, %v281
      %v283 = vpop.f32.mrb[0].mxu0
      %v284 = vpop.f32.mrb[0].mxu0
      %v285 = vadd.f32 0.0, %v284
      %v286 = vpop.f32.mrb[0].mxu0
      %287 = vdwg.mxu0
      %v288 = vmax.f32 %v282, 0.0
      %v289 = vmax.f32 %v285, 0.0
      %v290 = vpack.c.bf16 %v289, %v288
      %v292 = vunpack.c.l.b16 %v290
      %v293 = vunpack.c.h.b16 %v290
      %v294 = vpack.c.b16 %v292, %v292
      %v295 = vpack.c.b16 %v293, %v293
      %298 = vst [vmem:[%s194] sm:$0xf] %v294
      %299 = vst [vmem:[%s194 + $0x4] sm:$0xf] %v295
      %p300 = scmp.lt.s32.totalorder %s17, 1
      %s301 = scalar_select %p300, %s17, 1
      %p302 = scmp.lt.s32.totalorder %s18, 0
      %s303 = scalar_select %p302, %s18, 0
      %s304 = smul.addr %s301, 2
      %s305 = sadd.s32 %s303, %s304
      %s306 = smul.addr %s305, 4
      %s307 = scalar_lea.vmem %s2, %s306
      // Predicated region
      $region29: #{distiller_forward.9} parent=27 // pred_check
        %p308 = pneg %p99
      $region30: #{distiller_forward.9} parent=27 // pred_check_branch
        %310 = sbr.rel (%p308) target = $region32
      $region31: #{distiller_forward.9} parent=27 // pred_region
        _
      $region32: #{distiller_forward.9} parent=27 // pred_fallthru
        _
    $region28: #{distiller_forward.9} parent=5 // pred_fallthru
      _
    %p311 = scmp.le.s32.totalorder 2, %s8
    // Predicated region
    $region33: #{distiller_forward.9} parent=5 // pred_check
      %p312 = pneg %p311
    $region34: #{distiller_forward.9} parent=5 // pred_check_branch
      %314 = sbr.rel (%p312) target = $region36
    $region35: #{distiller_forward.9} parent=5 // pred_region
      %s315 = ssub.s32 %s8, 2
      // Predicated region
      $region37: #{distiller_forward.9} parent=35 // pred_check
        %p316 = pneg %p105
      $region38: #{distiller_forward.9} parent=35 // pred_check_branch
        %318 = sbr.rel (%p316) target = $region40
      $region39: #{distiller_forward.9} parent=35 // pred_region
        %p319 = scmp.lt.s32.totalorder %s19, 1
        %s320 = scalar_select %p319, %s19, 1
        %p321 = scmp.lt.s32.totalorder %s20, 0
        %s322 = scalar_select %p321, %s20, 0
        %s323 = smul.addr %s320, 2
        %s324 = sadd.s32 %s322, %s323
        %s325 = smul.addr %s324, 4
        %s326 = scalar_lea.vmem %s2, %s325
      $region40: #{distiller_forward.9} parent=35 // pred_fallthru
        _
    $region36: #{distiller_forward.9} parent=5 // pred_fallthru
      _
  $region6: #{distiller_forward.9} parent=0 // loop_footer
    %s12 = sadd.s32 1, %s8
  $region7: #{distiller_forward.9} parent=0 // loop_footer_branch
    %7 = sbr.rel target = $region3
  $region8: #{distiller_forward.9} parent=0 // loop_exit
    _

// kernel: distiller_forward.10
$region0: #{distiller_forward.10}
  #allocation0 [shape = 'u32[]', space=smem, size = 0x4, offset = 0x4, fixed_abs, tag = 'smem constant byte address 0x4 - core index']
  #allocation1 [shape = 'u32[144,128]{1,0:T(1,128)}', space=vmem, size = 0x12000, scoped, tag = 'internal scratch']
  %s0 = inlined_call_operand.vmem [shape: bf16[2,32,144], index: 0, kind: input, shape index: {}]
  %s1 = inlined_call_operand.vmem [shape: bf16[2,144,32], index: 1, kind: input, shape index: {}]
  %s2 = inlined_call_operand.vmem [shape: bf16[2,32,32], index: 2, kind: output, shape index: {}]
  %s3 = sld [smem:[#allocation0]]
  $region41: #{distiller_forward.10} parent=0
    _
  %s5 = ssub.s32 1, %s3
  %s6 = scalar_select 0, %s5, %s3
  loop: start=0, step=1, limit=4
  $region2: #{distiller_forward.10} parent=0 // loop_pre_header
    _
  $region3: #{distiller_forward.10} parent=0 // loop_header
    %s8 = sphi 0, %s12
    %p9 = scmp.ge.s32.totalorder %s8, 4
    %s15 = sphi 0, %s27
    %s16 = sphi 0, %s23
    %s17 = sphi 0, %s15
    %s18 = sphi 0, %s16
    %s19 = sphi 0, %s17
    %s20 = sphi 0, %s18
    %s30 = sphi 0, %s32
    %s33 = sphi 0, %s30
    %s34 = sphi 0, %s33
    %s50 = sphi 0, %s34
    %s58 = sphi 0, %s60
    %s61 = sphi 0, %s58
    %s62 = sphi 0, %s61
    %s78 = sphi 0, %s62
    %s86 = sphi 0, %s88
    %s89 = sphi 0, %s86
    %s90 = sphi 0, %s89
    %s106 = sphi 0, %s90
  $region4: #{distiller_forward.10} parent=0 // loop_header_branch
    %11 = sbr.rel (%p9) target = $region8
  $region5: #{distiller_forward.10} parent=0 // loop_body
    %s13 = ssub.s32 %s8, 1
    %s14 = ssub.s32 %s8, 2
    %s21 = sadd.s32 1, %s16
    %p22 = scmp.ge.s32.totalorder %s21, 1
    %s23 = scalar_select %p22, 0, %s21
    %s24 = sadd.s32 1, %s15
    %s25 = scalar_select %p22, %s24, %s15
    %p26 = scmp.ge.s32.totalorder %s25, 2
    %s27 = scalar_select %p26, 0, %s25
    %s28 = ssub.s32 %s15, %s27
    %p29 = scmp.eq.s32.totalorder %s28, 0
    %s31 = sadd.s32 %s30, 1
    %s32 = scalar_select %p29, %s30, %s31
    %p35 = pneg %p29
    %p36 = scmp.eq.s32.totalorder %s8, 1
    %p37 = por %p35, %p36
    %p38 = scmp.ne.s32.totalorder %s30, %s33
    %p39 = scmp.eq.s32.totalorder %s8, 0
    %p40 = por %p38, %p39
    %p41 = scmp.ne.s32.totalorder %s30, %s33
    %p42 = scmp.eq.s32.totalorder %s13, 1
    %p43 = por %p41, %p42
    %p44 = scmp.ne.s32.totalorder %s33, %s34
    %p45 = scmp.eq.s32.totalorder %s13, 0
    %p46 = por %p44, %p45
    %p47 = scmp.ne.s32.totalorder %s33, %s34
    %p48 = scmp.eq.s32.totalorder %s14, 1
    %p49 = por %p47, %p48
    %p51 = scmp.ne.s32.totalorder %s34, %s50
    %p52 = scmp.eq.s32.totalorder %s14, 0
    %p53 = por %p51, %p52
    %s54 = ssub.s32 %s15, %s27
    %s55 = ssub.s32 %s16, %s23
    %s56 = sor.u32 %s54, %s55
    %p57 = scmp.eq.s32.totalorder %s56, 0
    %s59 = sadd.s32 %s58, 1
    %s60 = scalar_select %p57, %s58, %s59
    %p63 = pneg %p57
    %p64 = scmp.eq.s32.totalorder %s8, 1
    %p65 = por %p63, %p64
    %p66 = scmp.ne.s32.totalorder %s58, %s61
    %p67 = scmp.eq.s32.totalorder %s8, 0
    %p68 = por %p66, %p67
    %p69 = scmp.ne.s32.totalorder %s58, %s61
    %p70 = scmp.eq.s32.totalorder %s13, 1
    %p71 = por %p69, %p70
    %p72 = scmp.ne.s32.totalorder %s61, %s62
    %p73 = scmp.eq.s32.totalorder %s13, 0
    %p74 = por %p72, %p73
    %p75 = scmp.ne.s32.totalorder %s61, %s62
    %p76 = scmp.eq.s32.totalorder %s14, 1
    %p77 = por %p75, %p76
    %p79 = scmp.ne.s32.totalorder %s62, %s78
    %p80 = scmp.eq.s32.totalorder %s14, 0
    %p81 = por %p79, %p80
    %s82 = ssub.s32 %s15, %s27
    %s83 = ssub.s32 %s16, %s23
    %s84 = sor.u32 %s82, %s83
    %p85 = scmp.eq.s32.totalorder %s84, 0
    %s87 = sadd.s32 %s86, 1
    %s88 = scalar_select %p85, %s86, %s87
    %p91 = pneg %p85
    %p92 = scmp.eq.s32.totalorder %s8, 1
    %p93 = por %p91, %p92
    %p94 = scmp.ne.s32.totalorder %s86, %s89
    %p95 = scmp.eq.s32.totalorder %s8, 0
    %p96 = por %p94, %p95
    %p97 = scmp.ne.s32.totalorder %s86, %s89
    %p98 = scmp.eq.s32.totalorder %s13, 1
    %p99 = por %p97, %p98
    %p100 = scmp.ne.s32.totalorder %s89, %s90
    %p101 = scmp.eq.s32.totalorder %s13, 0
    %p102 = por %p100, %p101
    %p103 = scmp.ne.s32.totalorder %s89, %s90
    %p104 = scmp.eq.s32.totalorder %s14, 1
    %p105 = por %p103, %p104
    %p107 = scmp.ne.s32.totalorder %s90, %s106
    %p108 = scmp.eq.s32.totalorder %s14, 0
    %p109 = por %p107, %p108
    %p110 = scmp.le.s32.totalorder 1, %s8
    %p111 = scmp.lt.s32.totalorder %s8, 3
    %p112 = pnand %p110, %p111
    %p113 = pneg %p112
    // Predicated region
    $region9: #{distiller_forward.10} parent=5 // pred_check
      _
    $region10: #{distiller_forward.10} parent=5 // pred_check_branch
      %115 = sbr.rel (%p112) target = $region12
    $region11: #{distiller_forward.10} parent=5 // pred_region
      %s116 = ssub.s32 %s8, 1
    $region12: #{distiller_forward.10} parent=5 // pred_fallthru
      _
    %p117 = scmp.lt.s32.totalorder %s8, 2
    // Predicated region
    $region13: #{distiller_forward.10} parent=5 // pred_check
      %p118 = pneg %p117
    $region14: #{distiller_forward.10} parent=5 // pred_check_branch
      %120 = sbr.rel (%p118) target = $region16
    $region15: #{distiller_forward.10} parent=5 // pred_region
      // Predicated region
      $region17: #{distiller_forward.10} parent=15 // pred_check
        %p121 = pneg %p40
      $region18: #{distiller_forward.10} parent=15 // pred_check_branch
        %123 = sbr.rel (%p121) target = $region20
      $region19: #{distiller_forward.10} parent=15 // pred_region
        %p124 = scmp.lt.s32.totalorder %s15, 1
        %s125 = scalar_select %p124, %s15, 1
        %s126 = smul.addr %s125, 8
        %s127 = smul.addr %s126, 4
        %s128 = scalar_lea.vmem %s0, %s127
      $region20: #{distiller_forward.10} parent=15 // pred_fallthru
        _
      // Predicated region
      $region21: #{distiller_forward.10} parent=15 // pred_check
        %p129 = pneg %p68
      $region22: #{distiller_forward.10} parent=15 // pred_check_branch
        %131 = sbr.rel (%p129) target = $region24
      $region23: #{distiller_forward.10} parent=15 // pred_region
        %p132 = scmp.lt.s32.totalorder %s15, 1
        %s133 = scalar_select %p132, %s15, 1
        %p134 = scmp.lt.s32.totalorder %s16, 0
        %s135 = scalar_select %p134, %s16, 0
        %s136 = smul.addr %s133, 18
        %s137 = sadd.s32 %s135, %s136
        %s138 = smul.addr %s137, 4
        %s139 = scalar_lea.vmem %s1, %s138
      $region24: #{distiller_forward.10} parent=15 // pred_fallthru
        _
    $region16: #{distiller_forward.10} parent=5 // pred_fallthru
      _
    %p140 = scmp.le.s32.totalorder 1, %s8
    %p141 = scmp.lt.s32.totalorder %s8, 3
    %p142 = pnand %p140, %p141
    %p143 = pneg %p142
    // Predicated region
    $region25: #{distiller_forward.10} parent=5 // pred_check
      _
    $region26: #{distiller_forward.10} parent=5 // pred_check_branch
      %145 = sbr.rel (%p142) target = $region28
    $region27: #{distiller_forward.10} parent=5 // pred_region
      %s146 = ssub.s32 %s8, 1
      %p147 = scmp.lt.s32.totalorder %s17, 1
      %s148 = scalar_select %p147, %s17, 1
      %s149 = smul.addr %s148, 8
      %s150 = smul.addr %s149, 4
      %s151 = scalar_lea.vmem %s0, %s150
      %p152 = pneg %p46
      %p153 = pneg %p43
      %p154 = scmp.lt.s32.totalorder %s17, 1
      %s155 = scalar_select %p154, %s17, 1
      %p156 = scmp.lt.s32.totalorder %s18, 0
      %s157 = scalar_select %p156, %s18, 0
      %s158 = smul.addr %s155, 18
      %s159 = sadd.s32 %s157, %s158
      %s160 = smul.addr %s159, 4
      %s161 = scalar_lea.vmem %s1, %s160
      %p162 = pneg %p74
      %p163 = pneg %p71
      %p164 = pneg %p102
      %p165 = pneg %p99
      %p166 = scmp.lt.s32.totalorder %s17, 1
      %s167 = scalar_select %p166, %s17, 1
      %p168 = scmp.lt.s32.totalorder %s18, 0
      %s169 = scalar_select %p168, %s18, 0
      %s170 = smul.addr %s167, 4
      %s171 = sadd.s32 %s169, %s170
      %s172 = smul.addr %s171, 4
      %s173 = scalar_lea.vmem %s2, %s172
      %p174 = scmp.lt.s32.totalorder %s17, 1
      %s175 = scalar_select %p174, %s17, 1
      %s176 = smul.addr %s175, 8
      %s177 = smul.addr %s176, 4
      %s178 = scalar_lea.vmem %s0, %s177
      %p179 = scmp.lt.s32.totalorder %s17, 1
      %s180 = scalar_select %p179, %s17, 1
      %p181 = scmp.lt.s32.totalorder %s18, 0
      %s182 = scalar_select %p181, %s18, 0
      %s183 = smul.addr %s180, 18
      %s184 = sadd.s32 %s182, %s183
      %s185 = smul.addr %s184, 4
      %s186 = scalar_lea.vmem %s1, %s185
      %p187 = scmp.lt.s32.totalorder %s17, 1
      %s188 = scalar_select %p187, %s17, 1
      %p189 = scmp.lt.s32.totalorder %s18, 0
      %s190 = scalar_select %p189, %s18, 0
      %s191 = smul.addr %s188, 4
      %s192 = sadd.s32 %s190, %s191
      %s193 = smul.addr %s192, 4
      %s194 = scalar_lea.vmem %s2, %s193
      %v196 = vld [vmem:[%s178] sm:$0xff]
      %v197 = vld [vmem:[%s178 + $0x8] sm:$0xff]
      %v198 = vld [vmem:[%s178 + $0x10] sm:$0xff]
      %v199 = vld [vmem:[%s178 + $0x18] sm:$0xff]
      %v200 = vld [vmem:[%s186] sm:$0xf]
      %v201 = vld [vmem:[%s186 + $0x4] sm:$0xf]
      %v202 = vld [vmem:[%s186 + $0x8] sm:$0xf]
      %v203 = vld [vmem:[%s186 + $0xc] sm:$0xf]
      %v204 = vld [vmem:[%s186 + $0x10] sm:$0xf]
      %v205 = vld [vmem:[%s186 + $0x14] sm:$0xf]
      %v206 = vld [vmem:[%s186 + $0x18] sm:$0xf]
      %v207 = vld [vmem:[%s186 + $0x1c] sm:$0xf]
      %v208 = vld [vmem:[%s186 + $0x20] sm:$0xf]
      %v209 = vld [vmem:[%s186 + $0x24] sm:$0xf]
      %v210 = vld [vmem:[%s186 + $0x28] sm:$0xf]
      %v211 = vld [vmem:[%s186 + $0x2c] sm:$0xf]
      %v212 = vld [vmem:[%s186 + $0x30] sm:$0xf]
      %v213 = vld [vmem:[%s186 + $0x34] sm:$0xf]
      %v214 = vld [vmem:[%s186 + $0x38] sm:$0xf]
      %v215 = vld [vmem:[%s186 + $0x3c] sm:$0xf]
      %v216 = vld [vmem:[%s186 + $0x40] sm:$0xf]
      %v217 = vld [vmem:[%s186 + $0x44] sm:$0xf]
      %v222 = vunpack.c.l.b16 %v196
      %v223 = vunpack.c.h.b16 %v196
      %v224 = vunpack.c.l.b16 %v197
      %v225 = vunpack.c.h.b16 %v197
      %v226 = vunpack.c.l.b16 %v198
      %v227 = vunpack.c.h.b16 %v198
      %v228 = vunpack.c.l.b16 %v199
      %v229 = vunpack.c.h.b16 %v199
      %v230 = vpack.c.b16 %v224, %v222
      %v231 = vpack.c.b16 %v225, %v223
      %v232 = vpack.c.b16 %v228, %v226
      %v233 = vpack.c.b16 %v229, %v227
      %v254 = vunpack.c.l.b16 %v200
      %v255 = vunpack.c.l.b16 %v201
      %v256 = vunpack.c.l.b16 %v202
      %v257 = vunpack.c.l.b16 %v203
      %v258 = vunpack.c.l.b16 %v204
      %v259 = vunpack.c.l.b16 %v205
      %v260 = vunpack.c.l.b16 %v206
      %v261 = vunpack.c.l.b16 %v207
      %v262 = vunpack.c.l.b16 %v208
      %v263 = vunpack.c.l.b16 %v209
      %v264 = vunpack.c.l.b16 %v210
      %v265 = vunpack.c.l.b16 %v211
      %v266 = vunpack.c.l.b16 %v212
      %v267 = vunpack.c.l.b16 %v213
      %v268 = vunpack.c.l.b16 %v214
      %v269 = vunpack.c.l.b16 %v215
      %v270 = vunpack.c.l.b16 %v216
      %v271 = vunpack.c.l.b16 %v217
      %v272 = vpack.c.b16 %v255, %v254
      %v273 = vpack.c.b16 %v257, %v256
      %v274 = vpack.c.b16 %v259, %v258
      %v275 = vpack.c.b16 %v261, %v260
      %v276 = vpack.c.b16 %v263, %v262
      %v277 = vpack.c.b16 %v265, %v264
      %v278 = vpack.c.b16 %v267, %v266
      %v279 = vpack.c.b16 %v269, %v268
      %v280 = vpack.c.b16 %v271, %v270
      %vm290 = vcmask 130048
      %v292 = vsel %vm290, %v231, 0
      %v295 = vsel %vm290, %v233, 0
      %297 = vmatprep.subr.bf16.mxu0 0
      %298 = vmatpush1.bf16.msra.mxu0 %v272
      %299 = vmatprep.subr.bf16.mxu0 0
      %300 = vmatpush1.bf16.msra.mxu0 %v273
      %301 = vmatprep.subr.bf16.mxu0 0
      %302 = vmatpush1.bf16.msra.mxu0 %v274
      %303 = vmatprep.subr.bf16.mxu0 0
      %304 = vmatpush1.bf16.msra.mxu0 %v275
      %305 = vmatprep.subr.bf16.mxu0 0
      %306 = vmatpush1.bf16.msra.mxu0 %v276
      %307 = vmatprep.subr.bf16.mxu0 0
      %308 = vmatpush1.bf16.msra.mxu0 %v277
      %309 = vmatprep.subr.bf16.mxu0 0
      %310 = vmatpush1.bf16.msra.mxu0 %v278
      %311 = vmatprep.subr.bf16.mxu0 0
      %312 = vmatpush1.bf16.msra.mxu0 %v279
      %313 = vmatprep.subr.bf16.mxu0 0
      %314 = vmatpush1.bf16.msra.mxu0 %v280
      %315 = vmatprep.subr.bf16.mxu0 0
      %316 = vmatpush1.bf16.msra.mxu0 0
      %317 = vmatprep.subr.bf16.mxu0 0
      %318 = vmatpush1.bf16.msra.mxu0 0
      %319 = vmatprep.subr.bf16.mxu0 0
      %320 = vmatpush1.bf16.msra.mxu0 0
      %321 = vmatprep.subr.bf16.mxu0 0
      %322 = vmatpush1.bf16.msra.mxu0 0
      %323 = vmatprep.subr.bf16.mxu0 0
      %324 = vmatpush1.bf16.msra.mxu0 0
      %325 = vmatprep.subr.bf16.mxu0 0
      %326 = vmatpush1.bf16.msra.mxu0 0
      %327 = vmatprep.subr.bf16.mxu0 0
      %328 = vmatpush1.bf16.msra.mxu0 0
      %329 = vmatprep.mubr.bf16.mxu0 %v292
      %330 = vmatmul.mubr.bf16.gmra.mrb[0].mxu0 %v230
      %v331 = vpop.f32.mrb[0].mxu0
      %v332 = vadd.f32 0.0, %v331
      %v333 = vpop.f32.mrb[0].mxu0
      %v334 = vpop.f32.mrb[0].mxu0
      %v335 = vadd.f32 0.0, %v334
      %v336 = vpop.f32.mrb[0].mxu0
      %337 = vmatprep.mubr.bf16.mxu0 %v295
      %338 = vmatmul.mubr.bf16.gmra.mrb[0].mxu0 %v232
      %v339 = vpop.f32.mrb[0].mxu0
      %v340 = vadd.f32 0.0, %v339
      %v341 = vpop.f32.mrb[0].mxu0
      %v342 = vpop.f32.mrb[0].mxu0
      %v343 = vadd.f32 0.0, %v342
      %v344 = vpop.f32.mrb[0].mxu0
      %345 = vdwg.mxu0
      %v346 = vmax.f32 %v332, 0.0
      %v347 = vmax.f32 %v335, 0.0
      %v348 = vmax.f32 %v340, 0.0
      %v349 = vmax.f32 %v343, 0.0
      %v350 = vpack.c.bf16 %v347, %v346
      %v351 = vpack.c.bf16 %v349, %v348
      %v354 = vunpack.c.l.b16 %v350
      %v355 = vunpack.c.h.b16 %v350
      %v356 = vunpack.c.l.b16 %v351
      %v357 = vunpack.c.h.b16 %v351
      %v358 = vpack.c.b16 %v354, %v354
      %v359 = vpack.c.b16 %v355, %v355
      %v360 = vpack.c.b16 %v356, %v356
      %v361 = vpack.c.b16 %v357, %v357
      %vm366 = vcmask 257024
      %367 = vst.msk [vmem:[%s194] sm:$0xf] %vm366, %v358
      %368 = vst.msk [vmem:[%s194 + $0x4] sm:$0xf] %vm366, %v359
      %369 = vst.msk [vmem:[%s194 + $0x8] sm:$0xf] %vm366, %v360
      %370 = vst.msk [vmem:[%s194 + $0xc] sm:$0xf] %vm366, %v361
      %p371 = scmp.lt.s32.totalorder %s17, 1
      %s372 = scalar_select %p371, %s17, 1
      %p373 = scmp.lt.s32.totalorder %s18, 0
      %s374 = scalar_select %p373, %s18, 0
      %s375 = smul.addr %s372, 4
      %s376 = sadd.s32 %s374, %s375
      %s377 = smul.addr %s376, 4
      %s378 = scalar_lea.vmem %s2, %s377
      // Predicated region
      $region29: #{distiller_forward.10} parent=27 // pred_check
        %p379 = pneg %p99
      $region30: #{distiller_forward.10} parent=27 // pred_check_branch
        %381 = sbr.rel (%p379) target = $region32
      $region31: #{distiller_forward.10} parent=27 // pred_region
        _
      $region32: #{distiller_forward.10} parent=27 // pred_fallthru
        _
    $region28: #{distiller_forward.10} parent=5 // pred_fallthru
      _
    %p382 = scmp.le.s32.totalorder 2, %s8
    // Predicated region
    $region33: #{distiller_forward.10} parent=5 // pred_check
      %p383 = pneg %p382
    $region34: #{distiller_forward.10} parent=5 // pred_check_branch
      %385 = sbr.rel (%p383) target = $region36
    $region35: #{distiller_forward.10} parent=5 // pred_region
      %s386 = ssub.s32 %s8, 2
      // Predicated region
      $region37: #{distiller_forward.10} parent=35 // pred_check
        %p387 = pneg %p105
      $region38: #{distiller_forward.10} parent=35 // pred_check_branch
        %389 = sbr.rel (%p387) target = $region40
      $region39: #{distiller_forward.10} parent=35 // pred_region
        %p390 = scmp.lt.s32.totalorder %s19, 1
        %s391 = scalar_select %p390, %s19, 1
        %p392 = scmp.lt.s32.totalorder %s20, 0
        %s393 = scalar_select %p392, %s20, 0
        %s394 = smul.addr %s391, 4
        %s395 = sadd.s32 %s393, %s394
        %s396 = smul.addr %s395, 4
        %s397 = scalar_lea.vmem %s2, %s396
      $region40: #{distiller_forward.10} parent=35 // pred_fallthru
        _
    $region36: #{distiller_forward.10} parent=5 // pred_fallthru
      _
  $region6: #{distiller_forward.10} parent=0 // loop_footer
    %s12 = sadd.s32 1, %s8
  $region7: #{distiller_forward.10} parent=0 // loop_footer_branch
    %7 = sbr.rel target = $region3
  $region8: #{distiller_forward.10} parent=0 // loop_exit
    _

// kernel: squeeze.20
$region0: #{squeeze.20}
  %s0 = inlined_call_operand.vmem [shape: bf16[1,32,2,2,2], index: 0, kind: input, shape index: {}]
  %s1 = inlined_call_operand.vmem [shape: bf16[256], index: 1, kind: output, shape index: {}]
  $region1: #{squeeze.20} parent=0
    #allocation0 [shape = 'u8[4096]{0}', space=vmem, size = 0x1000, scoped, tag = 'scoped mem for output reshape']
    #allocation1 [shape = 'u8[262144]{0}', space=vmem, size = 0x40000, scoped, tag = 'scoped mem for input reshape']
    %s3 = smul.u32 1, 2
    %s4 = sshllo.u32 0, %s3
    %s5 = smul.addr 1, 63
    %s6 = scalar_lea.vmem %s0, %s5
    %s7 = sshrl.u32 %s4, 1
    %s8 = sor.u32 %s4, %s7
    %s9 = sand.u32 %s8, 85
    %s10 = sshrl.u32 %s9, 1
    %s11 = sor.u32 %s9, %s10
    %s12 = sand.u32 51, %s11
    %s13 = sshrl.u32 %s12, 2
    %s14 = sor.u32 %s12, %s13
    %s15 = sand.u32 15, %s14
    %v16 = vld [vmem:[%s6] sm:%s15]
    %v17 = vunpack.c.l.bf16 %v16
    %v18 = vunpack.c.h.bf16 %v16
    %s19 = scalar_lea.vmem [#allocation1], 504
    %20 = vst [vmem:[%s19] sm:%s4] %v17
    %s21 = smul.addr 1, 62
    %s22 = scalar_lea.vmem %s0, %s21
    %s23 = sshrl.u32 %s4, 1
    %s24 = sor.u32 %s4, %s23
    %s25 = sand.u32 %s24, 85
    %s26 = sshrl.u32 %s25, 1
    %s27 = sor.u32 %s25, %s26
    %s28 = sand.u32 51, %s27
    %s29 = sshrl.u32 %s28, 2
    %s30 = sor.u32 %s28, %s29
    %s31 = sand.u32 15, %s30
    %v32 = vld [vmem:[%s22] sm:%s31]
    %v33 = vunpack.c.l.bf16 %v32
    %v34 = vunpack.c.h.bf16 %v32
    %s35 = scalar_lea.vmem [#allocation1], 496
    %36 = vst [vmem:[%s35] sm:%s4] %v33
    %s37 = smul.addr 1, 61
    %s38 = scalar_lea.vmem %s0, %s37
    %s39 = sshrl.u32 %s4, 1
    %s40 = sor.u32 %s4, %s39
    %s41 = sand.u32 %s40, 85
    %s42 = sshrl.u32 %s41, 1
    %s43 = sor.u32 %s41, %s42
    %s44 = sand.u32 51, %s43
    %s45 = sshrl.u32 %s44, 2
    %s46 = sor.u32 %s44, %s45
    %s47 = sand.u32 15, %s46
    %v48 = vld [vmem:[%s38] sm:%s47]
    %v49 = vunpack.c.l.bf16 %v48
    %v50 = vunpack.c.h.bf16 %v48
    %s51 = scalar_lea.vmem [#allocation1], 488
    %52 = vst [vmem:[%s51] sm:%s4] %v49
    %s53 = smul.addr 1, 60
    %s54 = scalar_lea.vmem %s0, %s53
    %s55 = sshrl.u32 %s4, 1
    %s56 = sor.u32 %s4, %s55
    %s57 = sand.u32 %s56, 85
    %s58 = sshrl.u32 %s57, 1
    %s59 = sor.u32 %s57, %s58
    %s60 = sand.u32 51, %s59
    %s61 = sshrl.u32 %s60, 2
    %s62 = sor.u32 %s60, %s61
    %s63 = sand.u32 15, %s62
    %v64 = vld [vmem:[%s54] sm:%s63]
    %v65 = vunpack.c.l.bf16 %v64
    %v66 = vunpack.c.h.bf16 %v64
    %s67 = scalar_lea.vmem [#allocation1], 480
    %68 = vst [vmem:[%s67] sm:%s4] %v65
    %s69 = smul.addr 1, 59
    %s70 = scalar_lea.vmem %s0, %s69
    %s71 = sshrl.u32 %s4, 1
    %s72 = sor.u32 %s4, %s71
    %s73 = sand.u32 %s72, 85
    %s74 = sshrl.u32 %s73, 1
    %s75 = sor.u32 %s73, %s74
    %s76 = sand.u32 51, %s75
    %s77 = sshrl.u32 %s76, 2
    %s78 = sor.u32 %s76, %s77
    %s79 = sand.u32 15, %s78
    %v80 = vld [vmem:[%s70] sm:%s79]
    %v81 = vunpack.c.l.bf16 %v80
    %v82 = vunpack.c.h.bf16 %v80
    %s83 = scalar_lea.vmem [#allocation1], 472
    %84 = vst [vmem:[%s83] sm:%s4] %v81
    %s85 = smul.addr 1, 58
    %s86 = scalar_lea.vmem %s0, %s85
    %s87 = sshrl.u32 %s4, 1
    %s88 = sor.u32 %s4, %s87
    %s89 = sand.u32 %s88, 85
    %s90 = sshrl.u32 %s89, 1
    %s91 = sor.u32 %s89, %s90
    %s92 = sand.u32 51, %s91
    %s93 = sshrl.u32 %s92, 2
    %s94 = sor.u32 %s92, %s93
    %s95 = sand.u32 15, %s94
    %v96 = vld [vmem:[%s86] sm:%s95]
    %v97 = vunpack.c.l.bf16 %v96
    %v98 = vunpack.c.h.bf16 %v96
    %s99 = scalar_lea.vmem [#allocation1], 464
    %100 = vst [vmem:[%s99] sm:%s4] %v97
    %s101 = smul.addr 1, 57
    %s102 = scalar_lea.vmem %s0, %s101
    %s103 = sshrl.u32 %s4, 1
    %s104 = sor.u32 %s4, %s103
    %s105 = sand.u32 %s104, 85
    %s106 = sshrl.u32 %s105, 1
    %s107 = sor.u32 %s105, %s106
    %s108 = sand.u32 51, %s107
    %s109 = sshrl.u32 %s108, 2
    %s110 = sor.u32 %s108, %s109
    %s111 = sand.u32 15, %s110
    %v112 = vld [vmem:[%s102] sm:%s111]
    %v113 = vunpack.c.l.bf16 %v112
    %v114 = vunpack.c.h.bf16 %v112
    %s115 = scalar_lea.vmem [#allocation1], 456
    %116 = vst [vmem:[%s115] sm:%s4] %v113
    %s117 = smul.addr 1, 56
    %s118 = scalar_lea.vmem %s0, %s117
    %s119 = sshrl.u32 %s4, 1
    %s120 = sor.u32 %s4, %s119
    %s121 = sand.u32 %s120, 85
    %s122 = sshrl.u32 %s121, 1
    %s123 = sor.u32 %s121, %s122
    %s124 = sand.u32 51, %s123
    %s125 = sshrl.u32 %s124, 2
    %s126 = sor.u32 %s124, %s125
    %s127 = sand.u32 15, %s126
    %v128 = vld [vmem:[%s118] sm:%s127]
    %v129 = vunpack.c.l.bf16 %v128
    %v130 = vunpack.c.h.bf16 %v128
    %s131 = scalar_lea.vmem [#allocation1], 448
    %132 = vst [vmem:[%s131] sm:%s4] %v129
    %s133 = smul.addr 1, 55
    %s134 = scalar_lea.vmem %s0, %s133
    %s135 = sshrl.u32 %s4, 1
    %s136 = sor.u32 %s4, %s135
    %s137 = sand.u32 %s136, 85
    %s138 = sshrl.u32 %s137, 1
    %s139 = sor.u32 %s137, %s138
    %s140 = sand.u32 51, %s139
    %s141 = sshrl.u32 %s140, 2
    %s142 = sor.u32 %s140, %s141
    %s143 = sand.u32 15, %s142
    %v144 = vld [vmem:[%s134] sm:%s143]
    %v145 = vunpack.c.l.bf16 %v144
    %v146 = vunpack.c.h.bf16 %v144
    %s147 = scalar_lea.vmem [#allocation1], 440
    %148 = vst [vmem:[%s147] sm:%s4] %v145
    %s149 = smul.addr 1, 54
    %s150 = scalar_lea.vmem %s0, %s149
    %s151 = sshrl.u32 %s4, 1
    %s152 = sor.u32 %s4, %s151
    %s153 = sand.u32 %s152, 85
    %s154 = sshrl.u32 %s153, 1
    %s155 = sor.u32 %s153, %s154
    %s156 = sand.u32 51, %s155
    %s157 = sshrl.u32 %s156, 2
    %s158 = sor.u32 %s156, %s157
    %s159 = sand.u32 15, %s158
    %v160 = vld [vmem:[%s150] sm:%s159]
    %v161 = vunpack.c.l.bf16 %v160
    %v162 = vunpack.c.h.bf16 %v160
    %s163 = scalar_lea.vmem [#allocation1], 432
    %164 = vst [vmem:[%s163] sm:%s4] %v161
    %s165 = smul.addr 1, 53
    %s166 = scalar_lea.vmem %s0, %s165
    %s167 = sshrl.u32 %s4, 1
    %s168 = sor.u32 %s4, %s167
    %s169 = sand.u32 %s168, 85
    %s170 = sshrl.u32 %s169, 1
    %s171 = sor.u32 %s169, %s170
    %s172 = sand.u32 51, %s171
    %s173 = sshrl.u32 %s172, 2
    %s174 = sor.u32 %s172, %s173
    %s175 = sand.u32 15, %s174
    %v176 = vld [vmem:[%s166] sm:%s175]
    %v177 = vunpack.c.l.bf16 %v176
    %v178 = vunpack.c.h.bf16 %v176
    %s179 = scalar_lea.vmem [#allocation1], 424
    %180 = vst [vmem:[%s179] sm:%s4] %v177
    %s181 = smul.addr 1, 52
    %s182 = scalar_lea.vmem %s0, %s181
    %s183 = sshrl.u32 %s4, 1
    %s184 = sor.u32 %s4, %s183
    %s185 = sand.u32 %s184, 85
    %s186 = sshrl.u32 %s185, 1
    %s187 = sor.u32 %s185, %s186
    %s188 = sand.u32 51, %s187
    %s189 = sshrl.u32 %s188, 2
    %s190 = sor.u32 %s188, %s189
    %s191 = sand.u32 15, %s190
    %v192 = vld [vmem:[%s182] sm:%s191]
    %v193 = vunpack.c.l.bf16 %v192
    %v194 = vunpack.c.h.bf16 %v192
    %s195 = scalar_lea.vmem [#allocation1], 416
    %196 = vst [vmem:[%s195] sm:%s4] %v193
    %s197 = smul.addr 1, 51
    %s198 = scalar_lea.vmem %s0, %s197
    %s199 = sshrl.u32 %s4, 1
    %s200 = sor.u32 %s4, %s199
    %s201 = sand.u32 %s200, 85
    %s202 = sshrl.u32 %s201, 1
    %s203 = sor.u32 %s201, %s202
    %s204 = sand.u32 51, %s203
    %s205 = sshrl.u32 %s204, 2
    %s206 = sor.u32 %s204, %s205
    %s207 = sand.u32 15, %s206
    %v208 = vld [vmem:[%s198] sm:%s207]
    %v209 = vunpack.c.l.bf16 %v208
    %v210 = vunpack.c.h.bf16 %v208
    %s211 = scalar_lea.vmem [#allocation1], 408
    %212 = vst [vmem:[%s211] sm:%s4] %v209
    %s213 = smul.addr 1, 50
    %s214 = scalar_lea.vmem %s0, %s213
    %s215 = sshrl.u32 %s4, 1
    %s216 = sor.u32 %s4, %s215
    %s217 = sand.u32 %s216, 85
    %s218 = sshrl.u32 %s217, 1
    %s219 = sor.u32 %s217, %s218
    %s220 = sand.u32 51, %s219
    %s221 = sshrl.u32 %s220, 2
    %s222 = sor.u32 %s220, %s221
    %s223 = sand.u32 15, %s222
    %v224 = vld [vmem:[%s214] sm:%s223]
    %v225 = vunpack.c.l.bf16 %v224
    %v226 = vunpack.c.h.bf16 %v224
    %s227 = scalar_lea.vmem [#allocation1], 400
    %228 = vst [vmem:[%s227] sm:%s4] %v225
    %s229 = smul.addr 1, 49
    %s230 = scalar_lea.vmem %s0, %s229
    %s231 = sshrl.u32 %s4, 1
    %s232 = sor.u32 %s4, %s231
    %s233 = sand.u32 %s232, 85
    %s234 = sshrl.u32 %s233, 1
    %s235 = sor.u32 %s233, %s234
    %s236 = sand.u32 51, %s235
    %s237 = sshrl.u32 %s236, 2
    %s238 = sor.u32 %s236, %s237
    %s239 = sand.u32 15, %s238
    %v240 = vld [vmem:[%s230] sm:%s239]
    %v241 = vunpack.c.l.bf16 %v240
    %v242 = vunpack.c.h.bf16 %v240
    %s243 = scalar_lea.vmem [#allocation1], 392
    %244 = vst [vmem:[%s243] sm:%s4] %v241
    %s245 = smul.addr 1, 48
    %s246 = scalar_lea.vmem %s0, %s245
    %s247 = sshrl.u32 %s4, 1
    %s248 = sor.u32 %s4, %s247
    %s249 = sand.u32 %s248, 85
    %s250 = sshrl.u32 %s249, 1
    %s251 = sor.u32 %s249, %s250
    %s252 = sand.u32 51, %s251
    %s253 = sshrl.u32 %s252, 2
    %s254 = sor.u32 %s252, %s253
    %s255 = sand.u32 15, %s254
    %v256 = vld [vmem:[%s246] sm:%s255]
    %v257 = vunpack.c.l.bf16 %v256
    %v258 = vunpack.c.h.bf16 %v256
    %s259 = scalar_lea.vmem [#allocation1], 384
    %260 = vst [vmem:[%s259] sm:%s4] %v257
    %s261 = smul.addr 1, 47
    %s262 = scalar_lea.vmem %s0, %s261
    %s263 = sshrl.u32 %s4, 1
    %s264 = sor.u32 %s4, %s263
    %s265 = sand.u32 %s264, 85
    %s266 = sshrl.u32 %s265, 1
    %s267 = sor.u32 %s265, %s266
    %s268 = sand.u32 51, %s267
    %s269 = sshrl.u32 %s268, 2
    %s270 = sor.u32 %s268, %s269
    %s271 = sand.u32 15, %s270
    %v272 = vld [vmem:[%s262] sm:%s271]
    %v273 = vunpack.c.l.bf16 %v272
    %v274 = vunpack.c.h.bf16 %v272
    %s275 = scalar_lea.vmem [#allocation1], 376
    %276 = vst [vmem:[%s275] sm:%s4] %v273
    %s277 = smul.addr 1, 46
    %s278 = scalar_lea.vmem %s0, %s277
    %s279 = sshrl.u32 %s4, 1
    %s280 = sor.u32 %s4, %s279
    %s281 = sand.u32 %s280, 85
    %s282 = sshrl.u32 %s281, 1
    %s283 = sor.u32 %s281, %s282
    %s284 = sand.u32 51, %s283
    %s285 = sshrl.u32 %s284, 2
    %s286 = sor.u32 %s284, %s285
    %s287 = sand.u32 15, %s286
    %v288 = vld [vmem:[%s278] sm:%s287]
    %v289 = vunpack.c.l.bf16 %v288
    %v290 = vunpack.c.h.bf16 %v288
    %s291 = scalar_lea.vmem [#allocation1], 368
    %292 = vst [vmem:[%s291] sm:%s4] %v289
    %s293 = smul.addr 1, 45
    %s294 = scalar_lea.vmem %s0, %s293
    %s295 = sshrl.u32 %s4, 1
    %s296 = sor.u32 %s4, %s295
    %s297 = sand.u32 %s296, 85
    %s298 = sshrl.u32 %s297, 1
    %s299 = sor.u32 %s297, %s298
    %s300 = sand.u32 51, %s299
    %s301 = sshrl.u32 %s300, 2
    %s302 = sor.u32 %s300, %s301
    %s303 = sand.u32 15, %s302
    %v304 = vld [vmem:[%s294] sm:%s303]
    %v305 = vunpack.c.l.bf16 %v304
    %v306 = vunpack.c.h.bf16 %v304
    %s307 = scalar_lea.vmem [#allocation1], 360
    %308 = vst [vmem:[%s307] sm:%s4] %v305
    %s309 = smul.addr 1, 44
    %s310 = scalar_lea.vmem %s0, %s309
    %s311 = sshrl.u32 %s4, 1
    %s312 = sor.u32 %s4, %s311
    %s313 = sand.u32 %s312, 85
    %s314 = sshrl.u32 %s313, 1
    %s315 = sor.u32 %s313, %s314
    %s316 = sand.u32 51, %s315
    %s317 = sshrl.u32 %s316, 2
    %s318 = sor.u32 %s316, %s317
    %s319 = sand.u32 15, %s318
    %v320 = vld [vmem:[%s310] sm:%s319]
    %v321 = vunpack.c.l.bf16 %v320
    %v322 = vunpack.c.h.bf16 %v320
    %s323 = scalar_lea.vmem [#allocation1], 352
    %324 = vst [vmem:[%s323] sm:%s4] %v321
    %s325 = smul.addr 1, 43
    %s326 = scalar_lea.vmem %s0, %s325
    %s327 = sshrl.u32 %s4, 1
    %s328 = sor.u32 %s4, %s327
    %s329 = sand.u32 %s328, 85
    %s330 = sshrl.u32 %s329, 1
    %s331 = sor.u32 %s329, %s330
    %s332 = sand.u32 51, %s331
    %s333 = sshrl.u32 %s332, 2
    %s334 = sor.u32 %s332, %s333
    %s335 = sand.u32 15, %s334
    %v336 = vld [vmem:[%s326] sm:%s335]
    %v337 = vunpack.c.l.bf16 %v336
    %v338 = vunpack.c.h.bf16 %v336
    %s339 = scalar_lea.vmem [#allocation1], 344
    %340 = vst [vmem:[%s339] sm:%s4] %v337
    %s341 = smul.addr 1, 42
    %s342 = scalar_lea.vmem %s0, %s341
    %s343 = sshrl.u32 %s4, 1
    %s344 = sor.u32 %s4, %s343
    %s345 = sand.u32 %s344, 85
    %s346 = sshrl.u32 %s345, 1
    %s347 = sor.u32 %s345, %s346
    %s348 = sand.u32 51, %s347
    %s349 = sshrl.u32 %s348, 2
    %s350 = sor.u32 %s348, %s349
    %s351 = sand.u32 15, %s350
    %v352 = vld [vmem:[%s342] sm:%s351]
    %v353 = vunpack.c.l.bf16 %v352
    %v354 = vunpack.c.h.bf16 %v352
    %s355 = scalar_lea.vmem [#allocation1], 336
    %356 = vst [vmem:[%s355] sm:%s4] %v353
    %s357 = smul.addr 1, 41
    %s358 = scalar_lea.vmem %s0, %s357
    %s359 = sshrl.u32 %s4, 1
    %s360 = sor.u32 %s4, %s359
    %s361 = sand.u32 %s360, 85
    %s362 = sshrl.u32 %s361, 1
    %s363 = sor.u32 %s361, %s362
    %s364 = sand.u32 51, %s363
    %s365 = sshrl.u32 %s364, 2
    %s366 = sor.u32 %s364, %s365
    %s367 = sand.u32 15, %s366
    %v368 = vld [vmem:[%s358] sm:%s367]
    %v369 = vunpack.c.l.bf16 %v368
    %v370 = vunpack.c.h.bf16 %v368
    %s371 = scalar_lea.vmem [#allocation1], 328
    %372 = vst [vmem:[%s371] sm:%s4] %v369
    %s373 = smul.addr 1, 40
    %s374 = scalar_lea.vmem %s0, %s373
    %s375 = sshrl.u32 %s4, 1
    %s376 = sor.u32 %s4, %s375
    %s377 = sand.u32 %s376, 85
    %s378 = sshrl.u32 %s377, 1
    %s379 = sor.u32 %s377, %s378
    %s380 = sand.u32 51, %s379
    %s381 = sshrl.u32 %s380, 2
    %s382 = sor.u32 %s380, %s381
    %s383 = sand.u32 15, %s382
    %v384 = vld [vmem:[%s374] sm:%s383]
    %v385 = vunpack.c.l.bf16 %v384
    %v386 = vunpack.c.h.bf16 %v384
    %s387 = scalar_lea.vmem [#allocation1], 320
    %388 = vst [vmem:[%s387] sm:%s4] %v385
    %s389 = smul.addr 1, 39
    %s390 = scalar_lea.vmem %s0, %s389
    %s391 = sshrl.u32 %s4, 1
    %s392 = sor.u32 %s4, %s391
    %s393 = sand.u32 %s392, 85
    %s394 = sshrl.u32 %s393, 1
    %s395 = sor.u32 %s393, %s394
    %s396 = sand.u32 51, %s395
    %s397 = sshrl.u32 %s396, 2
    %s398 = sor.u32 %s396, %s397
    %s399 = sand.u32 15, %s398
    %v400 = vld [vmem:[%s390] sm:%s399]
    %v401 = vunpack.c.l.bf16 %v400
    %v402 = vunpack.c.h.bf16 %v400
    %s403 = scalar_lea.vmem [#allocation1], 312
    %404 = vst [vmem:[%s403] sm:%s4] %v401
    %s405 = smul.addr 1, 38
    %s406 = scalar_lea.vmem %s0, %s405
    %s407 = sshrl.u32 %s4, 1
    %s408 = sor.u32 %s4, %s407
    %s409 = sand.u32 %s408, 85
    %s410 = sshrl.u32 %s409, 1
    %s411 = sor.u32 %s409, %s410
    %s412 = sand.u32 51, %s411
    %s413 = sshrl.u32 %s412, 2
    %s414 = sor.u32 %s412, %s413
    %s415 = sand.u32 15, %s414
    %v416 = vld [vmem:[%s406] sm:%s415]
    %v417 = vunpack.c.l.bf16 %v416
    %v418 = vunpack.c.h.bf16 %v416
    %s419 = scalar_lea.vmem [#allocation1], 304
    %420 = vst [vmem:[%s419] sm:%s4] %v417
    %s421 = smul.addr 1, 37
    %s422 = scalar_lea.vmem %s0, %s421
    %s423 = sshrl.u32 %s4, 1
    %s424 = sor.u32 %s4, %s423
    %s425 = sand.u32 %s424, 85
    %s426 = sshrl.u32 %s425, 1
    %s427 = sor.u32 %s425, %s426
    %s428 = sand.u32 51, %s427
    %s429 = sshrl.u32 %s428, 2
    %s430 = sor.u32 %s428, %s429
    %s431 = sand.u32 15, %s430
    %v432 = vld [vmem:[%s422] sm:%s431]
    %v433 = vunpack.c.l.bf16 %v432
    %v434 = vunpack.c.h.bf16 %v432
    %s435 = scalar_lea.vmem [#allocation1], 296
    %436 = vst [vmem:[%s435] sm:%s4] %v433
    %s437 = smul.addr 1, 36
    %s438 = scalar_lea.vmem %s0, %s437
    %s439 = sshrl.u32 %s4, 1
    %s440 = sor.u32 %s4, %s439
    %s441 = sand.u32 %s440, 85
    %s442 = sshrl.u32 %s441, 1
    %s443 = sor.u32 %s441, %s442
    %s444 = sand.u32 51, %s443
    %s445 = sshrl.u32 %s444, 2
    %s446 = sor.u32 %s444, %s445
    %s447 = sand.u32 15, %s446
    %v448 = vld [vmem:[%s438] sm:%s447]
    %v449 = vunpack.c.l.bf16 %v448
    %v450 = vunpack.c.h.bf16 %v448
    %s451 = scalar_lea.vmem [#allocation1], 288
    %452 = vst [vmem:[%s451] sm:%s4] %v449
    %s453 = smul.addr 1, 35
    %s454 = scalar_lea.vmem %s0, %s453
    %s455 = sshrl.u32 %s4, 1
    %s456 = sor.u32 %s4, %s455
    %s457 = sand.u32 %s456, 85
    %s458 = sshrl.u32 %s457, 1
    %s459 = sor.u32 %s457, %s458
    %s460 = sand.u32 51, %s459
    %s461 = sshrl.u32 %s460, 2
    %s462 = sor.u32 %s460, %s461
    %s463 = sand.u32 15, %s462
    %v464 = vld [vmem:[%s454] sm:%s463]
    %v465 = vunpack.c.l.bf16 %v464
    %v466 = vunpack.c.h.bf16 %v464
    %s467 = scalar_lea.vmem [#allocation1], 280
    %468 = vst [vmem:[%s467] sm:%s4] %v465
    %s469 = smul.addr 1, 34
    %s470 = scalar_lea.vmem %s0, %s469
    %s471 = sshrl.u32 %s4, 1
    %s472 = sor.u32 %s4, %s471
    %s473 = sand.u32 %s472, 85
    %s474 = sshrl.u32 %s473, 1
    %s475 = sor.u32 %s473, %s474
    %s476 = sand.u32 51, %s475
    %s477 = sshrl.u32 %s476, 2
    %s478 = sor.u32 %s476, %s477
    %s479 = sand.u32 15, %s478
    %v480 = vld [vmem:[%s470] sm:%s479]
    %v481 = vunpack.c.l.bf16 %v480
    %v482 = vunpack.c.h.bf16 %v480
    %s483 = scalar_lea.vmem [#allocation1], 272
    %484 = vst [vmem:[%s483] sm:%s4] %v481
    %s485 = smul.addr 1, 33
    %s486 = scalar_lea.vmem %s0, %s485
    %s487 = sshrl.u32 %s4, 1
    %s488 = sor.u32 %s4, %s487
    %s489 = sand.u32 %s488, 85
    %s490 = sshrl.u32 %s489, 1
    %s491 = sor.u32 %s489, %s490
    %s492 = sand.u32 51, %s491
    %s493 = sshrl.u32 %s492, 2
    %s494 = sor.u32 %s492, %s493
    %s495 = sand.u32 15, %s494
    %v496 = vld [vmem:[%s486] sm:%s495]
    %v497 = vunpack.c.l.bf16 %v496
    %v498 = vunpack.c.h.bf16 %v496
    %s499 = scalar_lea.vmem [#allocation1], 264
    %500 = vst [vmem:[%s499] sm:%s4] %v497
    %s501 = smul.addr 1, 32
    %s502 = scalar_lea.vmem %s0, %s501
    %s503 = sshrl.u32 %s4, 1
    %s504 = sor.u32 %s4, %s503
    %s505 = sand.u32 %s504, 85
    %s506 = sshrl.u32 %s505, 1
    %s507 = sor.u32 %s505, %s506
    %s508 = sand.u32 51, %s507
    %s509 = sshrl.u32 %s508, 2
    %s510 = sor.u32 %s508, %s509
    %s511 = sand.u32 15, %s510
    %v512 = vld [vmem:[%s502] sm:%s511]
    %v513 = vunpack.c.l.bf16 %v512
    %v514 = vunpack.c.h.bf16 %v512
    %s515 = scalar_lea.vmem [#allocation1], 256
    %516 = vst [vmem:[%s515] sm:%s4] %v513
    %s517 = smul.addr 1, 31
    %s518 = scalar_lea.vmem %s0, %s517
    %s519 = sshrl.u32 %s4, 1
    %s520 = sor.u32 %s4, %s519
    %s521 = sand.u32 %s520, 85
    %s522 = sshrl.u32 %s521, 1
    %s523 = sor.u32 %s521, %s522
    %s524 = sand.u32 51, %s523
    %s525 = sshrl.u32 %s524, 2
    %s526 = sor.u32 %s524, %s525
    %s527 = sand.u32 15, %s526
    %v528 = vld [vmem:[%s518] sm:%s527]
    %v529 = vunpack.c.l.bf16 %v528
    %v530 = vunpack.c.h.bf16 %v528
    %s531 = scalar_lea.vmem [#allocation1], 248
    %532 = vst [vmem:[%s531] sm:%s4] %v529
    %s533 = smul.addr 1, 30
    %s534 = scalar_lea.vmem %s0, %s533
    %s535 = sshrl.u32 %s4, 1
    %s536 = sor.u32 %s4, %s535
    %s537 = sand.u32 %s536, 85
    %s538 = sshrl.u32 %s537, 1
    %s539 = sor.u32 %s537, %s538
    %s540 = sand.u32 51, %s539
    %s541 = sshrl.u32 %s540, 2
    %s542 = sor.u32 %s540, %s541
    %s543 = sand.u32 15, %s542
    %v544 = vld [vmem:[%s534] sm:%s543]
    %v545 = vunpack.c.l.bf16 %v544
    %v546 = vunpack.c.h.bf16 %v544
    %s547 = scalar_lea.vmem [#allocation1], 240
    %548 = vst [vmem:[%s547] sm:%s4] %v545
    %s549 = smul.addr 1, 29
    %s550 = scalar_lea.vmem %s0, %s549
    %s551 = sshrl.u32 %s4, 1
    %s552 = sor.u32 %s4, %s551
    %s553 = sand.u32 %s552, 85
    %s554 = sshrl.u32 %s553, 1
    %s555 = sor.u32 %s553, %s554
    %s556 = sand.u32 51, %s555
    %s557 = sshrl.u32 %s556, 2
    %s558 = sor.u32 %s556, %s557
    %s559 = sand.u32 15, %s558
    %v560 = vld [vmem:[%s550] sm:%s559]
    %v561 = vunpack.c.l.bf16 %v560
    %v562 = vunpack.c.h.bf16 %v560
    %s563 = scalar_lea.vmem [#allocation1], 232
    %564 = vst [vmem:[%s563] sm:%s4] %v561
    %s565 = smul.addr 1, 28
    %s566 = scalar_lea.vmem %s0, %s565
    %s567 = sshrl.u32 %s4, 1
    %s568 = sor.u32 %s4, %s567
    %s569 = sand.u32 %s568, 85
    %s570 = sshrl.u32 %s569, 1
    %s571 = sor.u32 %s569, %s570
    %s572 = sand.u32 51, %s571
    %s573 = sshrl.u32 %s572, 2
    %s574 = sor.u32 %s572, %s573
    %s575 = sand.u32 15, %s574
    %v576 = vld [vmem:[%s566] sm:%s575]
    %v577 = vunpack.c.l.bf16 %v576
    %v578 = vunpack.c.h.bf16 %v576
    %s579 = scalar_lea.vmem [#allocation1], 224
    %580 = vst [vmem:[%s579] sm:%s4] %v577
    %s581 = smul.addr 1, 27
    %s582 = scalar_lea.vmem %s0, %s581
    %s583 = sshrl.u32 %s4, 1
    %s584 = sor.u32 %s4, %s583
    %s585 = sand.u32 %s584, 85
    %s586 = sshrl.u32 %s585, 1
    %s587 = sor.u32 %s585, %s586
    %s588 = sand.u32 51, %s587
    %s589 = sshrl.u32 %s588, 2
    %s590 = sor.u32 %s588, %s589
    %s591 = sand.u32 15, %s590
    %v592 = vld [vmem:[%s582] sm:%s591]
    %v593 = vunpack.c.l.bf16 %v592
    %v594 = vunpack.c.h.bf16 %v592
    %s595 = scalar_lea.vmem [#allocation1], 216
    %596 = vst [vmem:[%s595] sm:%s4] %v593
    %s597 = smul.addr 1, 26
    %s598 = scalar_lea.vmem %s0, %s597
    %s599 = sshrl.u32 %s4, 1
    %s600 = sor.u32 %s4, %s599
    %s601 = sand.u32 %s600, 85
    %s602 = sshrl.u32 %s601, 1
    %s603 = sor.u32 %s601, %s602
    %s604 = sand.u32 51, %s603
    %s605 = sshrl.u32 %s604, 2
    %s606 = sor.u32 %s604, %s605
    %s607 = sand.u32 15, %s606
    %v608 = vld [vmem:[%s598] sm:%s607]
    %v609 = vunpack.c.l.bf16 %v608
    %v610 = vunpack.c.h.bf16 %v608
    %s611 = scalar_lea.vmem [#allocation1], 208
    %612 = vst [vmem:[%s611] sm:%s4] %v609
    %s613 = smul.addr 1, 25
    %s614 = scalar_lea.vmem %s0, %s613
    %s615 = sshrl.u32 %s4, 1
    %s616 = sor.u32 %s4, %s615
    %s617 = sand.u32 %s616, 85
    %s618 = sshrl.u32 %s617, 1
    %s619 = sor.u32 %s617, %s618
    %s620 = sand.u32 51, %s619
    %s621 = sshrl.u32 %s620, 2
    %s622 = sor.u32 %s620, %s621
    %s623 = sand.u32 15, %s622
    %v624 = vld [vmem:[%s614] sm:%s623]
    %v625 = vunpack.c.l.bf16 %v624
    %v626 = vunpack.c.h.bf16 %v624
    %s627 = scalar_lea.vmem [#allocation1], 200
    %628 = vst [vmem:[%s627] sm:%s4] %v625
    %s629 = smul.addr 1, 24
    %s630 = scalar_lea.vmem %s0, %s629
    %s631 = sshrl.u32 %s4, 1
    %s632 = sor.u32 %s4, %s631
    %s633 = sand.u32 %s632, 85
    %s634 = sshrl.u32 %s633, 1
    %s635 = sor.u32 %s633, %s634
    %s636 = sand.u32 51, %s635
    %s637 = sshrl.u32 %s636, 2
    %s638 = sor.u32 %s636, %s637
    %s639 = sand.u32 15, %s638
    %v640 = vld [vmem:[%s630] sm:%s639]
    %v641 = vunpack.c.l.bf16 %v640
    %v642 = vunpack.c.h.bf16 %v640
    %s643 = scalar_lea.vmem [#allocation1], 192
    %644 = vst [vmem:[%s643] sm:%s4] %v641
    %s645 = smul.addr 1, 23
    %s646 = scalar_lea.vmem %s0, %s645
    %s647 = sshrl.u32 %s4, 1
    %s648 = sor.u32 %s4, %s647
    %s649 = sand.u32 %s648, 85
    %s650 = sshrl.u32 %s649, 1
    %s651 = sor.u32 %s649, %s650
    %s652 = sand.u32 51, %s651
    %s653 = sshrl.u32 %s652, 2
    %s654 = sor.u32 %s652, %s653
    %s655 = sand.u32 15, %s654
    %v656 = vld [vmem:[%s646] sm:%s655]
    %v657 = vunpack.c.l.bf16 %v656
    %v658 = vunpack.c.h.bf16 %v656
    %s659 = scalar_lea.vmem [#allocation1], 184
    %660 = vst [vmem:[%s659] sm:%s4] %v657
    %s661 = smul.addr 1, 22
    %s662 = scalar_lea.vmem %s0, %s661
    %s663 = sshrl.u32 %s4, 1
    %s664 = sor.u32 %s4, %s663
    %s665 = sand.u32 %s664, 85
    %s666 = sshrl.u32 %s665, 1
    %s667 = sor.u32 %s665, %s666
    %s668 = sand.u32 51, %s667
    %s669 = sshrl.u32 %s668, 2
    %s670 = sor.u32 %s668, %s669
    %s671 = sand.u32 15, %s670
    %v672 = vld [vmem:[%s662] sm:%s671]
    %v673 = vunpack.c.l.bf16 %v672
    %v674 = vunpack.c.h.bf16 %v672
    %s675 = scalar_lea.vmem [#allocation1], 176
    %676 = vst [vmem:[%s675] sm:%s4] %v673
    %s677 = smul.addr 1, 21
    %s678 = scalar_lea.vmem %s0, %s677
    %s679 = sshrl.u32 %s4, 1
    %s680 = sor.u32 %s4, %s679
    %s681 = sand.u32 %s680, 85
    %s682 = sshrl.u32 %s681, 1
    %s683 = sor.u32 %s681, %s682
    %s684 = sand.u32 51, %s683
    %s685 = sshrl.u32 %s684, 2
    %s686 = sor.u32 %s684, %s685
    %s687 = sand.u32 15, %s686
    %v688 = vld [vmem:[%s678] sm:%s687]
    %v689 = vunpack.c.l.bf16 %v688
    %v690 = vunpack.c.h.bf16 %v688
    %s691 = scalar_lea.vmem [#allocation1], 168
    %692 = vst [vmem:[%s691] sm:%s4] %v689
    %s693 = smul.addr 1, 20
    %s694 = scalar_lea.vmem %s0, %s693
    %s695 = sshrl.u32 %s4, 1
    %s696 = sor.u32 %s4, %s695
    %s697 = sand.u32 %s696, 85
    %s698 = sshrl.u32 %s697, 1
    %s699 = sor.u32 %s697, %s698
    %s700 = sand.u32 51, %s699
    %s701 = sshrl.u32 %s700, 2
    %s702 = sor.u32 %s700, %s701
    %s703 = sand.u32 15, %s702
    %v704 = vld [vmem:[%s694] sm:%s703]
    %v705 = vunpack.c.l.bf16 %v704
    %v706 = vunpack.c.h.bf16 %v704
    %s707 = scalar_lea.vmem [#allocation1], 160
    %708 = vst [vmem:[%s707] sm:%s4] %v705
    %s709 = smul.addr 1, 19
    %s710 = scalar_lea.vmem %s0, %s709
    %s711 = sshrl.u32 %s4, 1
    %s712 = sor.u32 %s4, %s711
    %s713 = sand.u32 %s712, 85
    %s714 = sshrl.u32 %s713, 1
    %s715 = sor.u32 %s713, %s714
    %s716 = sand.u32 51, %s715
    %s717 = sshrl.u32 %s716, 2
    %s718 = sor.u32 %s716, %s717
    %s719 = sand.u32 15, %s718
    %v720 = vld [vmem:[%s710] sm:%s719]
    %v721 = vunpack.c.l.bf16 %v720
    %v722 = vunpack.c.h.bf16 %v720
    %s723 = scalar_lea.vmem [#allocation1], 152
    %724 = vst [vmem:[%s723] sm:%s4] %v721
    %s725 = smul.addr 1, 18
    %s726 = scalar_lea.vmem %s0, %s725
    %s727 = sshrl.u32 %s4, 1
    %s728 = sor.u32 %s4, %s727
    %s729 = sand.u32 %s728, 85
    %s730 = sshrl.u32 %s729, 1
    %s731 = sor.u32 %s729, %s730
    %s732 = sand.u32 51, %s731
    %s733 = sshrl.u32 %s732, 2
    %s734 = sor.u32 %s732, %s733
    %s735 = sand.u32 15, %s734
    %v736 = vld [vmem:[%s726] sm:%s735]
    %v737 = vunpack.c.l.bf16 %v736
    %v738 = vunpack.c.h.bf16 %v736
    %s739 = scalar_lea.vmem [#allocation1], 144
    %740 = vst [vmem:[%s739] sm:%s4] %v737
    %s741 = smul.addr 1, 17
    %s742 = scalar_lea.vmem %s0, %s741
    %s743 = sshrl.u32 %s4, 1
    %s744 = sor.u32 %s4, %s743
    %s745 = sand.u32 %s744, 85
    %s746 = sshrl.u32 %s745, 1
    %s747 = sor.u32 %s745, %s746
    %s748 = sand.u32 51, %s747
    %s749 = sshrl.u32 %s748, 2
    %s750 = sor.u32 %s748, %s749
    %s751 = sand.u32 15, %s750
    %v752 = vld [vmem:[%s742] sm:%s751]
    %v753 = vunpack.c.l.bf16 %v752
    %v754 = vunpack.c.h.bf16 %v752
    %s755 = scalar_lea.vmem [#allocation1], 136
    %756 = vst [vmem:[%s755] sm:%s4] %v753
    %s757 = smul.addr 1, 16
    %s758 = scalar_lea.vmem %s0, %s757
    %s759 = sshrl.u32 %s4, 1
    %s760 = sor.u32 %s4, %s759
    %s761 = sand.u32 %s760, 85
    %s762 = sshrl.u32 %s761, 1
    %s763 = sor.u32 %s761, %s762
    %s764 = sand.u32 51, %s763
    %s765 = sshrl.u32 %s764, 2
    %s766 = sor.u32 %s764, %s765
    %s767 = sand.u32 15, %s766
    %v768 = vld [vmem:[%s758] sm:%s767]
    %v769 = vunpack.c.l.bf16 %v768
    %v770 = vunpack.c.h.bf16 %v768
    %s771 = scalar_lea.vmem [#allocation1], 128
    %772 = vst [vmem:[%s771] sm:%s4] %v769
    %s773 = smul.addr 1, 15
    %s774 = scalar_lea.vmem %s0, %s773
    %s775 = sshrl.u32 %s4, 1
    %s776 = sor.u32 %s4, %s775
    %s777 = sand.u32 %s776, 85
    %s778 = sshrl.u32 %s777, 1
    %s779 = sor.u32 %s777, %s778
    %s780 = sand.u32 51, %s779
    %s781 = sshrl.u32 %s780, 2
    %s782 = sor.u32 %s780, %s781
    %s783 = sand.u32 15, %s782
    %v784 = vld [vmem:[%s774] sm:%s783]
    %v785 = vunpack.c.l.bf16 %v784
    %v786 = vunpack.c.h.bf16 %v784
    %s787 = scalar_lea.vmem [#allocation1], 120
    %788 = vst [vmem:[%s787] sm:%s4] %v785
    %s789 = smul.addr 1, 14
    %s790 = scalar_lea.vmem %s0, %s789
    %s791 = sshrl.u32 %s4, 1
    %s792 = sor.u32 %s4, %s791
    %s793 = sand.u32 %s792, 85
    %s794 = sshrl.u32 %s793, 1
    %s795 = sor.u32 %s793, %s794
    %s796 = sand.u32 51, %s795
    %s797 = sshrl.u32 %s796, 2
    %s798 = sor.u32 %s796, %s797
    %s799 = sand.u32 15, %s798
    %v800 = vld [vmem:[%s790] sm:%s799]
    %v801 = vunpack.c.l.bf16 %v800
    %v802 = vunpack.c.h.bf16 %v800
    %s803 = scalar_lea.vmem [#allocation1], 112
    %804 = vst [vmem:[%s803] sm:%s4] %v801
    %s805 = smul.addr 1, 13
    %s806 = scalar_lea.vmem %s0, %s805
    %s807 = sshrl.u32 %s4, 1
    %s808 = sor.u32 %s4, %s807
    %s809 = sand.u32 %s808, 85
    %s810 = sshrl.u32 %s809, 1
    %s811 = sor.u32 %s809, %s810
    %s812 = sand.u32 51, %s811
    %s813 = sshrl.u32 %s812, 2
    %s814 = sor.u32 %s812, %s813
    %s815 = sand.u32 15, %s814
    %v816 = vld [vmem:[%s806] sm:%s815]
    %v817 = vunpack.c.l.bf16 %v816
    %v818 = vunpack.c.h.bf16 %v816
    %s819 = scalar_lea.vmem [#allocation1], 104
    %820 = vst [vmem:[%s819] sm:%s4] %v817
    %s821 = smul.addr 1, 12
    %s822 = scalar_lea.vmem %s0, %s821
    %s823 = sshrl.u32 %s4, 1
    %s824 = sor.u32 %s4, %s823
    %s825 = sand.u32 %s824, 85
    %s826 = sshrl.u32 %s825, 1
    %s827 = sor.u32 %s825, %s826
    %s828 = sand.u32 51, %s827
    %s829 = sshrl.u32 %s828, 2
    %s830 = sor.u32 %s828, %s829
    %s831 = sand.u32 15, %s830
    %v832 = vld [vmem:[%s822] sm:%s831]
    %v833 = vunpack.c.l.bf16 %v832
    %v834 = vunpack.c.h.bf16 %v832
    %s835 = scalar_lea.vmem [#allocation1], 96
    %836 = vst [vmem:[%s835] sm:%s4] %v833
    %s837 = smul.addr 1, 11
    %s838 = scalar_lea.vmem %s0, %s837
    %s839 = sshrl.u32 %s4, 1
    %s840 = sor.u32 %s4, %s839
    %s841 = sand.u32 %s840, 85
    %s842 = sshrl.u32 %s841, 1
    %s843 = sor.u32 %s841, %s842
    %s844 = sand.u32 51, %s843
    %s845 = sshrl.u32 %s844, 2
    %s846 = sor.u32 %s844, %s845
    %s847 = sand.u32 15, %s846
    %v848 = vld [vmem:[%s838] sm:%s847]
    %v849 = vunpack.c.l.bf16 %v848
    %v850 = vunpack.c.h.bf16 %v848
    %s851 = scalar_lea.vmem [#allocation1], 88
    %852 = vst [vmem:[%s851] sm:%s4] %v849
    %s853 = smul.addr 1, 10
    %s854 = scalar_lea.vmem %s0, %s853
    %s855 = sshrl.u32 %s4, 1
    %s856 = sor.u32 %s4, %s855
    %s857 = sand.u32 %s856, 85
    %s858 = sshrl.u32 %s857, 1
    %s859 = sor.u32 %s857, %s858
    %s860 = sand.u32 51, %s859
    %s861 = sshrl.u32 %s860, 2
    %s862 = sor.u32 %s860, %s861
    %s863 = sand.u32 15, %s862
    %v864 = vld [vmem:[%s854] sm:%s863]
    %v865 = vunpack.c.l.bf16 %v864
    %v866 = vunpack.c.h.bf16 %v864
    %s867 = scalar_lea.vmem [#allocation1], 80
    %868 = vst [vmem:[%s867] sm:%s4] %v865
    %s869 = smul.addr 1, 9
    %s870 = scalar_lea.vmem %s0, %s869
    %s871 = sshrl.u32 %s4, 1
    %s872 = sor.u32 %s4, %s871
    %s873 = sand.u32 %s872, 85
    %s874 = sshrl.u32 %s873, 1
    %s875 = sor.u32 %s873, %s874
    %s876 = sand.u32 51, %s875
    %s877 = sshrl.u32 %s876, 2
    %s878 = sor.u32 %s876, %s877
    %s879 = sand.u32 15, %s878
    %v880 = vld [vmem:[%s870] sm:%s879]
    %v881 = vunpack.c.l.bf16 %v880
    %v882 = vunpack.c.h.bf16 %v880
    %s883 = scalar_lea.vmem [#allocation1], 72
    %884 = vst [vmem:[%s883] sm:%s4] %v881
    %s885 = smul.addr 1, 8
    %s886 = scalar_lea.vmem %s0, %s885
    %s887 = sshrl.u32 %s4, 1
    %s888 = sor.u32 %s4, %s887
    %s889 = sand.u32 %s888, 85
    %s890 = sshrl.u32 %s889, 1
    %s891 = sor.u32 %s889, %s890
    %s892 = sand.u32 51, %s891
    %s893 = sshrl.u32 %s892, 2
    %s894 = sor.u32 %s892, %s893
    %s895 = sand.u32 15, %s894
    %v896 = vld [vmem:[%s886] sm:%s895]
    %v897 = vunpack.c.l.bf16 %v896
    %v898 = vunpack.c.h.bf16 %v896
    %s899 = scalar_lea.vmem [#allocation1], 64
    %900 = vst [vmem:[%s899] sm:%s4] %v897
    %s901 = smul.addr 1, 7
    %s902 = scalar_lea.vmem %s0, %s901
    %s903 = sshrl.u32 %s4, 1
    %s904 = sor.u32 %s4, %s903
    %s905 = sand.u32 %s904, 85
    %s906 = sshrl.u32 %s905, 1
    %s907 = sor.u32 %s905, %s906
    %s908 = sand.u32 51, %s907
    %s909 = sshrl.u32 %s908, 2
    %s910 = sor.u32 %s908, %s909
    %s911 = sand.u32 15, %s910
    %v912 = vld [vmem:[%s902] sm:%s911]
    %v913 = vunpack.c.l.bf16 %v912
    %v914 = vunpack.c.h.bf16 %v912
    %s915 = scalar_lea.vmem [#allocation1], 56
    %916 = vst [vmem:[%s915] sm:%s4] %v913
    %s917 = smul.addr 1, 6
    %s918 = scalar_lea.vmem %s0, %s917
    %s919 = sshrl.u32 %s4, 1
    %s920 = sor.u32 %s4, %s919
    %s921 = sand.u32 %s920, 85
    %s922 = sshrl.u32 %s921, 1
    %s923 = sor.u32 %s921, %s922
    %s924 = sand.u32 51, %s923
    %s925 = sshrl.u32 %s924, 2
    %s926 = sor.u32 %s924, %s925
    %s927 = sand.u32 15, %s926
    %v928 = vld [vmem:[%s918] sm:%s927]
    %v929 = vunpack.c.l.bf16 %v928
    %v930 = vunpack.c.h.bf16 %v928
    %s931 = scalar_lea.vmem [#allocation1], 48
    %932 = vst [vmem:[%s931] sm:%s4] %v929
    %s933 = smul.addr 1, 5
    %s934 = scalar_lea.vmem %s0, %s933
    %s935 = sshrl.u32 %s4, 1
    %s936 = sor.u32 %s4, %s935
    %s937 = sand.u32 %s936, 85
    %s938 = sshrl.u32 %s937, 1
    %s939 = sor.u32 %s937, %s938
    %s940 = sand.u32 51, %s939
    %s941 = sshrl.u32 %s940, 2
    %s942 = sor.u32 %s940, %s941
    %s943 = sand.u32 15, %s942
    %v944 = vld [vmem:[%s934] sm:%s943]
    %v945 = vunpack.c.l.bf16 %v944
    %v946 = vunpack.c.h.bf16 %v944
    %s947 = scalar_lea.vmem [#allocation1], 40
    %948 = vst [vmem:[%s947] sm:%s4] %v945
    %s949 = smul.addr 1, 4
    %s950 = scalar_lea.vmem %s0, %s949
    %s951 = sshrl.u32 %s4, 1
    %s952 = sor.u32 %s4, %s951
    %s953 = sand.u32 %s952, 85
    %s954 = sshrl.u32 %s953, 1
    %s955 = sor.u32 %s953, %s954
    %s956 = sand.u32 51, %s955
    %s957 = sshrl.u32 %s956, 2
    %s958 = sor.u32 %s956, %s957
    %s959 = sand.u32 15, %s958
    %v960 = vld [vmem:[%s950] sm:%s959]
    %v961 = vunpack.c.l.bf16 %v960
    %v962 = vunpack.c.h.bf16 %v960
    %s963 = scalar_lea.vmem [#allocation1], 32
    %964 = vst [vmem:[%s963] sm:%s4] %v961
    %s965 = smul.addr 1, 3
    %s966 = scalar_lea.vmem %s0, %s965
    %s967 = sshrl.u32 %s4, 1
    %s968 = sor.u32 %s4, %s967
    %s969 = sand.u32 %s968, 85
    %s970 = sshrl.u32 %s969, 1
    %s971 = sor.u32 %s969, %s970
    %s972 = sand.u32 51, %s971
    %s973 = sshrl.u32 %s972, 2
    %s974 = sor.u32 %s972, %s973
    %s975 = sand.u32 15, %s974
    %v976 = vld [vmem:[%s966] sm:%s975]
    %v977 = vunpack.c.l.bf16 %v976
    %v978 = vunpack.c.h.bf16 %v976
    %s979 = scalar_lea.vmem [#allocation1], 24
    %980 = vst [vmem:[%s979] sm:%s4] %v977
    %s981 = smul.addr 1, 2
    %s982 = scalar_lea.vmem %s0, %s981
    %s983 = sshrl.u32 %s4, 1
    %s984 = sor.u32 %s4, %s983
    %s985 = sand.u32 %s984, 85
    %s986 = sshrl.u32 %s985, 1
    %s987 = sor.u32 %s985, %s986
    %s988 = sand.u32 51, %s987
    %s989 = sshrl.u32 %s988, 2
    %s990 = sor.u32 %s988, %s989
    %s991 = sand.u32 15, %s990
    %v992 = vld [vmem:[%s982] sm:%s991]
    %v993 = vunpack.c.l.bf16 %v992
    %v994 = vunpack.c.h.bf16 %v992
    %s995 = scalar_lea.vmem [#allocation1], 16
    %996 = vst [vmem:[%s995] sm:%s4] %v993
    %s997 = scalar_lea.vmem %s0, 1
    %s998 = sshrl.u32 %s4, 1
    %s999 = sor.u32 %s4, %s998
    %s1000 = sand.u32 %s999, 85
    %s1001 = sshrl.u32 %s1000, 1
    %s1002 = sor.u32 %s1000, %s1001
    %s1003 = sand.u32 51, %s1002
    %s1004 = sshrl.u32 %s1003, 2
    %s1005 = sor.u32 %s1003, %s1004
    %s1006 = sand.u32 15, %s1005
    %v1007 = vld [vmem:[%s997] sm:%s1006]
    %v1008 = vunpack.c.l.bf16 %v1007
    %v1009 = vunpack.c.h.bf16 %v1007
    %s1010 = scalar_lea.vmem [#allocation1], 8
    %1011 = vst [vmem:[%s1010] sm:%s4] %v1008
    %s1012 = sshrl.u32 %s4, 1
    %s1013 = sor.u32 %s4, %s1012
    %s1014 = sand.u32 %s1013, 85
    %s1015 = sshrl.u32 %s1014, 1
    %s1016 = sor.u32 %s1014, %s1015
    %s1017 = sand.u32 51, %s1016
    %s1018 = sshrl.u32 %s1017, 2
    %s1019 = sor.u32 %s1017, %s1018
    %s1020 = sand.u32 15, %s1019
    %v1021 = vld [vmem:[%s0] sm:%s1020]
    %v1022 = vunpack.c.l.bf16 %v1021
    %v1023 = vunpack.c.h.bf16 %v1021
    %1024 = vst [vmem:[#allocation1] sm:%s4] %v1022
    %v1025 = vld [vmem:[#allocation1] sm:$0x1]
    %s1026 = scalar_lea.vmem [#allocation1], 255
    %v1027 = vld [vmem:[%s1026] sm:$0x2]
    %vm1028 = vcmask 1041409
    %v1029 = vsel %vm1028, %v1027, %v1025
    %vm1030 = vcmask 15360
    %1031 = vst.msk [vmem:[#allocation0] sm:$0x3] %vm1030, %v1029
    %s1032 = scalar_lea.vmem [#allocation1], 249
    %v1033 = vld [vmem:[%s1032] sm:$0x1]
    %s1034 = scalar_lea.vmem [#allocation1], 504
    %v1035 = vld [vmem:[%s1034] sm:$0x2]
    %vm1036 = vcmask 1041409
    %v1037 = vsel %vm1036, %v1035, %v1033
    %1038 = vrot.lane.b32.xlu0 %v1037, 126
    %v1039 = vpop.permute.xlu0 %1038
    %vm1040 = vcmask 1048560
    %1041 = vst.msk [vmem:[#allocation0] sm:$0x3] %vm1040, %v1039
    %s1042 = scalar_lea.vmem [#allocation1], 248
    %v1043 = vld [vmem:[%s1042] sm:$0x1]
    %s1044 = scalar_lea.vmem [#allocation1], 503
    %v1045 = vld [vmem:[%s1044] sm:$0x2]
    %vm1046 = vcmask 1041409
    %v1047 = vsel %vm1046, %v1045, %v1043
    %1048 = vrot.lane.b32.xlu0 %v1047, 124
    %v1049 = vpop.permute.xlu0 %1048
    %vm1050 = vcmask 1032160
    %1051 = vst.msk [vmem:[#allocation0] sm:$0x3] %vm1050, %v1049
    %s1052 = scalar_lea.vmem [#allocation1], 241
    %v1053 = vld [vmem:[%s1052] sm:$0x1]
    %s1054 = scalar_lea.vmem [#allocation1], 496
    %v1055 = vld [vmem:[%s1054] sm:$0x2]
    %vm1056 = vcmask 1041409
    %v1057 = vsel %vm1056, %v1055, %v1053
    %1058 = vrot.lane.b32.xlu0 %v1057, 122
    %v1059 = vpop.permute.xlu0 %1058
    %vm1060 = vcmask 1015760
    %1061 = vst.msk [vmem:[#allocation0] sm:$0x3] %vm1060, %v1059
    %s1062 = scalar_lea.vmem [#allocation1], 240
    %v1063 = vld [vmem:[%s1062] sm:$0x1]
    %s1064 = scalar_lea.vmem [#allocation1], 495
    %v1065 = vld [vmem:[%s1064] sm:$0x2]
    %vm1066 = vcmask 1041409
    %v1067 = vsel %vm1066, %v1065, %v1063
    %1068 = vrot.lane.b32.xlu0 %v1067, 120
    %v1069 = vpop.permute.xlu0 %1068
    %vm1070 = vcmask 999360
    %1071 = vst.msk [vmem:[#allocation0] sm:$0x3] %vm1070, %v1069
    %s1072 = scalar_lea.vmem [#allocation1], 233
    %v1073 = vld [vmem:[%s1072] sm:$0x1]
    %s1074 = scalar_lea.vmem [#allocation1], 488
    %v1075 = vld [vmem:[%s1074] sm:$0x2]
    %vm1076 = vcmask 1041409
    %v1077 = vsel %vm1076, %v1075, %v1073
    %1078 = vrot.lane.b32.xlu0 %v1077, 118
    %v1079 = vpop.permute.xlu0 %1078
    %vm1080 = vcmask 982960
    %1081 = vst.msk [vmem:[#allocation0] sm:$0x3] %vm1080, %v1079
    %s1082 = scalar_lea.vmem [#allocation1], 232
    %v1083 = vld [vmem:[%s1082] sm:$0x1]
    %s1084 = scalar_lea.vmem [#allocation1], 487
    %v1085 = vld [vmem:[%s1084] sm:$0x2]
    %vm1086 = vcmask 1041409
    %v1087 = vsel %vm1086, %v1085, %v1083
    %1088 = vrot.lane.b32.xlu0 %v1087, 116
    %v1089 = vpop.permute.xlu0 %1088
    %vm1090 = vcmask 966560
    %1091 = vst.msk [vmem:[#allocation0] sm:$0x3] %vm1090, %v1089
    %s1092 = scalar_lea.vmem [#allocation1], 225
    %v1093 = vld [vmem:[%s1092] sm:$0x1]
    %s1094 = scalar_lea.vmem [#allocation1], 480
    %v1095 = vld [vmem:[%s1094] sm:$0x2]
    %vm1096 = vcmask 1041409
    %v1097 = vsel %vm1096, %v1095, %v1093
    %1098 = vrot.lane.b32.xlu0 %v1097, 114
    %v1099 = vpop.permute.xlu0 %1098
    %vm1100 = vcmask 950160
    %1101 = vst.msk [vmem:[#allocation0] sm:$0x3] %vm1100, %v1099
    %s1102 = scalar_lea.vmem [#allocation1], 224
    %v1103 = vld [vmem:[%s1102] sm:$0x1]
    %s1104 = scalar_lea.vmem [#allocation1], 479
    %v1105 = vld [vmem:[%s1104] sm:$0x2]
    %vm1106 = vcmask 1041409
    %v1107 = vsel %vm1106, %v1105, %v1103
    %1108 = vrot.lane.b32.xlu0 %v1107, 112
    %v1109 = vpop.permute.xlu0 %1108
    %vm1110 = vcmask 933760
    %1111 = vst.msk [vmem:[#allocation0] sm:$0x3] %vm1110, %v1109
    %s1112 = scalar_lea.vmem [#allocation1], 217
    %v1113 = vld [vmem:[%s1112] sm:$0x1]
    %s1114 = scalar_lea.vmem [#allocation1], 472
    %v1115 = vld [vmem:[%s1114] sm:$0x2]
    %vm1116 = vcmask 1041409
    %v1117 = vsel %vm1116, %v1115, %v1113
    %1118 = vrot.lane.b32.xlu0 %v1117, 110
    %v1119 = vpop.permute.xlu0 %1118
    %vm1120 = vcmask 917360
    %1121 = vst.msk [vmem:[#allocation0] sm:$0x3] %vm1120, %v1119
    %s1122 = scalar_lea.vmem [#allocation1], 216
    %v1123 = vld [vmem:[%s1122] sm:$0x1]
    %s1124 = scalar_lea.vmem [#allocation1], 471
    %v1125 = vld [vmem:[%s1124] sm:$0x2]
    %vm1126 = vcmask 1041409
    %v1127 = vsel %vm1126, %v1125, %v1123
    %1128 = vrot.lane.b32.xlu0 %v1127, 108
    %v1129 = vpop.permute.xlu0 %1128
    %vm1130 = vcmask 900960
    %1131 = vst.msk [vmem:[#allocation0] sm:$0x3] %vm1130, %v1129
    %s1132 = scalar_lea.vmem [#allocation1], 209
    %v1133 = vld [vmem:[%s1132] sm:$0x1]
    %s1134 = scalar_lea.vmem [#allocation1], 464
    %v1135 = vld [vmem:[%s1134] sm:$0x2]
    %vm1136 = vcmask 1041409
    %v1137 = vsel %vm1136, %v1135, %v1133
    %1138 = vrot.lane.b32.xlu0 %v1137, 106
    %v1139 = vpop.permute.xlu0 %1138
    %vm1140 = vcmask 884560
    %1141 = vst.msk [vmem:[#allocation0] sm:$0x3] %vm1140, %v1139
    %s1142 = scalar_lea.vmem [#allocation1], 208
    %v1143 = vld [vmem:[%s1142] sm:$0x1]
    %s1144 = scalar_lea.vmem [#allocation1], 463
    %v1145 = vld [vmem:[%s1144] sm:$0x2]
    %vm1146 = vcmask 1041409
    %v1147 = vsel %vm1146, %v1145, %v1143
    %1148 = vrot.lane.b32.xlu0 %v1147, 104
    %v1149 = vpop.permute.xlu0 %1148
    %vm1150 = vcmask 868160
    %1151 = vst.msk [vmem:[#allocation0] sm:$0x3] %vm1150, %v1149
    %s1152 = scalar_lea.vmem [#allocation1], 201
    %v1153 = vld [vmem:[%s1152] sm:$0x1]
    %s1154 = scalar_lea.vmem [#allocation1], 456
    %v1155 = vld [vmem:[%s1154] sm:$0x2]
    %vm1156 = vcmask 1041409
    %v1157 = vsel %vm1156, %v1155, %v1153
    %1158 = vrot.lane.b32.xlu0 %v1157, 102
    %v1159 = vpop.permute.xlu0 %1158
    %vm1160 = vcmask 851760
    %1161 = vst.msk [vmem:[#allocation0] sm:$0x3] %vm1160, %v1159
    %s1162 = scalar_lea.vmem [#allocation1], 200
    %v1163 = vld [vmem:[%s1162] sm:$0x1]
    %s1164 = scalar_lea.vmem [#allocation1], 455
    %v1165 = vld [vmem:[%s1164] sm:$0x2]
    %vm1166 = vcmask 1041409
    %v1167 = vsel %vm1166, %v1165, %v1163
    %1168 = vrot.lane.b32.xlu0 %v1167, 100
    %v1169 = vpop.permute.xlu0 %1168
    %vm1170 = vcmask 835360
    %1171 = vst.msk [vmem:[#allocation0] sm:$0x3] %vm1170, %v1169
    %s1172 = scalar_lea.vmem [#allocation1], 193
    %v1173 = vld [vmem:[%s1172] sm:$0x1]
    %s1174 = scalar_lea.vmem [#allocation1], 448
    %v1175 = vld [vmem:[%s1174] sm:$0x2]
    %vm1176 = vcmask 1041409
    %v1177 = vsel %vm1176, %v1175, %v1173
    %1178 = vrot.lane.b32.xlu0 %v1177, 98
    %v1179 = vpop.permute.xlu0 %1178
    %vm1180 = vcmask 818960
    %1181 = vst.msk [vmem:[#allocation0] sm:$0x3] %vm1180, %v1179
    %s1182 = scalar_lea.vmem [#allocation1], 192
    %v1183 = vld [vmem:[%s1182] sm:$0x1]
    %s1184 = scalar_lea.vmem [#allocation1], 447
    %v1185 = vld [vmem:[%s1184] sm:$0x2]
    %vm1186 = vcmask 1041409
    %v1187 = vsel %vm1186, %v1185, %v1183
    %1188 = vrot.lane.b32.xlu0 %v1187, 96
    %v1189 = vpop.permute.xlu0 %1188
    %vm1190 = vcmask 802560
    %1191 = vst.msk [vmem:[#allocation0] sm:$0x3] %vm1190, %v1189
    %s1192 = scalar_lea.vmem [#allocation1], 185
    %v1193 = vld [vmem:[%s1192] sm:$0x1]
    %s1194 = scalar_lea.vmem [#allocation1], 440
    %v1195 = vld [vmem:[%s1194] sm:$0x2]
    %vm1196 = vcmask 1041409
    %v1197 = vsel %vm1196, %v1195, %v1193
    %1198 = vrot.lane.b32.xlu0 %v1197, 94
    %v1199 = vpop.permute.xlu0 %1198
    %vm1200 = vcmask 786160
    %1201 = vst.msk [vmem:[#allocation0] sm:$0x3] %vm1200, %v1199
    %s1202 = scalar_lea.vmem [#allocation1], 184
    %v1203 = vld [vmem:[%s1202] sm:$0x1]
    %s1204 = scalar_lea.vmem [#allocation1], 439
    %v1205 = vld [vmem:[%s1204] sm:$0x2]
    %vm1206 = vcmask 1041409
    %v1207 = vsel %vm1206, %v1205, %v1203
    %1208 = vrot.lane.b32.xlu0 %v1207, 92
    %v1209 = vpop.permute.xlu0 %1208
    %vm1210 = vcmask 769760
    %1211 = vst.msk [vmem:[#allocation0] sm:$0x3] %vm1210, %v1209
    %s1212 = scalar_lea.vmem [#allocation1], 177
    %v1213 = vld [vmem:[%s1212] sm:$0x1]
    %s1214 = scalar_lea.vmem [#allocation1], 432
    %v1215 = vld [vmem:[%s1214] sm:$0x2]
    %vm1216 = vcmask 1041409
    %v1217 = vsel %vm1216, %v1215, %v1213
    %1218 = vrot.lane.b32.xlu0 %v1217, 90
    %v1219 = vpop.permute.xlu0 %1218
    %vm1220 = vcmask 753360
    %1221 = vst.msk [vmem:[#allocation0] sm:$0x3] %vm1220, %v1219
    %s1222 = scalar_lea.vmem [#allocation1], 176
    %v1223 = vld [vmem:[%s1222] sm:$0x1]
    %s1224 = scalar_lea.vmem [#allocation1], 431
    %v1225 = vld [vmem:[%s1224] sm:$0x2]
    %vm1226 = vcmask 1041409
    %v1227 = vsel %vm1226, %v1225, %v1223
    %1228 = vrot.lane.b32.xlu0 %v1227, 88
    %v1229 = vpop.permute.xlu0 %1228
    %vm1230 = vcmask 736960
    %1231 = vst.msk [vmem:[#allocation0] sm:$0x3] %vm1230, %v1229
    %s1232 = scalar_lea.vmem [#allocation1], 169
    %v1233 = vld [vmem:[%s1232] sm:$0x1]
    %s1234 = scalar_lea.vmem [#allocation1], 424
    %v1235 = vld [vmem:[%s1234] sm:$0x2]
    %vm1236 = vcmask 1041409
    %v1237 = vsel %vm1236, %v1235, %v1233
    %1238 = vrot.lane.b32.xlu0 %v1237, 86
    %v1239 = vpop.permute.xlu0 %1238
    %vm1240 = vcmask 720560
    %1241 = vst.msk [vmem:[#allocation0] sm:$0x3] %vm1240, %v1239
    %s1242 = scalar_lea.vmem [#allocation1], 168
    %v1243 = vld [vmem:[%s1242] sm:$0x1]
    %s1244 = scalar_lea.vmem [#allocation1], 423
    %v1245 = vld [vmem:[%s1244] sm:$0x2]
    %vm1246 = vcmask 1041409
    %v1247 = vsel %vm1246, %v1245, %v1243
    %1248 = vrot.lane.b32.xlu0 %v1247, 84
    %v1249 = vpop.permute.xlu0 %1248
    %vm1250 = vcmask 704160
    %1251 = vst.msk [vmem:[#allocation0] sm:$0x3] %vm1250, %v1249
    %s1252 = scalar_lea.vmem [#allocation1], 161
    %v1253 = vld [vmem:[%s1252] sm:$0x1]
    %s1254 = scalar_lea.vmem [#allocation1], 416
    %v1255 = vld [vmem:[%s1254] sm:$0x2]
    %vm1256 = vcmask 1041409
    %v1257 = vsel %vm1256, %v1255, %v1253
    %1258 = vrot.lane.b32.xlu0 %v1257, 82
    %v1259 = vpop.permute.xlu0 %1258
    %vm1260 = vcmask 687760
    %1261 = vst.msk [vmem:[#allocation0] sm:$0x3] %vm1260, %v1259
    %s1262 = scalar_lea.vmem [#allocation1], 160
    %v1263 = vld [vmem:[%s1262] sm:$0x1]
    %s1264 = scalar_lea.vmem [#allocation1], 415
    %v1265 = vld [vmem:[%s1264] sm:$0x2]
    %vm1266 = vcmask 1041409
    %v1267 = vsel %vm1266, %v1265, %v1263
    %1268 = vrot.lane.b32.xlu0 %v1267, 80
    %v1269 = vpop.permute.xlu0 %1268
    %vm1270 = vcmask 671360
    %1271 = vst.msk [vmem:[#allocation0] sm:$0x3] %vm1270, %v1269
    %s1272 = scalar_lea.vmem [#allocation1], 153
    %v1273 = vld [vmem:[%s1272] sm:$0x1]
    %s1274 = scalar_lea.vmem [#allocation1], 408
    %v1275 = vld [vmem:[%s1274] sm:$0x2]
    %vm1276 = vcmask 1041409
    %v1277 = vsel %vm1276, %v1275, %v1273
    %1278 = vrot.lane.b32.xlu0 %v1277, 78
    %v1279 = vpop.permute.xlu0 %1278
    %vm1280 = vcmask 654960
    %1281 = vst.msk [vmem:[#allocation0] sm:$0x3] %vm1280, %v1279
    %s1282 = scalar_lea.vmem [#allocation1], 152
    %v1283 = vld [vmem:[%s1282] sm:$0x1]
    %s1284 = scalar_lea.vmem [#allocation1], 407
    %v1285 = vld [vmem:[%s1284] sm:$0x2]
    %vm1286 = vcmask 1041409
    %v1287 = vsel %vm1286, %v1285, %v1283
    %1288 = vrot.lane.b32.xlu0 %v1287, 76
    %v1289 = vpop.permute.xlu0 %1288
    %vm1290 = vcmask 638560
    %1291 = vst.msk [vmem:[#allocation0] sm:$0x3] %vm1290, %v1289
    %s1292 = scalar_lea.vmem [#allocation1], 145
    %v1293 = vld [vmem:[%s1292] sm:$0x1]
    %s1294 = scalar_lea.vmem [#allocation1], 400
    %v1295 = vld [vmem:[%s1294] sm:$0x2]
    %vm1296 = vcmask 1041409
    %v1297 = vsel %vm1296, %v1295, %v1293
    %1298 = vrot.lane.b32.xlu0 %v1297, 74
    %v1299 = vpop.permute.xlu0 %1298
    %vm1300 = vcmask 622160
    %1301 = vst.msk [vmem:[#allocation0] sm:$0x3] %vm1300, %v1299
    %s1302 = scalar_lea.vmem [#allocation1], 144
    %v1303 = vld [vmem:[%s1302] sm:$0x1]
    %s1304 = scalar_lea.vmem [#allocation1], 399
    %v1305 = vld [vmem:[%s1304] sm:$0x2]
    %vm1306 = vcmask 1041409
    %v1307 = vsel %vm1306, %v1305, %v1303
    %1308 = vrot.lane.b32.xlu0 %v1307, 72
    %v1309 = vpop.permute.xlu0 %1308
    %vm1310 = vcmask 605760
    %1311 = vst.msk [vmem:[#allocation0] sm:$0x3] %vm1310, %v1309
    %s1312 = scalar_lea.vmem [#allocation1], 137
    %v1313 = vld [vmem:[%s1312] sm:$0x1]
    %s1314 = scalar_lea.vmem [#allocation1], 392
    %v1315 = vld [vmem:[%s1314] sm:$0x2]
    %vm1316 = vcmask 1041409
    %v1317 = vsel %vm1316, %v1315, %v1313
    %1318 = vrot.lane.b32.xlu0 %v1317, 70
    %v1319 = vpop.permute.xlu0 %1318
    %vm1320 = vcmask 589360
    %1321 = vst.msk [vmem:[#allocation0] sm:$0x3] %vm1320, %v1319
    %s1322 = scalar_lea.vmem [#allocation1], 136
    %v1323 = vld [vmem:[%s1322] sm:$0x1]
    %s1324 = scalar_lea.vmem [#allocation1], 391
    %v1325 = vld [vmem:[%s1324] sm:$0x2]
    %vm1326 = vcmask 1041409
    %v1327 = vsel %vm1326, %v1325, %v1323
    %1328 = vrot.lane.b32.xlu0 %v1327, 68
    %v1329 = vpop.permute.xlu0 %1328
    %vm1330 = vcmask 572960
    %1331 = vst.msk [vmem:[#allocation0] sm:$0x3] %vm1330, %v1329
    %s1332 = scalar_lea.vmem [#allocation1], 129
    %v1333 = vld [vmem:[%s1332] sm:$0x1]
    %s1334 = scalar_lea.vmem [#allocation1], 384
    %v1335 = vld [vmem:[%s1334] sm:$0x2]
    %vm1336 = vcmask 1041409
    %v1337 = vsel %vm1336, %v1335, %v1333
    %1338 = vrot.lane.b32.xlu0 %v1337, 66
    %v1339 = vpop.permute.xlu0 %1338
    %vm1340 = vcmask 556560
    %1341 = vst.msk [vmem:[#allocation0] sm:$0x3] %vm1340, %v1339
    %s1342 = scalar_lea.vmem [#allocation1], 128
    %v1343 = vld [vmem:[%s1342] sm:$0x1]
    %s1344 = scalar_lea.vmem [#allocation1], 383
    %v1345 = vld [vmem:[%s1344] sm:$0x2]
    %vm1346 = vcmask 1041409
    %v1347 = vsel %vm1346, %v1345, %v1343
    %1348 = vrot.lane.b32.xlu0 %v1347, 64
    %v1349 = vpop.permute.xlu0 %1348
    %vm1350 = vcmask 540160
    %1351 = vst.msk [vmem:[#allocation0] sm:$0x3] %vm1350, %v1349
    %s1352 = scalar_lea.vmem [#allocation1], 121
    %v1353 = vld [vmem:[%s1352] sm:$0x1]
    %s1354 = scalar_lea.vmem [#allocation1], 376
    %v1355 = vld [vmem:[%s1354] sm:$0x2]
    %vm1356 = vcmask 1041409
    %v1357 = vsel %vm1356, %v1355, %v1353
    %1358 = vrot.lane.b32.xlu0 %v1357, 62
    %v1359 = vpop.permute.xlu0 %1358
    %vm1360 = vcmask 523760
    %1361 = vst.msk [vmem:[#allocation0] sm:$0x3] %vm1360, %v1359
    %s1362 = scalar_lea.vmem [#allocation1], 120
    %v1363 = vld [vmem:[%s1362] sm:$0x1]
    %s1364 = scalar_lea.vmem [#allocation1], 375
    %v1365 = vld [vmem:[%s1364] sm:$0x2]
    %vm1366 = vcmask 1041409
    %v1367 = vsel %vm1366, %v1365, %v1363
    %1368 = vrot.lane.b32.xlu0 %v1367, 60
    %v1369 = vpop.permute.xlu0 %1368
    %vm1370 = vcmask 507360
    %1371 = vst.msk [vmem:[#allocation0] sm:$0x3] %vm1370, %v1369
    %s1372 = scalar_lea.vmem [#allocation1], 113
    %v1373 = vld [vmem:[%s1372] sm:$0x1]
    %s1374 = scalar_lea.vmem [#allocation1], 368
    %v1375 = vld [vmem:[%s1374] sm:$0x2]
    %vm1376 = vcmask 1041409
    %v1377 = vsel %vm1376, %v1375, %v1373
    %1378 = vrot.lane.b32.xlu0 %v1377, 58
    %v1379 = vpop.permute.xlu0 %1378
    %vm1380 = vcmask 490960
    %1381 = vst.msk [vmem:[#allocation0] sm:$0x3] %vm1380, %v1379
    %s1382 = scalar_lea.vmem [#allocation1], 112
    %v1383 = vld [vmem:[%s1382] sm:$0x1]
    %s1384 = scalar_lea.vmem [#allocation1], 367
    %v1385 = vld [vmem:[%s1384] sm:$0x2]
    %vm1386 = vcmask 1041409
    %v1387 = vsel %vm1386, %v1385, %v1383
    %1388 = vrot.lane.b32.xlu0 %v1387, 56
    %v1389 = vpop.permute.xlu0 %1388
    %vm1390 = vcmask 474560
    %1391 = vst.msk [vmem:[#allocation0] sm:$0x3] %vm1390, %v1389
    %s1392 = scalar_lea.vmem [#allocation1], 105
    %v1393 = vld [vmem:[%s1392] sm:$0x1]
    %s1394 = scalar_lea.vmem [#allocation1], 360
    %v1395 = vld [vmem:[%s1394] sm:$0x2]
    %vm1396 = vcmask 1041409
    %v1397 = vsel %vm1396, %v1395, %v1393
    %1398 = vrot.lane.b32.xlu0 %v1397, 54
    %v1399 = vpop.permute.xlu0 %1398
    %vm1400 = vcmask 458160
    %1401 = vst.msk [vmem:[#allocation0] sm:$0x3] %vm1400, %v1399
    %s1402 = scalar_lea.vmem [#allocation1], 104
    %v1403 = vld [vmem:[%s1402] sm:$0x1]
    %s1404 = scalar_lea.vmem [#allocation1], 359
    %v1405 = vld [vmem:[%s1404] sm:$0x2]
    %vm1406 = vcmask 1041409
    %v1407 = vsel %vm1406, %v1405, %v1403
    %1408 = vrot.lane.b32.xlu0 %v1407, 52
    %v1409 = vpop.permute.xlu0 %1408
    %vm1410 = vcmask 441760
    %1411 = vst.msk [vmem:[#allocation0] sm:$0x3] %vm1410, %v1409
    %s1412 = scalar_lea.vmem [#allocation1], 97
    %v1413 = vld [vmem:[%s1412] sm:$0x1]
    %s1414 = scalar_lea.vmem [#allocation1], 352
    %v1415 = vld [vmem:[%s1414] sm:$0x2]
    %vm1416 = vcmask 1041409
    %v1417 = vsel %vm1416, %v1415, %v1413
    %1418 = vrot.lane.b32.xlu0 %v1417, 50
    %v1419 = vpop.permute.xlu0 %1418
    %vm1420 = vcmask 425360
    %1421 = vst.msk [vmem:[#allocation0] sm:$0x3] %vm1420, %v1419
    %s1422 = scalar_lea.vmem [#allocation1], 96
    %v1423 = vld [vmem:[%s1422] sm:$0x1]
    %s1424 = scalar_lea.vmem [#allocation1], 351
    %v1425 = vld [vmem:[%s1424] sm:$0x2]
    %vm1426 = vcmask 1041409
    %v1427 = vsel %vm1426, %v1425, %v1423
    %1428 = vrot.lane.b32.xlu0 %v1427, 48
    %v1429 = vpop.permute.xlu0 %1428
    %vm1430 = vcmask 408960
    %1431 = vst.msk [vmem:[#allocation0] sm:$0x3] %vm1430, %v1429
    %s1432 = scalar_lea.vmem [#allocation1], 89
    %v1433 = vld [vmem:[%s1432] sm:$0x1]
    %s1434 = scalar_lea.vmem [#allocation1], 344
    %v1435 = vld [vmem:[%s1434] sm:$0x2]
    %vm1436 = vcmask 1041409
    %v1437 = vsel %vm1436, %v1435, %v1433
    %1438 = vrot.lane.b32.xlu0 %v1437, 46
    %v1439 = vpop.permute.xlu0 %1438
    %vm1440 = vcmask 392560
    %1441 = vst.msk [vmem:[#allocation0] sm:$0x3] %vm1440, %v1439
    %s1442 = scalar_lea.vmem [#allocation1], 88
    %v1443 = vld [vmem:[%s1442] sm:$0x1]
    %s1444 = scalar_lea.vmem [#allocation1], 343
    %v1445 = vld [vmem:[%s1444] sm:$0x2]
    %vm1446 = vcmask 1041409
    %v1447 = vsel %vm1446, %v1445, %v1443
    %1448 = vrot.lane.b32.xlu0 %v1447, 44
    %v1449 = vpop.permute.xlu0 %1448
    %vm1450 = vcmask 376160
    %1451 = vst.msk [vmem:[#allocation0] sm:$0x3] %vm1450, %v1449
    %s1452 = scalar_lea.vmem [#allocation1], 81
    %v1453 = vld [vmem:[%s1452] sm:$0x1]
    %s1454 = scalar_lea.vmem [#allocation1], 336
    %v1455 = vld [vmem:[%s1454] sm:$0x2]
    %vm1456 = vcmask 1041409
    %v1457 = vsel %vm1456, %v1455, %v1453
    %1458 = vrot.lane.b32.xlu0 %v1457, 42
    %v1459 = vpop.permute.xlu0 %1458
    %vm1460 = vcmask 359760
    %1461 = vst.msk [vmem:[#allocation0] sm:$0x3] %vm1460, %v1459
    %s1462 = scalar_lea.vmem [#allocation1], 80
    %v1463 = vld [vmem:[%s1462] sm:$0x1]
    %s1464 = scalar_lea.vmem [#allocation1], 335
    %v1465 = vld [vmem:[%s1464] sm:$0x2]
    %vm1466 = vcmask 1041409
    %v1467 = vsel %vm1466, %v1465, %v1463
    %1468 = vrot.lane.b32.xlu0 %v1467, 40
    %v1469 = vpop.permute.xlu0 %1468
    %vm1470 = vcmask 343360
    %1471 = vst.msk [vmem:[#allocation0] sm:$0x3] %vm1470, %v1469
    %s1472 = scalar_lea.vmem [#allocation1], 73
    %v1473 = vld [vmem:[%s1472] sm:$0x1]
    %s1474 = scalar_lea.vmem [#allocation1], 328
    %v1475 = vld [vmem:[%s1474] sm:$0x2]
    %vm1476 = vcmask 1041409
    %v1477 = vsel %vm1476, %v1475, %v1473
    %1478 = vrot.lane.b32.xlu0 %v1477, 38
    %v1479 = vpop.permute.xlu0 %1478
    %vm1480 = vcmask 326960
    %1481 = vst.msk [vmem:[#allocation0] sm:$0x3] %vm1480, %v1479
    %s1482 = scalar_lea.vmem [#allocation1], 72
    %v1483 = vld [vmem:[%s1482] sm:$0x1]
    %s1484 = scalar_lea.vmem [#allocation1], 327
    %v1485 = vld [vmem:[%s1484] sm:$0x2]
    %vm1486 = vcmask 1041409
    %v1487 = vsel %vm1486, %v1485, %v1483
    %1488 = vrot.lane.b32.xlu0 %v1487, 36
    %v1489 = vpop.permute.xlu0 %1488
    %vm1490 = vcmask 310560
    %1491 = vst.msk [vmem:[#allocation0] sm:$0x3] %vm1490, %v1489
    %s1492 = scalar_lea.vmem [#allocation1], 65
    %v1493 = vld [vmem:[%s1492] sm:$0x1]
    %s1494 = scalar_lea.vmem [#allocation1], 320
    %v1495 = vld [vmem:[%s1494] sm:$0x2]
    %vm1496 = vcmask 1041409
    %v1497 = vsel %vm1496, %v1495, %v1493
    %1498 = vrot.lane.b32.xlu0 %v1497, 34
    %v1499 = vpop.permute.xlu0 %1498
    %vm1500 = vcmask 294160
    %1501 = vst.msk [vmem:[#allocation0] sm:$0x3] %vm1500, %v1499
    %s1502 = scalar_lea.vmem [#allocation1], 64
    %v1503 = vld [vmem:[%s1502] sm:$0x1]
    %s1504 = scalar_lea.vmem [#allocation1], 319
    %v1505 = vld [vmem:[%s1504] sm:$0x2]
    %vm1506 = vcmask 1041409
    %v1507 = vsel %vm1506, %v1505, %v1503
    %1508 = vrot.lane.b32.xlu0 %v1507, 32
    %v1509 = vpop.permute.xlu0 %1508
    %vm1510 = vcmask 277760
    %1511 = vst.msk [vmem:[#allocation0] sm:$0x3] %vm1510, %v1509
    %s1512 = scalar_lea.vmem [#allocation1], 57
    %v1513 = vld [vmem:[%s1512] sm:$0x1]
    %s1514 = scalar_lea.vmem [#allocation1], 312
    %v1515 = vld [vmem:[%s1514] sm:$0x2]
    %vm1516 = vcmask 1041409
    %v1517 = vsel %vm1516, %v1515, %v1513
    %1518 = vrot.lane.b32.xlu0 %v1517, 30
    %v1519 = vpop.permute.xlu0 %1518
    %vm1520 = vcmask 261360
    %1521 = vst.msk [vmem:[#allocation0] sm:$0x3] %vm1520, %v1519
    %s1522 = scalar_lea.vmem [#allocation1], 56
    %v1523 = vld [vmem:[%s1522] sm:$0x1]
    %s1524 = scalar_lea.vmem [#allocation1], 311
    %v1525 = vld [vmem:[%s1524] sm:$0x2]
    %vm1526 = vcmask 1041409
    %v1527 = vsel %vm1526, %v1525, %v1523
    %1528 = vrot.lane.b32.xlu0 %v1527, 28
    %v1529 = vpop.permute.xlu0 %1528
    %vm1530 = vcmask 244960
    %1531 = vst.msk [vmem:[#allocation0] sm:$0x3] %vm1530, %v1529
    %s1532 = scalar_lea.vmem [#allocation1], 49
    %v1533 = vld [vmem:[%s1532] sm:$0x1]
    %s1534 = scalar_lea.vmem [#allocation1], 304
    %v1535 = vld [vmem:[%s1534] sm:$0x2]
    %vm1536 = vcmask 1041409
    %v1537 = vsel %vm1536, %v1535, %v1533
    %1538 = vrot.lane.b32.xlu0 %v1537, 26
    %v1539 = vpop.permute.xlu0 %1538
    %vm1540 = vcmask 228560
    %1541 = vst.msk [vmem:[#allocation0] sm:$0x3] %vm1540, %v1539
    %s1542 = scalar_lea.vmem [#allocation1], 48
    %v1543 = vld [vmem:[%s1542] sm:$0x1]
    %s1544 = scalar_lea.vmem [#allocation1], 303
    %v1545 = vld [vmem:[%s1544] sm:$0x2]
    %vm1546 = vcmask 1041409
    %v1547 = vsel %vm1546, %v1545, %v1543
    %1548 = vrot.lane.b32.xlu0 %v1547, 24
    %v1549 = vpop.permute.xlu0 %1548
    %vm1550 = vcmask 212160
    %1551 = vst.msk [vmem:[#allocation0] sm:$0x3] %vm1550, %v1549
    %s1552 = scalar_lea.vmem [#allocation1], 41
    %v1553 = vld [vmem:[%s1552] sm:$0x1]
    %s1554 = scalar_lea.vmem [#allocation1], 296
    %v1555 = vld [vmem:[%s1554] sm:$0x2]
    %vm1556 = vcmask 1041409
    %v1557 = vsel %vm1556, %v1555, %v1553
    %1558 = vrot.lane.b32.xlu0 %v1557, 22
    %v1559 = vpop.permute.xlu0 %1558
    %vm1560 = vcmask 195760
    %1561 = vst.msk [vmem:[#allocation0] sm:$0x3] %vm1560, %v1559
    %s1562 = scalar_lea.vmem [#allocation1], 40
    %v1563 = vld [vmem:[%s1562] sm:$0x1]
    %s1564 = scalar_lea.vmem [#allocation1], 295
    %v1565 = vld [vmem:[%s1564] sm:$0x2]
    %vm1566 = vcmask 1041409
    %v1567 = vsel %vm1566, %v1565, %v1563
    %1568 = vrot.lane.b32.xlu0 %v1567, 20
    %v1569 = vpop.permute.xlu0 %1568
    %vm1570 = vcmask 179360
    %1571 = vst.msk [vmem:[#allocation0] sm:$0x3] %vm1570, %v1569
    %s1572 = scalar_lea.vmem [#allocation1], 33
    %v1573 = vld [vmem:[%s1572] sm:$0x1]
    %s1574 = scalar_lea.vmem [#allocation1], 288
    %v1575 = vld [vmem:[%s1574] sm:$0x2]
    %vm1576 = vcmask 1041409
    %v1577 = vsel %vm1576, %v1575, %v1573
    %1578 = vrot.lane.b32.xlu0 %v1577, 18
    %v1579 = vpop.permute.xlu0 %1578
    %vm1580 = vcmask 162960
    %1581 = vst.msk [vmem:[#allocation0] sm:$0x3] %vm1580, %v1579
    %s1582 = scalar_lea.vmem [#allocation1], 32
    %v1583 = vld [vmem:[%s1582] sm:$0x1]
    %s1584 = scalar_lea.vmem [#allocation1], 287
    %v1585 = vld [vmem:[%s1584] sm:$0x2]
    %vm1586 = vcmask 1041409
    %v1587 = vsel %vm1586, %v1585, %v1583
    %1588 = vrot.lane.b32.xlu0 %v1587, 16
    %v1589 = vpop.permute.xlu0 %1588
    %vm1590 = vcmask 146560
    %1591 = vst.msk [vmem:[#allocation0] sm:$0x3] %vm1590, %v1589
    %s1592 = scalar_lea.vmem [#allocation1], 25
    %v1593 = vld [vmem:[%s1592] sm:$0x1]
    %s1594 = scalar_lea.vmem [#allocation1], 280
    %v1595 = vld [vmem:[%s1594] sm:$0x2]
    %vm1596 = vcmask 1041409
    %v1597 = vsel %vm1596, %v1595, %v1593
    %1598 = vrot.lane.b32.xlu0 %v1597, 14
    %v1599 = vpop.permute.xlu0 %1598
    %vm1600 = vcmask 130160
    %1601 = vst.msk [vmem:[#allocation0] sm:$0x3] %vm1600, %v1599
    %s1602 = scalar_lea.vmem [#allocation1], 24
    %v1603 = vld [vmem:[%s1602] sm:$0x1]
    %s1604 = scalar_lea.vmem [#allocation1], 279
    %v1605 = vld [vmem:[%s1604] sm:$0x2]
    %vm1606 = vcmask 1041409
    %v1607 = vsel %vm1606, %v1605, %v1603
    %1608 = vrot.lane.b32.xlu0 %v1607, 12
    %v1609 = vpop.permute.xlu0 %1608
    %vm1610 = vcmask 113760
    %1611 = vst.msk [vmem:[#allocation0] sm:$0x3] %vm1610, %v1609
    %s1612 = scalar_lea.vmem [#allocation1], 17
    %v1613 = vld [vmem:[%s1612] sm:$0x1]
    %s1614 = scalar_lea.vmem [#allocation1], 272
    %v1615 = vld [vmem:[%s1614] sm:$0x2]
    %vm1616 = vcmask 1041409
    %v1617 = vsel %vm1616, %v1615, %v1613
    %1618 = vrot.lane.b32.xlu0 %v1617, 10
    %v1619 = vpop.permute.xlu0 %1618
    %vm1620 = vcmask 97360
    %1621 = vst.msk [vmem:[#allocation0] sm:$0x3] %vm1620, %v1619
    %s1622 = scalar_lea.vmem [#allocation1], 16
    %v1623 = vld [vmem:[%s1622] sm:$0x1]
    %s1624 = scalar_lea.vmem [#allocation1], 271
    %v1625 = vld [vmem:[%s1624] sm:$0x2]
    %vm1626 = vcmask 1041409
    %v1627 = vsel %vm1626, %v1625, %v1623
    %1628 = vrot.lane.b32.xlu0 %v1627, 8
    %v1629 = vpop.permute.xlu0 %1628
    %vm1630 = vcmask 80960
    %1631 = vst.msk [vmem:[#allocation0] sm:$0x3] %vm1630, %v1629
    %s1632 = scalar_lea.vmem [#allocation1], 9
    %v1633 = vld [vmem:[%s1632] sm:$0x1]
    %s1634 = scalar_lea.vmem [#allocation1], 264
    %v1635 = vld [vmem:[%s1634] sm:$0x2]
    %vm1636 = vcmask 1041409
    %v1637 = vsel %vm1636, %v1635, %v1633
    %1638 = vrot.lane.b32.xlu0 %v1637, 6
    %v1639 = vpop.permute.xlu0 %1638
    %vm1640 = vcmask 64560
    %1641 = vst.msk [vmem:[#allocation0] sm:$0x3] %vm1640, %v1639
    %s1642 = scalar_lea.vmem [#allocation1], 8
    %v1643 = vld [vmem:[%s1642] sm:$0x1]
    %s1644 = scalar_lea.vmem [#allocation1], 263
    %v1645 = vld [vmem:[%s1644] sm:$0x2]
    %vm1646 = vcmask 1041409
    %v1647 = vsel %vm1646, %v1645, %v1643
    %1648 = vrot.lane.b32.xlu0 %v1647, 4
    %v1649 = vpop.permute.xlu0 %1648
    %vm1650 = vcmask 48160
    %1651 = vst.msk [vmem:[#allocation0] sm:$0x3] %vm1650, %v1649
    %s1652 = scalar_lea.vmem [#allocation1], 1
    %v1653 = vld [vmem:[%s1652] sm:$0x1]
    %s1654 = scalar_lea.vmem [#allocation1], 256
    %v1655 = vld [vmem:[%s1654] sm:$0x2]
    %vm1656 = vcmask 1041409
    %v1657 = vsel %vm1656, %v1655, %v1653
    %1658 = vrot.lane.b32.xlu0 %v1657, 2
    %v1659 = vpop.permute.xlu0 %1658
    %vm1660 = vcmask 31760
    %1661 = vst.msk [vmem:[#allocation0] sm:$0x3] %vm1660, %v1659
    %s1663 = smul.u32 1, 2
    %s1664 = sshllo.u32 0, %s1663
    %s1665 = sshrl.u32 %s1663, 1
    %v1666 = vld [vmem:[#allocation0] sm:%s1664]
    %v1667 = vpack.c.bf16 0.0, %v1666
    %s1668 = sshllo.u32 0, %s1665
    %1669 = vst [vmem:[%s1] sm:%s1668] %v1667

// kernel: squeeze.18
$region0: #{squeeze.18}
  %s0 = inlined_call_operand.vmem [shape: bf16[1,32,2,4,4], index: 0, kind: input, shape index: {}]
  %s1 = inlined_call_operand.vmem [shape: bf16[1024], index: 1, kind: output, shape index: {}]
  $region1: #{squeeze.18} parent=0
    #allocation0 [shape = 'u8[4096]{0}', space=vmem, size = 0x1000, scoped, tag = 'scoped mem for output reshape']
    #allocation1 [shape = 'u8[262144]{0}', space=vmem, size = 0x40000, scoped, tag = 'scoped mem for input reshape']
    %s3 = smul.u32 2, 2
    %s4 = sshllo.u32 0, %s3
    %s5 = smul.addr 2, 63
    %s6 = scalar_lea.vmem %s0, %s5
    %s7 = sshrl.u32 %s4, 1
    %s8 = sor.u32 %s4, %s7
    %s9 = sand.u32 %s8, 85
    %s10 = sshrl.u32 %s9, 1
    %s11 = sor.u32 %s9, %s10
    %s12 = sand.u32 51, %s11
    %s13 = sshrl.u32 %s12, 2
    %s14 = sor.u32 %s12, %s13
    %s15 = sand.u32 15, %s14
    %v16 = vld [vmem:[%s6] sm:%s15]
    %v17 = vunpack.c.l.bf16 %v16
    %v18 = vunpack.c.h.bf16 %v16
    %s19 = scalar_lea.vmem [#allocation1], 504
    %20 = vst [vmem:[%s19] sm:%s4] %v17
    %s21 = smul.addr 2, 62
    %s22 = scalar_lea.vmem %s0, %s21
    %s23 = sshrl.u32 %s4, 1
    %s24 = sor.u32 %s4, %s23
    %s25 = sand.u32 %s24, 85
    %s26 = sshrl.u32 %s25, 1
    %s27 = sor.u32 %s25, %s26
    %s28 = sand.u32 51, %s27
    %s29 = sshrl.u32 %s28, 2
    %s30 = sor.u32 %s28, %s29
    %s31 = sand.u32 15, %s30
    %v32 = vld [vmem:[%s22] sm:%s31]
    %v33 = vunpack.c.l.bf16 %v32
    %v34 = vunpack.c.h.bf16 %v32
    %s35 = scalar_lea.vmem [#allocation1], 496
    %36 = vst [vmem:[%s35] sm:%s4] %v33
    %s37 = smul.addr 2, 61
    %s38 = scalar_lea.vmem %s0, %s37
    %s39 = sshrl.u32 %s4, 1
    %s40 = sor.u32 %s4, %s39
    %s41 = sand.u32 %s40, 85
    %s42 = sshrl.u32 %s41, 1
    %s43 = sor.u32 %s41, %s42
    %s44 = sand.u32 51, %s43
    %s45 = sshrl.u32 %s44, 2
    %s46 = sor.u32 %s44, %s45
    %s47 = sand.u32 15, %s46
    %v48 = vld [vmem:[%s38] sm:%s47]
    %v49 = vunpack.c.l.bf16 %v48
    %v50 = vunpack.c.h.bf16 %v48
    %s51 = scalar_lea.vmem [#allocation1], 488
    %52 = vst [vmem:[%s51] sm:%s4] %v49
    %s53 = smul.addr 2, 60
    %s54 = scalar_lea.vmem %s0, %s53
    %s55 = sshrl.u32 %s4, 1
    %s56 = sor.u32 %s4, %s55
    %s57 = sand.u32 %s56, 85
    %s58 = sshrl.u32 %s57, 1
    %s59 = sor.u32 %s57, %s58
    %s60 = sand.u32 51, %s59
    %s61 = sshrl.u32 %s60, 2
    %s62 = sor.u32 %s60, %s61
    %s63 = sand.u32 15, %s62
    %v64 = vld [vmem:[%s54] sm:%s63]
    %v65 = vunpack.c.l.bf16 %v64
    %v66 = vunpack.c.h.bf16 %v64
    %s67 = scalar_lea.vmem [#allocation1], 480
    %68 = vst [vmem:[%s67] sm:%s4] %v65
    %s69 = smul.addr 2, 59
    %s70 = scalar_lea.vmem %s0, %s69
    %s71 = sshrl.u32 %s4, 1
    %s72 = sor.u32 %s4, %s71
    %s73 = sand.u32 %s72, 85
    %s74 = sshrl.u32 %s73, 1
    %s75 = sor.u32 %s73, %s74
    %s76 = sand.u32 51, %s75
    %s77 = sshrl.u32 %s76, 2
    %s78 = sor.u32 %s76, %s77
    %s79 = sand.u32 15, %s78
    %v80 = vld [vmem:[%s70] sm:%s79]
    %v81 = vunpack.c.l.bf16 %v80
    %v82 = vunpack.c.h.bf16 %v80
    %s83 = scalar_lea.vmem [#allocation1], 472
    %84 = vst [vmem:[%s83] sm:%s4] %v81
    %s85 = smul.addr 2, 58
    %s86 = scalar_lea.vmem %s0, %s85
    %s87 = sshrl.u32 %s4, 1
    %s88 = sor.u32 %s4, %s87
    %s89 = sand.u32 %s88, 85
    %s90 = sshrl.u32 %s89, 1
    %s91 = sor.u32 %s89, %s90
    %s92 = sand.u32 51, %s91
    %s93 = sshrl.u32 %s92, 2
    %s94 = sor.u32 %s92, %s93
    %s95 = sand.u32 15, %s94
    %v96 = vld [vmem:[%s86] sm:%s95]
    %v97 = vunpack.c.l.bf16 %v96
    %v98 = vunpack.c.h.bf16 %v96
    %s99 = scalar_lea.vmem [#allocation1], 464
    %100 = vst [vmem:[%s99] sm:%s4] %v97
    %s101 = smul.addr 2, 57
    %s102 = scalar_lea.vmem %s0, %s101
    %s103 = sshrl.u32 %s4, 1
    %s104 = sor.u32 %s4, %s103
    %s105 = sand.u32 %s104, 85
    %s106 = sshrl.u32 %s105, 1
    %s107 = sor.u32 %s105, %s106
    %s108 = sand.u32 51, %s107
    %s109 = sshrl.u32 %s108, 2
    %s110 = sor.u32 %s108, %s109
    %s111 = sand.u32 15, %s110
    %v112 = vld [vmem:[%s102] sm:%s111]
    %v113 = vunpack.c.l.bf16 %v112
    %v114 = vunpack.c.h.bf16 %v112
    %s115 = scalar_lea.vmem [#allocation1], 456
    %116 = vst [vmem:[%s115] sm:%s4] %v113
    %s117 = smul.addr 2, 56
    %s118 = scalar_lea.vmem %s0, %s117
    %s119 = sshrl.u32 %s4, 1
    %s120 = sor.u32 %s4, %s119
    %s121 = sand.u32 %s120, 85
    %s122 = sshrl.u32 %s121, 1
    %s123 = sor.u32 %s121, %s122
    %s124 = sand.u32 51, %s123
    %s125 = sshrl.u32 %s124, 2
    %s126 = sor.u32 %s124, %s125
    %s127 = sand.u32 15, %s126
    %v128 = vld [vmem:[%s118] sm:%s127]
    %v129 = vunpack.c.l.bf16 %v128
    %v130 = vunpack.c.h.bf16 %v128
    %s131 = scalar_lea.vmem [#allocation1], 448
    %132 = vst [vmem:[%s131] sm:%s4] %v129
    %s133 = smul.addr 2, 55
    %s134 = scalar_lea.vmem %s0, %s133
    %s135 = sshrl.u32 %s4, 1
    %s136 = sor.u32 %s4, %s135
    %s137 = sand.u32 %s136, 85
    %s138 = sshrl.u32 %s137, 1
    %s139 = sor.u32 %s137, %s138
    %s140 = sand.u32 51, %s139
    %s141 = sshrl.u32 %s140, 2
    %s142 = sor.u32 %s140, %s141
    %s143 = sand.u32 15, %s142
    %v144 = vld [vmem:[%s134] sm:%s143]
    %v145 = vunpack.c.l.bf16 %v144
    %v146 = vunpack.c.h.bf16 %v144
    %s147 = scalar_lea.vmem [#allocation1], 440
    %148 = vst [vmem:[%s147] sm:%s4] %v145
    %s149 = smul.addr 2, 54
    %s150 = scalar_lea.vmem %s0, %s149
    %s151 = sshrl.u32 %s4, 1
    %s152 = sor.u32 %s4, %s151
    %s153 = sand.u32 %s152, 85
    %s154 = sshrl.u32 %s153, 1
    %s155 = sor.u32 %s153, %s154
    %s156 = sand.u32 51, %s155
    %s157 = sshrl.u32 %s156, 2
    %s158 = sor.u32 %s156, %s157
    %s159 = sand.u32 15, %s158
    %v160 = vld [vmem:[%s150] sm:%s159]
    %v161 = vunpack.c.l.bf16 %v160
    %v162 = vunpack.c.h.bf16 %v160
    %s163 = scalar_lea.vmem [#allocation1], 432
    %164 = vst [vmem:[%s163] sm:%s4] %v161
    %s165 = smul.addr 2, 53
    %s166 = scalar_lea.vmem %s0, %s165
    %s167 = sshrl.u32 %s4, 1
    %s168 = sor.u32 %s4, %s167
    %s169 = sand.u32 %s168, 85
    %s170 = sshrl.u32 %s169, 1
    %s171 = sor.u32 %s169, %s170
    %s172 = sand.u32 51, %s171
    %s173 = sshrl.u32 %s172, 2
    %s174 = sor.u32 %s172, %s173
    %s175 = sand.u32 15, %s174
    %v176 = vld [vmem:[%s166] sm:%s175]
    %v177 = vunpack.c.l.bf16 %v176
    %v178 = vunpack.c.h.bf16 %v176
    %s179 = scalar_lea.vmem [#allocation1], 424
    %180 = vst [vmem:[%s179] sm:%s4] %v177
    %s181 = smul.addr 2, 52
    %s182 = scalar_lea.vmem %s0, %s181
    %s183 = sshrl.u32 %s4, 1
    %s184 = sor.u32 %s4, %s183
    %s185 = sand.u32 %s184, 85
    %s186 = sshrl.u32 %s185, 1
    %s187 = sor.u32 %s185, %s186
    %s188 = sand.u32 51, %s187
    %s189 = sshrl.u32 %s188, 2
    %s190 = sor.u32 %s188, %s189
    %s191 = sand.u32 15, %s190
    %v192 = vld [vmem:[%s182] sm:%s191]
    %v193 = vunpack.c.l.bf16 %v192
    %v194 = vunpack.c.h.bf16 %v192
    %s195 = scalar_lea.vmem [#allocation1], 416
    %196 = vst [vmem:[%s195] sm:%s4] %v193
    %s197 = smul.addr 2, 51
    %s198 = scalar_lea.vmem %s0, %s197
    %s199 = sshrl.u32 %s4, 1
    %s200 = sor.u32 %s4, %s199
    %s201 = sand.u32 %s200, 85
    %s202 = sshrl.u32 %s201, 1
    %s203 = sor.u32 %s201, %s202
    %s204 = sand.u32 51, %s203
    %s205 = sshrl.u32 %s204, 2
    %s206 = sor.u32 %s204, %s205
    %s207 = sand.u32 15, %s206
    %v208 = vld [vmem:[%s198] sm:%s207]
    %v209 = vunpack.c.l.bf16 %v208
    %v210 = vunpack.c.h.bf16 %v208
    %s211 = scalar_lea.vmem [#allocation1], 408
    %212 = vst [vmem:[%s211] sm:%s4] %v209
    %s213 = smul.addr 2, 50
    %s214 = scalar_lea.vmem %s0, %s213
    %s215 = sshrl.u32 %s4, 1
    %s216 = sor.u32 %s4, %s215
    %s217 = sand.u32 %s216, 85
    %s218 = sshrl.u32 %s217, 1
    %s219 = sor.u32 %s217, %s218
    %s220 = sand.u32 51, %s219
    %s221 = sshrl.u32 %s220, 2
    %s222 = sor.u32 %s220, %s221
    %s223 = sand.u32 15, %s222
    %v224 = vld [vmem:[%s214] sm:%s223]
    %v225 = vunpack.c.l.bf16 %v224
    %v226 = vunpack.c.h.bf16 %v224
    %s227 = scalar_lea.vmem [#allocation1], 400
    %228 = vst [vmem:[%s227] sm:%s4] %v225
    %s229 = smul.addr 2, 49
    %s230 = scalar_lea.vmem %s0, %s229
    %s231 = sshrl.u32 %s4, 1
    %s232 = sor.u32 %s4, %s231
    %s233 = sand.u32 %s232, 85
    %s234 = sshrl.u32 %s233, 1
    %s235 = sor.u32 %s233, %s234
    %s236 = sand.u32 51, %s235
    %s237 = sshrl.u32 %s236, 2
    %s238 = sor.u32 %s236, %s237
    %s239 = sand.u32 15, %s238
    %v240 = vld [vmem:[%s230] sm:%s239]
    %v241 = vunpack.c.l.bf16 %v240
    %v242 = vunpack.c.h.bf16 %v240
    %s243 = scalar_lea.vmem [#allocation1], 392
    %244 = vst [vmem:[%s243] sm:%s4] %v241
    %s245 = smul.addr 2, 48
    %s246 = scalar_lea.vmem %s0, %s245
    %s247 = sshrl.u32 %s4, 1
    %s248 = sor.u32 %s4, %s247
    %s249 = sand.u32 %s248, 85
    %s250 = sshrl.u32 %s249, 1
    %s251 = sor.u32 %s249, %s250
    %s252 = sand.u32 51, %s251
    %s253 = sshrl.u32 %s252, 2
    %s254 = sor.u32 %s252, %s253
    %s255 = sand.u32 15, %s254
    %v256 = vld [vmem:[%s246] sm:%s255]
    %v257 = vunpack.c.l.bf16 %v256
    %v258 = vunpack.c.h.bf16 %v256
    %s259 = scalar_lea.vmem [#allocation1], 384
    %260 = vst [vmem:[%s259] sm:%s4] %v257
    %s261 = smul.addr 2, 47
    %s262 = scalar_lea.vmem %s0, %s261
    %s263 = sshrl.u32 %s4, 1
    %s264 = sor.u32 %s4, %s263
    %s265 = sand.u32 %s264, 85
    %s266 = sshrl.u32 %s265, 1
    %s267 = sor.u32 %s265, %s266
    %s268 = sand.u32 51, %s267
    %s269 = sshrl.u32 %s268, 2
    %s270 = sor.u32 %s268, %s269
    %s271 = sand.u32 15, %s270
    %v272 = vld [vmem:[%s262] sm:%s271]
    %v273 = vunpack.c.l.bf16 %v272
    %v274 = vunpack.c.h.bf16 %v272
    %s275 = scalar_lea.vmem [#allocation1], 376
    %276 = vst [vmem:[%s275] sm:%s4] %v273
    %s277 = smul.addr 2, 46
    %s278 = scalar_lea.vmem %s0, %s277
    %s279 = sshrl.u32 %s4, 1
    %s280 = sor.u32 %s4, %s279
    %s281 = sand.u32 %s280, 85
    %s282 = sshrl.u32 %s281, 1
    %s283 = sor.u32 %s281, %s282
    %s284 = sand.u32 51, %s283
    %s285 = sshrl.u32 %s284, 2
    %s286 = sor.u32 %s284, %s285
    %s287 = sand.u32 15, %s286
    %v288 = vld [vmem:[%s278] sm:%s287]
    %v289 = vunpack.c.l.bf16 %v288
    %v290 = vunpack.c.h.bf16 %v288
    %s291 = scalar_lea.vmem [#allocation1], 368
    %292 = vst [vmem:[%s291] sm:%s4] %v289
    %s293 = smul.addr 2, 45
    %s294 = scalar_lea.vmem %s0, %s293
    %s295 = sshrl.u32 %s4, 1
    %s296 = sor.u32 %s4, %s295
    %s297 = sand.u32 %s296, 85
    %s298 = sshrl.u32 %s297, 1
    %s299 = sor.u32 %s297, %s298
    %s300 = sand.u32 51, %s299
    %s301 = sshrl.u32 %s300, 2
    %s302 = sor.u32 %s300, %s301
    %s303 = sand.u32 15, %s302
    %v304 = vld [vmem:[%s294] sm:%s303]
    %v305 = vunpack.c.l.bf16 %v304
    %v306 = vunpack.c.h.bf16 %v304
    %s307 = scalar_lea.vmem [#allocation1], 360
    %308 = vst [vmem:[%s307] sm:%s4] %v305
    %s309 = smul.addr 2, 44
    %s310 = scalar_lea.vmem %s0, %s309
    %s311 = sshrl.u32 %s4, 1
    %s312 = sor.u32 %s4, %s311
    %s313 = sand.u32 %s312, 85
    %s314 = sshrl.u32 %s313, 1
    %s315 = sor.u32 %s313, %s314
    %s316 = sand.u32 51, %s315
    %s317 = sshrl.u32 %s316, 2
    %s318 = sor.u32 %s316, %s317
    %s319 = sand.u32 15, %s318
    %v320 = vld [vmem:[%s310] sm:%s319]
    %v321 = vunpack.c.l.bf16 %v320
    %v322 = vunpack.c.h.bf16 %v320
    %s323 = scalar_lea.vmem [#allocation1], 352
    %324 = vst [vmem:[%s323] sm:%s4] %v321
    %s325 = smul.addr 2, 43
    %s326 = scalar_lea.vmem %s0, %s325
    %s327 = sshrl.u32 %s4, 1
    %s328 = sor.u32 %s4, %s327
    %s329 = sand.u32 %s328, 85
    %s330 = sshrl.u32 %s329, 1
    %s331 = sor.u32 %s329, %s330
    %s332 = sand.u32 51, %s331
    %s333 = sshrl.u32 %s332, 2
    %s334 = sor.u32 %s332, %s333
    %s335 = sand.u32 15, %s334
    %v336 = vld [vmem:[%s326] sm:%s335]
    %v337 = vunpack.c.l.bf16 %v336
    %v338 = vunpack.c.h.bf16 %v336
    %s339 = scalar_lea.vmem [#allocation1], 344
    %340 = vst [vmem:[%s339] sm:%s4] %v337
    %s341 = smul.addr 2, 42
    %s342 = scalar_lea.vmem %s0, %s341
    %s343 = sshrl.u32 %s4, 1
    %s344 = sor.u32 %s4, %s343
    %s345 = sand.u32 %s344, 85
    %s346 = sshrl.u32 %s345, 1
    %s347 = sor.u32 %s345, %s346
    %s348 = sand.u32 51, %s347
    %s349 = sshrl.u32 %s348, 2
    %s350 = sor.u32 %s348, %s349
    %s351 = sand.u32 15, %s350
    %v352 = vld [vmem:[%s342] sm:%s351]
    %v353 = vunpack.c.l.bf16 %v352
    %v354 = vunpack.c.h.bf16 %v352
    %s355 = scalar_lea.vmem [#allocation1], 336
    %356 = vst [vmem:[%s355] sm:%s4] %v353
    %s357 = smul.addr 2, 41
    %s358 = scalar_lea.vmem %s0, %s357
    %s359 = sshrl.u32 %s4, 1
    %s360 = sor.u32 %s4, %s359
    %s361 = sand.u32 %s360, 85
    %s362 = sshrl.u32 %s361, 1
    %s363 = sor.u32 %s361, %s362
    %s364 = sand.u32 51, %s363
    %s365 = sshrl.u32 %s364, 2
    %s366 = sor.u32 %s364, %s365
    %s367 = sand.u32 15, %s366
    %v368 = vld [vmem:[%s358] sm:%s367]
    %v369 = vunpack.c.l.bf16 %v368
    %v370 = vunpack.c.h.bf16 %v368
    %s371 = scalar_lea.vmem [#allocation1], 328
    %372 = vst [vmem:[%s371] sm:%s4] %v369
    %s373 = smul.addr 2, 40
    %s374 = scalar_lea.vmem %s0, %s373
    %s375 = sshrl.u32 %s4, 1
    %s376 = sor.u32 %s4, %s375
    %s377 = sand.u32 %s376, 85
    %s378 = sshrl.u32 %s377, 1
    %s379 = sor.u32 %s377, %s378
    %s380 = sand.u32 51, %s379
    %s381 = sshrl.u32 %s380, 2
    %s382 = sor.u32 %s380, %s381
    %s383 = sand.u32 15, %s382
    %v384 = vld [vmem:[%s374] sm:%s383]
    %v385 = vunpack.c.l.bf16 %v384
    %v386 = vunpack.c.h.bf16 %v384
    %s387 = scalar_lea.vmem [#allocation1], 320
    %388 = vst [vmem:[%s387] sm:%s4] %v385
    %s389 = smul.addr 2, 39
    %s390 = scalar_lea.vmem %s0, %s389
    %s391 = sshrl.u32 %s4, 1
    %s392 = sor.u32 %s4, %s391
    %s393 = sand.u32 %s392, 85
    %s394 = sshrl.u32 %s393, 1
    %s395 = sor.u32 %s393, %s394
    %s396 = sand.u32 51, %s395
    %s397 = sshrl.u32 %s396, 2
    %s398 = sor.u32 %s396, %s397
    %s399 = sand.u32 15, %s398
    %v400 = vld [vmem:[%s390] sm:%s399]
    %v401 = vunpack.c.l.bf16 %v400
    %v402 = vunpack.c.h.bf16 %v400
    %s403 = scalar_lea.vmem [#allocation1], 312
    %404 = vst [vmem:[%s403] sm:%s4] %v401
    %s405 = smul.addr 2, 38
    %s406 = scalar_lea.vmem %s0, %s405
    %s407 = sshrl.u32 %s4, 1
    %s408 = sor.u32 %s4, %s407
    %s409 = sand.u32 %s408, 85
    %s410 = sshrl.u32 %s409, 1
    %s411 = sor.u32 %s409, %s410
    %s412 = sand.u32 51, %s411
    %s413 = sshrl.u32 %s412, 2
    %s414 = sor.u32 %s412, %s413
    %s415 = sand.u32 15, %s414
    %v416 = vld [vmem:[%s406] sm:%s415]
    %v417 = vunpack.c.l.bf16 %v416
    %v418 = vunpack.c.h.bf16 %v416
    %s419 = scalar_lea.vmem [#allocation1], 304
    %420 = vst [vmem:[%s419] sm:%s4] %v417
    %s421 = smul.addr 2, 37
    %s422 = scalar_lea.vmem %s0, %s421
    %s423 = sshrl.u32 %s4, 1
    %s424 = sor.u32 %s4, %s423
    %s425 = sand.u32 %s424, 85
    %s426 = sshrl.u32 %s425, 1
    %s427 = sor.u32 %s425, %s426
    %s428 = sand.u32 51, %s427
    %s429 = sshrl.u32 %s428, 2
    %s430 = sor.u32 %s428, %s429
    %s431 = sand.u32 15, %s430
    %v432 = vld [vmem:[%s422] sm:%s431]
    %v433 = vunpack.c.l.bf16 %v432
    %v434 = vunpack.c.h.bf16 %v432
    %s435 = scalar_lea.vmem [#allocation1], 296
    %436 = vst [vmem:[%s435] sm:%s4] %v433
    %s437 = smul.addr 2, 36
    %s438 = scalar_lea.vmem %s0, %s437
    %s439 = sshrl.u32 %s4, 1
    %s440 = sor.u32 %s4, %s439
    %s441 = sand.u32 %s440, 85
    %s442 = sshrl.u32 %s441, 1
    %s443 = sor.u32 %s441, %s442
    %s444 = sand.u32 51, %s443
    %s445 = sshrl.u32 %s444, 2
    %s446 = sor.u32 %s444, %s445
    %s447 = sand.u32 15, %s446
    %v448 = vld [vmem:[%s438] sm:%s447]
    %v449 = vunpack.c.l.bf16 %v448
    %v450 = vunpack.c.h.bf16 %v448
    %s451 = scalar_lea.vmem [#allocation1], 288
    %452 = vst [vmem:[%s451] sm:%s4] %v449
    %s453 = smul.addr 2, 35
    %s454 = scalar_lea.vmem %s0, %s453
    %s455 = sshrl.u32 %s4, 1
    %s456 = sor.u32 %s4, %s455
    %s457 = sand.u32 %s456, 85
    %s458 = sshrl.u32 %s457, 1
    %s459 = sor.u32 %s457, %s458
    %s460 = sand.u32 51, %s459
    %s461 = sshrl.u32 %s460, 2
    %s462 = sor.u32 %s460, %s461
    %s463 = sand.u32 15, %s462
    %v464 = vld [vmem:[%s454] sm:%s463]
    %v465 = vunpack.c.l.bf16 %v464
    %v466 = vunpack.c.h.bf16 %v464
    %s467 = scalar_lea.vmem [#allocation1], 280
    %468 = vst [vmem:[%s467] sm:%s4] %v465
    %s469 = smul.addr 2, 34
    %s470 = scalar_lea.vmem %s0, %s469
    %s471 = sshrl.u32 %s4, 1
    %s472 = sor.u32 %s4, %s471
    %s473 = sand.u32 %s472, 85
    %s474 = sshrl.u32 %s473, 1
    %s475 = sor.u32 %s473, %s474
    %s476 = sand.u32 51, %s475
    %s477 = sshrl.u32 %s476, 2
    %s478 = sor.u32 %s476, %s477
    %s479 = sand.u32 15, %s478
    %v480 = vld [vmem:[%s470] sm:%s479]
    %v481 = vunpack.c.l.bf16 %v480
    %v482 = vunpack.c.h.bf16 %v480
    %s483 = scalar_lea.vmem [#allocation1], 272
    %484 = vst [vmem:[%s483] sm:%s4] %v481
    %s485 = smul.addr 2, 33
    %s486 = scalar_lea.vmem %s0, %s485
    %s487 = sshrl.u32 %s4, 1
    %s488 = sor.u32 %s4, %s487
    %s489 = sand.u32 %s488, 85
    %s490 = sshrl.u32 %s489, 1
    %s491 = sor.u32 %s489, %s490
    %s492 = sand.u32 51, %s491
    %s493 = sshrl.u32 %s492, 2
    %s494 = sor.u32 %s492, %s493
    %s495 = sand.u32 15, %s494
    %v496 = vld [vmem:[%s486] sm:%s495]
    %v497 = vunpack.c.l.bf16 %v496
    %v498 = vunpack.c.h.bf16 %v496
    %s499 = scalar_lea.vmem [#allocation1], 264
    %500 = vst [vmem:[%s499] sm:%s4] %v497
    %s501 = smul.addr 2, 32
    %s502 = scalar_lea.vmem %s0, %s501
    %s503 = sshrl.u32 %s4, 1
    %s504 = sor.u32 %s4, %s503
    %s505 = sand.u32 %s504, 85
    %s506 = sshrl.u32 %s505, 1
    %s507 = sor.u32 %s505, %s506
    %s508 = sand.u32 51, %s507
    %s509 = sshrl.u32 %s508, 2
    %s510 = sor.u32 %s508, %s509
    %s511 = sand.u32 15, %s510
    %v512 = vld [vmem:[%s502] sm:%s511]
    %v513 = vunpack.c.l.bf16 %v512
    %v514 = vunpack.c.h.bf16 %v512
    %s515 = scalar_lea.vmem [#allocation1], 256
    %516 = vst [vmem:[%s515] sm:%s4] %v513
    %s517 = smul.addr 2, 31
    %s518 = scalar_lea.vmem %s0, %s517
    %s519 = sshrl.u32 %s4, 1
    %s520 = sor.u32 %s4, %s519
    %s521 = sand.u32 %s520, 85
    %s522 = sshrl.u32 %s521, 1
    %s523 = sor.u32 %s521, %s522
    %s524 = sand.u32 51, %s523
    %s525 = sshrl.u32 %s524, 2
    %s526 = sor.u32 %s524, %s525
    %s527 = sand.u32 15, %s526
    %v528 = vld [vmem:[%s518] sm:%s527]
    %v529 = vunpack.c.l.bf16 %v528
    %v530 = vunpack.c.h.bf16 %v528
    %s531 = scalar_lea.vmem [#allocation1], 248
    %532 = vst [vmem:[%s531] sm:%s4] %v529
    %s533 = smul.addr 2, 30
    %s534 = scalar_lea.vmem %s0, %s533
    %s535 = sshrl.u32 %s4, 1
    %s536 = sor.u32 %s4, %s535
    %s537 = sand.u32 %s536, 85
    %s538 = sshrl.u32 %s537, 1
    %s539 = sor.u32 %s537, %s538
    %s540 = sand.u32 51, %s539
    %s541 = sshrl.u32 %s540, 2
    %s542 = sor.u32 %s540, %s541
    %s543 = sand.u32 15, %s542
    %v544 = vld [vmem:[%s534] sm:%s543]
    %v545 = vunpack.c.l.bf16 %v544
    %v546 = vunpack.c.h.bf16 %v544
    %s547 = scalar_lea.vmem [#allocation1], 240
    %548 = vst [vmem:[%s547] sm:%s4] %v545
    %s549 = smul.addr 2, 29
    %s550 = scalar_lea.vmem %s0, %s549
    %s551 = sshrl.u32 %s4, 1
    %s552 = sor.u32 %s4, %s551
    %s553 = sand.u32 %s552, 85
    %s554 = sshrl.u32 %s553, 1
    %s555 = sor.u32 %s553, %s554
    %s556 = sand.u32 51, %s555
    %s557 = sshrl.u32 %s556, 2
    %s558 = sor.u32 %s556, %s557
    %s559 = sand.u32 15, %s558
    %v560 = vld [vmem:[%s550] sm:%s559]
    %v561 = vunpack.c.l.bf16 %v560
    %v562 = vunpack.c.h.bf16 %v560
    %s563 = scalar_lea.vmem [#allocation1], 232
    %564 = vst [vmem:[%s563] sm:%s4] %v561
    %s565 = smul.addr 2, 28
    %s566 = scalar_lea.vmem %s0, %s565
    %s567 = sshrl.u32 %s4, 1
    %s568 = sor.u32 %s4, %s567
    %s569 = sand.u32 %s568, 85
    %s570 = sshrl.u32 %s569, 1
    %s571 = sor.u32 %s569, %s570
    %s572 = sand.u32 51, %s571
    %s573 = sshrl.u32 %s572, 2
    %s574 = sor.u32 %s572, %s573
    %s575 = sand.u32 15, %s574
    %v576 = vld [vmem:[%s566] sm:%s575]
    %v577 = vunpack.c.l.bf16 %v576
    %v578 = vunpack.c.h.bf16 %v576
    %s579 = scalar_lea.vmem [#allocation1], 224
    %580 = vst [vmem:[%s579] sm:%s4] %v577
    %s581 = smul.addr 2, 27
    %s582 = scalar_lea.vmem %s0, %s581
    %s583 = sshrl.u32 %s4, 1
    %s584 = sor.u32 %s4, %s583
    %s585 = sand.u32 %s584, 85
    %s586 = sshrl.u32 %s585, 1
    %s587 = sor.u32 %s585, %s586
    %s588 = sand.u32 51, %s587
    %s589 = sshrl.u32 %s588, 2
    %s590 = sor.u32 %s588, %s589
    %s591 = sand.u32 15, %s590
    %v592 = vld [vmem:[%s582] sm:%s591]
    %v593 = vunpack.c.l.bf16 %v592
    %v594 = vunpack.c.h.bf16 %v592
    %s595 = scalar_lea.vmem [#allocation1], 216
    %596 = vst [vmem:[%s595] sm:%s4] %v593
    %s597 = smul.addr 2, 26
    %s598 = scalar_lea.vmem %s0, %s597
    %s599 = sshrl.u32 %s4, 1
    %s600 = sor.u32 %s4, %s599
    %s601 = sand.u32 %s600, 85
    %s602 = sshrl.u32 %s601, 1
    %s603 = sor.u32 %s601, %s602
    %s604 = sand.u32 51, %s603
    %s605 = sshrl.u32 %s604, 2
    %s606 = sor.u32 %s604, %s605
    %s607 = sand.u32 15, %s606
    %v608 = vld [vmem:[%s598] sm:%s607]
    %v609 = vunpack.c.l.bf16 %v608
    %v610 = vunpack.c.h.bf16 %v608
    %s611 = scalar_lea.vmem [#allocation1], 208
    %612 = vst [vmem:[%s611] sm:%s4] %v609
    %s613 = smul.addr 2, 25
    %s614 = scalar_lea.vmem %s0, %s613
    %s615 = sshrl.u32 %s4, 1
    %s616 = sor.u32 %s4, %s615
    %s617 = sand.u32 %s616, 85
    %s618 = sshrl.u32 %s617, 1
    %s619 = sor.u32 %s617, %s618
    %s620 = sand.u32 51, %s619
    %s621 = sshrl.u32 %s620, 2
    %s622 = sor.u32 %s620, %s621
    %s623 = sand.u32 15, %s622
    %v624 = vld [vmem:[%s614] sm:%s623]
    %v625 = vunpack.c.l.bf16 %v624
    %v626 = vunpack.c.h.bf16 %v624
    %s627 = scalar_lea.vmem [#allocation1], 200
    %628 = vst [vmem:[%s627] sm:%s4] %v625
    %s629 = smul.addr 2, 24
    %s630 = scalar_lea.vmem %s0, %s629
    %s631 = sshrl.u32 %s4, 1
    %s632 = sor.u32 %s4, %s631
    %s633 = sand.u32 %s632, 85
    %s634 = sshrl.u32 %s633, 1
    %s635 = sor.u32 %s633, %s634
    %s636 = sand.u32 51, %s635
    %s637 = sshrl.u32 %s636, 2
    %s638 = sor.u32 %s636, %s637
    %s639 = sand.u32 15, %s638
    %v640 = vld [vmem:[%s630] sm:%s639]
    %v641 = vunpack.c.l.bf16 %v640
    %v642 = vunpack.c.h.bf16 %v640
    %s643 = scalar_lea.vmem [#allocation1], 192
    %644 = vst [vmem:[%s643] sm:%s4] %v641
    %s645 = smul.addr 2, 23
    %s646 = scalar_lea.vmem %s0, %s645
    %s647 = sshrl.u32 %s4, 1
    %s648 = sor.u32 %s4, %s647
    %s649 = sand.u32 %s648, 85
    %s650 = sshrl.u32 %s649, 1
    %s651 = sor.u32 %s649, %s650
    %s652 = sand.u32 51, %s651
    %s653 = sshrl.u32 %s652, 2
    %s654 = sor.u32 %s652, %s653
    %s655 = sand.u32 15, %s654
    %v656 = vld [vmem:[%s646] sm:%s655]
    %v657 = vunpack.c.l.bf16 %v656
    %v658 = vunpack.c.h.bf16 %v656
    %s659 = scalar_lea.vmem [#allocation1], 184
    %660 = vst [vmem:[%s659] sm:%s4] %v657
    %s661 = smul.addr 2, 22
    %s662 = scalar_lea.vmem %s0, %s661
    %s663 = sshrl.u32 %s4, 1
    %s664 = sor.u32 %s4, %s663
    %s665 = sand.u32 %s664, 85
    %s666 = sshrl.u32 %s665, 1
    %s667 = sor.u32 %s665, %s666
    %s668 = sand.u32 51, %s667
    %s669 = sshrl.u32 %s668, 2
    %s670 = sor.u32 %s668, %s669
    %s671 = sand.u32 15, %s670
    %v672 = vld [vmem:[%s662] sm:%s671]
    %v673 = vunpack.c.l.bf16 %v672
    %v674 = vunpack.c.h.bf16 %v672
    %s675 = scalar_lea.vmem [#allocation1], 176
    %676 = vst [vmem:[%s675] sm:%s4] %v673
    %s677 = smul.addr 2, 21
    %s678 = scalar_lea.vmem %s0, %s677
    %s679 = sshrl.u32 %s4, 1
    %s680 = sor.u32 %s4, %s679
    %s681 = sand.u32 %s680, 85
    %s682 = sshrl.u32 %s681, 1
    %s683 = sor.u32 %s681, %s682
    %s684 = sand.u32 51, %s683
    %s685 = sshrl.u32 %s684, 2
    %s686 = sor.u32 %s684, %s685
    %s687 = sand.u32 15, %s686
    %v688 = vld [vmem:[%s678] sm:%s687]
    %v689 = vunpack.c.l.bf16 %v688
    %v690 = vunpack.c.h.bf16 %v688
    %s691 = scalar_lea.vmem [#allocation1], 168
    %692 = vst [vmem:[%s691] sm:%s4] %v689
    %s693 = smul.addr 2, 20
    %s694 = scalar_lea.vmem %s0, %s693
    %s695 = sshrl.u32 %s4, 1
    %s696 = sor.u32 %s4, %s695
    %s697 = sand.u32 %s696, 85
    %s698 = sshrl.u32 %s697, 1
    %s699 = sor.u32 %s697, %s698
    %s700 = sand.u32 51, %s699
    %s701 = sshrl.u32 %s700, 2
    %s702 = sor.u32 %s700, %s701
    %s703 = sand.u32 15, %s702
    %v704 = vld [vmem:[%s694] sm:%s703]
    %v705 = vunpack.c.l.bf16 %v704
    %v706 = vunpack.c.h.bf16 %v704
    %s707 = scalar_lea.vmem [#allocation1], 160
    %708 = vst [vmem:[%s707] sm:%s4] %v705
    %s709 = smul.addr 2, 19
    %s710 = scalar_lea.vmem %s0, %s709
    %s711 = sshrl.u32 %s4, 1
    %s712 = sor.u32 %s4, %s711
    %s713 = sand.u32 %s712, 85
    %s714 = sshrl.u32 %s713, 1
    %s715 = sor.u32 %s713, %s714
    %s716 = sand.u32 51, %s715
    %s717 = sshrl.u32 %s716, 2
    %s718 = sor.u32 %s716, %s717
    %s719 = sand.u32 15, %s718
    %v720 = vld [vmem:[%s710] sm:%s719]
    %v721 = vunpack.c.l.bf16 %v720
    %v722 = vunpack.c.h.bf16 %v720
    %s723 = scalar_lea.vmem [#allocation1], 152
    %724 = vst [vmem:[%s723] sm:%s4] %v721
    %s725 = smul.addr 2, 18
    %s726 = scalar_lea.vmem %s0, %s725
    %s727 = sshrl.u32 %s4, 1
    %s728 = sor.u32 %s4, %s727
    %s729 = sand.u32 %s728, 85
    %s730 = sshrl.u32 %s729, 1
    %s731 = sor.u32 %s729, %s730
    %s732 = sand.u32 51, %s731
    %s733 = sshrl.u32 %s732, 2
    %s734 = sor.u32 %s732, %s733
    %s735 = sand.u32 15, %s734
    %v736 = vld [vmem:[%s726] sm:%s735]
    %v737 = vunpack.c.l.bf16 %v736
    %v738 = vunpack.c.h.bf16 %v736
    %s739 = scalar_lea.vmem [#allocation1], 144
    %740 = vst [vmem:[%s739] sm:%s4] %v737
    %s741 = smul.addr 2, 17
    %s742 = scalar_lea.vmem %s0, %s741
    %s743 = sshrl.u32 %s4, 1
    %s744 = sor.u32 %s4, %s743
    %s745 = sand.u32 %s744, 85
    %s746 = sshrl.u32 %s745, 1
    %s747 = sor.u32 %s745, %s746
    %s748 = sand.u32 51, %s747
    %s749 = sshrl.u32 %s748, 2
    %s750 = sor.u32 %s748, %s749
    %s751 = sand.u32 15, %s750
    %v752 = vld [vmem:[%s742] sm:%s751]
    %v753 = vunpack.c.l.bf16 %v752
    %v754 = vunpack.c.h.bf16 %v752
    %s755 = scalar_lea.vmem [#allocation1], 136
    %756 = vst [vmem:[%s755] sm:%s4] %v753
    %s757 = smul.addr 2, 16
    %s758 = scalar_lea.vmem %s0, %s757
    %s759 = sshrl.u32 %s4, 1
    %s760 = sor.u32 %s4, %s759
    %s761 = sand.u32 %s760, 85
    %s762 = sshrl.u32 %s761, 1
    %s763 = sor.u32 %s761, %s762
    %s764 = sand.u32 51, %s763
    %s765 = sshrl.u32 %s764, 2
    %s766 = sor.u32 %s764, %s765
    %s767 = sand.u32 15, %s766
    %v768 = vld [vmem:[%s758] sm:%s767]
    %v769 = vunpack.c.l.bf16 %v768
    %v770 = vunpack.c.h.bf16 %v768
    %s771 = scalar_lea.vmem [#allocation1], 128
    %772 = vst [vmem:[%s771] sm:%s4] %v769
    %s773 = smul.addr 2, 15
    %s774 = scalar_lea.vmem %s0, %s773
    %s775 = sshrl.u32 %s4, 1
    %s776 = sor.u32 %s4, %s775
    %s777 = sand.u32 %s776, 85
    %s778 = sshrl.u32 %s777, 1
    %s779 = sor.u32 %s777, %s778
    %s780 = sand.u32 51, %s779
    %s781 = sshrl.u32 %s780, 2
    %s782 = sor.u32 %s780, %s781
    %s783 = sand.u32 15, %s782
    %v784 = vld [vmem:[%s774] sm:%s783]
    %v785 = vunpack.c.l.bf16 %v784
    %v786 = vunpack.c.h.bf16 %v784
    %s787 = scalar_lea.vmem [#allocation1], 120
    %788 = vst [vmem:[%s787] sm:%s4] %v785
    %s789 = smul.addr 2, 14
    %s790 = scalar_lea.vmem %s0, %s789
    %s791 = sshrl.u32 %s4, 1
    %s792 = sor.u32 %s4, %s791
    %s793 = sand.u32 %s792, 85
    %s794 = sshrl.u32 %s793, 1
    %s795 = sor.u32 %s793, %s794
    %s796 = sand.u32 51, %s795
    %s797 = sshrl.u32 %s796, 2
    %s798 = sor.u32 %s796, %s797
    %s799 = sand.u32 15, %s798
    %v800 = vld [vmem:[%s790] sm:%s799]
    %v801 = vunpack.c.l.bf16 %v800
    %v802 = vunpack.c.h.bf16 %v800
    %s803 = scalar_lea.vmem [#allocation1], 112
    %804 = vst [vmem:[%s803] sm:%s4] %v801
    %s805 = smul.addr 2, 13
    %s806 = scalar_lea.vmem %s0, %s805
    %s807 = sshrl.u32 %s4, 1
    %s808 = sor.u32 %s4, %s807
    %s809 = sand.u32 %s808, 85
    %s810 = sshrl.u32 %s809, 1
    %s811 = sor.u32 %s809, %s810
    %s812 = sand.u32 51, %s811
    %s813 = sshrl.u32 %s812, 2
    %s814 = sor.u32 %s812, %s813
    %s815 = sand.u32 15, %s814
    %v816 = vld [vmem:[%s806] sm:%s815]
    %v817 = vunpack.c.l.bf16 %v816
    %v818 = vunpack.c.h.bf16 %v816
    %s819 = scalar_lea.vmem [#allocation1], 104
    %820 = vst [vmem:[%s819] sm:%s4] %v817
    %s821 = smul.addr 2, 12
    %s822 = scalar_lea.vmem %s0, %s821
    %s823 = sshrl.u32 %s4, 1
    %s824 = sor.u32 %s4, %s823
    %s825 = sand.u32 %s824, 85
    %s826 = sshrl.u32 %s825, 1
    %s827 = sor.u32 %s825, %s826
    %s828 = sand.u32 51, %s827
    %s829 = sshrl.u32 %s828, 2
    %s830 = sor.u32 %s828, %s829
    %s831 = sand.u32 15, %s830
    %v832 = vld [vmem:[%s822] sm:%s831]
    %v833 = vunpack.c.l.bf16 %v832
    %v834 = vunpack.c.h.bf16 %v832
    %s835 = scalar_lea.vmem [#allocation1], 96
    %836 = vst [vmem:[%s835] sm:%s4] %v833
    %s837 = smul.addr 2, 11
    %s838 = scalar_lea.vmem %s0, %s837
    %s839 = sshrl.u32 %s4, 1
    %s840 = sor.u32 %s4, %s839
    %s841 = sand.u32 %s840, 85
    %s842 = sshrl.u32 %s841, 1
    %s843 = sor.u32 %s841, %s842
    %s844 = sand.u32 51, %s843
    %s845 = sshrl.u32 %s844, 2
    %s846 = sor.u32 %s844, %s845
    %s847 = sand.u32 15, %s846
    %v848 = vld [vmem:[%s838] sm:%s847]
    %v849 = vunpack.c.l.bf16 %v848
    %v850 = vunpack.c.h.bf16 %v848
    %s851 = scalar_lea.vmem [#allocation1], 88
    %852 = vst [vmem:[%s851] sm:%s4] %v849
    %s853 = smul.addr 2, 10
    %s854 = scalar_lea.vmem %s0, %s853
    %s855 = sshrl.u32 %s4, 1
    %s856 = sor.u32 %s4, %s855
    %s857 = sand.u32 %s856, 85
    %s858 = sshrl.u32 %s857, 1
    %s859 = sor.u32 %s857, %s858
    %s860 = sand.u32 51, %s859
    %s861 = sshrl.u32 %s860, 2
    %s862 = sor.u32 %s860, %s861
    %s863 = sand.u32 15, %s862
    %v864 = vld [vmem:[%s854] sm:%s863]
    %v865 = vunpack.c.l.bf16 %v864
    %v866 = vunpack.c.h.bf16 %v864
    %s867 = scalar_lea.vmem [#allocation1], 80
    %868 = vst [vmem:[%s867] sm:%s4] %v865
    %s869 = smul.addr 2, 9
    %s870 = scalar_lea.vmem %s0, %s869
    %s871 = sshrl.u32 %s4, 1
    %s872 = sor.u32 %s4, %s871
    %s873 = sand.u32 %s872, 85
    %s874 = sshrl.u32 %s873, 1
    %s875 = sor.u32 %s873, %s874
    %s876 = sand.u32 51, %s875
    %s877 = sshrl.u32 %s876, 2
    %s878 = sor.u32 %s876, %s877
    %s879 = sand.u32 15, %s878
    %v880 = vld [vmem:[%s870] sm:%s879]
    %v881 = vunpack.c.l.bf16 %v880
    %v882 = vunpack.c.h.bf16 %v880
    %s883 = scalar_lea.vmem [#allocation1], 72
    %884 = vst [vmem:[%s883] sm:%s4] %v881
    %s885 = smul.addr 2, 8
    %s886 = scalar_lea.vmem %s0, %s885
    %s887 = sshrl.u32 %s4, 1
    %s888 = sor.u32 %s4, %s887
    %s889 = sand.u32 %s888, 85
    %s890 = sshrl.u32 %s889, 1
    %s891 = sor.u32 %s889, %s890
    %s892 = sand.u32 51, %s891
    %s893 = sshrl.u32 %s892, 2
    %s894 = sor.u32 %s892, %s893
    %s895 = sand.u32 15, %s894
    %v896 = vld [vmem:[%s886] sm:%s895]
    %v897 = vunpack.c.l.bf16 %v896
    %v898 = vunpack.c.h.bf16 %v896
    %s899 = scalar_lea.vmem [#allocation1], 64
    %900 = vst [vmem:[%s899] sm:%s4] %v897
    %s901 = smul.addr 2, 7
    %s902 = scalar_lea.vmem %s0, %s901
    %s903 = sshrl.u32 %s4, 1
    %s904 = sor.u32 %s4, %s903
    %s905 = sand.u32 %s904, 85
    %s906 = sshrl.u32 %s905, 1
    %s907 = sor.u32 %s905, %s906
    %s908 = sand.u32 51, %s907
    %s909 = sshrl.u32 %s908, 2
    %s910 = sor.u32 %s908, %s909
    %s911 = sand.u32 15, %s910
    %v912 = vld [vmem:[%s902] sm:%s911]
    %v913 = vunpack.c.l.bf16 %v912
    %v914 = vunpack.c.h.bf16 %v912
    %s915 = scalar_lea.vmem [#allocation1], 56
    %916 = vst [vmem:[%s915] sm:%s4] %v913
    %s917 = smul.addr 2, 6
    %s918 = scalar_lea.vmem %s0, %s917
    %s919 = sshrl.u32 %s4, 1
    %s920 = sor.u32 %s4, %s919
    %s921 = sand.u32 %s920, 85
    %s922 = sshrl.u32 %s921, 1
    %s923 = sor.u32 %s921, %s922
    %s924 = sand.u32 51, %s923
    %s925 = sshrl.u32 %s924, 2
    %s926 = sor.u32 %s924, %s925
    %s927 = sand.u32 15, %s926
    %v928 = vld [vmem:[%s918] sm:%s927]
    %v929 = vunpack.c.l.bf16 %v928
    %v930 = vunpack.c.h.bf16 %v928
    %s931 = scalar_lea.vmem [#allocation1], 48
    %932 = vst [vmem:[%s931] sm:%s4] %v929
    %s933 = smul.addr 2, 5
    %s934 = scalar_lea.vmem %s0, %s933
    %s935 = sshrl.u32 %s4, 1
    %s936 = sor.u32 %s4, %s935
    %s937 = sand.u32 %s936, 85
    %s938 = sshrl.u32 %s937, 1
    %s939 = sor.u32 %s937, %s938
    %s940 = sand.u32 51, %s939
    %s941 = sshrl.u32 %s940, 2
    %s942 = sor.u32 %s940, %s941
    %s943 = sand.u32 15, %s942
    %v944 = vld [vmem:[%s934] sm:%s943]
    %v945 = vunpack.c.l.bf16 %v944
    %v946 = vunpack.c.h.bf16 %v944
    %s947 = scalar_lea.vmem [#allocation1], 40
    %948 = vst [vmem:[%s947] sm:%s4] %v945
    %s949 = smul.addr 2, 4
    %s950 = scalar_lea.vmem %s0, %s949
    %s951 = sshrl.u32 %s4, 1
    %s952 = sor.u32 %s4, %s951
    %s953 = sand.u32 %s952, 85
    %s954 = sshrl.u32 %s953, 1
    %s955 = sor.u32 %s953, %s954
    %s956 = sand.u32 51, %s955
    %s957 = sshrl.u32 %s956, 2
    %s958 = sor.u32 %s956, %s957
    %s959 = sand.u32 15, %s958
    %v960 = vld [vmem:[%s950] sm:%s959]
    %v961 = vunpack.c.l.bf16 %v960
    %v962 = vunpack.c.h.bf16 %v960
    %s963 = scalar_lea.vmem [#allocation1], 32
    %964 = vst [vmem:[%s963] sm:%s4] %v961
    %s965 = smul.addr 2, 3
    %s966 = scalar_lea.vmem %s0, %s965
    %s967 = sshrl.u32 %s4, 1
    %s968 = sor.u32 %s4, %s967
    %s969 = sand.u32 %s968, 85
    %s970 = sshrl.u32 %s969, 1
    %s971 = sor.u32 %s969, %s970
    %s972 = sand.u32 51, %s971
    %s973 = sshrl.u32 %s972, 2
    %s974 = sor.u32 %s972, %s973
    %s975 = sand.u32 15, %s974
    %v976 = vld [vmem:[%s966] sm:%s975]
    %v977 = vunpack.c.l.bf16 %v976
    %v978 = vunpack.c.h.bf16 %v976
    %s979 = scalar_lea.vmem [#allocation1], 24
    %980 = vst [vmem:[%s979] sm:%s4] %v977
    %s981 = smul.addr 2, 2
    %s982 = scalar_lea.vmem %s0, %s981
    %s983 = sshrl.u32 %s4, 1
    %s984 = sor.u32 %s4, %s983
    %s985 = sand.u32 %s984, 85
    %s986 = sshrl.u32 %s985, 1
    %s987 = sor.u32 %s985, %s986
    %s988 = sand.u32 51, %s987
    %s989 = sshrl.u32 %s988, 2
    %s990 = sor.u32 %s988, %s989
    %s991 = sand.u32 15, %s990
    %v992 = vld [vmem:[%s982] sm:%s991]
    %v993 = vunpack.c.l.bf16 %v992
    %v994 = vunpack.c.h.bf16 %v992
    %s995 = scalar_lea.vmem [#allocation1], 16
    %996 = vst [vmem:[%s995] sm:%s4] %v993
    %s997 = scalar_lea.vmem %s0, 2
    %s998 = sshrl.u32 %s4, 1
    %s999 = sor.u32 %s4, %s998
    %s1000 = sand.u32 %s999, 85
    %s1001 = sshrl.u32 %s1000, 1
    %s1002 = sor.u32 %s1000, %s1001
    %s1003 = sand.u32 51, %s1002
    %s1004 = sshrl.u32 %s1003, 2
    %s1005 = sor.u32 %s1003, %s1004
    %s1006 = sand.u32 15, %s1005
    %v1007 = vld [vmem:[%s997] sm:%s1006]
    %v1008 = vunpack.c.l.bf16 %v1007
    %v1009 = vunpack.c.h.bf16 %v1007
    %s1010 = scalar_lea.vmem [#allocation1], 8
    %1011 = vst [vmem:[%s1010] sm:%s4] %v1008
    %s1012 = sshrl.u32 %s4, 1
    %s1013 = sor.u32 %s4, %s1012
    %s1014 = sand.u32 %s1013, 85
    %s1015 = sshrl.u32 %s1014, 1
    %s1016 = sor.u32 %s1014, %s1015
    %s1017 = sand.u32 51, %s1016
    %s1018 = sshrl.u32 %s1017, 2
    %s1019 = sor.u32 %s1017, %s1018
    %s1020 = sand.u32 15, %s1019
    %v1021 = vld [vmem:[%s0] sm:%s1020]
    %v1022 = vunpack.c.l.bf16 %v1021
    %v1023 = vunpack.c.h.bf16 %v1021
    %1024 = vst [vmem:[#allocation1] sm:%s4] %v1022
    %v1025 = vld [vmem:[#allocation1] sm:$0x1]
    %s1026 = scalar_lea.vmem [#allocation1], 63
    %v1027 = vld [vmem:[%s1026] sm:$0x2]
    %vm1028 = vcmask 1041409
    %v1029 = vsel %vm1028, %v1027, %v1025
    %s1030 = scalar_lea.vmem [#allocation1], 126
    %v1031 = vld [vmem:[%s1030] sm:$0x4]
    %vm1032 = vcmask 1042434
    %v1033 = vsel %vm1032, %v1031, %v1029
    %s1034 = scalar_lea.vmem [#allocation1], 189
    %v1035 = vld [vmem:[%s1034] sm:$0x8]
    %vm1036 = vcmask 1043459
    %v1037 = vsel %vm1036, %v1035, %v1033
    %s1038 = scalar_lea.vmem [#allocation1], 252
    %v1039 = vld [vmem:[%s1038] sm:$0x10]
    %vm1040 = vcmask 1044484
    %v1041 = vsel %vm1040, %v1039, %v1037
    %s1042 = scalar_lea.vmem [#allocation1], 315
    %v1043 = vld [vmem:[%s1042] sm:$0x20]
    %vm1044 = vcmask 1045509
    %v1045 = vsel %vm1044, %v1043, %v1041
    %s1046 = scalar_lea.vmem [#allocation1], 378
    %v1047 = vld [vmem:[%s1046] sm:$0x40]
    %vm1048 = vcmask 1046534
    %v1049 = vsel %vm1048, %v1047, %v1045
    %s1050 = scalar_lea.vmem [#allocation1], 441
    %v1051 = vld [vmem:[%s1050] sm:$0x80]
    %vm1052 = vcmask 1047559
    %v1053 = vsel %vm1052, %v1051, %v1049
    %vm1054 = vcmask 31744
    %1055 = vst.msk [vmem:[#allocation0] sm:$0xff] %vm1054, %v1053
    %s1056 = scalar_lea.vmem [#allocation1], 59
    %v1057 = vld [vmem:[%s1056] sm:$0x1]
    %s1058 = scalar_lea.vmem [#allocation1], 122
    %v1059 = vld [vmem:[%s1058] sm:$0x2]
    %vm1060 = vcmask 1041409
    %v1061 = vsel %vm1060, %v1059, %v1057
    %s1062 = scalar_lea.vmem [#allocation1], 185
    %v1063 = vld [vmem:[%s1062] sm:$0x4]
    %vm1064 = vcmask 1042434
    %v1065 = vsel %vm1064, %v1063, %v1061
    %s1066 = scalar_lea.vmem [#allocation1], 248
    %v1067 = vld [vmem:[%s1066] sm:$0x8]
    %vm1068 = vcmask 1043459
    %v1069 = vsel %vm1068, %v1067, %v1065
    %s1070 = scalar_lea.vmem [#allocation1], 311
    %v1071 = vld [vmem:[%s1070] sm:$0x10]
    %vm1072 = vcmask 1044484
    %v1073 = vsel %vm1072, %v1071, %v1069
    %s1074 = scalar_lea.vmem [#allocation1], 374
    %v1075 = vld [vmem:[%s1074] sm:$0x20]
    %vm1076 = vcmask 1045509
    %v1077 = vsel %vm1076, %v1075, %v1073
    %s1078 = scalar_lea.vmem [#allocation1], 437
    %v1079 = vld [vmem:[%s1078] sm:$0x40]
    %vm1080 = vcmask 1046534
    %v1081 = vsel %vm1080, %v1079, %v1077
    %s1082 = scalar_lea.vmem [#allocation1], 500
    %v1083 = vld [vmem:[%s1082] sm:$0x80]
    %vm1084 = vcmask 1047559
    %v1085 = vsel %vm1084, %v1083, %v1081
    %1086 = vrot.lane.b32.xlu0 %v1085, 124
    %v1087 = vpop.permute.xlu0 %1086
    %vm1088 = vcmask 1048544
    %1089 = vst.msk [vmem:[#allocation0] sm:$0xff] %vm1088, %v1087
    %s1090 = scalar_lea.vmem [#allocation1], 58
    %v1091 = vld [vmem:[%s1090] sm:$0x1]
    %s1092 = scalar_lea.vmem [#allocation1], 121
    %v1093 = vld [vmem:[%s1092] sm:$0x2]
    %vm1094 = vcmask 1041409
    %v1095 = vsel %vm1094, %v1093, %v1091
    %s1096 = scalar_lea.vmem [#allocation1], 184
    %v1097 = vld [vmem:[%s1096] sm:$0x4]
    %vm1098 = vcmask 1042434
    %v1099 = vsel %vm1098, %v1097, %v1095
    %s1100 = scalar_lea.vmem [#allocation1], 247
    %v1101 = vld [vmem:[%s1100] sm:$0x8]
    %vm1102 = vcmask 1043459
    %v1103 = vsel %vm1102, %v1101, %v1099
    %s1104 = scalar_lea.vmem [#allocation1], 310
    %v1105 = vld [vmem:[%s1104] sm:$0x10]
    %vm1106 = vcmask 1044484
    %v1107 = vsel %vm1106, %v1105, %v1103
    %s1108 = scalar_lea.vmem [#allocation1], 373
    %v1109 = vld [vmem:[%s1108] sm:$0x20]
    %vm1110 = vcmask 1045509
    %v1111 = vsel %vm1110, %v1109, %v1107
    %s1112 = scalar_lea.vmem [#allocation1], 436
    %v1113 = vld [vmem:[%s1112] sm:$0x40]
    %vm1114 = vcmask 1046534
    %v1115 = vsel %vm1114, %v1113, %v1111
    %s1116 = scalar_lea.vmem [#allocation1], 499
    %v1117 = vld [vmem:[%s1116] sm:$0x80]
    %vm1118 = vcmask 1047559
    %v1119 = vsel %vm1118, %v1117, %v1115
    %1120 = vrot.lane.b32.xlu0 %v1119, 120
    %v1121 = vpop.permute.xlu0 %1120
    %vm1122 = vcmask 1015744
    %1123 = vst.msk [vmem:[#allocation0] sm:$0xff] %vm1122, %v1121
    %s1124 = scalar_lea.vmem [#allocation1], 57
    %v1125 = vld [vmem:[%s1124] sm:$0x1]
    %s1126 = scalar_lea.vmem [#allocation1], 120
    %v1127 = vld [vmem:[%s1126] sm:$0x2]
    %vm1128 = vcmask 1041409
    %v1129 = vsel %vm1128, %v1127, %v1125
    %s1130 = scalar_lea.vmem [#allocation1], 183
    %v1131 = vld [vmem:[%s1130] sm:$0x4]
    %vm1132 = vcmask 1042434
    %v1133 = vsel %vm1132, %v1131, %v1129
    %s1134 = scalar_lea.vmem [#allocation1], 246
    %v1135 = vld [vmem:[%s1134] sm:$0x8]
    %vm1136 = vcmask 1043459
    %v1137 = vsel %vm1136, %v1135, %v1133
    %s1138 = scalar_lea.vmem [#allocation1], 309
    %v1139 = vld [vmem:[%s1138] sm:$0x10]
    %vm1140 = vcmask 1044484
    %v1141 = vsel %vm1140, %v1139, %v1137
    %s1142 = scalar_lea.vmem [#allocation1], 372
    %v1143 = vld [vmem:[%s1142] sm:$0x20]
    %vm1144 = vcmask 1045509
    %v1145 = vsel %vm1144, %v1143, %v1141
    %s1146 = scalar_lea.vmem [#allocation1], 435
    %v1147 = vld [vmem:[%s1146] sm:$0x40]
    %vm1148 = vcmask 1046534
    %v1149 = vsel %vm1148, %v1147, %v1145
    %s1150 = scalar_lea.vmem [#allocation1], 498
    %v1151 = vld [vmem:[%s1150] sm:$0x80]
    %vm1152 = vcmask 1047559
    %v1153 = vsel %vm1152, %v1151, %v1149
    %1154 = vrot.lane.b32.xlu0 %v1153, 116
    %v1155 = vpop.permute.xlu0 %1154
    %vm1156 = vcmask 982944
    %1157 = vst.msk [vmem:[#allocation0] sm:$0xff] %vm1156, %v1155
    %s1158 = scalar_lea.vmem [#allocation1], 56
    %v1159 = vld [vmem:[%s1158] sm:$0x1]
    %s1160 = scalar_lea.vmem [#allocation1], 119
    %v1161 = vld [vmem:[%s1160] sm:$0x2]
    %vm1162 = vcmask 1041409
    %v1163 = vsel %vm1162, %v1161, %v1159
    %s1164 = scalar_lea.vmem [#allocation1], 182
    %v1165 = vld [vmem:[%s1164] sm:$0x4]
    %vm1166 = vcmask 1042434
    %v1167 = vsel %vm1166, %v1165, %v1163
    %s1168 = scalar_lea.vmem [#allocation1], 245
    %v1169 = vld [vmem:[%s1168] sm:$0x8]
    %vm1170 = vcmask 1043459
    %v1171 = vsel %vm1170, %v1169, %v1167
    %s1172 = scalar_lea.vmem [#allocation1], 308
    %v1173 = vld [vmem:[%s1172] sm:$0x10]
    %vm1174 = vcmask 1044484
    %v1175 = vsel %vm1174, %v1173, %v1171
    %s1176 = scalar_lea.vmem [#allocation1], 371
    %v1177 = vld [vmem:[%s1176] sm:$0x20]
    %vm1178 = vcmask 1045509
    %v1179 = vsel %vm1178, %v1177, %v1175
    %s1180 = scalar_lea.vmem [#allocation1], 434
    %v1181 = vld [vmem:[%s1180] sm:$0x40]
    %vm1182 = vcmask 1046534
    %v1183 = vsel %vm1182, %v1181, %v1179
    %s1184 = scalar_lea.vmem [#allocation1], 497
    %v1185 = vld [vmem:[%s1184] sm:$0x80]
    %vm1186 = vcmask 1047559
    %v1187 = vsel %vm1186, %v1185, %v1183
    %1188 = vrot.lane.b32.xlu0 %v1187, 112
    %v1189 = vpop.permute.xlu0 %1188
    %vm1190 = vcmask 950144
    %1191 = vst.msk [vmem:[#allocation0] sm:$0xff] %vm1190, %v1189
    %s1192 = scalar_lea.vmem [#allocation1], 51
    %v1193 = vld [vmem:[%s1192] sm:$0x1]
    %s1194 = scalar_lea.vmem [#allocation1], 114
    %v1195 = vld [vmem:[%s1194] sm:$0x2]
    %vm1196 = vcmask 1041409
    %v1197 = vsel %vm1196, %v1195, %v1193
    %s1198 = scalar_lea.vmem [#allocation1], 177
    %v1199 = vld [vmem:[%s1198] sm:$0x4]
    %vm1200 = vcmask 1042434
    %v1201 = vsel %vm1200, %v1199, %v1197
    %s1202 = scalar_lea.vmem [#allocation1], 240
    %v1203 = vld [vmem:[%s1202] sm:$0x8]
    %vm1204 = vcmask 1043459
    %v1205 = vsel %vm1204, %v1203, %v1201
    %s1206 = scalar_lea.vmem [#allocation1], 303
    %v1207 = vld [vmem:[%s1206] sm:$0x10]
    %vm1208 = vcmask 1044484
    %v1209 = vsel %vm1208, %v1207, %v1205
    %s1210 = scalar_lea.vmem [#allocation1], 366
    %v1211 = vld [vmem:[%s1210] sm:$0x20]
    %vm1212 = vcmask 1045509
    %v1213 = vsel %vm1212, %v1211, %v1209
    %s1214 = scalar_lea.vmem [#allocation1], 429
    %v1215 = vld [vmem:[%s1214] sm:$0x40]
    %vm1216 = vcmask 1046534
    %v1217 = vsel %vm1216, %v1215, %v1213
    %s1218 = scalar_lea.vmem [#allocation1], 492
    %v1219 = vld [vmem:[%s1218] sm:$0x80]
    %vm1220 = vcmask 1047559
    %v1221 = vsel %vm1220, %v1219, %v1217
    %1222 = vrot.lane.b32.xlu0 %v1221, 108
    %v1223 = vpop.permute.xlu0 %1222
    %vm1224 = vcmask 917344
    %1225 = vst.msk [vmem:[#allocation0] sm:$0xff] %vm1224, %v1223
    %s1226 = scalar_lea.vmem [#allocation1], 50
    %v1227 = vld [vmem:[%s1226] sm:$0x1]
    %s1228 = scalar_lea.vmem [#allocation1], 113
    %v1229 = vld [vmem:[%s1228] sm:$0x2]
    %vm1230 = vcmask 1041409
    %v1231 = vsel %vm1230, %v1229, %v1227
    %s1232 = scalar_lea.vmem [#allocation1], 176
    %v1233 = vld [vmem:[%s1232] sm:$0x4]
    %vm1234 = vcmask 1042434
    %v1235 = vsel %vm1234, %v1233, %v1231
    %s1236 = scalar_lea.vmem [#allocation1], 239
    %v1237 = vld [vmem:[%s1236] sm:$0x8]
    %vm1238 = vcmask 1043459
    %v1239 = vsel %vm1238, %v1237, %v1235
    %s1240 = scalar_lea.vmem [#allocation1], 302
    %v1241 = vld [vmem:[%s1240] sm:$0x10]
    %vm1242 = vcmask 1044484
    %v1243 = vsel %vm1242, %v1241, %v1239
    %s1244 = scalar_lea.vmem [#allocation1], 365
    %v1245 = vld [vmem:[%s1244] sm:$0x20]
    %vm1246 = vcmask 1045509
    %v1247 = vsel %vm1246, %v1245, %v1243
    %s1248 = scalar_lea.vmem [#allocation1], 428
    %v1249 = vld [vmem:[%s1248] sm:$0x40]
    %vm1250 = vcmask 1046534
    %v1251 = vsel %vm1250, %v1249, %v1247
    %s1252 = scalar_lea.vmem [#allocation1], 491
    %v1253 = vld [vmem:[%s1252] sm:$0x80]
    %vm1254 = vcmask 1047559
    %v1255 = vsel %vm1254, %v1253, %v1251
    %1256 = vrot.lane.b32.xlu0 %v1255, 104
    %v1257 = vpop.permute.xlu0 %1256
    %vm1258 = vcmask 884544
    %1259 = vst.msk [vmem:[#allocation0] sm:$0xff] %vm1258, %v1257
    %s1260 = scalar_lea.vmem [#allocation1], 49
    %v1261 = vld [vmem:[%s1260] sm:$0x1]
    %s1262 = scalar_lea.vmem [#allocation1], 112
    %v1263 = vld [vmem:[%s1262] sm:$0x2]
    %vm1264 = vcmask 1041409
    %v1265 = vsel %vm1264, %v1263, %v1261
    %s1266 = scalar_lea.vmem [#allocation1], 175
    %v1267 = vld [vmem:[%s1266] sm:$0x4]
    %vm1268 = vcmask 1042434
    %v1269 = vsel %vm1268, %v1267, %v1265
    %s1270 = scalar_lea.vmem [#allocation1], 238
    %v1271 = vld [vmem:[%s1270] sm:$0x8]
    %vm1272 = vcmask 1043459
    %v1273 = vsel %vm1272, %v1271, %v1269
    %s1274 = scalar_lea.vmem [#allocation1], 301
    %v1275 = vld [vmem:[%s1274] sm:$0x10]
    %vm1276 = vcmask 1044484
    %v1277 = vsel %vm1276, %v1275, %v1273
    %s1278 = scalar_lea.vmem [#allocation1], 364
    %v1279 = vld [vmem:[%s1278] sm:$0x20]
    %vm1280 = vcmask 1045509
    %v1281 = vsel %vm1280, %v1279, %v1277
    %s1282 = scalar_lea.vmem [#allocation1], 427
    %v1283 = vld [vmem:[%s1282] sm:$0x40]
    %vm1284 = vcmask 1046534
    %v1285 = vsel %vm1284, %v1283, %v1281
    %s1286 = scalar_lea.vmem [#allocation1], 490
    %v1287 = vld [vmem:[%s1286] sm:$0x80]
    %vm1288 = vcmask 1047559
    %v1289 = vsel %vm1288, %v1287, %v1285
    %1290 = vrot.lane.b32.xlu0 %v1289, 100
    %v1291 = vpop.permute.xlu0 %1290
    %vm1292 = vcmask 851744
    %1293 = vst.msk [vmem:[#allocation0] sm:$0xff] %vm1292, %v1291
    %s1294 = scalar_lea.vmem [#allocation1], 48
    %v1295 = vld [vmem:[%s1294] sm:$0x1]
    %s1296 = scalar_lea.vmem [#allocation1], 111
    %v1297 = vld [vmem:[%s1296] sm:$0x2]
    %vm1298 = vcmask 1041409
    %v1299 = vsel %vm1298, %v1297, %v1295
    %s1300 = scalar_lea.vmem [#allocation1], 174
    %v1301 = vld [vmem:[%s1300] sm:$0x4]
    %vm1302 = vcmask 1042434
    %v1303 = vsel %vm1302, %v1301, %v1299
    %s1304 = scalar_lea.vmem [#allocation1], 237
    %v1305 = vld [vmem:[%s1304] sm:$0x8]
    %vm1306 = vcmask 1043459
    %v1307 = vsel %vm1306, %v1305, %v1303
    %s1308 = scalar_lea.vmem [#allocation1], 300
    %v1309 = vld [vmem:[%s1308] sm:$0x10]
    %vm1310 = vcmask 1044484
    %v1311 = vsel %vm1310, %v1309, %v1307
    %s1312 = scalar_lea.vmem [#allocation1], 363
    %v1313 = vld [vmem:[%s1312] sm:$0x20]
    %vm1314 = vcmask 1045509
    %v1315 = vsel %vm1314, %v1313, %v1311
    %s1316 = scalar_lea.vmem [#allocation1], 426
    %v1317 = vld [vmem:[%s1316] sm:$0x40]
    %vm1318 = vcmask 1046534
    %v1319 = vsel %vm1318, %v1317, %v1315
    %s1320 = scalar_lea.vmem [#allocation1], 489
    %v1321 = vld [vmem:[%s1320] sm:$0x80]
    %vm1322 = vcmask 1047559
    %v1323 = vsel %vm1322, %v1321, %v1319
    %1324 = vrot.lane.b32.xlu0 %v1323, 96
    %v1325 = vpop.permute.xlu0 %1324
    %vm1326 = vcmask 818944
    %1327 = vst.msk [vmem:[#allocation0] sm:$0xff] %vm1326, %v1325
    %s1328 = scalar_lea.vmem [#allocation1], 43
    %v1329 = vld [vmem:[%s1328] sm:$0x1]
    %s1330 = scalar_lea.vmem [#allocation1], 106
    %v1331 = vld [vmem:[%s1330] sm:$0x2]
    %vm1332 = vcmask 1041409
    %v1333 = vsel %vm1332, %v1331, %v1329
    %s1334 = scalar_lea.vmem [#allocation1], 169
    %v1335 = vld [vmem:[%s1334] sm:$0x4]
    %vm1336 = vcmask 1042434
    %v1337 = vsel %vm1336, %v1335, %v1333
    %s1338 = scalar_lea.vmem [#allocation1], 232
    %v1339 = vld [vmem:[%s1338] sm:$0x8]
    %vm1340 = vcmask 1043459
    %v1341 = vsel %vm1340, %v1339, %v1337
    %s1342 = scalar_lea.vmem [#allocation1], 295
    %v1343 = vld [vmem:[%s1342] sm:$0x10]
    %vm1344 = vcmask 1044484
    %v1345 = vsel %vm1344, %v1343, %v1341
    %s1346 = scalar_lea.vmem [#allocation1], 358
    %v1347 = vld [vmem:[%s1346] sm:$0x20]
    %vm1348 = vcmask 1045509
    %v1349 = vsel %vm1348, %v1347, %v1345
    %s1350 = scalar_lea.vmem [#allocation1], 421
    %v1351 = vld [vmem:[%s1350] sm:$0x40]
    %vm1352 = vcmask 1046534
    %v1353 = vsel %vm1352, %v1351, %v1349
    %s1354 = scalar_lea.vmem [#allocation1], 484
    %v1355 = vld [vmem:[%s1354] sm:$0x80]
    %vm1356 = vcmask 1047559
    %v1357 = vsel %vm1356, %v1355, %v1353
    %1358 = vrot.lane.b32.xlu0 %v1357, 92
    %v1359 = vpop.permute.xlu0 %1358
    %vm1360 = vcmask 786144
    %1361 = vst.msk [vmem:[#allocation0] sm:$0xff] %vm1360, %v1359
    %s1362 = scalar_lea.vmem [#allocation1], 42
    %v1363 = vld [vmem:[%s1362] sm:$0x1]
    %s1364 = scalar_lea.vmem [#allocation1], 105
    %v1365 = vld [vmem:[%s1364] sm:$0x2]
    %vm1366 = vcmask 1041409
    %v1367 = vsel %vm1366, %v1365, %v1363
    %s1368 = scalar_lea.vmem [#allocation1], 168
    %v1369 = vld [vmem:[%s1368] sm:$0x4]
    %vm1370 = vcmask 1042434
    %v1371 = vsel %vm1370, %v1369, %v1367
    %s1372 = scalar_lea.vmem [#allocation1], 231
    %v1373 = vld [vmem:[%s1372] sm:$0x8]
    %vm1374 = vcmask 1043459
    %v1375 = vsel %vm1374, %v1373, %v1371
    %s1376 = scalar_lea.vmem [#allocation1], 294
    %v1377 = vld [vmem:[%s1376] sm:$0x10]
    %vm1378 = vcmask 1044484
    %v1379 = vsel %vm1378, %v1377, %v1375
    %s1380 = scalar_lea.vmem [#allocation1], 357
    %v1381 = vld [vmem:[%s1380] sm:$0x20]
    %vm1382 = vcmask 1045509
    %v1383 = vsel %vm1382, %v1381, %v1379
    %s1384 = scalar_lea.vmem [#allocation1], 420
    %v1385 = vld [vmem:[%s1384] sm:$0x40]
    %vm1386 = vcmask 1046534
    %v1387 = vsel %vm1386, %v1385, %v1383
    %s1388 = scalar_lea.vmem [#allocation1], 483
    %v1389 = vld [vmem:[%s1388] sm:$0x80]
    %vm1390 = vcmask 1047559
    %v1391 = vsel %vm1390, %v1389, %v1387
    %1392 = vrot.lane.b32.xlu0 %v1391, 88
    %v1393 = vpop.permute.xlu0 %1392
    %vm1394 = vcmask 753344
    %1395 = vst.msk [vmem:[#allocation0] sm:$0xff] %vm1394, %v1393
    %s1396 = scalar_lea.vmem [#allocation1], 41
    %v1397 = vld [vmem:[%s1396] sm:$0x1]
    %s1398 = scalar_lea.vmem [#allocation1], 104
    %v1399 = vld [vmem:[%s1398] sm:$0x2]
    %vm1400 = vcmask 1041409
    %v1401 = vsel %vm1400, %v1399, %v1397
    %s1402 = scalar_lea.vmem [#allocation1], 167
    %v1403 = vld [vmem:[%s1402] sm:$0x4]
    %vm1404 = vcmask 1042434
    %v1405 = vsel %vm1404, %v1403, %v1401
    %s1406 = scalar_lea.vmem [#allocation1], 230
    %v1407 = vld [vmem:[%s1406] sm:$0x8]
    %vm1408 = vcmask 1043459
    %v1409 = vsel %vm1408, %v1407, %v1405
    %s1410 = scalar_lea.vmem [#allocation1], 293
    %v1411 = vld [vmem:[%s1410] sm:$0x10]
    %vm1412 = vcmask 1044484
    %v1413 = vsel %vm1412, %v1411, %v1409
    %s1414 = scalar_lea.vmem [#allocation1], 356
    %v1415 = vld [vmem:[%s1414] sm:$0x20]
    %vm1416 = vcmask 1045509
    %v1417 = vsel %vm1416, %v1415, %v1413
    %s1418 = scalar_lea.vmem [#allocation1], 419
    %v1419 = vld [vmem:[%s1418] sm:$0x40]
    %vm1420 = vcmask 1046534
    %v1421 = vsel %vm1420, %v1419, %v1417
    %s1422 = scalar_lea.vmem [#allocation1], 482
    %v1423 = vld [vmem:[%s1422] sm:$0x80]
    %vm1424 = vcmask 1047559
    %v1425 = vsel %vm1424, %v1423, %v1421
    %1426 = vrot.lane.b32.xlu0 %v1425, 84
    %v1427 = vpop.permute.xlu0 %1426
    %vm1428 = vcmask 720544
    %1429 = vst.msk [vmem:[#allocation0] sm:$0xff] %vm1428, %v1427
    %s1430 = scalar_lea.vmem [#allocation1], 40
    %v1431 = vld [vmem:[%s1430] sm:$0x1]
    %s1432 = scalar_lea.vmem [#allocation1], 103
    %v1433 = vld [vmem:[%s1432] sm:$0x2]
    %vm1434 = vcmask 1041409
    %v1435 = vsel %vm1434, %v1433, %v1431
    %s1436 = scalar_lea.vmem [#allocation1], 166
    %v1437 = vld [vmem:[%s1436] sm:$0x4]
    %vm1438 = vcmask 1042434
    %v1439 = vsel %vm1438, %v1437, %v1435
    %s1440 = scalar_lea.vmem [#allocation1], 229
    %v1441 = vld [vmem:[%s1440] sm:$0x8]
    %vm1442 = vcmask 1043459
    %v1443 = vsel %vm1442, %v1441, %v1439
    %s1444 = scalar_lea.vmem [#allocation1], 292
    %v1445 = vld [vmem:[%s1444] sm:$0x10]
    %vm1446 = vcmask 1044484
    %v1447 = vsel %vm1446, %v1445, %v1443
    %s1448 = scalar_lea.vmem [#allocation1], 355
    %v1449 = vld [vmem:[%s1448] sm:$0x20]
    %vm1450 = vcmask 1045509
    %v1451 = vsel %vm1450, %v1449, %v1447
    %s1452 = scalar_lea.vmem [#allocation1], 418
    %v1453 = vld [vmem:[%s1452] sm:$0x40]
    %vm1454 = vcmask 1046534
    %v1455 = vsel %vm1454, %v1453, %v1451
    %s1456 = scalar_lea.vmem [#allocation1], 481
    %v1457 = vld [vmem:[%s1456] sm:$0x80]
    %vm1458 = vcmask 1047559
    %v1459 = vsel %vm1458, %v1457, %v1455
    %1460 = vrot.lane.b32.xlu0 %v1459, 80
    %v1461 = vpop.permute.xlu0 %1460
    %vm1462 = vcmask 687744
    %1463 = vst.msk [vmem:[#allocation0] sm:$0xff] %vm1462, %v1461
    %s1464 = scalar_lea.vmem [#allocation1], 35
    %v1465 = vld [vmem:[%s1464] sm:$0x1]
    %s1466 = scalar_lea.vmem [#allocation1], 98
    %v1467 = vld [vmem:[%s1466] sm:$0x2]
    %vm1468 = vcmask 1041409
    %v1469 = vsel %vm1468, %v1467, %v1465
    %s1470 = scalar_lea.vmem [#allocation1], 161
    %v1471 = vld [vmem:[%s1470] sm:$0x4]
    %vm1472 = vcmask 1042434
    %v1473 = vsel %vm1472, %v1471, %v1469
    %s1474 = scalar_lea.vmem [#allocation1], 224
    %v1475 = vld [vmem:[%s1474] sm:$0x8]
    %vm1476 = vcmask 1043459
    %v1477 = vsel %vm1476, %v1475, %v1473
    %s1478 = scalar_lea.vmem [#allocation1], 287
    %v1479 = vld [vmem:[%s1478] sm:$0x10]
    %vm1480 = vcmask 1044484
    %v1481 = vsel %vm1480, %v1479, %v1477
    %s1482 = scalar_lea.vmem [#allocation1], 350
    %v1483 = vld [vmem:[%s1482] sm:$0x20]
    %vm1484 = vcmask 1045509
    %v1485 = vsel %vm1484, %v1483, %v1481
    %s1486 = scalar_lea.vmem [#allocation1], 413
    %v1487 = vld [vmem:[%s1486] sm:$0x40]
    %vm1488 = vcmask 1046534
    %v1489 = vsel %vm1488, %v1487, %v1485
    %s1490 = scalar_lea.vmem [#allocation1], 476
    %v1491 = vld [vmem:[%s1490] sm:$0x80]
    %vm1492 = vcmask 1047559
    %v1493 = vsel %vm1492, %v1491, %v1489
    %1494 = vrot.lane.b32.xlu0 %v1493, 76
    %v1495 = vpop.permute.xlu0 %1494
    %vm1496 = vcmask 654944
    %1497 = vst.msk [vmem:[#allocation0] sm:$0xff] %vm1496, %v1495
    %s1498 = scalar_lea.vmem [#allocation1], 34
    %v1499 = vld [vmem:[%s1498] sm:$0x1]
    %s1500 = scalar_lea.vmem [#allocation1], 97
    %v1501 = vld [vmem:[%s1500] sm:$0x2]
    %vm1502 = vcmask 1041409
    %v1503 = vsel %vm1502, %v1501, %v1499
    %s1504 = scalar_lea.vmem [#allocation1], 160
    %v1505 = vld [vmem:[%s1504] sm:$0x4]
    %vm1506 = vcmask 1042434
    %v1507 = vsel %vm1506, %v1505, %v1503
    %s1508 = scalar_lea.vmem [#allocation1], 223
    %v1509 = vld [vmem:[%s1508] sm:$0x8]
    %vm1510 = vcmask 1043459
    %v1511 = vsel %vm1510, %v1509, %v1507
    %s1512 = scalar_lea.vmem [#allocation1], 286
    %v1513 = vld [vmem:[%s1512] sm:$0x10]
    %vm1514 = vcmask 1044484
    %v1515 = vsel %vm1514, %v1513, %v1511
    %s1516 = scalar_lea.vmem [#allocation1], 349
    %v1517 = vld [vmem:[%s1516] sm:$0x20]
    %vm1518 = vcmask 1045509
    %v1519 = vsel %vm1518, %v1517, %v1515
    %s1520 = scalar_lea.vmem [#allocation1], 412
    %v1521 = vld [vmem:[%s1520] sm:$0x40]
    %vm1522 = vcmask 1046534
    %v1523 = vsel %vm1522, %v1521, %v1519
    %s1524 = scalar_lea.vmem [#allocation1], 475
    %v1525 = vld [vmem:[%s1524] sm:$0x80]
    %vm1526 = vcmask 1047559
    %v1527 = vsel %vm1526, %v1525, %v1523
    %1528 = vrot.lane.b32.xlu0 %v1527, 72
    %v1529 = vpop.permute.xlu0 %1528
    %vm1530 = vcmask 622144
    %1531 = vst.msk [vmem:[#allocation0] sm:$0xff] %vm1530, %v1529
    %s1532 = scalar_lea.vmem [#allocation1], 33
    %v1533 = vld [vmem:[%s1532] sm:$0x1]
    %s1534 = scalar_lea.vmem [#allocation1], 96
    %v1535 = vld [vmem:[%s1534] sm:$0x2]
    %vm1536 = vcmask 1041409
    %v1537 = vsel %vm1536, %v1535, %v1533
    %s1538 = scalar_lea.vmem [#allocation1], 159
    %v1539 = vld [vmem:[%s1538] sm:$0x4]
    %vm1540 = vcmask 1042434
    %v1541 = vsel %vm1540, %v1539, %v1537
    %s1542 = scalar_lea.vmem [#allocation1], 222
    %v1543 = vld [vmem:[%s1542] sm:$0x8]
    %vm1544 = vcmask 1043459
    %v1545 = vsel %vm1544, %v1543, %v1541
    %s1546 = scalar_lea.vmem [#allocation1], 285
    %v1547 = vld [vmem:[%s1546] sm:$0x10]
    %vm1548 = vcmask 1044484
    %v1549 = vsel %vm1548, %v1547, %v1545
    %s1550 = scalar_lea.vmem [#allocation1], 348
    %v1551 = vld [vmem:[%s1550] sm:$0x20]
    %vm1552 = vcmask 1045509
    %v1553 = vsel %vm1552, %v1551, %v1549
    %s1554 = scalar_lea.vmem [#allocation1], 411
    %v1555 = vld [vmem:[%s1554] sm:$0x40]
    %vm1556 = vcmask 1046534
    %v1557 = vsel %vm1556, %v1555, %v1553
    %s1558 = scalar_lea.vmem [#allocation1], 474
    %v1559 = vld [vmem:[%s1558] sm:$0x80]
    %vm1560 = vcmask 1047559
    %v1561 = vsel %vm1560, %v1559, %v1557
    %1562 = vrot.lane.b32.xlu0 %v1561, 68
    %v1563 = vpop.permute.xlu0 %1562
    %vm1564 = vcmask 589344
    %1565 = vst.msk [vmem:[#allocation0] sm:$0xff] %vm1564, %v1563
    %s1566 = scalar_lea.vmem [#allocation1], 32
    %v1567 = vld [vmem:[%s1566] sm:$0x1]
    %s1568 = scalar_lea.vmem [#allocation1], 95
    %v1569 = vld [vmem:[%s1568] sm:$0x2]
    %vm1570 = vcmask 1041409
    %v1571 = vsel %vm1570, %v1569, %v1567
    %s1572 = scalar_lea.vmem [#allocation1], 158
    %v1573 = vld [vmem:[%s1572] sm:$0x4]
    %vm1574 = vcmask 1042434
    %v1575 = vsel %vm1574, %v1573, %v1571
    %s1576 = scalar_lea.vmem [#allocation1], 221
    %v1577 = vld [vmem:[%s1576] sm:$0x8]
    %vm1578 = vcmask 1043459
    %v1579 = vsel %vm1578, %v1577, %v1575
    %s1580 = scalar_lea.vmem [#allocation1], 284
    %v1581 = vld [vmem:[%s1580] sm:$0x10]
    %vm1582 = vcmask 1044484
    %v1583 = vsel %vm1582, %v1581, %v1579
    %s1584 = scalar_lea.vmem [#allocation1], 347
    %v1585 = vld [vmem:[%s1584] sm:$0x20]
    %vm1586 = vcmask 1045509
    %v1587 = vsel %vm1586, %v1585, %v1583
    %s1588 = scalar_lea.vmem [#allocation1], 410
    %v1589 = vld [vmem:[%s1588] sm:$0x40]
    %vm1590 = vcmask 1046534
    %v1591 = vsel %vm1590, %v1589, %v1587
    %s1592 = scalar_lea.vmem [#allocation1], 473
    %v1593 = vld [vmem:[%s1592] sm:$0x80]
    %vm1594 = vcmask 1047559
    %v1595 = vsel %vm1594, %v1593, %v1591
    %1596 = vrot.lane.b32.xlu0 %v1595, 64
    %v1597 = vpop.permute.xlu0 %1596
    %vm1598 = vcmask 556544
    %1599 = vst.msk [vmem:[#allocation0] sm:$0xff] %vm1598, %v1597
    %s1600 = scalar_lea.vmem [#allocation1], 27
    %v1601 = vld [vmem:[%s1600] sm:$0x1]
    %s1602 = scalar_lea.vmem [#allocation1], 90
    %v1603 = vld [vmem:[%s1602] sm:$0x2]
    %vm1604 = vcmask 1041409
    %v1605 = vsel %vm1604, %v1603, %v1601
    %s1606 = scalar_lea.vmem [#allocation1], 153
    %v1607 = vld [vmem:[%s1606] sm:$0x4]
    %vm1608 = vcmask 1042434
    %v1609 = vsel %vm1608, %v1607, %v1605
    %s1610 = scalar_lea.vmem [#allocation1], 216
    %v1611 = vld [vmem:[%s1610] sm:$0x8]
    %vm1612 = vcmask 1043459
    %v1613 = vsel %vm1612, %v1611, %v1609
    %s1614 = scalar_lea.vmem [#allocation1], 279
    %v1615 = vld [vmem:[%s1614] sm:$0x10]
    %vm1616 = vcmask 1044484
    %v1617 = vsel %vm1616, %v1615, %v1613
    %s1618 = scalar_lea.vmem [#allocation1], 342
    %v1619 = vld [vmem:[%s1618] sm:$0x20]
    %vm1620 = vcmask 1045509
    %v1621 = vsel %vm1620, %v1619, %v1617
    %s1622 = scalar_lea.vmem [#allocation1], 405
    %v1623 = vld [vmem:[%s1622] sm:$0x40]
    %vm1624 = vcmask 1046534
    %v1625 = vsel %vm1624, %v1623, %v1621
    %s1626 = scalar_lea.vmem [#allocation1], 468
    %v1627 = vld [vmem:[%s1626] sm:$0x80]
    %vm1628 = vcmask 1047559
    %v1629 = vsel %vm1628, %v1627, %v1625
    %1630 = vrot.lane.b32.xlu0 %v1629, 60
    %v1631 = vpop.permute.xlu0 %1630
    %vm1632 = vcmask 523744
    %1633 = vst.msk [vmem:[#allocation0] sm:$0xff] %vm1632, %v1631
    %s1634 = scalar_lea.vmem [#allocation1], 26
    %v1635 = vld [vmem:[%s1634] sm:$0x1]
    %s1636 = scalar_lea.vmem [#allocation1], 89
    %v1637 = vld [vmem:[%s1636] sm:$0x2]
    %vm1638 = vcmask 1041409
    %v1639 = vsel %vm1638, %v1637, %v1635
    %s1640 = scalar_lea.vmem [#allocation1], 152
    %v1641 = vld [vmem:[%s1640] sm:$0x4]
    %vm1642 = vcmask 1042434
    %v1643 = vsel %vm1642, %v1641, %v1639
    %s1644 = scalar_lea.vmem [#allocation1], 215
    %v1645 = vld [vmem:[%s1644] sm:$0x8]
    %vm1646 = vcmask 1043459
    %v1647 = vsel %vm1646, %v1645, %v1643
    %s1648 = scalar_lea.vmem [#allocation1], 278
    %v1649 = vld [vmem:[%s1648] sm:$0x10]
    %vm1650 = vcmask 1044484
    %v1651 = vsel %vm1650, %v1649, %v1647
    %s1652 = scalar_lea.vmem [#allocation1], 341
    %v1653 = vld [vmem:[%s1652] sm:$0x20]
    %vm1654 = vcmask 1045509
    %v1655 = vsel %vm1654, %v1653, %v1651
    %s1656 = scalar_lea.vmem [#allocation1], 404
    %v1657 = vld [vmem:[%s1656] sm:$0x40]
    %vm1658 = vcmask 1046534
    %v1659 = vsel %vm1658, %v1657, %v1655
    %s1660 = scalar_lea.vmem [#allocation1], 467
    %v1661 = vld [vmem:[%s1660] sm:$0x80]
    %vm1662 = vcmask 1047559
    %v1663 = vsel %vm1662, %v1661, %v1659
    %1664 = vrot.lane.b32.xlu0 %v1663, 56
    %v1665 = vpop.permute.xlu0 %1664
    %vm1666 = vcmask 490944
    %1667 = vst.msk [vmem:[#allocation0] sm:$0xff] %vm1666, %v1665
    %s1668 = scalar_lea.vmem [#allocation1], 25
    %v1669 = vld [vmem:[%s1668] sm:$0x1]
    %s1670 = scalar_lea.vmem [#allocation1], 88
    %v1671 = vld [vmem:[%s1670] sm:$0x2]
    %vm1672 = vcmask 1041409
    %v1673 = vsel %vm1672, %v1671, %v1669
    %s1674 = scalar_lea.vmem [#allocation1], 151
    %v1675 = vld [vmem:[%s1674] sm:$0x4]
    %vm1676 = vcmask 1042434
    %v1677 = vsel %vm1676, %v1675, %v1673
    %s1678 = scalar_lea.vmem [#allocation1], 214
    %v1679 = vld [vmem:[%s1678] sm:$0x8]
    %vm1680 = vcmask 1043459
    %v1681 = vsel %vm1680, %v1679, %v1677
    %s1682 = scalar_lea.vmem [#allocation1], 277
    %v1683 = vld [vmem:[%s1682] sm:$0x10]
    %vm1684 = vcmask 1044484
    %v1685 = vsel %vm1684, %v1683, %v1681
    %s1686 = scalar_lea.vmem [#allocation1], 340
    %v1687 = vld [vmem:[%s1686] sm:$0x20]
    %vm1688 = vcmask 1045509
    %v1689 = vsel %vm1688, %v1687, %v1685
    %s1690 = scalar_lea.vmem [#allocation1], 403
    %v1691 = vld [vmem:[%s1690] sm:$0x40]
    %vm1692 = vcmask 1046534
    %v1693 = vsel %vm1692, %v1691, %v1689
    %s1694 = scalar_lea.vmem [#allocation1], 466
    %v1695 = vld [vmem:[%s1694] sm:$0x80]
    %vm1696 = vcmask 1047559
    %v1697 = vsel %vm1696, %v1695, %v1693
    %1698 = vrot.lane.b32.xlu0 %v1697, 52
    %v1699 = vpop.permute.xlu0 %1698
    %vm1700 = vcmask 458144
    %1701 = vst.msk [vmem:[#allocation0] sm:$0xff] %vm1700, %v1699
    %s1702 = scalar_lea.vmem [#allocation1], 24
    %v1703 = vld [vmem:[%s1702] sm:$0x1]
    %s1704 = scalar_lea.vmem [#allocation1], 87
    %v1705 = vld [vmem:[%s1704] sm:$0x2]
    %vm1706 = vcmask 1041409
    %v1707 = vsel %vm1706, %v1705, %v1703
    %s1708 = scalar_lea.vmem [#allocation1], 150
    %v1709 = vld [vmem:[%s1708] sm:$0x4]
    %vm1710 = vcmask 1042434
    %v1711 = vsel %vm1710, %v1709, %v1707
    %s1712 = scalar_lea.vmem [#allocation1], 213
    %v1713 = vld [vmem:[%s1712] sm:$0x8]
    %vm1714 = vcmask 1043459
    %v1715 = vsel %vm1714, %v1713, %v1711
    %s1716 = scalar_lea.vmem [#allocation1], 276
    %v1717 = vld [vmem:[%s1716] sm:$0x10]
    %vm1718 = vcmask 1044484
    %v1719 = vsel %vm1718, %v1717, %v1715
    %s1720 = scalar_lea.vmem [#allocation1], 339
    %v1721 = vld [vmem:[%s1720] sm:$0x20]
    %vm1722 = vcmask 1045509
    %v1723 = vsel %vm1722, %v1721, %v1719
    %s1724 = scalar_lea.vmem [#allocation1], 402
    %v1725 = vld [vmem:[%s1724] sm:$0x40]
    %vm1726 = vcmask 1046534
    %v1727 = vsel %vm1726, %v1725, %v1723
    %s1728 = scalar_lea.vmem [#allocation1], 465
    %v1729 = vld [vmem:[%s1728] sm:$0x80]
    %vm1730 = vcmask 1047559
    %v1731 = vsel %vm1730, %v1729, %v1727
    %1732 = vrot.lane.b32.xlu0 %v1731, 48
    %v1733 = vpop.permute.xlu0 %1732
    %vm1734 = vcmask 425344
    %1735 = vst.msk [vmem:[#allocation0] sm:$0xff] %vm1734, %v1733
    %s1736 = scalar_lea.vmem [#allocation1], 19
    %v1737 = vld [vmem:[%s1736] sm:$0x1]
    %s1738 = scalar_lea.vmem [#allocation1], 82
    %v1739 = vld [vmem:[%s1738] sm:$0x2]
    %vm1740 = vcmask 1041409
    %v1741 = vsel %vm1740, %v1739, %v1737
    %s1742 = scalar_lea.vmem [#allocation1], 145
    %v1743 = vld [vmem:[%s1742] sm:$0x4]
    %vm1744 = vcmask 1042434
    %v1745 = vsel %vm1744, %v1743, %v1741
    %s1746 = scalar_lea.vmem [#allocation1], 208
    %v1747 = vld [vmem:[%s1746] sm:$0x8]
    %vm1748 = vcmask 1043459
    %v1749 = vsel %vm1748, %v1747, %v1745
    %s1750 = scalar_lea.vmem [#allocation1], 271
    %v1751 = vld [vmem:[%s1750] sm:$0x10]
    %vm1752 = vcmask 1044484
    %v1753 = vsel %vm1752, %v1751, %v1749
    %s1754 = scalar_lea.vmem [#allocation1], 334
    %v1755 = vld [vmem:[%s1754] sm:$0x20]
    %vm1756 = vcmask 1045509
    %v1757 = vsel %vm1756, %v1755, %v1753
    %s1758 = scalar_lea.vmem [#allocation1], 397
    %v1759 = vld [vmem:[%s1758] sm:$0x40]
    %vm1760 = vcmask 1046534
    %v1761 = vsel %vm1760, %v1759, %v1757
    %s1762 = scalar_lea.vmem [#allocation1], 460
    %v1763 = vld [vmem:[%s1762] sm:$0x80]
    %vm1764 = vcmask 1047559
    %v1765 = vsel %vm1764, %v1763, %v1761
    %1766 = vrot.lane.b32.xlu0 %v1765, 44
    %v1767 = vpop.permute.xlu0 %1766
    %vm1768 = vcmask 392544
    %1769 = vst.msk [vmem:[#allocation0] sm:$0xff] %vm1768, %v1767
    %s1770 = scalar_lea.vmem [#allocation1], 18
    %v1771 = vld [vmem:[%s1770] sm:$0x1]
    %s1772 = scalar_lea.vmem [#allocation1], 81
    %v1773 = vld [vmem:[%s1772] sm:$0x2]
    %vm1774 = vcmask 1041409
    %v1775 = vsel %vm1774, %v1773, %v1771
    %s1776 = scalar_lea.vmem [#allocation1], 144
    %v1777 = vld [vmem:[%s1776] sm:$0x4]
    %vm1778 = vcmask 1042434
    %v1779 = vsel %vm1778, %v1777, %v1775
    %s1780 = scalar_lea.vmem [#allocation1], 207
    %v1781 = vld [vmem:[%s1780] sm:$0x8]
    %vm1782 = vcmask 1043459
    %v1783 = vsel %vm1782, %v1781, %v1779
    %s1784 = scalar_lea.vmem [#allocation1], 270
    %v1785 = vld [vmem:[%s1784] sm:$0x10]
    %vm1786 = vcmask 1044484
    %v1787 = vsel %vm1786, %v1785, %v1783
    %s1788 = scalar_lea.vmem [#allocation1], 333
    %v1789 = vld [vmem:[%s1788] sm:$0x20]
    %vm1790 = vcmask 1045509
    %v1791 = vsel %vm1790, %v1789, %v1787
    %s1792 = scalar_lea.vmem [#allocation1], 396
    %v1793 = vld [vmem:[%s1792] sm:$0x40]
    %vm1794 = vcmask 1046534
    %v1795 = vsel %vm1794, %v1793, %v1791
    %s1796 = scalar_lea.vmem [#allocation1], 459
    %v1797 = vld [vmem:[%s1796] sm:$0x80]
    %vm1798 = vcmask 1047559
    %v1799 = vsel %vm1798, %v1797, %v1795
    %1800 = vrot.lane.b32.xlu0 %v1799, 40
    %v1801 = vpop.permute.xlu0 %1800
    %vm1802 = vcmask 359744
    %1803 = vst.msk [vmem:[#allocation0] sm:$0xff] %vm1802, %v1801
    %s1804 = scalar_lea.vmem [#allocation1], 17
    %v1805 = vld [vmem:[%s1804] sm:$0x1]
    %s1806 = scalar_lea.vmem [#allocation1], 80
    %v1807 = vld [vmem:[%s1806] sm:$0x2]
    %vm1808 = vcmask 1041409
    %v1809 = vsel %vm1808, %v1807, %v1805
    %s1810 = scalar_lea.vmem [#allocation1], 143
    %v1811 = vld [vmem:[%s1810] sm:$0x4]
    %vm1812 = vcmask 1042434
    %v1813 = vsel %vm1812, %v1811, %v1809
    %s1814 = scalar_lea.vmem [#allocation1], 206
    %v1815 = vld [vmem:[%s1814] sm:$0x8]
    %vm1816 = vcmask 1043459
    %v1817 = vsel %vm1816, %v1815, %v1813
    %s1818 = scalar_lea.vmem [#allocation1], 269
    %v1819 = vld [vmem:[%s1818] sm:$0x10]
    %vm1820 = vcmask 1044484
    %v1821 = vsel %vm1820, %v1819, %v1817
    %s1822 = scalar_lea.vmem [#allocation1], 332
    %v1823 = vld [vmem:[%s1822] sm:$0x20]
    %vm1824 = vcmask 1045509
    %v1825 = vsel %vm1824, %v1823, %v1821
    %s1826 = scalar_lea.vmem [#allocation1], 395
    %v1827 = vld [vmem:[%s1826] sm:$0x40]
    %vm1828 = vcmask 1046534
    %v1829 = vsel %vm1828, %v1827, %v1825
    %s1830 = scalar_lea.vmem [#allocation1], 458
    %v1831 = vld [vmem:[%s1830] sm:$0x80]
    %vm1832 = vcmask 1047559
    %v1833 = vsel %vm1832, %v1831, %v1829
    %1834 = vrot.lane.b32.xlu0 %v1833, 36
    %v1835 = vpop.permute.xlu0 %1834
    %vm1836 = vcmask 326944
    %1837 = vst.msk [vmem:[#allocation0] sm:$0xff] %vm1836, %v1835
    %s1838 = scalar_lea.vmem [#allocation1], 16
    %v1839 = vld [vmem:[%s1838] sm:$0x1]
    %s1840 = scalar_lea.vmem [#allocation1], 79
    %v1841 = vld [vmem:[%s1840] sm:$0x2]
    %vm1842 = vcmask 1041409
    %v1843 = vsel %vm1842, %v1841, %v1839
    %s1844 = scalar_lea.vmem [#allocation1], 142
    %v1845 = vld [vmem:[%s1844] sm:$0x4]
    %vm1846 = vcmask 1042434
    %v1847 = vsel %vm1846, %v1845, %v1843
    %s1848 = scalar_lea.vmem [#allocation1], 205
    %v1849 = vld [vmem:[%s1848] sm:$0x8]
    %vm1850 = vcmask 1043459
    %v1851 = vsel %vm1850, %v1849, %v1847
    %s1852 = scalar_lea.vmem [#allocation1], 268
    %v1853 = vld [vmem:[%s1852] sm:$0x10]
    %vm1854 = vcmask 1044484
    %v1855 = vsel %vm1854, %v1853, %v1851
    %s1856 = scalar_lea.vmem [#allocation1], 331
    %v1857 = vld [vmem:[%s1856] sm:$0x20]
    %vm1858 = vcmask 1045509
    %v1859 = vsel %vm1858, %v1857, %v1855
    %s1860 = scalar_lea.vmem [#allocation1], 394
    %v1861 = vld [vmem:[%s1860] sm:$0x40]
    %vm1862 = vcmask 1046534
    %v1863 = vsel %vm1862, %v1861, %v1859
    %s1864 = scalar_lea.vmem [#allocation1], 457
    %v1865 = vld [vmem:[%s1864] sm:$0x80]
    %vm1866 = vcmask 1047559
    %v1867 = vsel %vm1866, %v1865, %v1863
    %1868 = vrot.lane.b32.xlu0 %v1867, 32
    %v1869 = vpop.permute.xlu0 %1868
    %vm1870 = vcmask 294144
    %1871 = vst.msk [vmem:[#allocation0] sm:$0xff] %vm1870, %v1869
    %s1872 = scalar_lea.vmem [#allocation1], 11
    %v1873 = vld [vmem:[%s1872] sm:$0x1]
    %s1874 = scalar_lea.vmem [#allocation1], 74
    %v1875 = vld [vmem:[%s1874] sm:$0x2]
    %vm1876 = vcmask 1041409
    %v1877 = vsel %vm1876, %v1875, %v1873
    %s1878 = scalar_lea.vmem [#allocation1], 137
    %v1879 = vld [vmem:[%s1878] sm:$0x4]
    %vm1880 = vcmask 1042434
    %v1881 = vsel %vm1880, %v1879, %v1877
    %s1882 = scalar_lea.vmem [#allocation1], 200
    %v1883 = vld [vmem:[%s1882] sm:$0x8]
    %vm1884 = vcmask 1043459
    %v1885 = vsel %vm1884, %v1883, %v1881
    %s1886 = scalar_lea.vmem [#allocation1], 263
    %v1887 = vld [vmem:[%s1886] sm:$0x10]
    %vm1888 = vcmask 1044484
    %v1889 = vsel %vm1888, %v1887, %v1885
    %s1890 = scalar_lea.vmem [#allocation1], 326
    %v1891 = vld [vmem:[%s1890] sm:$0x20]
    %vm1892 = vcmask 1045509
    %v1893 = vsel %vm1892, %v1891, %v1889
    %s1894 = scalar_lea.vmem [#allocation1], 389
    %v1895 = vld [vmem:[%s1894] sm:$0x40]
    %vm1896 = vcmask 1046534
    %v1897 = vsel %vm1896, %v1895, %v1893
    %s1898 = scalar_lea.vmem [#allocation1], 452
    %v1899 = vld [vmem:[%s1898] sm:$0x80]
    %vm1900 = vcmask 1047559
    %v1901 = vsel %vm1900, %v1899, %v1897
    %1902 = vrot.lane.b32.xlu0 %v1901, 28
    %v1903 = vpop.permute.xlu0 %1902
    %vm1904 = vcmask 261344
    %1905 = vst.msk [vmem:[#allocation0] sm:$0xff] %vm1904, %v1903
    %s1906 = scalar_lea.vmem [#allocation1], 10
    %v1907 = vld [vmem:[%s1906] sm:$0x1]
    %s1908 = scalar_lea.vmem [#allocation1], 73
    %v1909 = vld [vmem:[%s1908] sm:$0x2]
    %vm1910 = vcmask 1041409
    %v1911 = vsel %vm1910, %v1909, %v1907
    %s1912 = scalar_lea.vmem [#allocation1], 136
    %v1913 = vld [vmem:[%s1912] sm:$0x4]
    %vm1914 = vcmask 1042434
    %v1915 = vsel %vm1914, %v1913, %v1911
    %s1916 = scalar_lea.vmem [#allocation1], 199
    %v1917 = vld [vmem:[%s1916] sm:$0x8]
    %vm1918 = vcmask 1043459
    %v1919 = vsel %vm1918, %v1917, %v1915
    %s1920 = scalar_lea.vmem [#allocation1], 262
    %v1921 = vld [vmem:[%s1920] sm:$0x10]
    %vm1922 = vcmask 1044484
    %v1923 = vsel %vm1922, %v1921, %v1919
    %s1924 = scalar_lea.vmem [#allocation1], 325
    %v1925 = vld [vmem:[%s1924] sm:$0x20]
    %vm1926 = vcmask 1045509
    %v1927 = vsel %vm1926, %v1925, %v1923
    %s1928 = scalar_lea.vmem [#allocation1], 388
    %v1929 = vld [vmem:[%s1928] sm:$0x40]
    %vm1930 = vcmask 1046534
    %v1931 = vsel %vm1930, %v1929, %v1927
    %s1932 = scalar_lea.vmem [#allocation1], 451
    %v1933 = vld [vmem:[%s1932] sm:$0x80]
    %vm1934 = vcmask 1047559
    %v1935 = vsel %vm1934, %v1933, %v1931
    %1936 = vrot.lane.b32.xlu0 %v1935, 24
    %v1937 = vpop.permute.xlu0 %1936
    %vm1938 = vcmask 228544
    %1939 = vst.msk [vmem:[#allocation0] sm:$0xff] %vm1938, %v1937
    %s1940 = scalar_lea.vmem [#allocation1], 9
    %v1941 = vld [vmem:[%s1940] sm:$0x1]
    %s1942 = scalar_lea.vmem [#allocation1], 72
    %v1943 = vld [vmem:[%s1942] sm:$0x2]
    %vm1944 = vcmask 1041409
    %v1945 = vsel %vm1944, %v1943, %v1941
    %s1946 = scalar_lea.vmem [#allocation1], 135
    %v1947 = vld [vmem:[%s1946] sm:$0x4]
    %vm1948 = vcmask 1042434
    %v1949 = vsel %vm1948, %v1947, %v1945
    %s1950 = scalar_lea.vmem [#allocation1], 198
    %v1951 = vld [vmem:[%s1950] sm:$0x8]
    %vm1952 = vcmask 1043459
    %v1953 = vsel %vm1952, %v1951, %v1949
    %s1954 = scalar_lea.vmem [#allocation1], 261
    %v1955 = vld [vmem:[%s1954] sm:$0x10]
    %vm1956 = vcmask 1044484
    %v1957 = vsel %vm1956, %v1955, %v1953
    %s1958 = scalar_lea.vmem [#allocation1], 324
    %v1959 = vld [vmem:[%s1958] sm:$0x20]
    %vm1960 = vcmask 1045509
    %v1961 = vsel %vm1960, %v1959, %v1957
    %s1962 = scalar_lea.vmem [#allocation1], 387
    %v1963 = vld [vmem:[%s1962] sm:$0x40]
    %vm1964 = vcmask 1046534
    %v1965 = vsel %vm1964, %v1963, %v1961
    %s1966 = scalar_lea.vmem [#allocation1], 450
    %v1967 = vld [vmem:[%s1966] sm:$0x80]
    %vm1968 = vcmask 1047559
    %v1969 = vsel %vm1968, %v1967, %v1965
    %1970 = vrot.lane.b32.xlu0 %v1969, 20
    %v1971 = vpop.permute.xlu0 %1970
    %vm1972 = vcmask 195744
    %1973 = vst.msk [vmem:[#allocation0] sm:$0xff] %vm1972, %v1971
    %s1974 = scalar_lea.vmem [#allocation1], 8
    %v1975 = vld [vmem:[%s1974] sm:$0x1]
    %s1976 = scalar_lea.vmem [#allocation1], 71
    %v1977 = vld [vmem:[%s1976] sm:$0x2]
    %vm1978 = vcmask 1041409
    %v1979 = vsel %vm1978, %v1977, %v1975
    %s1980 = scalar_lea.vmem [#allocation1], 134
    %v1981 = vld [vmem:[%s1980] sm:$0x4]
    %vm1982 = vcmask 1042434
    %v1983 = vsel %vm1982, %v1981, %v1979
    %s1984 = scalar_lea.vmem [#allocation1], 197
    %v1985 = vld [vmem:[%s1984] sm:$0x8]
    %vm1986 = vcmask 1043459
    %v1987 = vsel %vm1986, %v1985, %v1983
    %s1988 = scalar_lea.vmem [#allocation1], 260
    %v1989 = vld [vmem:[%s1988] sm:$0x10]
    %vm1990 = vcmask 1044484
    %v1991 = vsel %vm1990, %v1989, %v1987
    %s1992 = scalar_lea.vmem [#allocation1], 323
    %v1993 = vld [vmem:[%s1992] sm:$0x20]
    %vm1994 = vcmask 1045509
    %v1995 = vsel %vm1994, %v1993, %v1991
    %s1996 = scalar_lea.vmem [#allocation1], 386
    %v1997 = vld [vmem:[%s1996] sm:$0x40]
    %vm1998 = vcmask 1046534
    %v1999 = vsel %vm1998, %v1997, %v1995
    %s2000 = scalar_lea.vmem [#allocation1], 449
    %v2001 = vld [vmem:[%s2000] sm:$0x80]
    %vm2002 = vcmask 1047559
    %v2003 = vsel %vm2002, %v2001, %v1999
    %2004 = vrot.lane.b32.xlu0 %v2003, 16
    %v2005 = vpop.permute.xlu0 %2004
    %vm2006 = vcmask 162944
    %2007 = vst.msk [vmem:[#allocation0] sm:$0xff] %vm2006, %v2005
    %s2008 = scalar_lea.vmem [#allocation1], 3
    %v2009 = vld [vmem:[%s2008] sm:$0x1]
    %s2010 = scalar_lea.vmem [#allocation1], 66
    %v2011 = vld [vmem:[%s2010] sm:$0x2]
    %vm2012 = vcmask 1041409
    %v2013 = vsel %vm2012, %v2011, %v2009
    %s2014 = scalar_lea.vmem [#allocation1], 129
    %v2015 = vld [vmem:[%s2014] sm:$0x4]
    %vm2016 = vcmask 1042434
    %v2017 = vsel %vm2016, %v2015, %v2013
    %s2018 = scalar_lea.vmem [#allocation1], 192
    %v2019 = vld [vmem:[%s2018] sm:$0x8]
    %vm2020 = vcmask 1043459
    %v2021 = vsel %vm2020, %v2019, %v2017
    %s2022 = scalar_lea.vmem [#allocation1], 255
    %v2023 = vld [vmem:[%s2022] sm:$0x10]
    %vm2024 = vcmask 1044484
    %v2025 = vsel %vm2024, %v2023, %v2021
    %s2026 = scalar_lea.vmem [#allocation1], 318
    %v2027 = vld [vmem:[%s2026] sm:$0x20]
    %vm2028 = vcmask 1045509
    %v2029 = vsel %vm2028, %v2027, %v2025
    %s2030 = scalar_lea.vmem [#allocation1], 381
    %v2031 = vld [vmem:[%s2030] sm:$0x40]
    %vm2032 = vcmask 1046534
    %v2033 = vsel %vm2032, %v2031, %v2029
    %s2034 = scalar_lea.vmem [#allocation1], 444
    %v2035 = vld [vmem:[%s2034] sm:$0x80]
    %vm2036 = vcmask 1047559
    %v2037 = vsel %vm2036, %v2035, %v2033
    %2038 = vrot.lane.b32.xlu0 %v2037, 12
    %v2039 = vpop.permute.xlu0 %2038
    %vm2040 = vcmask 130144
    %2041 = vst.msk [vmem:[#allocation0] sm:$0xff] %vm2040, %v2039
    %s2042 = scalar_lea.vmem [#allocation1], 2
    %v2043 = vld [vmem:[%s2042] sm:$0x1]
    %s2044 = scalar_lea.vmem [#allocation1], 65
    %v2045 = vld [vmem:[%s2044] sm:$0x2]
    %vm2046 = vcmask 1041409
    %v2047 = vsel %vm2046, %v2045, %v2043
    %s2048 = scalar_lea.vmem [#allocation1], 128
    %v2049 = vld [vmem:[%s2048] sm:$0x4]
    %vm2050 = vcmask 1042434
    %v2051 = vsel %vm2050, %v2049, %v2047
    %s2052 = scalar_lea.vmem [#allocation1], 191
    %v2053 = vld [vmem:[%s2052] sm:$0x8]
    %vm2054 = vcmask 1043459
    %v2055 = vsel %vm2054, %v2053, %v2051
    %s2056 = scalar_lea.vmem [#allocation1], 254
    %v2057 = vld [vmem:[%s2056] sm:$0x10]
    %vm2058 = vcmask 1044484
    %v2059 = vsel %vm2058, %v2057, %v2055
    %s2060 = scalar_lea.vmem [#allocation1], 317
    %v2061 = vld [vmem:[%s2060] sm:$0x20]
    %vm2062 = vcmask 1045509
    %v2063 = vsel %vm2062, %v2061, %v2059
    %s2064 = scalar_lea.vmem [#allocation1], 380
    %v2065 = vld [vmem:[%s2064] sm:$0x40]
    %vm2066 = vcmask 1046534
    %v2067 = vsel %vm2066, %v2065, %v2063
    %s2068 = scalar_lea.vmem [#allocation1], 443
    %v2069 = vld [vmem:[%s2068] sm:$0x80]
    %vm2070 = vcmask 1047559
    %v2071 = vsel %vm2070, %v2069, %v2067
    %2072 = vrot.lane.b32.xlu0 %v2071, 8
    %v2073 = vpop.permute.xlu0 %2072
    %vm2074 = vcmask 97344
    %2075 = vst.msk [vmem:[#allocation0] sm:$0xff] %vm2074, %v2073
    %s2076 = scalar_lea.vmem [#allocation1], 1
    %v2077 = vld [vmem:[%s2076] sm:$0x1]
    %s2078 = scalar_lea.vmem [#allocation1], 64
    %v2079 = vld [vmem:[%s2078] sm:$0x2]
    %vm2080 = vcmask 1041409
    %v2081 = vsel %vm2080, %v2079, %v2077
    %s2082 = scalar_lea.vmem [#allocation1], 127
    %v2083 = vld [vmem:[%s2082] sm:$0x4]
    %vm2084 = vcmask 1042434
    %v2085 = vsel %vm2084, %v2083, %v2081
    %s2086 = scalar_lea.vmem [#allocation1], 190
    %v2087 = vld [vmem:[%s2086] sm:$0x8]
    %vm2088 = vcmask 1043459
    %v2089 = vsel %vm2088, %v2087, %v2085
    %s2090 = scalar_lea.vmem [#allocation1], 253
    %v2091 = vld [vmem:[%s2090] sm:$0x10]
    %vm2092 = vcmask 1044484
    %v2093 = vsel %vm2092, %v2091, %v2089
    %s2094 = scalar_lea.vmem [#allocation1], 316
    %v2095 = vld [vmem:[%s2094] sm:$0x20]
    %vm2096 = vcmask 1045509
    %v2097 = vsel %vm2096, %v2095, %v2093
    %s2098 = scalar_lea.vmem [#allocation1], 379
    %v2099 = vld [vmem:[%s2098] sm:$0x40]
    %vm2100 = vcmask 1046534
    %v2101 = vsel %vm2100, %v2099, %v2097
    %s2102 = scalar_lea.vmem [#allocation1], 442
    %v2103 = vld [vmem:[%s2102] sm:$0x80]
    %vm2104 = vcmask 1047559
    %v2105 = vsel %vm2104, %v2103, %v2101
    %2106 = vrot.lane.b32.xlu0 %v2105, 4
    %v2107 = vpop.permute.xlu0 %2106
    %vm2108 = vcmask 64544
    %2109 = vst.msk [vmem:[#allocation0] sm:$0xff] %vm2108, %v2107
    %s2111 = smul.u32 4, 2
    %s2112 = sshllo.u32 0, %s2111
    %s2113 = sshrl.u32 %s2111, 1
    %v2114 = vld [vmem:[#allocation0] sm:%s2112]
    %v2115 = vpack.c.bf16 0.0, %v2114
    %s2116 = sshllo.u32 0, %s2113
    %2117 = vst [vmem:[%s1] sm:%s2116] %v2115

// kernel: distiller_forward.11
$region0: #{distiller_forward.11}
  #allocation0 [shape = 'u32[]', space=smem, size = 0x4, offset = 0x4, fixed_abs, tag = 'smem constant byte address 0x4 - core index']
  #allocation1 [shape = 'u32[144,128]{1,0:T(1,128)}', space=vmem, size = 0x12000, scoped, tag = 'internal scratch']
  %s0 = inlined_call_operand.vmem [shape: bf16[2,32,288], index: 0, kind: input, shape index: {}]
  %s1 = inlined_call_operand.vmem [shape: bf16[2,288,8], index: 1, kind: input, shape index: {}]
  %s2 = inlined_call_operand.vmem [shape: bf16[2,32,8], index: 2, kind: output, shape index: {}]
  %s3 = sld [smem:[#allocation0]]
  $region41: #{distiller_forward.11} parent=0
    _
  %s5 = ssub.s32 1, %s3
  %s6 = scalar_select 0, %s5, %s3
  loop: start=0, step=1, limit=4
  $region2: #{distiller_forward.11} parent=0 // loop_pre_header
    _
  $region3: #{distiller_forward.11} parent=0 // loop_header
    %s8 = sphi 0, %s12
    %p9 = scmp.ge.s32.totalorder %s8, 4
    %s15 = sphi 0, %s27
    %s16 = sphi 0, %s23
    %s17 = sphi 0, %s15
    %s18 = sphi 0, %s16
    %s19 = sphi 0, %s17
    %s20 = sphi 0, %s18
    %s30 = sphi 0, %s32
    %s33 = sphi 0, %s30
    %s34 = sphi 0, %s33
    %s50 = sphi 0, %s34
    %s58 = sphi 0, %s60
    %s61 = sphi 0, %s58
    %s62 = sphi 0, %s61
    %s78 = sphi 0, %s62
    %s86 = sphi 0, %s88
    %s89 = sphi 0, %s86
    %s90 = sphi 0, %s89
    %s106 = sphi 0, %s90
  $region4: #{distiller_forward.11} parent=0 // loop_header_branch
    %11 = sbr.rel (%p9) target = $region8
  $region5: #{distiller_forward.11} parent=0 // loop_body
    %s13 = ssub.s32 %s8, 1
    %s14 = ssub.s32 %s8, 2
    %s21 = sadd.s32 1, %s16
    %p22 = scmp.ge.s32.totalorder %s21, 1
    %s23 = scalar_select %p22, 0, %s21
    %s24 = sadd.s32 1, %s15
    %s25 = scalar_select %p22, %s24, %s15
    %p26 = scmp.ge.s32.totalorder %s25, 2
    %s27 = scalar_select %p26, 0, %s25
    %s28 = ssub.s32 %s15, %s27
    %p29 = scmp.eq.s32.totalorder %s28, 0
    %s31 = sadd.s32 %s30, 1
    %s32 = scalar_select %p29, %s30, %s31
    %p35 = pneg %p29
    %p36 = scmp.eq.s32.totalorder %s8, 1
    %p37 = por %p35, %p36
    %p38 = scmp.ne.s32.totalorder %s30, %s33
    %p39 = scmp.eq.s32.totalorder %s8, 0
    %p40 = por %p38, %p39
    %p41 = scmp.ne.s32.totalorder %s30, %s33
    %p42 = scmp.eq.s32.totalorder %s13, 1
    %p43 = por %p41, %p42
    %p44 = scmp.ne.s32.totalorder %s33, %s34
    %p45 = scmp.eq.s32.totalorder %s13, 0
    %p46 = por %p44, %p45
    %p47 = scmp.ne.s32.totalorder %s33, %s34
    %p48 = scmp.eq.s32.totalorder %s14, 1
    %p49 = por %p47, %p48
    %p51 = scmp.ne.s32.totalorder %s34, %s50
    %p52 = scmp.eq.s32.totalorder %s14, 0
    %p53 = por %p51, %p52
    %s54 = ssub.s32 %s15, %s27
    %s55 = ssub.s32 %s16, %s23
    %s56 = sor.u32 %s54, %s55
    %p57 = scmp.eq.s32.totalorder %s56, 0
    %s59 = sadd.s32 %s58, 1
    %s60 = scalar_select %p57, %s58, %s59
    %p63 = pneg %p57
    %p64 = scmp.eq.s32.totalorder %s8, 1
    %p65 = por %p63, %p64
    %p66 = scmp.ne.s32.totalorder %s58, %s61
    %p67 = scmp.eq.s32.totalorder %s8, 0
    %p68 = por %p66, %p67
    %p69 = scmp.ne.s32.totalorder %s58, %s61
    %p70 = scmp.eq.s32.totalorder %s13, 1
    %p71 = por %p69, %p70
    %p72 = scmp.ne.s32.totalorder %s61, %s62
    %p73 = scmp.eq.s32.totalorder %s13, 0
    %p74 = por %p72, %p73
    %p75 = scmp.ne.s32.totalorder %s61, %s62
    %p76 = scmp.eq.s32.totalorder %s14, 1
    %p77 = por %p75, %p76
    %p79 = scmp.ne.s32.totalorder %s62, %s78
    %p80 = scmp.eq.s32.totalorder %s14, 0
    %p81 = por %p79, %p80
    %s82 = ssub.s32 %s15, %s27
    %s83 = ssub.s32 %s16, %s23
    %s84 = sor.u32 %s82, %s83
    %p85 = scmp.eq.s32.totalorder %s84, 0
    %s87 = sadd.s32 %s86, 1
    %s88 = scalar_select %p85, %s86, %s87
    %p91 = pneg %p85
    %p92 = scmp.eq.s32.totalorder %s8, 1
    %p93 = por %p91, %p92
    %p94 = scmp.ne.s32.totalorder %s86, %s89
    %p95 = scmp.eq.s32.totalorder %s8, 0
    %p96 = por %p94, %p95
    %p97 = scmp.ne.s32.totalorder %s86, %s89
    %p98 = scmp.eq.s32.totalorder %s13, 1
    %p99 = por %p97, %p98
    %p100 = scmp.ne.s32.totalorder %s89, %s90
    %p101 = scmp.eq.s32.totalorder %s13, 0
    %p102 = por %p100, %p101
    %p103 = scmp.ne.s32.totalorder %s89, %s90
    %p104 = scmp.eq.s32.totalorder %s14, 1
    %p105 = por %p103, %p104
    %p107 = scmp.ne.s32.totalorder %s90, %s106
    %p108 = scmp.eq.s32.totalorder %s14, 0
    %p109 = por %p107, %p108
    %p110 = scmp.le.s32.totalorder 1, %s8
    %p111 = scmp.lt.s32.totalorder %s8, 3
    %p112 = pnand %p110, %p111
    %p113 = pneg %p112
    // Predicated region
    $region9: #{distiller_forward.11} parent=5 // pred_check
      _
    $region10: #{distiller_forward.11} parent=5 // pred_check_branch
      %115 = sbr.rel (%p112) target = $region12
    $region11: #{distiller_forward.11} parent=5 // pred_region
      %s116 = ssub.s32 %s8, 1
    $region12: #{distiller_forward.11} parent=5 // pred_fallthru
      _
    %p117 = scmp.lt.s32.totalorder %s8, 2
    // Predicated region
    $region13: #{distiller_forward.11} parent=5 // pred_check
      %p118 = pneg %p117
    $region14: #{distiller_forward.11} parent=5 // pred_check_branch
      %120 = sbr.rel (%p118) target = $region16
    $region15: #{distiller_forward.11} parent=5 // pred_region
      // Predicated region
      $region17: #{distiller_forward.11} parent=15 // pred_check
        %p121 = pneg %p40
      $region18: #{distiller_forward.11} parent=15 // pred_check_branch
        %123 = sbr.rel (%p121) target = $region20
      $region19: #{distiller_forward.11} parent=15 // pred_region
        %p124 = scmp.lt.s32.totalorder %s15, 1
        %s125 = scalar_select %p124, %s15, 1
        %s126 = smul.addr %s125, 12
        %s127 = smul.addr %s126, 4
        %s128 = scalar_lea.vmem %s0, %s127
      $region20: #{distiller_forward.11} parent=15 // pred_fallthru
        _
      // Predicated region
      $region21: #{distiller_forward.11} parent=15 // pred_check
        %p129 = pneg %p68
      $region22: #{distiller_forward.11} parent=15 // pred_check_branch
        %131 = sbr.rel (%p129) target = $region24
      $region23: #{distiller_forward.11} parent=15 // pred_region
        %p132 = scmp.lt.s32.totalorder %s15, 1
        %s133 = scalar_select %p132, %s15, 1
        %p134 = scmp.lt.s32.totalorder %s16, 0
        %s135 = scalar_select %p134, %s16, 0
        %s136 = smul.addr %s133, 36
        %s137 = sadd.s32 %s135, %s136
        %s138 = smul.addr %s137, 4
        %s139 = scalar_lea.vmem %s1, %s138
      $region24: #{distiller_forward.11} parent=15 // pred_fallthru
        _
    $region16: #{distiller_forward.11} parent=5 // pred_fallthru
      _
    %p140 = scmp.le.s32.totalorder 1, %s8
    %p141 = scmp.lt.s32.totalorder %s8, 3
    %p142 = pnand %p140, %p141
    %p143 = pneg %p142
    // Predicated region
    $region25: #{distiller_forward.11} parent=5 // pred_check
      _
    $region26: #{distiller_forward.11} parent=5 // pred_check_branch
      %145 = sbr.rel (%p142) target = $region28
    $region27: #{distiller_forward.11} parent=5 // pred_region
      %s146 = ssub.s32 %s8, 1
      %p147 = scmp.lt.s32.totalorder %s17, 1
      %s148 = scalar_select %p147, %s17, 1
      %s149 = smul.addr %s148, 12
      %s150 = smul.addr %s149, 4
      %s151 = scalar_lea.vmem %s0, %s150
      %p152 = pneg %p46
      %p153 = pneg %p43
      %p154 = scmp.lt.s32.totalorder %s17, 1
      %s155 = scalar_select %p154, %s17, 1
      %p156 = scmp.lt.s32.totalorder %s18, 0
      %s157 = scalar_select %p156, %s18, 0
      %s158 = smul.addr %s155, 36
      %s159 = sadd.s32 %s157, %s158
      %s160 = smul.addr %s159, 4
      %s161 = scalar_lea.vmem %s1, %s160
      %p162 = pneg %p74
      %p163 = pneg %p71
      %p164 = pneg %p102
      %p165 = pneg %p99
      %p166 = scmp.lt.s32.totalorder %s17, 1
      %s167 = scalar_select %p166, %s17, 1
      %p168 = scmp.lt.s32.totalorder %s18, 0
      %s169 = scalar_select %p168, %s18, 0
      %s170 = smul.addr %s167, 4
      %s171 = sadd.s32 %s169, %s170
      %s172 = smul.addr %s171, 4
      %s173 = scalar_lea.vmem %s2, %s172
      %p174 = scmp.lt.s32.totalorder %s17, 1
      %s175 = scalar_select %p174, %s17, 1
      %s176 = smul.addr %s175, 12
      %s177 = smul.addr %s176, 4
      %s178 = scalar_lea.vmem %s0, %s177
      %p179 = scmp.lt.s32.totalorder %s17, 1
      %s180 = scalar_select %p179, %s17, 1
      %p181 = scmp.lt.s32.totalorder %s18, 0
      %s182 = scalar_select %p181, %s18, 0
      %s183 = smul.addr %s180, 36
      %s184 = sadd.s32 %s182, %s183
      %s185 = smul.addr %s184, 4
      %s186 = scalar_lea.vmem %s1, %s185
      %p187 = scmp.lt.s32.totalorder %s17, 1
      %s188 = scalar_select %p187, %s17, 1
      %p189 = scmp.lt.s32.totalorder %s18, 0
      %s190 = scalar_select %p189, %s18, 0
      %s191 = smul.addr %s188, 4
      %s192 = sadd.s32 %s190, %s191
      %s193 = smul.addr %s192, 4
      %s194 = scalar_lea.vmem %s2, %s193
      %v196 = vld [vmem:[%s178] sm:$0xff]
      %v197 = vld [vmem:[%s178 + $0x8] sm:$0xf]
      %v198 = vld [vmem:[%s178 + $0xc] sm:$0xff]
      %v199 = vld [vmem:[%s178 + $0x14] sm:$0xf]
      %v200 = vld [vmem:[%s178 + $0x18] sm:$0xff]
      %v201 = vld [vmem:[%s178 + $0x20] sm:$0xf]
      %v202 = vld [vmem:[%s178 + $0x24] sm:$0xff]
      %v203 = vld [vmem:[%s178 + $0x2c] sm:$0xf]
      %v204 = vld [vmem:[%s186] sm:$0xf]
      %v205 = vld [vmem:[%s186 + $0x4] sm:$0xf]
      %v206 = vld [vmem:[%s186 + $0x8] sm:$0xf]
      %v207 = vld [vmem:[%s186 + $0xc] sm:$0xf]
      %v208 = vld [vmem:[%s186 + $0x10] sm:$0xf]
      %v209 = vld [vmem:[%s186 + $0x14] sm:$0xf]
      %v210 = vld [vmem:[%s186 + $0x18] sm:$0xf]
      %v211 = vld [vmem:[%s186 + $0x1c] sm:$0xf]
      %v212 = vld [vmem:[%s186 + $0x20] sm:$0xf]
      %v213 = vld [vmem:[%s186 + $0x24] sm:$0xf]
      %v214 = vld [vmem:[%s186 + $0x28] sm:$0xf]
      %v215 = vld [vmem:[%s186 + $0x2c] sm:$0xf]
      %v216 = vld [vmem:[%s186 + $0x30] sm:$0xf]
      %v217 = vld [vmem:[%s186 + $0x34] sm:$0xf]
      %v218 = vld [vmem:[%s186 + $0x38] sm:$0xf]
      %v219 = vld [vmem:[%s186 + $0x3c] sm:$0xf]
      %v220 = vld [vmem:[%s186 + $0x40] sm:$0xf]
      %v221 = vld [vmem:[%s186 + $0x44] sm:$0xf]
      %v222 = vld [vmem:[%s186 + $0x48] sm:$0xf]
      %v223 = vld [vmem:[%s186 + $0x4c] sm:$0xf]
      %v224 = vld [vmem:[%s186 + $0x50] sm:$0xf]
      %v225 = vld [vmem:[%s186 + $0x54] sm:$0xf]
      %v226 = vld [vmem:[%s186 + $0x58] sm:$0xf]
      %v227 = vld [vmem:[%s186 + $0x5c] sm:$0xf]
      %v228 = vld [vmem:[%s186 + $0x60] sm:$0xf]
      %v229 = vld [vmem:[%s186 + $0x64] sm:$0xf]
      %v230 = vld [vmem:[%s186 + $0x68] sm:$0xf]
      %v231 = vld [vmem:[%s186 + $0x6c] sm:$0xf]
      %v232 = vld [vmem:[%s186 + $0x70] sm:$0xf]
      %v233 = vld [vmem:[%s186 + $0x74] sm:$0xf]
      %v234 = vld [vmem:[%s186 + $0x78] sm:$0xf]
      %v235 = vld [vmem:[%s186 + $0x7c] sm:$0xf]
      %v236 = vld [vmem:[%s186 + $0x80] sm:$0xf]
      %v237 = vld [vmem:[%s186 + $0x84] sm:$0xf]
      %v238 = vld [vmem:[%s186 + $0x88] sm:$0xf]
      %v239 = vld [vmem:[%s186 + $0x8c] sm:$0xf]
      %v248 = vunpack.c.l.b16 %v196
      %v249 = vunpack.c.h.b16 %v196
      %v250 = vunpack.c.l.b16 %v197
      %v251 = vunpack.c.l.b16 %v198
      %v252 = vunpack.c.h.b16 %v198
      %v253 = vunpack.c.l.b16 %v199
      %v254 = vunpack.c.l.b16 %v200
      %v255 = vunpack.c.h.b16 %v200
      %v256 = vunpack.c.l.b16 %v201
      %v257 = vunpack.c.l.b16 %v202
      %v258 = vunpack.c.h.b16 %v202
      %v259 = vunpack.c.l.b16 %v203
      %v260 = vpack.c.b16 %v251, %v248
      %v261 = vpack.c.b16 %v252, %v249
      %v262 = vpack.c.b16 %v253, %v250
      %v263 = vpack.c.b16 %v257, %v254
      %v264 = vpack.c.b16 %v258, %v255
      %v265 = vpack.c.b16 %v259, %v256
      %v306 = vunpack.c.l.b16 %v204
      %v307 = vunpack.c.l.b16 %v205
      %v308 = vunpack.c.l.b16 %v206
      %v309 = vunpack.c.l.b16 %v207
      %v310 = vunpack.c.l.b16 %v208
      %v311 = vunpack.c.l.b16 %v209
      %v312 = vunpack.c.l.b16 %v210
      %v313 = vunpack.c.l.b16 %v211
      %v314 = vunpack.c.l.b16 %v212
      %v315 = vunpack.c.l.b16 %v213
      %v316 = vunpack.c.l.b16 %v214
      %v317 = vunpack.c.l.b16 %v215
      %v318 = vunpack.c.l.b16 %v216
      %v319 = vunpack.c.l.b16 %v217
      %v320 = vunpack.c.l.b16 %v218
      %v321 = vunpack.c.l.b16 %v219
      %v322 = vunpack.c.l.b16 %v220
      %v323 = vunpack.c.l.b16 %v221
      %v324 = vunpack.c.l.b16 %v222
      %v325 = vunpack.c.l.b16 %v223
      %v326 = vunpack.c.l.b16 %v224
      %v327 = vunpack.c.l.b16 %v225
      %v328 = vunpack.c.l.b16 %v226
      %v329 = vunpack.c.l.b16 %v227
      %v330 = vunpack.c.l.b16 %v228
      %v331 = vunpack.c.l.b16 %v229
      %v332 = vunpack.c.l.b16 %v230
      %v333 = vunpack.c.l.b16 %v231
      %v334 = vunpack.c.l.b16 %v232
      %v335 = vunpack.c.l.b16 %v233
      %v336 = vunpack.c.l.b16 %v234
      %v337 = vunpack.c.l.b16 %v235
      %v338 = vunpack.c.l.b16 %v236
      %v339 = vunpack.c.l.b16 %v237
      %v340 = vunpack.c.l.b16 %v238
      %v341 = vunpack.c.l.b16 %v239
      %v342 = vpack.c.b16 %v307, %v306
      %v343 = vpack.c.b16 %v309, %v308
      %v344 = vpack.c.b16 %v311, %v310
      %v345 = vpack.c.b16 %v313, %v312
      %v346 = vpack.c.b16 %v315, %v314
      %v347 = vpack.c.b16 %v317, %v316
      %v348 = vpack.c.b16 %v319, %v318
      %v349 = vpack.c.b16 %v321, %v320
      %v350 = vpack.c.b16 %v323, %v322
      %v351 = vpack.c.b16 %v325, %v324
      %v352 = vpack.c.b16 %v327, %v326
      %v353 = vpack.c.b16 %v329, %v328
      %v354 = vpack.c.b16 %v331, %v330
      %v355 = vpack.c.b16 %v333, %v332
      %v356 = vpack.c.b16 %v335, %v334
      %v357 = vpack.c.b16 %v337, %v336
      %v358 = vpack.c.b16 %v339, %v338
      %v359 = vpack.c.b16 %v341, %v340
      %vm378 = vcmask 261120
      %v380 = vsel %vm378, %v262, 0
      %v383 = vsel %vm378, %v265, 0
      %385 = vmatprep.subr.bf16.mxu0 0
      %386 = vmatpush1.bf16.msra.mxu0 %v342
      %387 = vmatprep.subr.bf16.mxu0 0
      %388 = vmatpush1.bf16.msra.mxu0 %v343
      %389 = vmatprep.subr.bf16.mxu0 0
      %390 = vmatpush1.bf16.msra.mxu0 %v344
      %391 = vmatprep.subr.bf16.mxu0 0
      %392 = vmatpush1.bf16.msra.mxu0 %v345
      %393 = vmatprep.subr.bf16.mxu0 0
      %394 = vmatpush1.bf16.msra.mxu0 %v346
      %395 = vmatprep.subr.bf16.mxu0 0
      %396 = vmatpush1.bf16.msra.mxu0 %v347
      %397 = vmatprep.subr.bf16.mxu0 0
      %398 = vmatpush1.bf16.msra.mxu0 %v348
      %399 = vmatprep.subr.bf16.mxu0 0
      %400 = vmatpush1.bf16.msra.mxu0 %v349
      %401 = vmatprep.subr.bf16.mxu0 0
      %402 = vmatpush1.bf16.msra.mxu0 %v350
      %403 = vmatprep.subr.bf16.mxu0 0
      %404 = vmatpush1.bf16.msra.mxu0 %v351
      %405 = vmatprep.subr.bf16.mxu0 0
      %406 = vmatpush1.bf16.msra.mxu0 %v352
      %407 = vmatprep.subr.bf16.mxu0 0
      %408 = vmatpush1.bf16.msra.mxu0 %v353
      %409 = vmatprep.subr.bf16.mxu0 0
      %410 = vmatpush1.bf16.msra.mxu0 %v354
      %411 = vmatprep.subr.bf16.mxu0 0
      %412 = vmatpush1.bf16.msra.mxu0 %v355
      %413 = vmatprep.subr.bf16.mxu0 0
      %414 = vmatpush1.bf16.msra.mxu0 %v356
      %415 = vmatprep.subr.bf16.mxu0 0
      %416 = vmatpush1.bf16.msra.mxu0 %v357
      %417 = vmatprep.mubr.bf16.mxu0 %v261
      %418 = vmatmul.mubr.bf16.gmra.mrb[0].mxu0 %v260
      %v419 = vpop.f32.mrb[0].mxu0
      %v420 = vadd.f32 0.0, %v419
      %v421 = vpop.f32.mrb[0].mxu0
      %v422 = vpop.f32.mrb[0].mxu0
      %v423 = vadd.f32 0.0, %v422
      %v424 = vpop.f32.mrb[0].mxu0
      %425 = vmatprep.mubr.bf16.mxu0 %v264
      %426 = vmatmul.mubr.bf16.gmra.mrb[0].mxu0 %v263
      %v427 = vpop.f32.mrb[0].mxu0
      %v428 = vadd.f32 0.0, %v427
      %v429 = vpop.f32.mrb[0].mxu0
      %v430 = vpop.f32.mrb[0].mxu0
      %v431 = vadd.f32 0.0, %v430
      %v432 = vpop.f32.mrb[0].mxu0
      %433 = vdwg.mxu0
      %434 = vmatprep.subr.bf16.mxu0 0
      %435 = vmatpush1.bf16.msra.mxu0 %v358
      %436 = vmatprep.subr.bf16.mxu0 0
      %437 = vmatpush1.bf16.msra.mxu0 %v359
      %438 = vmatprep.subr.bf16.mxu0 0
      %439 = vmatpush1.bf16.msra.mxu0 0
      %440 = vmatprep.subr.bf16.mxu0 0
      %441 = vmatpush1.bf16.msra.mxu0 0
      %442 = vmatprep.subr.bf16.mxu0 0
      %443 = vmatpush1.bf16.msra.mxu0 0
      %444 = vmatprep.subr.bf16.mxu0 0
      %445 = vmatpush1.bf16.msra.mxu0 0
      %446 = vmatprep.subr.bf16.mxu0 0
      %447 = vmatpush1.bf16.msra.mxu0 0
      %448 = vmatprep.subr.bf16.mxu0 0
      %449 = vmatpush1.bf16.msra.mxu0 0
      %450 = vmatprep.subr.bf16.mxu0 0
      %451 = vmatpush1.bf16.msra.mxu0 0
      %452 = vmatprep.subr.bf16.mxu0 0
      %453 = vmatpush1.bf16.msra.mxu0 0
      %454 = vmatprep.subr.bf16.mxu0 0
      %455 = vmatpush1.bf16.msra.mxu0 0
      %456 = vmatprep.subr.bf16.mxu0 0
      %457 = vmatpush1.bf16.msra.mxu0 0
      %458 = vmatprep.subr.bf16.mxu0 0
      %459 = vmatpush1.bf16.msra.mxu0 0
      %460 = vmatprep.subr.bf16.mxu0 0
      %461 = vmatpush1.bf16.msra.mxu0 0
      %462 = vmatprep.subr.bf16.mxu0 0
      %463 = vmatpush1.bf16.msra.mxu0 0
      %464 = vmatprep.subr.bf16.mxu0 0
      %465 = vmatpush1.bf16.msra.mxu0 0
      %466 = vmatprep.mubr.bf16.mxu0 0
      %467 = vmatmul.mubr.bf16.gmra.mrb[0].mxu0 %v380
      %v468 = vpop.f32.mrb[0].mxu0
      %v469 = vadd.f32 %v420, %v468
      %v470 = vpop.f32.mrb[0].mxu0
      %v471 = vpop.f32.mrb[0].mxu0
      %v472 = vadd.f32 %v423, %v471
      %v473 = vpop.f32.mrb[0].mxu0
      %474 = vmatprep.mubr.bf16.mxu0 0
      %475 = vmatmul.mubr.bf16.gmra.mrb[0].mxu0 %v383
      %v476 = vpop.f32.mrb[0].mxu0
      %v477 = vadd.f32 %v428, %v476
      %v478 = vpop.f32.mrb[0].mxu0
      %v479 = vpop.f32.mrb[0].mxu0
      %v480 = vadd.f32 %v431, %v479
      %v481 = vpop.f32.mrb[0].mxu0
      %482 = vdwg.mxu0
      %v483 = vmax.f32 %v469, 0.0
      %v484 = vmax.f32 %v472, 0.0
      %v485 = vmax.f32 %v477, 0.0
      %v486 = vmax.f32 %v480, 0.0
      %v487 = vpack.c.bf16 %v484, %v483
      %v488 = vpack.c.bf16 %v486, %v485
      %v491 = vunpack.c.l.b16 %v487
      %v492 = vunpack.c.h.b16 %v487
      %v493 = vunpack.c.l.b16 %v488
      %v494 = vunpack.c.h.b16 %v488
      %v495 = vpack.c.b16 %v491, %v491
      %v496 = vpack.c.b16 %v492, %v492
      %v497 = vpack.c.b16 %v493, %v493
      %v498 = vpack.c.b16 %v494, %v494
      %vm503 = vcmask 60416
      %504 = vst.msk [vmem:[%s194] sm:$0xf] %vm503, %v495
      %505 = vst.msk [vmem:[%s194 + $0x4] sm:$0xf] %vm503, %v496
      %506 = vst.msk [vmem:[%s194 + $0x8] sm:$0xf] %vm503, %v497
      %507 = vst.msk [vmem:[%s194 + $0xc] sm:$0xf] %vm503, %v498
      %p508 = scmp.lt.s32.totalorder %s17, 1
      %s509 = scalar_select %p508, %s17, 1
      %p510 = scmp.lt.s32.totalorder %s18, 0
      %s511 = scalar_select %p510, %s18, 0
      %s512 = smul.addr %s509, 4
      %s513 = sadd.s32 %s511, %s512
      %s514 = smul.addr %s513, 4
      %s515 = scalar_lea.vmem %s2, %s514
      // Predicated region
      $region29: #{distiller_forward.11} parent=27 // pred_check
        %p516 = pneg %p99
      $region30: #{distiller_forward.11} parent=27 // pred_check_branch
        %518 = sbr.rel (%p516) target = $region32
      $region31: #{distiller_forward.11} parent=27 // pred_region
        _
      $region32: #{distiller_forward.11} parent=27 // pred_fallthru
        _
    $region28: #{distiller_forward.11} parent=5 // pred_fallthru
      _
    %p519 = scmp.le.s32.totalorder 2, %s8
    // Predicated region
    $region33: #{distiller_forward.11} parent=5 // pred_check
      %p520 = pneg %p519
    $region34: #{distiller_forward.11} parent=5 // pred_check_branch
      %522 = sbr.rel (%p520) target = $region36
    $region35: #{distiller_forward.11} parent=5 // pred_region
      %s523 = ssub.s32 %s8, 2
      // Predicated region
      $region37: #{distiller_forward.11} parent=35 // pred_check
        %p524 = pneg %p105
      $region38: #{distiller_forward.11} parent=35 // pred_check_branch
        %526 = sbr.rel (%p524) target = $region40
      $region39: #{distiller_forward.11} parent=35 // pred_region
        %p527 = scmp.lt.s32.totalorder %s19, 1
        %s528 = scalar_select %p527, %s19, 1
        %p529 = scmp.lt.s32.totalorder %s20, 0
        %s530 = scalar_select %p529, %s20, 0
        %s531 = smul.addr %s528, 4
        %s532 = sadd.s32 %s530, %s531
        %s533 = smul.addr %s532, 4
        %s534 = scalar_lea.vmem %s2, %s533
      $region40: #{distiller_forward.11} parent=35 // pred_fallthru
        _
    $region36: #{distiller_forward.11} parent=5 // pred_fallthru
      _
  $region6: #{distiller_forward.11} parent=0 // loop_footer
    %s12 = sadd.s32 1, %s8
  $region7: #{distiller_forward.11} parent=0 // loop_footer_branch
    %7 = sbr.rel target = $region3
  $region8: #{distiller_forward.11} parent=0 // loop_exit
    _

// kernel: squeeze.16
$region0: #{squeeze.16}
  %s0 = inlined_call_operand.vmem [shape: bf16[1,16,2,8,8], index: 0, kind: input, shape index: {}]
  %s1 = inlined_call_operand.vmem [shape: bf16[2048], index: 1, kind: output, shape index: {}]
  $region1: #{squeeze.16} parent=0
    #allocation0 [shape = 'u8[8192]{0}', space=vmem, size = 0x2000, scoped, tag = 'scoped mem for output reshape']
    #allocation1 [shape = 'u8[131072]{0}', space=vmem, size = 0x20000, scoped, tag = 'scoped mem for input reshape']
    %s3 = smul.u32 4, 2
    %s4 = sshllo.u32 0, %s3
    %s5 = smul.addr 4, 31
    %s6 = scalar_lea.vmem %s0, %s5
    %s7 = sshrl.u32 %s4, 1
    %s8 = sor.u32 %s4, %s7
    %s9 = sand.u32 %s8, 85
    %s10 = sshrl.u32 %s9, 1
    %s11 = sor.u32 %s9, %s10
    %s12 = sand.u32 51, %s11
    %s13 = sshrl.u32 %s12, 2
    %s14 = sor.u32 %s12, %s13
    %s15 = sand.u32 15, %s14
    %v16 = vld [vmem:[%s6] sm:%s15]
    %v17 = vunpack.c.l.bf16 %v16
    %v18 = vunpack.c.h.bf16 %v16
    %s19 = scalar_lea.vmem [#allocation1], 248
    %20 = vst [vmem:[%s19] sm:%s4] %v17
    %s21 = smul.addr 4, 30
    %s22 = scalar_lea.vmem %s0, %s21
    %s23 = sshrl.u32 %s4, 1
    %s24 = sor.u32 %s4, %s23
    %s25 = sand.u32 %s24, 85
    %s26 = sshrl.u32 %s25, 1
    %s27 = sor.u32 %s25, %s26
    %s28 = sand.u32 51, %s27
    %s29 = sshrl.u32 %s28, 2
    %s30 = sor.u32 %s28, %s29
    %s31 = sand.u32 15, %s30
    %v32 = vld [vmem:[%s22] sm:%s31]
    %v33 = vunpack.c.l.bf16 %v32
    %v34 = vunpack.c.h.bf16 %v32
    %s35 = scalar_lea.vmem [#allocation1], 240
    %36 = vst [vmem:[%s35] sm:%s4] %v33
    %s37 = smul.addr 4, 29
    %s38 = scalar_lea.vmem %s0, %s37
    %s39 = sshrl.u32 %s4, 1
    %s40 = sor.u32 %s4, %s39
    %s41 = sand.u32 %s40, 85
    %s42 = sshrl.u32 %s41, 1
    %s43 = sor.u32 %s41, %s42
    %s44 = sand.u32 51, %s43
    %s45 = sshrl.u32 %s44, 2
    %s46 = sor.u32 %s44, %s45
    %s47 = sand.u32 15, %s46
    %v48 = vld [vmem:[%s38] sm:%s47]
    %v49 = vunpack.c.l.bf16 %v48
    %v50 = vunpack.c.h.bf16 %v48
    %s51 = scalar_lea.vmem [#allocation1], 232
    %52 = vst [vmem:[%s51] sm:%s4] %v49
    %s53 = smul.addr 4, 28
    %s54 = scalar_lea.vmem %s0, %s53
    %s55 = sshrl.u32 %s4, 1
    %s56 = sor.u32 %s4, %s55
    %s57 = sand.u32 %s56, 85
    %s58 = sshrl.u32 %s57, 1
    %s59 = sor.u32 %s57, %s58
    %s60 = sand.u32 51, %s59
    %s61 = sshrl.u32 %s60, 2
    %s62 = sor.u32 %s60, %s61
    %s63 = sand.u32 15, %s62
    %v64 = vld [vmem:[%s54] sm:%s63]
    %v65 = vunpack.c.l.bf16 %v64
    %v66 = vunpack.c.h.bf16 %v64
    %s67 = scalar_lea.vmem [#allocation1], 224
    %68 = vst [vmem:[%s67] sm:%s4] %v65
    %s69 = smul.addr 4, 27
    %s70 = scalar_lea.vmem %s0, %s69
    %s71 = sshrl.u32 %s4, 1
    %s72 = sor.u32 %s4, %s71
    %s73 = sand.u32 %s72, 85
    %s74 = sshrl.u32 %s73, 1
    %s75 = sor.u32 %s73, %s74
    %s76 = sand.u32 51, %s75
    %s77 = sshrl.u32 %s76, 2
    %s78 = sor.u32 %s76, %s77
    %s79 = sand.u32 15, %s78
    %v80 = vld [vmem:[%s70] sm:%s79]
    %v81 = vunpack.c.l.bf16 %v80
    %v82 = vunpack.c.h.bf16 %v80
    %s83 = scalar_lea.vmem [#allocation1], 216
    %84 = vst [vmem:[%s83] sm:%s4] %v81
    %s85 = smul.addr 4, 26
    %s86 = scalar_lea.vmem %s0, %s85
    %s87 = sshrl.u32 %s4, 1
    %s88 = sor.u32 %s4, %s87
    %s89 = sand.u32 %s88, 85
    %s90 = sshrl.u32 %s89, 1
    %s91 = sor.u32 %s89, %s90
    %s92 = sand.u32 51, %s91
    %s93 = sshrl.u32 %s92, 2
    %s94 = sor.u32 %s92, %s93
    %s95 = sand.u32 15, %s94
    %v96 = vld [vmem:[%s86] sm:%s95]
    %v97 = vunpack.c.l.bf16 %v96
    %v98 = vunpack.c.h.bf16 %v96
    %s99 = scalar_lea.vmem [#allocation1], 208
    %100 = vst [vmem:[%s99] sm:%s4] %v97
    %s101 = smul.addr 4, 25
    %s102 = scalar_lea.vmem %s0, %s101
    %s103 = sshrl.u32 %s4, 1
    %s104 = sor.u32 %s4, %s103
    %s105 = sand.u32 %s104, 85
    %s106 = sshrl.u32 %s105, 1
    %s107 = sor.u32 %s105, %s106
    %s108 = sand.u32 51, %s107
    %s109 = sshrl.u32 %s108, 2
    %s110 = sor.u32 %s108, %s109
    %s111 = sand.u32 15, %s110
    %v112 = vld [vmem:[%s102] sm:%s111]
    %v113 = vunpack.c.l.bf16 %v112
    %v114 = vunpack.c.h.bf16 %v112
    %s115 = scalar_lea.vmem [#allocation1], 200
    %116 = vst [vmem:[%s115] sm:%s4] %v113
    %s117 = smul.addr 4, 24
    %s118 = scalar_lea.vmem %s0, %s117
    %s119 = sshrl.u32 %s4, 1
    %s120 = sor.u32 %s4, %s119
    %s121 = sand.u32 %s120, 85
    %s122 = sshrl.u32 %s121, 1
    %s123 = sor.u32 %s121, %s122
    %s124 = sand.u32 51, %s123
    %s125 = sshrl.u32 %s124, 2
    %s126 = sor.u32 %s124, %s125
    %s127 = sand.u32 15, %s126
    %v128 = vld [vmem:[%s118] sm:%s127]
    %v129 = vunpack.c.l.bf16 %v128
    %v130 = vunpack.c.h.bf16 %v128
    %s131 = scalar_lea.vmem [#allocation1], 192
    %132 = vst [vmem:[%s131] sm:%s4] %v129
    %s133 = smul.addr 4, 23
    %s134 = scalar_lea.vmem %s0, %s133
    %s135 = sshrl.u32 %s4, 1
    %s136 = sor.u32 %s4, %s135
    %s137 = sand.u32 %s136, 85
    %s138 = sshrl.u32 %s137, 1
    %s139 = sor.u32 %s137, %s138
    %s140 = sand.u32 51, %s139
    %s141 = sshrl.u32 %s140, 2
    %s142 = sor.u32 %s140, %s141
    %s143 = sand.u32 15, %s142
    %v144 = vld [vmem:[%s134] sm:%s143]
    %v145 = vunpack.c.l.bf16 %v144
    %v146 = vunpack.c.h.bf16 %v144
    %s147 = scalar_lea.vmem [#allocation1], 184
    %148 = vst [vmem:[%s147] sm:%s4] %v145
    %s149 = smul.addr 4, 22
    %s150 = scalar_lea.vmem %s0, %s149
    %s151 = sshrl.u32 %s4, 1
    %s152 = sor.u32 %s4, %s151
    %s153 = sand.u32 %s152, 85
    %s154 = sshrl.u32 %s153, 1
    %s155 = sor.u32 %s153, %s154
    %s156 = sand.u32 51, %s155
    %s157 = sshrl.u32 %s156, 2
    %s158 = sor.u32 %s156, %s157
    %s159 = sand.u32 15, %s158
    %v160 = vld [vmem:[%s150] sm:%s159]
    %v161 = vunpack.c.l.bf16 %v160
    %v162 = vunpack.c.h.bf16 %v160
    %s163 = scalar_lea.vmem [#allocation1], 176
    %164 = vst [vmem:[%s163] sm:%s4] %v161
    %s165 = smul.addr 4, 21
    %s166 = scalar_lea.vmem %s0, %s165
    %s167 = sshrl.u32 %s4, 1
    %s168 = sor.u32 %s4, %s167
    %s169 = sand.u32 %s168, 85
    %s170 = sshrl.u32 %s169, 1
    %s171 = sor.u32 %s169, %s170
    %s172 = sand.u32 51, %s171
    %s173 = sshrl.u32 %s172, 2
    %s174 = sor.u32 %s172, %s173
    %s175 = sand.u32 15, %s174
    %v176 = vld [vmem:[%s166] sm:%s175]
    %v177 = vunpack.c.l.bf16 %v176
    %v178 = vunpack.c.h.bf16 %v176
    %s179 = scalar_lea.vmem [#allocation1], 168
    %180 = vst [vmem:[%s179] sm:%s4] %v177
    %s181 = smul.addr 4, 20
    %s182 = scalar_lea.vmem %s0, %s181
    %s183 = sshrl.u32 %s4, 1
    %s184 = sor.u32 %s4, %s183
    %s185 = sand.u32 %s184, 85
    %s186 = sshrl.u32 %s185, 1
    %s187 = sor.u32 %s185, %s186
    %s188 = sand.u32 51, %s187
    %s189 = sshrl.u32 %s188, 2
    %s190 = sor.u32 %s188, %s189
    %s191 = sand.u32 15, %s190
    %v192 = vld [vmem:[%s182] sm:%s191]
    %v193 = vunpack.c.l.bf16 %v192
    %v194 = vunpack.c.h.bf16 %v192
    %s195 = scalar_lea.vmem [#allocation1], 160
    %196 = vst [vmem:[%s195] sm:%s4] %v193
    %s197 = smul.addr 4, 19
    %s198 = scalar_lea.vmem %s0, %s197
    %s199 = sshrl.u32 %s4, 1
    %s200 = sor.u32 %s4, %s199
    %s201 = sand.u32 %s200, 85
    %s202 = sshrl.u32 %s201, 1
    %s203 = sor.u32 %s201, %s202
    %s204 = sand.u32 51, %s203
    %s205 = sshrl.u32 %s204, 2
    %s206 = sor.u32 %s204, %s205
    %s207 = sand.u32 15, %s206
    %v208 = vld [vmem:[%s198] sm:%s207]
    %v209 = vunpack.c.l.bf16 %v208
    %v210 = vunpack.c.h.bf16 %v208
    %s211 = scalar_lea.vmem [#allocation1], 152
    %212 = vst [vmem:[%s211] sm:%s4] %v209
    %s213 = smul.addr 4, 18
    %s214 = scalar_lea.vmem %s0, %s213
    %s215 = sshrl.u32 %s4, 1
    %s216 = sor.u32 %s4, %s215
    %s217 = sand.u32 %s216, 85
    %s218 = sshrl.u32 %s217, 1
    %s219 = sor.u32 %s217, %s218
    %s220 = sand.u32 51, %s219
    %s221 = sshrl.u32 %s220, 2
    %s222 = sor.u32 %s220, %s221
    %s223 = sand.u32 15, %s222
    %v224 = vld [vmem:[%s214] sm:%s223]
    %v225 = vunpack.c.l.bf16 %v224
    %v226 = vunpack.c.h.bf16 %v224
    %s227 = scalar_lea.vmem [#allocation1], 144
    %228 = vst [vmem:[%s227] sm:%s4] %v225
    %s229 = smul.addr 4, 17
    %s230 = scalar_lea.vmem %s0, %s229
    %s231 = sshrl.u32 %s4, 1
    %s232 = sor.u32 %s4, %s231
    %s233 = sand.u32 %s232, 85
    %s234 = sshrl.u32 %s233, 1
    %s235 = sor.u32 %s233, %s234
    %s236 = sand.u32 51, %s235
    %s237 = sshrl.u32 %s236, 2
    %s238 = sor.u32 %s236, %s237
    %s239 = sand.u32 15, %s238
    %v240 = vld [vmem:[%s230] sm:%s239]
    %v241 = vunpack.c.l.bf16 %v240
    %v242 = vunpack.c.h.bf16 %v240
    %s243 = scalar_lea.vmem [#allocation1], 136
    %244 = vst [vmem:[%s243] sm:%s4] %v241
    %s245 = smul.addr 4, 16
    %s246 = scalar_lea.vmem %s0, %s245
    %s247 = sshrl.u32 %s4, 1
    %s248 = sor.u32 %s4, %s247
    %s249 = sand.u32 %s248, 85
    %s250 = sshrl.u32 %s249, 1
    %s251 = sor.u32 %s249, %s250
    %s252 = sand.u32 51, %s251
    %s253 = sshrl.u32 %s252, 2
    %s254 = sor.u32 %s252, %s253
    %s255 = sand.u32 15, %s254
    %v256 = vld [vmem:[%s246] sm:%s255]
    %v257 = vunpack.c.l.bf16 %v256
    %v258 = vunpack.c.h.bf16 %v256
    %s259 = scalar_lea.vmem [#allocation1], 128
    %260 = vst [vmem:[%s259] sm:%s4] %v257
    %s261 = smul.addr 4, 15
    %s262 = scalar_lea.vmem %s0, %s261
    %s263 = sshrl.u32 %s4, 1
    %s264 = sor.u32 %s4, %s263
    %s265 = sand.u32 %s264, 85
    %s266 = sshrl.u32 %s265, 1
    %s267 = sor.u32 %s265, %s266
    %s268 = sand.u32 51, %s267
    %s269 = sshrl.u32 %s268, 2
    %s270 = sor.u32 %s268, %s269
    %s271 = sand.u32 15, %s270
    %v272 = vld [vmem:[%s262] sm:%s271]
    %v273 = vunpack.c.l.bf16 %v272
    %v274 = vunpack.c.h.bf16 %v272
    %s275 = scalar_lea.vmem [#allocation1], 120
    %276 = vst [vmem:[%s275] sm:%s4] %v273
    %s277 = smul.addr 4, 14
    %s278 = scalar_lea.vmem %s0, %s277
    %s279 = sshrl.u32 %s4, 1
    %s280 = sor.u32 %s4, %s279
    %s281 = sand.u32 %s280, 85
    %s282 = sshrl.u32 %s281, 1
    %s283 = sor.u32 %s281, %s282
    %s284 = sand.u32 51, %s283
    %s285 = sshrl.u32 %s284, 2
    %s286 = sor.u32 %s284, %s285
    %s287 = sand.u32 15, %s286
    %v288 = vld [vmem:[%s278] sm:%s287]
    %v289 = vunpack.c.l.bf16 %v288
    %v290 = vunpack.c.h.bf16 %v288
    %s291 = scalar_lea.vmem [#allocation1], 112
    %292 = vst [vmem:[%s291] sm:%s4] %v289
    %s293 = smul.addr 4, 13
    %s294 = scalar_lea.vmem %s0, %s293
    %s295 = sshrl.u32 %s4, 1
    %s296 = sor.u32 %s4, %s295
    %s297 = sand.u32 %s296, 85
    %s298 = sshrl.u32 %s297, 1
    %s299 = sor.u32 %s297, %s298
    %s300 = sand.u32 51, %s299
    %s301 = sshrl.u32 %s300, 2
    %s302 = sor.u32 %s300, %s301
    %s303 = sand.u32 15, %s302
    %v304 = vld [vmem:[%s294] sm:%s303]
    %v305 = vunpack.c.l.bf16 %v304
    %v306 = vunpack.c.h.bf16 %v304
    %s307 = scalar_lea.vmem [#allocation1], 104
    %308 = vst [vmem:[%s307] sm:%s4] %v305
    %s309 = smul.addr 4, 12
    %s310 = scalar_lea.vmem %s0, %s309
    %s311 = sshrl.u32 %s4, 1
    %s312 = sor.u32 %s4, %s311
    %s313 = sand.u32 %s312, 85
    %s314 = sshrl.u32 %s313, 1
    %s315 = sor.u32 %s313, %s314
    %s316 = sand.u32 51, %s315
    %s317 = sshrl.u32 %s316, 2
    %s318 = sor.u32 %s316, %s317
    %s319 = sand.u32 15, %s318
    %v320 = vld [vmem:[%s310] sm:%s319]
    %v321 = vunpack.c.l.bf16 %v320
    %v322 = vunpack.c.h.bf16 %v320
    %s323 = scalar_lea.vmem [#allocation1], 96
    %324 = vst [vmem:[%s323] sm:%s4] %v321
    %s325 = smul.addr 4, 11
    %s326 = scalar_lea.vmem %s0, %s325
    %s327 = sshrl.u32 %s4, 1
    %s328 = sor.u32 %s4, %s327
    %s329 = sand.u32 %s328, 85
    %s330 = sshrl.u32 %s329, 1
    %s331 = sor.u32 %s329, %s330
    %s332 = sand.u32 51, %s331
    %s333 = sshrl.u32 %s332, 2
    %s334 = sor.u32 %s332, %s333
    %s335 = sand.u32 15, %s334
    %v336 = vld [vmem:[%s326] sm:%s335]
    %v337 = vunpack.c.l.bf16 %v336
    %v338 = vunpack.c.h.bf16 %v336
    %s339 = scalar_lea.vmem [#allocation1], 88
    %340 = vst [vmem:[%s339] sm:%s4] %v337
    %s341 = smul.addr 4, 10
    %s342 = scalar_lea.vmem %s0, %s341
    %s343 = sshrl.u32 %s4, 1
    %s344 = sor.u32 %s4, %s343
    %s345 = sand.u32 %s344, 85
    %s346 = sshrl.u32 %s345, 1
    %s347 = sor.u32 %s345, %s346
    %s348 = sand.u32 51, %s347
    %s349 = sshrl.u32 %s348, 2
    %s350 = sor.u32 %s348, %s349
    %s351 = sand.u32 15, %s350
    %v352 = vld [vmem:[%s342] sm:%s351]
    %v353 = vunpack.c.l.bf16 %v352
    %v354 = vunpack.c.h.bf16 %v352
    %s355 = scalar_lea.vmem [#allocation1], 80
    %356 = vst [vmem:[%s355] sm:%s4] %v353
    %s357 = smul.addr 4, 9
    %s358 = scalar_lea.vmem %s0, %s357
    %s359 = sshrl.u32 %s4, 1
    %s360 = sor.u32 %s4, %s359
    %s361 = sand.u32 %s360, 85
    %s362 = sshrl.u32 %s361, 1
    %s363 = sor.u32 %s361, %s362
    %s364 = sand.u32 51, %s363
    %s365 = sshrl.u32 %s364, 2
    %s366 = sor.u32 %s364, %s365
    %s367 = sand.u32 15, %s366
    %v368 = vld [vmem:[%s358] sm:%s367]
    %v369 = vunpack.c.l.bf16 %v368
    %v370 = vunpack.c.h.bf16 %v368
    %s371 = scalar_lea.vmem [#allocation1], 72
    %372 = vst [vmem:[%s371] sm:%s4] %v369
    %s373 = smul.addr 4, 8
    %s374 = scalar_lea.vmem %s0, %s373
    %s375 = sshrl.u32 %s4, 1
    %s376 = sor.u32 %s4, %s375
    %s377 = sand.u32 %s376, 85
    %s378 = sshrl.u32 %s377, 1
    %s379 = sor.u32 %s377, %s378
    %s380 = sand.u32 51, %s379
    %s381 = sshrl.u32 %s380, 2
    %s382 = sor.u32 %s380, %s381
    %s383 = sand.u32 15, %s382
    %v384 = vld [vmem:[%s374] sm:%s383]
    %v385 = vunpack.c.l.bf16 %v384
    %v386 = vunpack.c.h.bf16 %v384
    %s387 = scalar_lea.vmem [#allocation1], 64
    %388 = vst [vmem:[%s387] sm:%s4] %v385
    %s389 = smul.addr 4, 7
    %s390 = scalar_lea.vmem %s0, %s389
    %s391 = sshrl.u32 %s4, 1
    %s392 = sor.u32 %s4, %s391
    %s393 = sand.u32 %s392, 85
    %s394 = sshrl.u32 %s393, 1
    %s395 = sor.u32 %s393, %s394
    %s396 = sand.u32 51, %s395
    %s397 = sshrl.u32 %s396, 2
    %s398 = sor.u32 %s396, %s397
    %s399 = sand.u32 15, %s398
    %v400 = vld [vmem:[%s390] sm:%s399]
    %v401 = vunpack.c.l.bf16 %v400
    %v402 = vunpack.c.h.bf16 %v400
    %s403 = scalar_lea.vmem [#allocation1], 56
    %404 = vst [vmem:[%s403] sm:%s4] %v401
    %s405 = smul.addr 4, 6
    %s406 = scalar_lea.vmem %s0, %s405
    %s407 = sshrl.u32 %s4, 1
    %s408 = sor.u32 %s4, %s407
    %s409 = sand.u32 %s408, 85
    %s410 = sshrl.u32 %s409, 1
    %s411 = sor.u32 %s409, %s410
    %s412 = sand.u32 51, %s411
    %s413 = sshrl.u32 %s412, 2
    %s414 = sor.u32 %s412, %s413
    %s415 = sand.u32 15, %s414
    %v416 = vld [vmem:[%s406] sm:%s415]
    %v417 = vunpack.c.l.bf16 %v416
    %v418 = vunpack.c.h.bf16 %v416
    %s419 = scalar_lea.vmem [#allocation1], 48
    %420 = vst [vmem:[%s419] sm:%s4] %v417
    %s421 = smul.addr 4, 5
    %s422 = scalar_lea.vmem %s0, %s421
    %s423 = sshrl.u32 %s4, 1
    %s424 = sor.u32 %s4, %s423
    %s425 = sand.u32 %s424, 85
    %s426 = sshrl.u32 %s425, 1
    %s427 = sor.u32 %s425, %s426
    %s428 = sand.u32 51, %s427
    %s429 = sshrl.u32 %s428, 2
    %s430 = sor.u32 %s428, %s429
    %s431 = sand.u32 15, %s430
    %v432 = vld [vmem:[%s422] sm:%s431]
    %v433 = vunpack.c.l.bf16 %v432
    %v434 = vunpack.c.h.bf16 %v432
    %s435 = scalar_lea.vmem [#allocation1], 40
    %436 = vst [vmem:[%s435] sm:%s4] %v433
    %s437 = smul.addr 4, 4
    %s438 = scalar_lea.vmem %s0, %s437
    %s439 = sshrl.u32 %s4, 1
    %s440 = sor.u32 %s4, %s439
    %s441 = sand.u32 %s440, 85
    %s442 = sshrl.u32 %s441, 1
    %s443 = sor.u32 %s441, %s442
    %s444 = sand.u32 51, %s443
    %s445 = sshrl.u32 %s444, 2
    %s446 = sor.u32 %s444, %s445
    %s447 = sand.u32 15, %s446
    %v448 = vld [vmem:[%s438] sm:%s447]
    %v449 = vunpack.c.l.bf16 %v448
    %v450 = vunpack.c.h.bf16 %v448
    %s451 = scalar_lea.vmem [#allocation1], 32
    %452 = vst [vmem:[%s451] sm:%s4] %v449
    %s453 = smul.addr 4, 3
    %s454 = scalar_lea.vmem %s0, %s453
    %s455 = sshrl.u32 %s4, 1
    %s456 = sor.u32 %s4, %s455
    %s457 = sand.u32 %s456, 85
    %s458 = sshrl.u32 %s457, 1
    %s459 = sor.u32 %s457, %s458
    %s460 = sand.u32 51, %s459
    %s461 = sshrl.u32 %s460, 2
    %s462 = sor.u32 %s460, %s461
    %s463 = sand.u32 15, %s462
    %v464 = vld [vmem:[%s454] sm:%s463]
    %v465 = vunpack.c.l.bf16 %v464
    %v466 = vunpack.c.h.bf16 %v464
    %s467 = scalar_lea.vmem [#allocation1], 24
    %468 = vst [vmem:[%s467] sm:%s4] %v465
    %s469 = smul.addr 4, 2
    %s470 = scalar_lea.vmem %s0, %s469
    %s471 = sshrl.u32 %s4, 1
    %s472 = sor.u32 %s4, %s471
    %s473 = sand.u32 %s472, 85
    %s474 = sshrl.u32 %s473, 1
    %s475 = sor.u32 %s473, %s474
    %s476 = sand.u32 51, %s475
    %s477 = sshrl.u32 %s476, 2
    %s478 = sor.u32 %s476, %s477
    %s479 = sand.u32 15, %s478
    %v480 = vld [vmem:[%s470] sm:%s479]
    %v481 = vunpack.c.l.bf16 %v480
    %v482 = vunpack.c.h.bf16 %v480
    %s483 = scalar_lea.vmem [#allocation1], 16
    %484 = vst [vmem:[%s483] sm:%s4] %v481
    %s485 = scalar_lea.vmem %s0, 4
    %s486 = sshrl.u32 %s4, 1
    %s487 = sor.u32 %s4, %s486
    %s488 = sand.u32 %s487, 85
    %s489 = sshrl.u32 %s488, 1
    %s490 = sor.u32 %s488, %s489
    %s491 = sand.u32 51, %s490
    %s492 = sshrl.u32 %s491, 2
    %s493 = sor.u32 %s491, %s492
    %s494 = sand.u32 15, %s493
    %v495 = vld [vmem:[%s485] sm:%s494]
    %v496 = vunpack.c.l.bf16 %v495
    %v497 = vunpack.c.h.bf16 %v495
    %s498 = scalar_lea.vmem [#allocation1], 8
    %499 = vst [vmem:[%s498] sm:%s4] %v496
    %s500 = sshrl.u32 %s4, 1
    %s501 = sor.u32 %s4, %s500
    %s502 = sand.u32 %s501, 85
    %s503 = sshrl.u32 %s502, 1
    %s504 = sor.u32 %s502, %s503
    %s505 = sand.u32 51, %s504
    %s506 = sshrl.u32 %s505, 2
    %s507 = sor.u32 %s505, %s506
    %s508 = sand.u32 15, %s507
    %v509 = vld [vmem:[%s0] sm:%s508]
    %v510 = vunpack.c.l.bf16 %v509
    %v511 = vunpack.c.h.bf16 %v509
    %512 = vst [vmem:[#allocation1] sm:%s4] %v510
    %s513 = smov 3
    %v514 = vld [vmem:[#allocation1] ss:$16 sm:%s513]
    %s515 = smov 12
    %v516 = vld [vmem:[#allocation1] ss:$16 sm:%s515]
    %vm517 = vcmask 1043458
    %v518 = vsel %vm517, %v516, %v514
    %s519 = smov 48
    %v520 = vld [vmem:[#allocation1] ss:$16 sm:%s519]
    %vm521 = vcmask 1045508
    %v522 = vsel %vm521, %v520, %v518
    %s523 = smov 192
    %v524 = vld [vmem:[#allocation1] ss:$16 sm:%s523]
    %vm525 = vcmask 1047558
    %v526 = vsel %vm525, %v524, %v522
    %vm527 = vcmask 64512
    %528 = vst.msk [vmem:[#allocation0] sm:$0xff] %vm527, %v526
    %s529 = scalar_lea.vmem [#allocation1], 128
    %s530 = smov 3
    %v531 = vld [vmem:[%s529] ss:$16 sm:%s530]
    %s532 = scalar_lea.vmem [#allocation1], 128
    %s533 = smov 12
    %v534 = vld [vmem:[%s532] ss:$16 sm:%s533]
    %vm535 = vcmask 1043458
    %v536 = vsel %vm535, %v534, %v531
    %s537 = scalar_lea.vmem [#allocation1], 128
    %s538 = smov 48
    %v539 = vld [vmem:[%s537] ss:$16 sm:%s538]
    %vm540 = vcmask 1045508
    %v541 = vsel %vm540, %v539, %v536
    %s542 = scalar_lea.vmem [#allocation1], 128
    %s543 = smov 192
    %v544 = vld [vmem:[%s542] ss:$16 sm:%s543]
    %vm545 = vcmask 1047558
    %v546 = vsel %vm545, %v544, %v541
    %vm547 = vcmask 64512
    %s548 = scalar_lea.vmem [#allocation0], 8
    %549 = vst.msk [vmem:[%s548] sm:$0xff] %vm547, %v546
    %s550 = scalar_lea.vmem [#allocation1], 15
    %s551 = smov 3
    %v552 = vld [vmem:[%s550] ss:$16 sm:%s551]
    %s553 = scalar_lea.vmem [#allocation1], 15
    %s554 = smov 12
    %v555 = vld [vmem:[%s553] ss:$16 sm:%s554]
    %vm556 = vcmask 1043458
    %v557 = vsel %vm556, %v555, %v552
    %s558 = scalar_lea.vmem [#allocation1], 15
    %s559 = smov 48
    %v560 = vld [vmem:[%s558] ss:$16 sm:%s559]
    %vm561 = vcmask 1045508
    %v562 = vsel %vm561, %v560, %v557
    %s563 = scalar_lea.vmem [#allocation1], 15
    %s564 = smov 192
    %v565 = vld [vmem:[%s563] ss:$16 sm:%s564]
    %vm566 = vcmask 1047558
    %v567 = vsel %vm566, %v565, %v562
    %568 = vrot.lane.b32.xlu0 %v567, 120
    %v569 = vpop.permute.xlu0 %568
    %vm570 = vcmask 1048512
    %571 = vst.msk [vmem:[#allocation0] sm:$0xff] %vm570, %v569
    %s572 = scalar_lea.vmem [#allocation1], 143
    %s573 = smov 3
    %v574 = vld [vmem:[%s572] ss:$16 sm:%s573]
    %s575 = scalar_lea.vmem [#allocation1], 143
    %s576 = smov 12
    %v577 = vld [vmem:[%s575] ss:$16 sm:%s576]
    %vm578 = vcmask 1043458
    %v579 = vsel %vm578, %v577, %v574
    %s580 = scalar_lea.vmem [#allocation1], 143
    %s581 = smov 48
    %v582 = vld [vmem:[%s580] ss:$16 sm:%s581]
    %vm583 = vcmask 1045508
    %v584 = vsel %vm583, %v582, %v579
    %s585 = scalar_lea.vmem [#allocation1], 143
    %s586 = smov 192
    %v587 = vld [vmem:[%s585] ss:$16 sm:%s586]
    %vm588 = vcmask 1047558
    %v589 = vsel %vm588, %v587, %v584
    %590 = vrot.lane.b32.xlu0 %v589, 120
    %v591 = vpop.permute.xlu0 %590
    %vm592 = vcmask 1048512
    %s593 = scalar_lea.vmem [#allocation0], 8
    %594 = vst.msk [vmem:[%s593] sm:$0xff] %vm592, %v591
    %s595 = scalar_lea.vmem [#allocation1], 14
    %s596 = smov 3
    %v597 = vld [vmem:[%s595] ss:$16 sm:%s596]
    %s598 = scalar_lea.vmem [#allocation1], 14
    %s599 = smov 12
    %v600 = vld [vmem:[%s598] ss:$16 sm:%s599]
    %vm601 = vcmask 1043458
    %v602 = vsel %vm601, %v600, %v597
    %s603 = scalar_lea.vmem [#allocation1], 14
    %s604 = smov 48
    %v605 = vld [vmem:[%s603] ss:$16 sm:%s604]
    %vm606 = vcmask 1045508
    %v607 = vsel %vm606, %v605, %v602
    %s608 = scalar_lea.vmem [#allocation1], 14
    %s609 = smov 192
    %v610 = vld [vmem:[%s608] ss:$16 sm:%s609]
    %vm611 = vcmask 1047558
    %v612 = vsel %vm611, %v610, %v607
    %613 = vrot.lane.b32.xlu0 %v612, 112
    %v614 = vpop.permute.xlu0 %613
    %vm615 = vcmask 982912
    %616 = vst.msk [vmem:[#allocation0] sm:$0xff] %vm615, %v614
    %s617 = scalar_lea.vmem [#allocation1], 142
    %s618 = smov 3
    %v619 = vld [vmem:[%s617] ss:$16 sm:%s618]
    %s620 = scalar_lea.vmem [#allocation1], 142
    %s621 = smov 12
    %v622 = vld [vmem:[%s620] ss:$16 sm:%s621]
    %vm623 = vcmask 1043458
    %v624 = vsel %vm623, %v622, %v619
    %s625 = scalar_lea.vmem [#allocation1], 142
    %s626 = smov 48
    %v627 = vld [vmem:[%s625] ss:$16 sm:%s626]
    %vm628 = vcmask 1045508
    %v629 = vsel %vm628, %v627, %v624
    %s630 = scalar_lea.vmem [#allocation1], 142
    %s631 = smov 192
    %v632 = vld [vmem:[%s630] ss:$16 sm:%s631]
    %vm633 = vcmask 1047558
    %v634 = vsel %vm633, %v632, %v629
    %635 = vrot.lane.b32.xlu0 %v634, 112
    %v636 = vpop.permute.xlu0 %635
    %vm637 = vcmask 982912
    %s638 = scalar_lea.vmem [#allocation0], 8
    %639 = vst.msk [vmem:[%s638] sm:$0xff] %vm637, %v636
    %s640 = scalar_lea.vmem [#allocation1], 13
    %s641 = smov 3
    %v642 = vld [vmem:[%s640] ss:$16 sm:%s641]
    %s643 = scalar_lea.vmem [#allocation1], 13
    %s644 = smov 12
    %v645 = vld [vmem:[%s643] ss:$16 sm:%s644]
    %vm646 = vcmask 1043458
    %v647 = vsel %vm646, %v645, %v642
    %s648 = scalar_lea.vmem [#allocation1], 13
    %s649 = smov 48
    %v650 = vld [vmem:[%s648] ss:$16 sm:%s649]
    %vm651 = vcmask 1045508
    %v652 = vsel %vm651, %v650, %v647
    %s653 = scalar_lea.vmem [#allocation1], 13
    %s654 = smov 192
    %v655 = vld [vmem:[%s653] ss:$16 sm:%s654]
    %vm656 = vcmask 1047558
    %v657 = vsel %vm656, %v655, %v652
    %658 = vrot.lane.b32.xlu0 %v657, 104
    %v659 = vpop.permute.xlu0 %658
    %vm660 = vcmask 917312
    %661 = vst.msk [vmem:[#allocation0] sm:$0xff] %vm660, %v659
    %s662 = scalar_lea.vmem [#allocation1], 141
    %s663 = smov 3
    %v664 = vld [vmem:[%s662] ss:$16 sm:%s663]
    %s665 = scalar_lea.vmem [#allocation1], 141
    %s666 = smov 12
    %v667 = vld [vmem:[%s665] ss:$16 sm:%s666]
    %vm668 = vcmask 1043458
    %v669 = vsel %vm668, %v667, %v664
    %s670 = scalar_lea.vmem [#allocation1], 141
    %s671 = smov 48
    %v672 = vld [vmem:[%s670] ss:$16 sm:%s671]
    %vm673 = vcmask 1045508
    %v674 = vsel %vm673, %v672, %v669
    %s675 = scalar_lea.vmem [#allocation1], 141
    %s676 = smov 192
    %v677 = vld [vmem:[%s675] ss:$16 sm:%s676]
    %vm678 = vcmask 1047558
    %v679 = vsel %vm678, %v677, %v674
    %680 = vrot.lane.b32.xlu0 %v679, 104
    %v681 = vpop.permute.xlu0 %680
    %vm682 = vcmask 917312
    %s683 = scalar_lea.vmem [#allocation0], 8
    %684 = vst.msk [vmem:[%s683] sm:$0xff] %vm682, %v681
    %s685 = scalar_lea.vmem [#allocation1], 12
    %s686 = smov 3
    %v687 = vld [vmem:[%s685] ss:$16 sm:%s686]
    %s688 = scalar_lea.vmem [#allocation1], 12
    %s689 = smov 12
    %v690 = vld [vmem:[%s688] ss:$16 sm:%s689]
    %vm691 = vcmask 1043458
    %v692 = vsel %vm691, %v690, %v687
    %s693 = scalar_lea.vmem [#allocation1], 12
    %s694 = smov 48
    %v695 = vld [vmem:[%s693] ss:$16 sm:%s694]
    %vm696 = vcmask 1045508
    %v697 = vsel %vm696, %v695, %v692
    %s698 = scalar_lea.vmem [#allocation1], 12
    %s699 = smov 192
    %v700 = vld [vmem:[%s698] ss:$16 sm:%s699]
    %vm701 = vcmask 1047558
    %v702 = vsel %vm701, %v700, %v697
    %703 = vrot.lane.b32.xlu0 %v702, 96
    %v704 = vpop.permute.xlu0 %703
    %vm705 = vcmask 851712
    %706 = vst.msk [vmem:[#allocation0] sm:$0xff] %vm705, %v704
    %s707 = scalar_lea.vmem [#allocation1], 140
    %s708 = smov 3
    %v709 = vld [vmem:[%s707] ss:$16 sm:%s708]
    %s710 = scalar_lea.vmem [#allocation1], 140
    %s711 = smov 12
    %v712 = vld [vmem:[%s710] ss:$16 sm:%s711]
    %vm713 = vcmask 1043458
    %v714 = vsel %vm713, %v712, %v709
    %s715 = scalar_lea.vmem [#allocation1], 140
    %s716 = smov 48
    %v717 = vld [vmem:[%s715] ss:$16 sm:%s716]
    %vm718 = vcmask 1045508
    %v719 = vsel %vm718, %v717, %v714
    %s720 = scalar_lea.vmem [#allocation1], 140
    %s721 = smov 192
    %v722 = vld [vmem:[%s720] ss:$16 sm:%s721]
    %vm723 = vcmask 1047558
    %v724 = vsel %vm723, %v722, %v719
    %725 = vrot.lane.b32.xlu0 %v724, 96
    %v726 = vpop.permute.xlu0 %725
    %vm727 = vcmask 851712
    %s728 = scalar_lea.vmem [#allocation0], 8
    %729 = vst.msk [vmem:[%s728] sm:$0xff] %vm727, %v726
    %s730 = scalar_lea.vmem [#allocation1], 11
    %s731 = smov 3
    %v732 = vld [vmem:[%s730] ss:$16 sm:%s731]
    %s733 = scalar_lea.vmem [#allocation1], 11
    %s734 = smov 12
    %v735 = vld [vmem:[%s733] ss:$16 sm:%s734]
    %vm736 = vcmask 1043458
    %v737 = vsel %vm736, %v735, %v732
    %s738 = scalar_lea.vmem [#allocation1], 11
    %s739 = smov 48
    %v740 = vld [vmem:[%s738] ss:$16 sm:%s739]
    %vm741 = vcmask 1045508
    %v742 = vsel %vm741, %v740, %v737
    %s743 = scalar_lea.vmem [#allocation1], 11
    %s744 = smov 192
    %v745 = vld [vmem:[%s743] ss:$16 sm:%s744]
    %vm746 = vcmask 1047558
    %v747 = vsel %vm746, %v745, %v742
    %748 = vrot.lane.b32.xlu0 %v747, 88
    %v749 = vpop.permute.xlu0 %748
    %vm750 = vcmask 786112
    %751 = vst.msk [vmem:[#allocation0] sm:$0xff] %vm750, %v749
    %s752 = scalar_lea.vmem [#allocation1], 139
    %s753 = smov 3
    %v754 = vld [vmem:[%s752] ss:$16 sm:%s753]
    %s755 = scalar_lea.vmem [#allocation1], 139
    %s756 = smov 12
    %v757 = vld [vmem:[%s755] ss:$16 sm:%s756]
    %vm758 = vcmask 1043458
    %v759 = vsel %vm758, %v757, %v754
    %s760 = scalar_lea.vmem [#allocation1], 139
    %s761 = smov 48
    %v762 = vld [vmem:[%s760] ss:$16 sm:%s761]
    %vm763 = vcmask 1045508
    %v764 = vsel %vm763, %v762, %v759
    %s765 = scalar_lea.vmem [#allocation1], 139
    %s766 = smov 192
    %v767 = vld [vmem:[%s765] ss:$16 sm:%s766]
    %vm768 = vcmask 1047558
    %v769 = vsel %vm768, %v767, %v764
    %770 = vrot.lane.b32.xlu0 %v769, 88
    %v771 = vpop.permute.xlu0 %770
    %vm772 = vcmask 786112
    %s773 = scalar_lea.vmem [#allocation0], 8
    %774 = vst.msk [vmem:[%s773] sm:$0xff] %vm772, %v771
    %s775 = scalar_lea.vmem [#allocation1], 10
    %s776 = smov 3
    %v777 = vld [vmem:[%s775] ss:$16 sm:%s776]
    %s778 = scalar_lea.vmem [#allocation1], 10
    %s779 = smov 12
    %v780 = vld [vmem:[%s778] ss:$16 sm:%s779]
    %vm781 = vcmask 1043458
    %v782 = vsel %vm781, %v780, %v777
    %s783 = scalar_lea.vmem [#allocation1], 10
    %s784 = smov 48
    %v785 = vld [vmem:[%s783] ss:$16 sm:%s784]
    %vm786 = vcmask 1045508
    %v787 = vsel %vm786, %v785, %v782
    %s788 = scalar_lea.vmem [#allocation1], 10
    %s789 = smov 192
    %v790 = vld [vmem:[%s788] ss:$16 sm:%s789]
    %vm791 = vcmask 1047558
    %v792 = vsel %vm791, %v790, %v787
    %793 = vrot.lane.b32.xlu0 %v792, 80
    %v794 = vpop.permute.xlu0 %793
    %vm795 = vcmask 720512
    %796 = vst.msk [vmem:[#allocation0] sm:$0xff] %vm795, %v794
    %s797 = scalar_lea.vmem [#allocation1], 138
    %s798 = smov 3
    %v799 = vld [vmem:[%s797] ss:$16 sm:%s798]
    %s800 = scalar_lea.vmem [#allocation1], 138
    %s801 = smov 12
    %v802 = vld [vmem:[%s800] ss:$16 sm:%s801]
    %vm803 = vcmask 1043458
    %v804 = vsel %vm803, %v802, %v799
    %s805 = scalar_lea.vmem [#allocation1], 138
    %s806 = smov 48
    %v807 = vld [vmem:[%s805] ss:$16 sm:%s806]
    %vm808 = vcmask 1045508
    %v809 = vsel %vm808, %v807, %v804
    %s810 = scalar_lea.vmem [#allocation1], 138
    %s811 = smov 192
    %v812 = vld [vmem:[%s810] ss:$16 sm:%s811]
    %vm813 = vcmask 1047558
    %v814 = vsel %vm813, %v812, %v809
    %815 = vrot.lane.b32.xlu0 %v814, 80
    %v816 = vpop.permute.xlu0 %815
    %vm817 = vcmask 720512
    %s818 = scalar_lea.vmem [#allocation0], 8
    %819 = vst.msk [vmem:[%s818] sm:$0xff] %vm817, %v816
    %s820 = scalar_lea.vmem [#allocation1], 9
    %s821 = smov 3
    %v822 = vld [vmem:[%s820] ss:$16 sm:%s821]
    %s823 = scalar_lea.vmem [#allocation1], 9
    %s824 = smov 12
    %v825 = vld [vmem:[%s823] ss:$16 sm:%s824]
    %vm826 = vcmask 1043458
    %v827 = vsel %vm826, %v825, %v822
    %s828 = scalar_lea.vmem [#allocation1], 9
    %s829 = smov 48
    %v830 = vld [vmem:[%s828] ss:$16 sm:%s829]
    %vm831 = vcmask 1045508
    %v832 = vsel %vm831, %v830, %v827
    %s833 = scalar_lea.vmem [#allocation1], 9
    %s834 = smov 192
    %v835 = vld [vmem:[%s833] ss:$16 sm:%s834]
    %vm836 = vcmask 1047558
    %v837 = vsel %vm836, %v835, %v832
    %838 = vrot.lane.b32.xlu0 %v837, 72
    %v839 = vpop.permute.xlu0 %838
    %vm840 = vcmask 654912
    %841 = vst.msk [vmem:[#allocation0] sm:$0xff] %vm840, %v839
    %s842 = scalar_lea.vmem [#allocation1], 137
    %s843 = smov 3
    %v844 = vld [vmem:[%s842] ss:$16 sm:%s843]
    %s845 = scalar_lea.vmem [#allocation1], 137
    %s846 = smov 12
    %v847 = vld [vmem:[%s845] ss:$16 sm:%s846]
    %vm848 = vcmask 1043458
    %v849 = vsel %vm848, %v847, %v844
    %s850 = scalar_lea.vmem [#allocation1], 137
    %s851 = smov 48
    %v852 = vld [vmem:[%s850] ss:$16 sm:%s851]
    %vm853 = vcmask 1045508
    %v854 = vsel %vm853, %v852, %v849
    %s855 = scalar_lea.vmem [#allocation1], 137
    %s856 = smov 192
    %v857 = vld [vmem:[%s855] ss:$16 sm:%s856]
    %vm858 = vcmask 1047558
    %v859 = vsel %vm858, %v857, %v854
    %860 = vrot.lane.b32.xlu0 %v859, 72
    %v861 = vpop.permute.xlu0 %860
    %vm862 = vcmask 654912
    %s863 = scalar_lea.vmem [#allocation0], 8
    %864 = vst.msk [vmem:[%s863] sm:$0xff] %vm862, %v861
    %s865 = scalar_lea.vmem [#allocation1], 8
    %s866 = smov 3
    %v867 = vld [vmem:[%s865] ss:$16 sm:%s866]
    %s868 = scalar_lea.vmem [#allocation1], 8
    %s869 = smov 12
    %v870 = vld [vmem:[%s868] ss:$16 sm:%s869]
    %vm871 = vcmask 1043458
    %v872 = vsel %vm871, %v870, %v867
    %s873 = scalar_lea.vmem [#allocation1], 8
    %s874 = smov 48
    %v875 = vld [vmem:[%s873] ss:$16 sm:%s874]
    %vm876 = vcmask 1045508
    %v877 = vsel %vm876, %v875, %v872
    %s878 = scalar_lea.vmem [#allocation1], 8
    %s879 = smov 192
    %v880 = vld [vmem:[%s878] ss:$16 sm:%s879]
    %vm881 = vcmask 1047558
    %v882 = vsel %vm881, %v880, %v877
    %883 = vrot.lane.b32.xlu0 %v882, 64
    %v884 = vpop.permute.xlu0 %883
    %vm885 = vcmask 589312
    %886 = vst.msk [vmem:[#allocation0] sm:$0xff] %vm885, %v884
    %s887 = scalar_lea.vmem [#allocation1], 136
    %s888 = smov 3
    %v889 = vld [vmem:[%s887] ss:$16 sm:%s888]
    %s890 = scalar_lea.vmem [#allocation1], 136
    %s891 = smov 12
    %v892 = vld [vmem:[%s890] ss:$16 sm:%s891]
    %vm893 = vcmask 1043458
    %v894 = vsel %vm893, %v892, %v889
    %s895 = scalar_lea.vmem [#allocation1], 136
    %s896 = smov 48
    %v897 = vld [vmem:[%s895] ss:$16 sm:%s896]
    %vm898 = vcmask 1045508
    %v899 = vsel %vm898, %v897, %v894
    %s900 = scalar_lea.vmem [#allocation1], 136
    %s901 = smov 192
    %v902 = vld [vmem:[%s900] ss:$16 sm:%s901]
    %vm903 = vcmask 1047558
    %v904 = vsel %vm903, %v902, %v899
    %905 = vrot.lane.b32.xlu0 %v904, 64
    %v906 = vpop.permute.xlu0 %905
    %vm907 = vcmask 589312
    %s908 = scalar_lea.vmem [#allocation0], 8
    %909 = vst.msk [vmem:[%s908] sm:$0xff] %vm907, %v906
    %s910 = scalar_lea.vmem [#allocation1], 7
    %s911 = smov 3
    %v912 = vld [vmem:[%s910] ss:$16 sm:%s911]
    %s913 = scalar_lea.vmem [#allocation1], 7
    %s914 = smov 12
    %v915 = vld [vmem:[%s913] ss:$16 sm:%s914]
    %vm916 = vcmask 1043458
    %v917 = vsel %vm916, %v915, %v912
    %s918 = scalar_lea.vmem [#allocation1], 7
    %s919 = smov 48
    %v920 = vld [vmem:[%s918] ss:$16 sm:%s919]
    %vm921 = vcmask 1045508
    %v922 = vsel %vm921, %v920, %v917
    %s923 = scalar_lea.vmem [#allocation1], 7
    %s924 = smov 192
    %v925 = vld [vmem:[%s923] ss:$16 sm:%s924]
    %vm926 = vcmask 1047558
    %v927 = vsel %vm926, %v925, %v922
    %928 = vrot.lane.b32.xlu0 %v927, 56
    %v929 = vpop.permute.xlu0 %928
    %vm930 = vcmask 523712
    %931 = vst.msk [vmem:[#allocation0] sm:$0xff] %vm930, %v929
    %s932 = scalar_lea.vmem [#allocation1], 135
    %s933 = smov 3
    %v934 = vld [vmem:[%s932] ss:$16 sm:%s933]
    %s935 = scalar_lea.vmem [#allocation1], 135
    %s936 = smov 12
    %v937 = vld [vmem:[%s935] ss:$16 sm:%s936]
    %vm938 = vcmask 1043458
    %v939 = vsel %vm938, %v937, %v934
    %s940 = scalar_lea.vmem [#allocation1], 135
    %s941 = smov 48
    %v942 = vld [vmem:[%s940] ss:$16 sm:%s941]
    %vm943 = vcmask 1045508
    %v944 = vsel %vm943, %v942, %v939
    %s945 = scalar_lea.vmem [#allocation1], 135
    %s946 = smov 192
    %v947 = vld [vmem:[%s945] ss:$16 sm:%s946]
    %vm948 = vcmask 1047558
    %v949 = vsel %vm948, %v947, %v944
    %950 = vrot.lane.b32.xlu0 %v949, 56
    %v951 = vpop.permute.xlu0 %950
    %vm952 = vcmask 523712
    %s953 = scalar_lea.vmem [#allocation0], 8
    %954 = vst.msk [vmem:[%s953] sm:$0xff] %vm952, %v951
    %s955 = scalar_lea.vmem [#allocation1], 6
    %s956 = smov 3
    %v957 = vld [vmem:[%s955] ss:$16 sm:%s956]
    %s958 = scalar_lea.vmem [#allocation1], 6
    %s959 = smov 12
    %v960 = vld [vmem:[%s958] ss:$16 sm:%s959]
    %vm961 = vcmask 1043458
    %v962 = vsel %vm961, %v960, %v957
    %s963 = scalar_lea.vmem [#allocation1], 6
    %s964 = smov 48
    %v965 = vld [vmem:[%s963] ss:$16 sm:%s964]
    %vm966 = vcmask 1045508
    %v967 = vsel %vm966, %v965, %v962
    %s968 = scalar_lea.vmem [#allocation1], 6
    %s969 = smov 192
    %v970 = vld [vmem:[%s968] ss:$16 sm:%s969]
    %vm971 = vcmask 1047558
    %v972 = vsel %vm971, %v970, %v967
    %973 = vrot.lane.b32.xlu0 %v972, 48
    %v974 = vpop.permute.xlu0 %973
    %vm975 = vcmask 458112
    %976 = vst.msk [vmem:[#allocation0] sm:$0xff] %vm975, %v974
    %s977 = scalar_lea.vmem [#allocation1], 134
    %s978 = smov 3
    %v979 = vld [vmem:[%s977] ss:$16 sm:%s978]
    %s980 = scalar_lea.vmem [#allocation1], 134
    %s981 = smov 12
    %v982 = vld [vmem:[%s980] ss:$16 sm:%s981]
    %vm983 = vcmask 1043458
    %v984 = vsel %vm983, %v982, %v979
    %s985 = scalar_lea.vmem [#allocation1], 134
    %s986 = smov 48
    %v987 = vld [vmem:[%s985] ss:$16 sm:%s986]
    %vm988 = vcmask 1045508
    %v989 = vsel %vm988, %v987, %v984
    %s990 = scalar_lea.vmem [#allocation1], 134
    %s991 = smov 192
    %v992 = vld [vmem:[%s990] ss:$16 sm:%s991]
    %vm993 = vcmask 1047558
    %v994 = vsel %vm993, %v992, %v989
    %995 = vrot.lane.b32.xlu0 %v994, 48
    %v996 = vpop.permute.xlu0 %995
    %vm997 = vcmask 458112
    %s998 = scalar_lea.vmem [#allocation0], 8
    %999 = vst.msk [vmem:[%s998] sm:$0xff] %vm997, %v996
    %s1000 = scalar_lea.vmem [#allocation1], 5
    %s1001 = smov 3
    %v1002 = vld [vmem:[%s1000] ss:$16 sm:%s1001]
    %s1003 = scalar_lea.vmem [#allocation1], 5
    %s1004 = smov 12
    %v1005 = vld [vmem:[%s1003] ss:$16 sm:%s1004]
    %vm1006 = vcmask 1043458
    %v1007 = vsel %vm1006, %v1005, %v1002
    %s1008 = scalar_lea.vmem [#allocation1], 5
    %s1009 = smov 48
    %v1010 = vld [vmem:[%s1008] ss:$16 sm:%s1009]
    %vm1011 = vcmask 1045508
    %v1012 = vsel %vm1011, %v1010, %v1007
    %s1013 = scalar_lea.vmem [#allocation1], 5
    %s1014 = smov 192
    %v1015 = vld [vmem:[%s1013] ss:$16 sm:%s1014]
    %vm1016 = vcmask 1047558
    %v1017 = vsel %vm1016, %v1015, %v1012
    %1018 = vrot.lane.b32.xlu0 %v1017, 40
    %v1019 = vpop.permute.xlu0 %1018
    %vm1020 = vcmask 392512
    %1021 = vst.msk [vmem:[#allocation0] sm:$0xff] %vm1020, %v1019
    %s1022 = scalar_lea.vmem [#allocation1], 133
    %s1023 = smov 3
    %v1024 = vld [vmem:[%s1022] ss:$16 sm:%s1023]
    %s1025 = scalar_lea.vmem [#allocation1], 133
    %s1026 = smov 12
    %v1027 = vld [vmem:[%s1025] ss:$16 sm:%s1026]
    %vm1028 = vcmask 1043458
    %v1029 = vsel %vm1028, %v1027, %v1024
    %s1030 = scalar_lea.vmem [#allocation1], 133
    %s1031 = smov 48
    %v1032 = vld [vmem:[%s1030] ss:$16 sm:%s1031]
    %vm1033 = vcmask 1045508
    %v1034 = vsel %vm1033, %v1032, %v1029
    %s1035 = scalar_lea.vmem [#allocation1], 133
    %s1036 = smov 192
    %v1037 = vld [vmem:[%s1035] ss:$16 sm:%s1036]
    %vm1038 = vcmask 1047558
    %v1039 = vsel %vm1038, %v1037, %v1034
    %1040 = vrot.lane.b32.xlu0 %v1039, 40
    %v1041 = vpop.permute.xlu0 %1040
    %vm1042 = vcmask 392512
    %s1043 = scalar_lea.vmem [#allocation0], 8
    %1044 = vst.msk [vmem:[%s1043] sm:$0xff] %vm1042, %v1041
    %s1045 = scalar_lea.vmem [#allocation1], 4
    %s1046 = smov 3
    %v1047 = vld [vmem:[%s1045] ss:$16 sm:%s1046]
    %s1048 = scalar_lea.vmem [#allocation1], 4
    %s1049 = smov 12
    %v1050 = vld [vmem:[%s1048] ss:$16 sm:%s1049]
    %vm1051 = vcmask 1043458
    %v1052 = vsel %vm1051, %v1050, %v1047
    %s1053 = scalar_lea.vmem [#allocation1], 4
    %s1054 = smov 48
    %v1055 = vld [vmem:[%s1053] ss:$16 sm:%s1054]
    %vm1056 = vcmask 1045508
    %v1057 = vsel %vm1056, %v1055, %v1052
    %s1058 = scalar_lea.vmem [#allocation1], 4
    %s1059 = smov 192
    %v1060 = vld [vmem:[%s1058] ss:$16 sm:%s1059]
    %vm1061 = vcmask 1047558
    %v1062 = vsel %vm1061, %v1060, %v1057
    %1063 = vrot.lane.b32.xlu0 %v1062, 32
    %v1064 = vpop.permute.xlu0 %1063
    %vm1065 = vcmask 326912
    %1066 = vst.msk [vmem:[#allocation0] sm:$0xff] %vm1065, %v1064
    %s1067 = scalar_lea.vmem [#allocation1], 132
    %s1068 = smov 3
    %v1069 = vld [vmem:[%s1067] ss:$16 sm:%s1068]
    %s1070 = scalar_lea.vmem [#allocation1], 132
    %s1071 = smov 12
    %v1072 = vld [vmem:[%s1070] ss:$16 sm:%s1071]
    %vm1073 = vcmask 1043458
    %v1074 = vsel %vm1073, %v1072, %v1069
    %s1075 = scalar_lea.vmem [#allocation1], 132
    %s1076 = smov 48
    %v1077 = vld [vmem:[%s1075] ss:$16 sm:%s1076]
    %vm1078 = vcmask 1045508
    %v1079 = vsel %vm1078, %v1077, %v1074
    %s1080 = scalar_lea.vmem [#allocation1], 132
    %s1081 = smov 192
    %v1082 = vld [vmem:[%s1080] ss:$16 sm:%s1081]
    %vm1083 = vcmask 1047558
    %v1084 = vsel %vm1083, %v1082, %v1079
    %1085 = vrot.lane.b32.xlu0 %v1084, 32
    %v1086 = vpop.permute.xlu0 %1085
    %vm1087 = vcmask 326912
    %s1088 = scalar_lea.vmem [#allocation0], 8
    %1089 = vst.msk [vmem:[%s1088] sm:$0xff] %vm1087, %v1086
    %s1090 = scalar_lea.vmem [#allocation1], 3
    %s1091 = smov 3
    %v1092 = vld [vmem:[%s1090] ss:$16 sm:%s1091]
    %s1093 = scalar_lea.vmem [#allocation1], 3
    %s1094 = smov 12
    %v1095 = vld [vmem:[%s1093] ss:$16 sm:%s1094]
    %vm1096 = vcmask 1043458
    %v1097 = vsel %vm1096, %v1095, %v1092
    %s1098 = scalar_lea.vmem [#allocation1], 3
    %s1099 = smov 48
    %v1100 = vld [vmem:[%s1098] ss:$16 sm:%s1099]
    %vm1101 = vcmask 1045508
    %v1102 = vsel %vm1101, %v1100, %v1097
    %s1103 = scalar_lea.vmem [#allocation1], 3
    %s1104 = smov 192
    %v1105 = vld [vmem:[%s1103] ss:$16 sm:%s1104]
    %vm1106 = vcmask 1047558
    %v1107 = vsel %vm1106, %v1105, %v1102
    %1108 = vrot.lane.b32.xlu0 %v1107, 24
    %v1109 = vpop.permute.xlu0 %1108
    %vm1110 = vcmask 261312
    %1111 = vst.msk [vmem:[#allocation0] sm:$0xff] %vm1110, %v1109
    %s1112 = scalar_lea.vmem [#allocation1], 131
    %s1113 = smov 3
    %v1114 = vld [vmem:[%s1112] ss:$16 sm:%s1113]
    %s1115 = scalar_lea.vmem [#allocation1], 131
    %s1116 = smov 12
    %v1117 = vld [vmem:[%s1115] ss:$16 sm:%s1116]
    %vm1118 = vcmask 1043458
    %v1119 = vsel %vm1118, %v1117, %v1114
    %s1120 = scalar_lea.vmem [#allocation1], 131
    %s1121 = smov 48
    %v1122 = vld [vmem:[%s1120] ss:$16 sm:%s1121]
    %vm1123 = vcmask 1045508
    %v1124 = vsel %vm1123, %v1122, %v1119
    %s1125 = scalar_lea.vmem [#allocation1], 131
    %s1126 = smov 192
    %v1127 = vld [vmem:[%s1125] ss:$16 sm:%s1126]
    %vm1128 = vcmask 1047558
    %v1129 = vsel %vm1128, %v1127, %v1124
    %1130 = vrot.lane.b32.xlu0 %v1129, 24
    %v1131 = vpop.permute.xlu0 %1130
    %vm1132 = vcmask 261312
    %s1133 = scalar_lea.vmem [#allocation0], 8
    %1134 = vst.msk [vmem:[%s1133] sm:$0xff] %vm1132, %v1131
    %s1135 = scalar_lea.vmem [#allocation1], 2
    %s1136 = smov 3
    %v1137 = vld [vmem:[%s1135] ss:$16 sm:%s1136]
    %s1138 = scalar_lea.vmem [#allocation1], 2
    %s1139 = smov 12
    %v1140 = vld [vmem:[%s1138] ss:$16 sm:%s1139]
    %vm1141 = vcmask 1043458
    %v1142 = vsel %vm1141, %v1140, %v1137
    %s1143 = scalar_lea.vmem [#allocation1], 2
    %s1144 = smov 48
    %v1145 = vld [vmem:[%s1143] ss:$16 sm:%s1144]
    %vm1146 = vcmask 1045508
    %v1147 = vsel %vm1146, %v1145, %v1142
    %s1148 = scalar_lea.vmem [#allocation1], 2
    %s1149 = smov 192
    %v1150 = vld [vmem:[%s1148] ss:$16 sm:%s1149]
    %vm1151 = vcmask 1047558
    %v1152 = vsel %vm1151, %v1150, %v1147
    %1153 = vrot.lane.b32.xlu0 %v1152, 16
    %v1154 = vpop.permute.xlu0 %1153
    %vm1155 = vcmask 195712
    %1156 = vst.msk [vmem:[#allocation0] sm:$0xff] %vm1155, %v1154
    %s1157 = scalar_lea.vmem [#allocation1], 130
    %s1158 = smov 3
    %v1159 = vld [vmem:[%s1157] ss:$16 sm:%s1158]
    %s1160 = scalar_lea.vmem [#allocation1], 130
    %s1161 = smov 12
    %v1162 = vld [vmem:[%s1160] ss:$16 sm:%s1161]
    %vm1163 = vcmask 1043458
    %v1164 = vsel %vm1163, %v1162, %v1159
    %s1165 = scalar_lea.vmem [#allocation1], 130
    %s1166 = smov 48
    %v1167 = vld [vmem:[%s1165] ss:$16 sm:%s1166]
    %vm1168 = vcmask 1045508
    %v1169 = vsel %vm1168, %v1167, %v1164
    %s1170 = scalar_lea.vmem [#allocation1], 130
    %s1171 = smov 192
    %v1172 = vld [vmem:[%s1170] ss:$16 sm:%s1171]
    %vm1173 = vcmask 1047558
    %v1174 = vsel %vm1173, %v1172, %v1169
    %1175 = vrot.lane.b32.xlu0 %v1174, 16
    %v1176 = vpop.permute.xlu0 %1175
    %vm1177 = vcmask 195712
    %s1178 = scalar_lea.vmem [#allocation0], 8
    %1179 = vst.msk [vmem:[%s1178] sm:$0xff] %vm1177, %v1176
    %s1180 = scalar_lea.vmem [#allocation1], 1
    %s1181 = smov 3
    %v1182 = vld [vmem:[%s1180] ss:$16 sm:%s1181]
    %s1183 = scalar_lea.vmem [#allocation1], 1
    %s1184 = smov 12
    %v1185 = vld [vmem:[%s1183] ss:$16 sm:%s1184]
    %vm1186 = vcmask 1043458
    %v1187 = vsel %vm1186, %v1185, %v1182
    %s1188 = scalar_lea.vmem [#allocation1], 1
    %s1189 = smov 48
    %v1190 = vld [vmem:[%s1188] ss:$16 sm:%s1189]
    %vm1191 = vcmask 1045508
    %v1192 = vsel %vm1191, %v1190, %v1187
    %s1193 = scalar_lea.vmem [#allocation1], 1
    %s1194 = smov 192
    %v1195 = vld [vmem:[%s1193] ss:$16 sm:%s1194]
    %vm1196 = vcmask 1047558
    %v1197 = vsel %vm1196, %v1195, %v1192
    %1198 = vrot.lane.b32.xlu0 %v1197, 8
    %v1199 = vpop.permute.xlu0 %1198
    %vm1200 = vcmask 130112
    %1201 = vst.msk [vmem:[#allocation0] sm:$0xff] %vm1200, %v1199
    %s1202 = scalar_lea.vmem [#allocation1], 129
    %s1203 = smov 3
    %v1204 = vld [vmem:[%s1202] ss:$16 sm:%s1203]
    %s1205 = scalar_lea.vmem [#allocation1], 129
    %s1206 = smov 12
    %v1207 = vld [vmem:[%s1205] ss:$16 sm:%s1206]
    %vm1208 = vcmask 1043458
    %v1209 = vsel %vm1208, %v1207, %v1204
    %s1210 = scalar_lea.vmem [#allocation1], 129
    %s1211 = smov 48
    %v1212 = vld [vmem:[%s1210] ss:$16 sm:%s1211]
    %vm1213 = vcmask 1045508
    %v1214 = vsel %vm1213, %v1212, %v1209
    %s1215 = scalar_lea.vmem [#allocation1], 129
    %s1216 = smov 192
    %v1217 = vld [vmem:[%s1215] ss:$16 sm:%s1216]
    %vm1218 = vcmask 1047558
    %v1219 = vsel %vm1218, %v1217, %v1214
    %1220 = vrot.lane.b32.xlu0 %v1219, 8
    %v1221 = vpop.permute.xlu0 %1220
    %vm1222 = vcmask 130112
    %s1223 = scalar_lea.vmem [#allocation0], 8
    %1224 = vst.msk [vmem:[%s1223] sm:$0xff] %vm1222, %v1221
    %s1226 = smul.u32 4, 2
    %s1227 = sshllo.u32 0, %s1226
    %s1228 = sshrl.u32 %s1226, 1
    %v1229 = vld [vmem:[#allocation0] sm:%s1227]
    %v1230 = vpack.c.bf16 0.0, %v1229
    %s1231 = sshllo.u32 0, %s1228
    %1232 = vst [vmem:[%s1] sm:%s1231] %v1230
    %s1233 = scalar_lea.vmem [#allocation0], 8
    %v1234 = vld [vmem:[%s1233] sm:%s1227]
    %v1235 = vpack.c.bf16 0.0, %v1234
    %s1236 = sshllo.u32 0, %s1228
    %s1237 = scalar_lea.vmem %s1, 4
    %1238 = vst [vmem:[%s1237] sm:%s1236] %v1235

// kernel: squeeze.14
$region0: #{squeeze.14}
  %s0 = inlined_call_operand.vmem [shape: bf16[1,8,2,16,16], index: 0, kind: input, shape index: {}]
  %s1 = inlined_call_operand.vmem [shape: bf16[4096], index: 1, kind: output, shape index: {}]
  $region1: #{squeeze.14} parent=0
    #allocation0 [shape = 'u8[16384]{0}', space=vmem, size = 0x4000, scoped, tag = 'scoped mem for output reshape']
    #allocation1 [shape = 'u8[131072]{0}', space=vmem, size = 0x20000, scoped, tag = 'scoped mem for input reshape']
    %s3 = smul.u32 4, 2
    %s4 = sshllo.u32 0, %s3
    %s5 = smul.addr 4, 31
    %s6 = scalar_lea.vmem %s0, %s5
    %s7 = sshrl.u32 %s4, 1
    %s8 = sor.u32 %s4, %s7
    %s9 = sand.u32 %s8, 85
    %s10 = sshrl.u32 %s9, 1
    %s11 = sor.u32 %s9, %s10
    %s12 = sand.u32 51, %s11
    %s13 = sshrl.u32 %s12, 2
    %s14 = sor.u32 %s12, %s13
    %s15 = sand.u32 15, %s14
    %v16 = vld [vmem:[%s6] sm:%s15]
    %v17 = vunpack.c.l.bf16 %v16
    %v18 = vunpack.c.h.bf16 %v16
    %s19 = scalar_lea.vmem [#allocation1], 248
    %20 = vst [vmem:[%s19] sm:%s4] %v17
    %s21 = smul.addr 4, 30
    %s22 = scalar_lea.vmem %s0, %s21
    %s23 = sshrl.u32 %s4, 1
    %s24 = sor.u32 %s4, %s23
    %s25 = sand.u32 %s24, 85
    %s26 = sshrl.u32 %s25, 1
    %s27 = sor.u32 %s25, %s26
    %s28 = sand.u32 51, %s27
    %s29 = sshrl.u32 %s28, 2
    %s30 = sor.u32 %s28, %s29
    %s31 = sand.u32 15, %s30
    %v32 = vld [vmem:[%s22] sm:%s31]
    %v33 = vunpack.c.l.bf16 %v32
    %v34 = vunpack.c.h.bf16 %v32
    %s35 = scalar_lea.vmem [#allocation1], 240
    %36 = vst [vmem:[%s35] sm:%s4] %v33
    %s37 = smul.addr 4, 29
    %s38 = scalar_lea.vmem %s0, %s37
    %s39 = sshrl.u32 %s4, 1
    %s40 = sor.u32 %s4, %s39
    %s41 = sand.u32 %s40, 85
    %s42 = sshrl.u32 %s41, 1
    %s43 = sor.u32 %s41, %s42
    %s44 = sand.u32 51, %s43
    %s45 = sshrl.u32 %s44, 2
    %s46 = sor.u32 %s44, %s45
    %s47 = sand.u32 15, %s46
    %v48 = vld [vmem:[%s38] sm:%s47]
    %v49 = vunpack.c.l.bf16 %v48
    %v50 = vunpack.c.h.bf16 %v48
    %s51 = scalar_lea.vmem [#allocation1], 232
    %52 = vst [vmem:[%s51] sm:%s4] %v49
    %s53 = smul.addr 4, 28
    %s54 = scalar_lea.vmem %s0, %s53
    %s55 = sshrl.u32 %s4, 1
    %s56 = sor.u32 %s4, %s55
    %s57 = sand.u32 %s56, 85
    %s58 = sshrl.u32 %s57, 1
    %s59 = sor.u32 %s57, %s58
    %s60 = sand.u32 51, %s59
    %s61 = sshrl.u32 %s60, 2
    %s62 = sor.u32 %s60, %s61
    %s63 = sand.u32 15, %s62
    %v64 = vld [vmem:[%s54] sm:%s63]
    %v65 = vunpack.c.l.bf16 %v64
    %v66 = vunpack.c.h.bf16 %v64
    %s67 = scalar_lea.vmem [#allocation1], 224
    %68 = vst [vmem:[%s67] sm:%s4] %v65
    %s69 = smul.addr 4, 27
    %s70 = scalar_lea.vmem %s0, %s69
    %s71 = sshrl.u32 %s4, 1
    %s72 = sor.u32 %s4, %s71
    %s73 = sand.u32 %s72, 85
    %s74 = sshrl.u32 %s73, 1
    %s75 = sor.u32 %s73, %s74
    %s76 = sand.u32 51, %s75
    %s77 = sshrl.u32 %s76, 2
    %s78 = sor.u32 %s76, %s77
    %s79 = sand.u32 15, %s78
    %v80 = vld [vmem:[%s70] sm:%s79]
    %v81 = vunpack.c.l.bf16 %v80
    %v82 = vunpack.c.h.bf16 %v80
    %s83 = scalar_lea.vmem [#allocation1], 216
    %84 = vst [vmem:[%s83] sm:%s4] %v81
    %s85 = smul.addr 4, 26
    %s86 = scalar_lea.vmem %s0, %s85
    %s87 = sshrl.u32 %s4, 1
    %s88 = sor.u32 %s4, %s87
    %s89 = sand.u32 %s88, 85
    %s90 = sshrl.u32 %s89, 1
    %s91 = sor.u32 %s89, %s90
    %s92 = sand.u32 51, %s91
    %s93 = sshrl.u32 %s92, 2
    %s94 = sor.u32 %s92, %s93
    %s95 = sand.u32 15, %s94
    %v96 = vld [vmem:[%s86] sm:%s95]
    %v97 = vunpack.c.l.bf16 %v96
    %v98 = vunpack.c.h.bf16 %v96
    %s99 = scalar_lea.vmem [#allocation1], 208
    %100 = vst [vmem:[%s99] sm:%s4] %v97
    %s101 = smul.addr 4, 25
    %s102 = scalar_lea.vmem %s0, %s101
    %s103 = sshrl.u32 %s4, 1
    %s104 = sor.u32 %s4, %s103
    %s105 = sand.u32 %s104, 85
    %s106 = sshrl.u32 %s105, 1
    %s107 = sor.u32 %s105, %s106
    %s108 = sand.u32 51, %s107
    %s109 = sshrl.u32 %s108, 2
    %s110 = sor.u32 %s108, %s109
    %s111 = sand.u32 15, %s110
    %v112 = vld [vmem:[%s102] sm:%s111]
    %v113 = vunpack.c.l.bf16 %v112
    %v114 = vunpack.c.h.bf16 %v112
    %s115 = scalar_lea.vmem [#allocation1], 200
    %116 = vst [vmem:[%s115] sm:%s4] %v113
    %s117 = smul.addr 4, 24
    %s118 = scalar_lea.vmem %s0, %s117
    %s119 = sshrl.u32 %s4, 1
    %s120 = sor.u32 %s4, %s119
    %s121 = sand.u32 %s120, 85
    %s122 = sshrl.u32 %s121, 1
    %s123 = sor.u32 %s121, %s122
    %s124 = sand.u32 51, %s123
    %s125 = sshrl.u32 %s124, 2
    %s126 = sor.u32 %s124, %s125
    %s127 = sand.u32 15, %s126
    %v128 = vld [vmem:[%s118] sm:%s127]
    %v129 = vunpack.c.l.bf16 %v128
    %v130 = vunpack.c.h.bf16 %v128
    %s131 = scalar_lea.vmem [#allocation1], 192
    %132 = vst [vmem:[%s131] sm:%s4] %v129
    %s133 = smul.addr 4, 23
    %s134 = scalar_lea.vmem %s0, %s133
    %s135 = sshrl.u32 %s4, 1
    %s136 = sor.u32 %s4, %s135
    %s137 = sand.u32 %s136, 85
    %s138 = sshrl.u32 %s137, 1
    %s139 = sor.u32 %s137, %s138
    %s140 = sand.u32 51, %s139
    %s141 = sshrl.u32 %s140, 2
    %s142 = sor.u32 %s140, %s141
    %s143 = sand.u32 15, %s142
    %v144 = vld [vmem:[%s134] sm:%s143]
    %v145 = vunpack.c.l.bf16 %v144
    %v146 = vunpack.c.h.bf16 %v144
    %s147 = scalar_lea.vmem [#allocation1], 184
    %148 = vst [vmem:[%s147] sm:%s4] %v145
    %s149 = smul.addr 4, 22
    %s150 = scalar_lea.vmem %s0, %s149
    %s151 = sshrl.u32 %s4, 1
    %s152 = sor.u32 %s4, %s151
    %s153 = sand.u32 %s152, 85
    %s154 = sshrl.u32 %s153, 1
    %s155 = sor.u32 %s153, %s154
    %s156 = sand.u32 51, %s155
    %s157 = sshrl.u32 %s156, 2
    %s158 = sor.u32 %s156, %s157
    %s159 = sand.u32 15, %s158
    %v160 = vld [vmem:[%s150] sm:%s159]
    %v161 = vunpack.c.l.bf16 %v160
    %v162 = vunpack.c.h.bf16 %v160
    %s163 = scalar_lea.vmem [#allocation1], 176
    %164 = vst [vmem:[%s163] sm:%s4] %v161
    %s165 = smul.addr 4, 21
    %s166 = scalar_lea.vmem %s0, %s165
    %s167 = sshrl.u32 %s4, 1
    %s168 = sor.u32 %s4, %s167
    %s169 = sand.u32 %s168, 85
    %s170 = sshrl.u32 %s169, 1
    %s171 = sor.u32 %s169, %s170
    %s172 = sand.u32 51, %s171
    %s173 = sshrl.u32 %s172, 2
    %s174 = sor.u32 %s172, %s173
    %s175 = sand.u32 15, %s174
    %v176 = vld [vmem:[%s166] sm:%s175]
    %v177 = vunpack.c.l.bf16 %v176
    %v178 = vunpack.c.h.bf16 %v176
    %s179 = scalar_lea.vmem [#allocation1], 168
    %180 = vst [vmem:[%s179] sm:%s4] %v177
    %s181 = smul.addr 4, 20
    %s182 = scalar_lea.vmem %s0, %s181
    %s183 = sshrl.u32 %s4, 1
    %s184 = sor.u32 %s4, %s183
    %s185 = sand.u32 %s184, 85
    %s186 = sshrl.u32 %s185, 1
    %s187 = sor.u32 %s185, %s186
    %s188 = sand.u32 51, %s187
    %s189 = sshrl.u32 %s188, 2
    %s190 = sor.u32 %s188, %s189
    %s191 = sand.u32 15, %s190
    %v192 = vld [vmem:[%s182] sm:%s191]
    %v193 = vunpack.c.l.bf16 %v192
    %v194 = vunpack.c.h.bf16 %v192
    %s195 = scalar_lea.vmem [#allocation1], 160
    %196 = vst [vmem:[%s195] sm:%s4] %v193
    %s197 = smul.addr 4, 19
    %s198 = scalar_lea.vmem %s0, %s197
    %s199 = sshrl.u32 %s4, 1
    %s200 = sor.u32 %s4, %s199
    %s201 = sand.u32 %s200, 85
    %s202 = sshrl.u32 %s201, 1
    %s203 = sor.u32 %s201, %s202
    %s204 = sand.u32 51, %s203
    %s205 = sshrl.u32 %s204, 2
    %s206 = sor.u32 %s204, %s205
    %s207 = sand.u32 15, %s206
    %v208 = vld [vmem:[%s198] sm:%s207]
    %v209 = vunpack.c.l.bf16 %v208
    %v210 = vunpack.c.h.bf16 %v208
    %s211 = scalar_lea.vmem [#allocation1], 152
    %212 = vst [vmem:[%s211] sm:%s4] %v209
    %s213 = smul.addr 4, 18
    %s214 = scalar_lea.vmem %s0, %s213
    %s215 = sshrl.u32 %s4, 1
    %s216 = sor.u32 %s4, %s215
    %s217 = sand.u32 %s216, 85
    %s218 = sshrl.u32 %s217, 1
    %s219 = sor.u32 %s217, %s218
    %s220 = sand.u32 51, %s219
    %s221 = sshrl.u32 %s220, 2
    %s222 = sor.u32 %s220, %s221
    %s223 = sand.u32 15, %s222
    %v224 = vld [vmem:[%s214] sm:%s223]
    %v225 = vunpack.c.l.bf16 %v224
    %v226 = vunpack.c.h.bf16 %v224
    %s227 = scalar_lea.vmem [#allocation1], 144
    %228 = vst [vmem:[%s227] sm:%s4] %v225
    %s229 = smul.addr 4, 17
    %s230 = scalar_lea.vmem %s0, %s229
    %s231 = sshrl.u32 %s4, 1
    %s232 = sor.u32 %s4, %s231
    %s233 = sand.u32 %s232, 85
    %s234 = sshrl.u32 %s233, 1
    %s235 = sor.u32 %s233, %s234
    %s236 = sand.u32 51, %s235
    %s237 = sshrl.u32 %s236, 2
    %s238 = sor.u32 %s236, %s237
    %s239 = sand.u32 15, %s238
    %v240 = vld [vmem:[%s230] sm:%s239]
    %v241 = vunpack.c.l.bf16 %v240
    %v242 = vunpack.c.h.bf16 %v240
    %s243 = scalar_lea.vmem [#allocation1], 136
    %244 = vst [vmem:[%s243] sm:%s4] %v241
    %s245 = smul.addr 4, 16
    %s246 = scalar_lea.vmem %s0, %s245
    %s247 = sshrl.u32 %s4, 1
    %s248 = sor.u32 %s4, %s247
    %s249 = sand.u32 %s248, 85
    %s250 = sshrl.u32 %s249, 1
    %s251 = sor.u32 %s249, %s250
    %s252 = sand.u32 51, %s251
    %s253 = sshrl.u32 %s252, 2
    %s254 = sor.u32 %s252, %s253
    %s255 = sand.u32 15, %s254
    %v256 = vld [vmem:[%s246] sm:%s255]
    %v257 = vunpack.c.l.bf16 %v256
    %v258 = vunpack.c.h.bf16 %v256
    %s259 = scalar_lea.vmem [#allocation1], 128
    %260 = vst [vmem:[%s259] sm:%s4] %v257
    %s261 = smul.addr 4, 15
    %s262 = scalar_lea.vmem %s0, %s261
    %s263 = sshrl.u32 %s4, 1
    %s264 = sor.u32 %s4, %s263
    %s265 = sand.u32 %s264, 85
    %s266 = sshrl.u32 %s265, 1
    %s267 = sor.u32 %s265, %s266
    %s268 = sand.u32 51, %s267
    %s269 = sshrl.u32 %s268, 2
    %s270 = sor.u32 %s268, %s269
    %s271 = sand.u32 15, %s270
    %v272 = vld [vmem:[%s262] sm:%s271]
    %v273 = vunpack.c.l.bf16 %v272
    %v274 = vunpack.c.h.bf16 %v272
    %s275 = scalar_lea.vmem [#allocation1], 120
    %276 = vst [vmem:[%s275] sm:%s4] %v273
    %s277 = smul.addr 4, 14
    %s278 = scalar_lea.vmem %s0, %s277
    %s279 = sshrl.u32 %s4, 1
    %s280 = sor.u32 %s4, %s279
    %s281 = sand.u32 %s280, 85
    %s282 = sshrl.u32 %s281, 1
    %s283 = sor.u32 %s281, %s282
    %s284 = sand.u32 51, %s283
    %s285 = sshrl.u32 %s284, 2
    %s286 = sor.u32 %s284, %s285
    %s287 = sand.u32 15, %s286
    %v288 = vld [vmem:[%s278] sm:%s287]
    %v289 = vunpack.c.l.bf16 %v288
    %v290 = vunpack.c.h.bf16 %v288
    %s291 = scalar_lea.vmem [#allocation1], 112
    %292 = vst [vmem:[%s291] sm:%s4] %v289
    %s293 = smul.addr 4, 13
    %s294 = scalar_lea.vmem %s0, %s293
    %s295 = sshrl.u32 %s4, 1
    %s296 = sor.u32 %s4, %s295
    %s297 = sand.u32 %s296, 85
    %s298 = sshrl.u32 %s297, 1
    %s299 = sor.u32 %s297, %s298
    %s300 = sand.u32 51, %s299
    %s301 = sshrl.u32 %s300, 2
    %s302 = sor.u32 %s300, %s301
    %s303 = sand.u32 15, %s302
    %v304 = vld [vmem:[%s294] sm:%s303]
    %v305 = vunpack.c.l.bf16 %v304
    %v306 = vunpack.c.h.bf16 %v304
    %s307 = scalar_lea.vmem [#allocation1], 104
    %308 = vst [vmem:[%s307] sm:%s4] %v305
    %s309 = smul.addr 4, 12
    %s310 = scalar_lea.vmem %s0, %s309
    %s311 = sshrl.u32 %s4, 1
    %s312 = sor.u32 %s4, %s311
    %s313 = sand.u32 %s312, 85
    %s314 = sshrl.u32 %s313, 1
    %s315 = sor.u32 %s313, %s314
    %s316 = sand.u32 51, %s315
    %s317 = sshrl.u32 %s316, 2
    %s318 = sor.u32 %s316, %s317
    %s319 = sand.u32 15, %s318
    %v320 = vld [vmem:[%s310] sm:%s319]
    %v321 = vunpack.c.l.bf16 %v320
    %v322 = vunpack.c.h.bf16 %v320
    %s323 = scalar_lea.vmem [#allocation1], 96
    %324 = vst [vmem:[%s323] sm:%s4] %v321
    %s325 = smul.addr 4, 11
    %s326 = scalar_lea.vmem %s0, %s325
    %s327 = sshrl.u32 %s4, 1
    %s328 = sor.u32 %s4, %s327
    %s329 = sand.u32 %s328, 85
    %s330 = sshrl.u32 %s329, 1
    %s331 = sor.u32 %s329, %s330
    %s332 = sand.u32 51, %s331
    %s333 = sshrl.u32 %s332, 2
    %s334 = sor.u32 %s332, %s333
    %s335 = sand.u32 15, %s334
    %v336 = vld [vmem:[%s326] sm:%s335]
    %v337 = vunpack.c.l.bf16 %v336
    %v338 = vunpack.c.h.bf16 %v336
    %s339 = scalar_lea.vmem [#allocation1], 88
    %340 = vst [vmem:[%s339] sm:%s4] %v337
    %s341 = smul.addr 4, 10
    %s342 = scalar_lea.vmem %s0, %s341
    %s343 = sshrl.u32 %s4, 1
    %s344 = sor.u32 %s4, %s343
    %s345 = sand.u32 %s344, 85
    %s346 = sshrl.u32 %s345, 1
    %s347 = sor.u32 %s345, %s346
    %s348 = sand.u32 51, %s347
    %s349 = sshrl.u32 %s348, 2
    %s350 = sor.u32 %s348, %s349
    %s351 = sand.u32 15, %s350
    %v352 = vld [vmem:[%s342] sm:%s351]
    %v353 = vunpack.c.l.bf16 %v352
    %v354 = vunpack.c.h.bf16 %v352
    %s355 = scalar_lea.vmem [#allocation1], 80
    %356 = vst [vmem:[%s355] sm:%s4] %v353
    %s357 = smul.addr 4, 9
    %s358 = scalar_lea.vmem %s0, %s357
    %s359 = sshrl.u32 %s4, 1
    %s360 = sor.u32 %s4, %s359
    %s361 = sand.u32 %s360, 85
    %s362 = sshrl.u32 %s361, 1
    %s363 = sor.u32 %s361, %s362
    %s364 = sand.u32 51, %s363
    %s365 = sshrl.u32 %s364, 2
    %s366 = sor.u32 %s364, %s365
    %s367 = sand.u32 15, %s366
    %v368 = vld [vmem:[%s358] sm:%s367]
    %v369 = vunpack.c.l.bf16 %v368
    %v370 = vunpack.c.h.bf16 %v368
    %s371 = scalar_lea.vmem [#allocation1], 72
    %372 = vst [vmem:[%s371] sm:%s4] %v369
    %s373 = smul.addr 4, 8
    %s374 = scalar_lea.vmem %s0, %s373
    %s375 = sshrl.u32 %s4, 1
    %s376 = sor.u32 %s4, %s375
    %s377 = sand.u32 %s376, 85
    %s378 = sshrl.u32 %s377, 1
    %s379 = sor.u32 %s377, %s378
    %s380 = sand.u32 51, %s379
    %s381 = sshrl.u32 %s380, 2
    %s382 = sor.u32 %s380, %s381
    %s383 = sand.u32 15, %s382
    %v384 = vld [vmem:[%s374] sm:%s383]
    %v385 = vunpack.c.l.bf16 %v384
    %v386 = vunpack.c.h.bf16 %v384
    %s387 = scalar_lea.vmem [#allocation1], 64
    %388 = vst [vmem:[%s387] sm:%s4] %v385
    %s389 = smul.addr 4, 7
    %s390 = scalar_lea.vmem %s0, %s389
    %s391 = sshrl.u32 %s4, 1
    %s392 = sor.u32 %s4, %s391
    %s393 = sand.u32 %s392, 85
    %s394 = sshrl.u32 %s393, 1
    %s395 = sor.u32 %s393, %s394
    %s396 = sand.u32 51, %s395
    %s397 = sshrl.u32 %s396, 2
    %s398 = sor.u32 %s396, %s397
    %s399 = sand.u32 15, %s398
    %v400 = vld [vmem:[%s390] sm:%s399]
    %v401 = vunpack.c.l.bf16 %v400
    %v402 = vunpack.c.h.bf16 %v400
    %s403 = scalar_lea.vmem [#allocation1], 56
    %404 = vst [vmem:[%s403] sm:%s4] %v401
    %s405 = smul.addr 4, 6
    %s406 = scalar_lea.vmem %s0, %s405
    %s407 = sshrl.u32 %s4, 1
    %s408 = sor.u32 %s4, %s407
    %s409 = sand.u32 %s408, 85
    %s410 = sshrl.u32 %s409, 1
    %s411 = sor.u32 %s409, %s410
    %s412 = sand.u32 51, %s411
    %s413 = sshrl.u32 %s412, 2
    %s414 = sor.u32 %s412, %s413
    %s415 = sand.u32 15, %s414
    %v416 = vld [vmem:[%s406] sm:%s415]
    %v417 = vunpack.c.l.bf16 %v416
    %v418 = vunpack.c.h.bf16 %v416
    %s419 = scalar_lea.vmem [#allocation1], 48
    %420 = vst [vmem:[%s419] sm:%s4] %v417
    %s421 = smul.addr 4, 5
    %s422 = scalar_lea.vmem %s0, %s421
    %s423 = sshrl.u32 %s4, 1
    %s424 = sor.u32 %s4, %s423
    %s425 = sand.u32 %s424, 85
    %s426 = sshrl.u32 %s425, 1
    %s427 = sor.u32 %s425, %s426
    %s428 = sand.u32 51, %s427
    %s429 = sshrl.u32 %s428, 2
    %s430 = sor.u32 %s428, %s429
    %s431 = sand.u32 15, %s430
    %v432 = vld [vmem:[%s422] sm:%s431]
    %v433 = vunpack.c.l.bf16 %v432
    %v434 = vunpack.c.h.bf16 %v432
    %s435 = scalar_lea.vmem [#allocation1], 40
    %436 = vst [vmem:[%s435] sm:%s4] %v433
    %s437 = smul.addr 4, 4
    %s438 = scalar_lea.vmem %s0, %s437
    %s439 = sshrl.u32 %s4, 1
    %s440 = sor.u32 %s4, %s439
    %s441 = sand.u32 %s440, 85
    %s442 = sshrl.u32 %s441, 1
    %s443 = sor.u32 %s441, %s442
    %s444 = sand.u32 51, %s443
    %s445 = sshrl.u32 %s444, 2
    %s446 = sor.u32 %s444, %s445
    %s447 = sand.u32 15, %s446
    %v448 = vld [vmem:[%s438] sm:%s447]
    %v449 = vunpack.c.l.bf16 %v448
    %v450 = vunpack.c.h.bf16 %v448
    %s451 = scalar_lea.vmem [#allocation1], 32
    %452 = vst [vmem:[%s451] sm:%s4] %v449
    %s453 = smul.addr 4, 3
    %s454 = scalar_lea.vmem %s0, %s453
    %s455 = sshrl.u32 %s4, 1
    %s456 = sor.u32 %s4, %s455
    %s457 = sand.u32 %s456, 85
    %s458 = sshrl.u32 %s457, 1
    %s459 = sor.u32 %s457, %s458
    %s460 = sand.u32 51, %s459
    %s461 = sshrl.u32 %s460, 2
    %s462 = sor.u32 %s460, %s461
    %s463 = sand.u32 15, %s462
    %v464 = vld [vmem:[%s454] sm:%s463]
    %v465 = vunpack.c.l.bf16 %v464
    %v466 = vunpack.c.h.bf16 %v464
    %s467 = scalar_lea.vmem [#allocation1], 24
    %468 = vst [vmem:[%s467] sm:%s4] %v465
    %s469 = smul.addr 4, 2
    %s470 = scalar_lea.vmem %s0, %s469
    %s471 = sshrl.u32 %s4, 1
    %s472 = sor.u32 %s4, %s471
    %s473 = sand.u32 %s472, 85
    %s474 = sshrl.u32 %s473, 1
    %s475 = sor.u32 %s473, %s474
    %s476 = sand.u32 51, %s475
    %s477 = sshrl.u32 %s476, 2
    %s478 = sor.u32 %s476, %s477
    %s479 = sand.u32 15, %s478
    %v480 = vld [vmem:[%s470] sm:%s479]
    %v481 = vunpack.c.l.bf16 %v480
    %v482 = vunpack.c.h.bf16 %v480
    %s483 = scalar_lea.vmem [#allocation1], 16
    %484 = vst [vmem:[%s483] sm:%s4] %v481
    %s485 = scalar_lea.vmem %s0, 4
    %s486 = sshrl.u32 %s4, 1
    %s487 = sor.u32 %s4, %s486
    %s488 = sand.u32 %s487, 85
    %s489 = sshrl.u32 %s488, 1
    %s490 = sor.u32 %s488, %s489
    %s491 = sand.u32 51, %s490
    %s492 = sshrl.u32 %s491, 2
    %s493 = sor.u32 %s491, %s492
    %s494 = sand.u32 15, %s493
    %v495 = vld [vmem:[%s485] sm:%s494]
    %v496 = vunpack.c.l.bf16 %v495
    %v497 = vunpack.c.h.bf16 %v495
    %s498 = scalar_lea.vmem [#allocation1], 8
    %499 = vst [vmem:[%s498] sm:%s4] %v496
    %s500 = sshrl.u32 %s4, 1
    %s501 = sor.u32 %s4, %s500
    %s502 = sand.u32 %s501, 85
    %s503 = sshrl.u32 %s502, 1
    %s504 = sor.u32 %s502, %s503
    %s505 = sand.u32 51, %s504
    %s506 = sshrl.u32 %s505, 2
    %s507 = sor.u32 %s505, %s506
    %s508 = sand.u32 15, %s507
    %v509 = vld [vmem:[%s0] sm:%s508]
    %v510 = vunpack.c.l.bf16 %v509
    %v511 = vunpack.c.h.bf16 %v509
    %512 = vst [vmem:[#allocation1] sm:%s4] %v510
    %v513 = vld [vmem:[#allocation1] ss:$8 sm:$0xf]
    %v514 = vld [vmem:[#allocation1] ss:$8 sm:$0xf0]
    %vm515 = vcmask 1047556
    %v516 = vsel %vm515, %v514, %v513
    %vm517 = vcmask 130048
    %518 = vst.msk [vmem:[#allocation0] sm:$0xff] %vm517, %v516
    %s519 = scalar_lea.vmem [#allocation1], 64
    %v520 = vld [vmem:[%s519] ss:$8 sm:$0xf]
    %s521 = scalar_lea.vmem [#allocation1], 64
    %v522 = vld [vmem:[%s521] ss:$8 sm:$0xf0]
    %vm523 = vcmask 1047556
    %v524 = vsel %vm523, %v522, %v520
    %vm525 = vcmask 130048
    %s526 = scalar_lea.vmem [#allocation0], 8
    %527 = vst.msk [vmem:[%s526] sm:$0xff] %vm525, %v524
    %s528 = scalar_lea.vmem [#allocation1], 128
    %v529 = vld [vmem:[%s528] ss:$8 sm:$0xf]
    %s530 = scalar_lea.vmem [#allocation1], 128
    %v531 = vld [vmem:[%s530] ss:$8 sm:$0xf0]
    %vm532 = vcmask 1047556
    %v533 = vsel %vm532, %v531, %v529
    %vm534 = vcmask 130048
    %s535 = scalar_lea.vmem [#allocation0], 16
    %536 = vst.msk [vmem:[%s535] sm:$0xff] %vm534, %v533
    %s537 = scalar_lea.vmem [#allocation1], 192
    %v538 = vld [vmem:[%s537] ss:$8 sm:$0xf]
    %s539 = scalar_lea.vmem [#allocation1], 192
    %v540 = vld [vmem:[%s539] ss:$8 sm:$0xf0]
    %vm541 = vcmask 1047556
    %v542 = vsel %vm541, %v540, %v538
    %vm543 = vcmask 130048
    %s544 = scalar_lea.vmem [#allocation0], 24
    %545 = vst.msk [vmem:[%s544] sm:$0xff] %vm543, %v542
    %s546 = scalar_lea.vmem [#allocation1], 7
    %v547 = vld [vmem:[%s546] ss:$8 sm:$0xf]
    %s548 = scalar_lea.vmem [#allocation1], 7
    %v549 = vld [vmem:[%s548] ss:$8 sm:$0xf0]
    %vm550 = vcmask 1047556
    %v551 = vsel %vm550, %v549, %v547
    %552 = vrot.lane.b32.xlu0 %v551, 112
    %v553 = vpop.permute.xlu0 %552
    %vm554 = vcmask 1048448
    %555 = vst.msk [vmem:[#allocation0] sm:$0xff] %vm554, %v553
    %s556 = scalar_lea.vmem [#allocation1], 71
    %v557 = vld [vmem:[%s556] ss:$8 sm:$0xf]
    %s558 = scalar_lea.vmem [#allocation1], 71
    %v559 = vld [vmem:[%s558] ss:$8 sm:$0xf0]
    %vm560 = vcmask 1047556
    %v561 = vsel %vm560, %v559, %v557
    %562 = vrot.lane.b32.xlu0 %v561, 112
    %v563 = vpop.permute.xlu0 %562
    %vm564 = vcmask 1048448
    %s565 = scalar_lea.vmem [#allocation0], 8
    %566 = vst.msk [vmem:[%s565] sm:$0xff] %vm564, %v563
    %s567 = scalar_lea.vmem [#allocation1], 135
    %v568 = vld [vmem:[%s567] ss:$8 sm:$0xf]
    %s569 = scalar_lea.vmem [#allocation1], 135
    %v570 = vld [vmem:[%s569] ss:$8 sm:$0xf0]
    %vm571 = vcmask 1047556
    %v572 = vsel %vm571, %v570, %v568
    %573 = vrot.lane.b32.xlu0 %v572, 112
    %v574 = vpop.permute.xlu0 %573
    %vm575 = vcmask 1048448
    %s576 = scalar_lea.vmem [#allocation0], 16
    %577 = vst.msk [vmem:[%s576] sm:$0xff] %vm575, %v574
    %s578 = scalar_lea.vmem [#allocation1], 199
    %v579 = vld [vmem:[%s578] ss:$8 sm:$0xf]
    %s580 = scalar_lea.vmem [#allocation1], 199
    %v581 = vld [vmem:[%s580] ss:$8 sm:$0xf0]
    %vm582 = vcmask 1047556
    %v583 = vsel %vm582, %v581, %v579
    %584 = vrot.lane.b32.xlu0 %v583, 112
    %v585 = vpop.permute.xlu0 %584
    %vm586 = vcmask 1048448
    %s587 = scalar_lea.vmem [#allocation0], 24
    %588 = vst.msk [vmem:[%s587] sm:$0xff] %vm586, %v585
    %s589 = scalar_lea.vmem [#allocation1], 6
    %v590 = vld [vmem:[%s589] ss:$8 sm:$0xf]
    %s591 = scalar_lea.vmem [#allocation1], 6
    %v592 = vld [vmem:[%s591] ss:$8 sm:$0xf0]
    %vm593 = vcmask 1047556
    %v594 = vsel %vm593, %v592, %v590
    %595 = vrot.lane.b32.xlu0 %v594, 96
    %v596 = vpop.permute.xlu0 %595
    %vm597 = vcmask 917248
    %598 = vst.msk [vmem:[#allocation0] sm:$0xff] %vm597, %v596
    %s599 = scalar_lea.vmem [#allocation1], 70
    %v600 = vld [vmem:[%s599] ss:$8 sm:$0xf]
    %s601 = scalar_lea.vmem [#allocation1], 70
    %v602 = vld [vmem:[%s601] ss:$8 sm:$0xf0]
    %vm603 = vcmask 1047556
    %v604 = vsel %vm603, %v602, %v600
    %605 = vrot.lane.b32.xlu0 %v604, 96
    %v606 = vpop.permute.xlu0 %605
    %vm607 = vcmask 917248
    %s608 = scalar_lea.vmem [#allocation0], 8
    %609 = vst.msk [vmem:[%s608] sm:$0xff] %vm607, %v606
    %s610 = scalar_lea.vmem [#allocation1], 134
    %v611 = vld [vmem:[%s610] ss:$8 sm:$0xf]
    %s612 = scalar_lea.vmem [#allocation1], 134
    %v613 = vld [vmem:[%s612] ss:$8 sm:$0xf0]
    %vm614 = vcmask 1047556
    %v615 = vsel %vm614, %v613, %v611
    %616 = vrot.lane.b32.xlu0 %v615, 96
    %v617 = vpop.permute.xlu0 %616
    %vm618 = vcmask 917248
    %s619 = scalar_lea.vmem [#allocation0], 16
    %620 = vst.msk [vmem:[%s619] sm:$0xff] %vm618, %v617
    %s621 = scalar_lea.vmem [#allocation1], 198
    %v622 = vld [vmem:[%s621] ss:$8 sm:$0xf]
    %s623 = scalar_lea.vmem [#allocation1], 198
    %v624 = vld [vmem:[%s623] ss:$8 sm:$0xf0]
    %vm625 = vcmask 1047556
    %v626 = vsel %vm625, %v624, %v622
    %627 = vrot.lane.b32.xlu0 %v626, 96
    %v628 = vpop.permute.xlu0 %627
    %vm629 = vcmask 917248
    %s630 = scalar_lea.vmem [#allocation0], 24
    %631 = vst.msk [vmem:[%s630] sm:$0xff] %vm629, %v628
    %s632 = scalar_lea.vmem [#allocation1], 5
    %v633 = vld [vmem:[%s632] ss:$8 sm:$0xf]
    %s634 = scalar_lea.vmem [#allocation1], 5
    %v635 = vld [vmem:[%s634] ss:$8 sm:$0xf0]
    %vm636 = vcmask 1047556
    %v637 = vsel %vm636, %v635, %v633
    %638 = vrot.lane.b32.xlu0 %v637, 80
    %v639 = vpop.permute.xlu0 %638
    %vm640 = vcmask 786048
    %641 = vst.msk [vmem:[#allocation0] sm:$0xff] %vm640, %v639
    %s642 = scalar_lea.vmem [#allocation1], 69
    %v643 = vld [vmem:[%s642] ss:$8 sm:$0xf]
    %s644 = scalar_lea.vmem [#allocation1], 69
    %v645 = vld [vmem:[%s644] ss:$8 sm:$0xf0]
    %vm646 = vcmask 1047556
    %v647 = vsel %vm646, %v645, %v643
    %648 = vrot.lane.b32.xlu0 %v647, 80
    %v649 = vpop.permute.xlu0 %648
    %vm650 = vcmask 786048
    %s651 = scalar_lea.vmem [#allocation0], 8
    %652 = vst.msk [vmem:[%s651] sm:$0xff] %vm650, %v649
    %s653 = scalar_lea.vmem [#allocation1], 133
    %v654 = vld [vmem:[%s653] ss:$8 sm:$0xf]
    %s655 = scalar_lea.vmem [#allocation1], 133
    %v656 = vld [vmem:[%s655] ss:$8 sm:$0xf0]
    %vm657 = vcmask 1047556
    %v658 = vsel %vm657, %v656, %v654
    %659 = vrot.lane.b32.xlu0 %v658, 80
    %v660 = vpop.permute.xlu0 %659
    %vm661 = vcmask 786048
    %s662 = scalar_lea.vmem [#allocation0], 16
    %663 = vst.msk [vmem:[%s662] sm:$0xff] %vm661, %v660
    %s664 = scalar_lea.vmem [#allocation1], 197
    %v665 = vld [vmem:[%s664] ss:$8 sm:$0xf]
    %s666 = scalar_lea.vmem [#allocation1], 197
    %v667 = vld [vmem:[%s666] ss:$8 sm:$0xf0]
    %vm668 = vcmask 1047556
    %v669 = vsel %vm668, %v667, %v665
    %670 = vrot.lane.b32.xlu0 %v669, 80
    %v671 = vpop.permute.xlu0 %670
    %vm672 = vcmask 786048
    %s673 = scalar_lea.vmem [#allocation0], 24
    %674 = vst.msk [vmem:[%s673] sm:$0xff] %vm672, %v671
    %s675 = scalar_lea.vmem [#allocation1], 4
    %v676 = vld [vmem:[%s675] ss:$8 sm:$0xf]
    %s677 = scalar_lea.vmem [#allocation1], 4
    %v678 = vld [vmem:[%s677] ss:$8 sm:$0xf0]
    %vm679 = vcmask 1047556
    %v680 = vsel %vm679, %v678, %v676
    %681 = vrot.lane.b32.xlu0 %v680, 64
    %v682 = vpop.permute.xlu0 %681
    %vm683 = vcmask 654848
    %684 = vst.msk [vmem:[#allocation0] sm:$0xff] %vm683, %v682
    %s685 = scalar_lea.vmem [#allocation1], 68
    %v686 = vld [vmem:[%s685] ss:$8 sm:$0xf]
    %s687 = scalar_lea.vmem [#allocation1], 68
    %v688 = vld [vmem:[%s687] ss:$8 sm:$0xf0]
    %vm689 = vcmask 1047556
    %v690 = vsel %vm689, %v688, %v686
    %691 = vrot.lane.b32.xlu0 %v690, 64
    %v692 = vpop.permute.xlu0 %691
    %vm693 = vcmask 654848
    %s694 = scalar_lea.vmem [#allocation0], 8
    %695 = vst.msk [vmem:[%s694] sm:$0xff] %vm693, %v692
    %s696 = scalar_lea.vmem [#allocation1], 132
    %v697 = vld [vmem:[%s696] ss:$8 sm:$0xf]
    %s698 = scalar_lea.vmem [#allocation1], 132
    %v699 = vld [vmem:[%s698] ss:$8 sm:$0xf0]
    %vm700 = vcmask 1047556
    %v701 = vsel %vm700, %v699, %v697
    %702 = vrot.lane.b32.xlu0 %v701, 64
    %v703 = vpop.permute.xlu0 %702
    %vm704 = vcmask 654848
    %s705 = scalar_lea.vmem [#allocation0], 16
    %706 = vst.msk [vmem:[%s705] sm:$0xff] %vm704, %v703
    %s707 = scalar_lea.vmem [#allocation1], 196
    %v708 = vld [vmem:[%s707] ss:$8 sm:$0xf]
    %s709 = scalar_lea.vmem [#allocation1], 196
    %v710 = vld [vmem:[%s709] ss:$8 sm:$0xf0]
    %vm711 = vcmask 1047556
    %v712 = vsel %vm711, %v710, %v708
    %713 = vrot.lane.b32.xlu0 %v712, 64
    %v714 = vpop.permute.xlu0 %713
    %vm715 = vcmask 654848
    %s716 = scalar_lea.vmem [#allocation0], 24
    %717 = vst.msk [vmem:[%s716] sm:$0xff] %vm715, %v714
    %s718 = scalar_lea.vmem [#allocation1], 3
    %v719 = vld [vmem:[%s718] ss:$8 sm:$0xf]
    %s720 = scalar_lea.vmem [#allocation1], 3
    %v721 = vld [vmem:[%s720] ss:$8 sm:$0xf0]
    %vm722 = vcmask 1047556
    %v723 = vsel %vm722, %v721, %v719
    %724 = vrot.lane.b32.xlu0 %v723, 48
    %v725 = vpop.permute.xlu0 %724
    %vm726 = vcmask 523648
    %727 = vst.msk [vmem:[#allocation0] sm:$0xff] %vm726, %v725
    %s728 = scalar_lea.vmem [#allocation1], 67
    %v729 = vld [vmem:[%s728] ss:$8 sm:$0xf]
    %s730 = scalar_lea.vmem [#allocation1], 67
    %v731 = vld [vmem:[%s730] ss:$8 sm:$0xf0]
    %vm732 = vcmask 1047556
    %v733 = vsel %vm732, %v731, %v729
    %734 = vrot.lane.b32.xlu0 %v733, 48
    %v735 = vpop.permute.xlu0 %734
    %vm736 = vcmask 523648
    %s737 = scalar_lea.vmem [#allocation0], 8
    %738 = vst.msk [vmem:[%s737] sm:$0xff] %vm736, %v735
    %s739 = scalar_lea.vmem [#allocation1], 131
    %v740 = vld [vmem:[%s739] ss:$8 sm:$0xf]
    %s741 = scalar_lea.vmem [#allocation1], 131
    %v742 = vld [vmem:[%s741] ss:$8 sm:$0xf0]
    %vm743 = vcmask 1047556
    %v744 = vsel %vm743, %v742, %v740
    %745 = vrot.lane.b32.xlu0 %v744, 48
    %v746 = vpop.permute.xlu0 %745
    %vm747 = vcmask 523648
    %s748 = scalar_lea.vmem [#allocation0], 16
    %749 = vst.msk [vmem:[%s748] sm:$0xff] %vm747, %v746
    %s750 = scalar_lea.vmem [#allocation1], 195
    %v751 = vld [vmem:[%s750] ss:$8 sm:$0xf]
    %s752 = scalar_lea.vmem [#allocation1], 195
    %v753 = vld [vmem:[%s752] ss:$8 sm:$0xf0]
    %vm754 = vcmask 1047556
    %v755 = vsel %vm754, %v753, %v751
    %756 = vrot.lane.b32.xlu0 %v755, 48
    %v757 = vpop.permute.xlu0 %756
    %vm758 = vcmask 523648
    %s759 = scalar_lea.vmem [#allocation0], 24
    %760 = vst.msk [vmem:[%s759] sm:$0xff] %vm758, %v757
    %s761 = scalar_lea.vmem [#allocation1], 2
    %v762 = vld [vmem:[%s761] ss:$8 sm:$0xf]
    %s763 = scalar_lea.vmem [#allocation1], 2
    %v764 = vld [vmem:[%s763] ss:$8 sm:$0xf0]
    %vm765 = vcmask 1047556
    %v766 = vsel %vm765, %v764, %v762
    %767 = vrot.lane.b32.xlu0 %v766, 32
    %v768 = vpop.permute.xlu0 %767
    %vm769 = vcmask 392448
    %770 = vst.msk [vmem:[#allocation0] sm:$0xff] %vm769, %v768
    %s771 = scalar_lea.vmem [#allocation1], 66
    %v772 = vld [vmem:[%s771] ss:$8 sm:$0xf]
    %s773 = scalar_lea.vmem [#allocation1], 66
    %v774 = vld [vmem:[%s773] ss:$8 sm:$0xf0]
    %vm775 = vcmask 1047556
    %v776 = vsel %vm775, %v774, %v772
    %777 = vrot.lane.b32.xlu0 %v776, 32
    %v778 = vpop.permute.xlu0 %777
    %vm779 = vcmask 392448
    %s780 = scalar_lea.vmem [#allocation0], 8
    %781 = vst.msk [vmem:[%s780] sm:$0xff] %vm779, %v778
    %s782 = scalar_lea.vmem [#allocation1], 130
    %v783 = vld [vmem:[%s782] ss:$8 sm:$0xf]
    %s784 = scalar_lea.vmem [#allocation1], 130
    %v785 = vld [vmem:[%s784] ss:$8 sm:$0xf0]
    %vm786 = vcmask 1047556
    %v787 = vsel %vm786, %v785, %v783
    %788 = vrot.lane.b32.xlu0 %v787, 32
    %v789 = vpop.permute.xlu0 %788
    %vm790 = vcmask 392448
    %s791 = scalar_lea.vmem [#allocation0], 16
    %792 = vst.msk [vmem:[%s791] sm:$0xff] %vm790, %v789
    %s793 = scalar_lea.vmem [#allocation1], 194
    %v794 = vld [vmem:[%s793] ss:$8 sm:$0xf]
    %s795 = scalar_lea.vmem [#allocation1], 194
    %v796 = vld [vmem:[%s795] ss:$8 sm:$0xf0]
    %vm797 = vcmask 1047556
    %v798 = vsel %vm797, %v796, %v794
    %799 = vrot.lane.b32.xlu0 %v798, 32
    %v800 = vpop.permute.xlu0 %799
    %vm801 = vcmask 392448
    %s802 = scalar_lea.vmem [#allocation0], 24
    %803 = vst.msk [vmem:[%s802] sm:$0xff] %vm801, %v800
    %s804 = scalar_lea.vmem [#allocation1], 1
    %v805 = vld [vmem:[%s804] ss:$8 sm:$0xf]
    %s806 = scalar_lea.vmem [#allocation1], 1
    %v807 = vld [vmem:[%s806] ss:$8 sm:$0xf0]
    %vm808 = vcmask 1047556
    %v809 = vsel %vm808, %v807, %v805
    %810 = vrot.lane.b32.xlu0 %v809, 16
    %v811 = vpop.permute.xlu0 %810
    %vm812 = vcmask 261248
    %813 = vst.msk [vmem:[#allocation0] sm:$0xff] %vm812, %v811
    %s814 = scalar_lea.vmem [#allocation1], 65
    %v815 = vld [vmem:[%s814] ss:$8 sm:$0xf]
    %s816 = scalar_lea.vmem [#allocation1], 65
    %v817 = vld [vmem:[%s816] ss:$8 sm:$0xf0]
    %vm818 = vcmask 1047556
    %v819 = vsel %vm818, %v817, %v815
    %820 = vrot.lane.b32.xlu0 %v819, 16
    %v821 = vpop.permute.xlu0 %820
    %vm822 = vcmask 261248
    %s823 = scalar_lea.vmem [#allocation0], 8
    %824 = vst.msk [vmem:[%s823] sm:$0xff] %vm822, %v821
    %s825 = scalar_lea.vmem [#allocation1], 129
    %v826 = vld [vmem:[%s825] ss:$8 sm:$0xf]
    %s827 = scalar_lea.vmem [#allocation1], 129
    %v828 = vld [vmem:[%s827] ss:$8 sm:$0xf0]
    %vm829 = vcmask 1047556
    %v830 = vsel %vm829, %v828, %v826
    %831 = vrot.lane.b32.xlu0 %v830, 16
    %v832 = vpop.permute.xlu0 %831
    %vm833 = vcmask 261248
    %s834 = scalar_lea.vmem [#allocation0], 16
    %835 = vst.msk [vmem:[%s834] sm:$0xff] %vm833, %v832
    %s836 = scalar_lea.vmem [#allocation1], 193
    %v837 = vld [vmem:[%s836] ss:$8 sm:$0xf]
    %s838 = scalar_lea.vmem [#allocation1], 193
    %v839 = vld [vmem:[%s838] ss:$8 sm:$0xf0]
    %vm840 = vcmask 1047556
    %v841 = vsel %vm840, %v839, %v837
    %842 = vrot.lane.b32.xlu0 %v841, 16
    %v843 = vpop.permute.xlu0 %842
    %vm844 = vcmask 261248
    %s845 = scalar_lea.vmem [#allocation0], 24
    %846 = vst.msk [vmem:[%s845] sm:$0xff] %vm844, %v843
    %s848 = smul.u32 4, 2
    %s849 = sshllo.u32 0, %s848
    %s850 = sshrl.u32 %s848, 1
    %v851 = vld [vmem:[#allocation0] sm:%s849]
    %v852 = vpack.c.bf16 0.0, %v851
    %s853 = sshllo.u32 0, %s850
    %854 = vst [vmem:[%s1] sm:%s853] %v852
    %s855 = scalar_lea.vmem [#allocation0], 8
    %v856 = vld [vmem:[%s855] sm:%s849]
    %v857 = vpack.c.bf16 0.0, %v856
    %s858 = sshllo.u32 0, %s850
    %s859 = scalar_lea.vmem %s1, 4
    %860 = vst [vmem:[%s859] sm:%s858] %v857
    %s861 = scalar_lea.vmem [#allocation0], 16
    %v862 = vld [vmem:[%s861] sm:%s849]
    %v863 = vpack.c.bf16 0.0, %v862
    %s864 = sshllo.u32 0, %s850
    %s865 = smul.addr 4, 2
    %s866 = scalar_lea.vmem %s1, %s865
    %867 = vst [vmem:[%s866] sm:%s864] %v863
    %s868 = scalar_lea.vmem [#allocation0], 24
    %v869 = vld [vmem:[%s868] sm:%s849]
    %v870 = vpack.c.bf16 0.0, %v869
    %s871 = sshllo.u32 0, %s850
    %s872 = smul.addr 4, 3
    %s873 = scalar_lea.vmem %s1, %s872
    %874 = vst [vmem:[%s873] sm:%s871] %v870

// kernel: squeeze.19
$region0: #{squeeze.19}
  %s0 = inlined_call_operand.vmem [shape: bf16[1,32,8], index: 0, kind: input, shape index: {}]
  %s1 = inlined_call_operand.vmem [shape: bf16[256], index: 1, kind: output, shape index: {}]
  $region1: #{squeeze.19} parent=0
    #allocation0 [shape = 'u8[4096]{0}', space=vmem, size = 0x1000, scoped, tag = 'scoped mem for output reshape']
    #allocation1 [shape = 'u8[16384]{0}', space=vmem, size = 0x4000, scoped, tag = 'scoped mem for input reshape']
    %s3 = smul.u32 4, 2
    %s4 = sshllo.u32 0, %s3
    %s5 = smul.addr 4, 3
    %s6 = scalar_lea.vmem %s0, %s5
    %s7 = sshrl.u32 %s4, 1
    %s8 = sor.u32 %s4, %s7
    %s9 = sand.u32 %s8, 85
    %s10 = sshrl.u32 %s9, 1
    %s11 = sor.u32 %s9, %s10
    %s12 = sand.u32 51, %s11
    %s13 = sshrl.u32 %s12, 2
    %s14 = sor.u32 %s12, %s13
    %s15 = sand.u32 15, %s14
    %v16 = vld [vmem:[%s6] sm:%s15]
    %v17 = vunpack.c.l.bf16 %v16
    %v18 = vunpack.c.h.bf16 %v16
    %s19 = scalar_lea.vmem [#allocation1], 24
    %20 = vst [vmem:[%s19] sm:%s4] %v17
    %s21 = smul.addr 4, 2
    %s22 = scalar_lea.vmem %s0, %s21
    %s23 = sshrl.u32 %s4, 1
    %s24 = sor.u32 %s4, %s23
    %s25 = sand.u32 %s24, 85
    %s26 = sshrl.u32 %s25, 1
    %s27 = sor.u32 %s25, %s26
    %s28 = sand.u32 51, %s27
    %s29 = sshrl.u32 %s28, 2
    %s30 = sor.u32 %s28, %s29
    %s31 = sand.u32 15, %s30
    %v32 = vld [vmem:[%s22] sm:%s31]
    %v33 = vunpack.c.l.bf16 %v32
    %v34 = vunpack.c.h.bf16 %v32
    %s35 = scalar_lea.vmem [#allocation1], 16
    %36 = vst [vmem:[%s35] sm:%s4] %v33
    %s37 = scalar_lea.vmem %s0, 4
    %s38 = sshrl.u32 %s4, 1
    %s39 = sor.u32 %s4, %s38
    %s40 = sand.u32 %s39, 85
    %s41 = sshrl.u32 %s40, 1
    %s42 = sor.u32 %s40, %s41
    %s43 = sand.u32 51, %s42
    %s44 = sshrl.u32 %s43, 2
    %s45 = sor.u32 %s43, %s44
    %s46 = sand.u32 15, %s45
    %v47 = vld [vmem:[%s37] sm:%s46]
    %v48 = vunpack.c.l.bf16 %v47
    %v49 = vunpack.c.h.bf16 %v47
    %s50 = scalar_lea.vmem [#allocation1], 8
    %51 = vst [vmem:[%s50] sm:%s4] %v48
    %s52 = sshrl.u32 %s4, 1
    %s53 = sor.u32 %s4, %s52
    %s54 = sand.u32 %s53, 85
    %s55 = sshrl.u32 %s54, 1
    %s56 = sor.u32 %s54, %s55
    %s57 = sand.u32 51, %s56
    %s58 = sshrl.u32 %s57, 2
    %s59 = sor.u32 %s57, %s58
    %s60 = sand.u32 15, %s59
    %v61 = vld [vmem:[%s0] sm:%s60]
    %v62 = vunpack.c.l.bf16 %v61
    %v63 = vunpack.c.h.bf16 %v61
    %64 = vst [vmem:[#allocation1] sm:%s4] %v62
    %s65 = smov 3
    %v66 = vld [vmem:[#allocation1] ss:$16 sm:%s65]
    %vm67 = vcmask 64512
    %68 = vst.msk [vmem:[#allocation0] sm:$0x3] %vm67, %v66
    %s69 = scalar_lea.vmem [#allocation1], 15
    %s70 = smov 3
    %v71 = vld [vmem:[%s69] ss:$16 sm:%s70]
    %72 = vrot.lane.b32.xlu0 %v71, 120
    %v73 = vpop.permute.xlu0 %72
    %vm74 = vcmask 1048512
    %75 = vst.msk [vmem:[#allocation0] sm:$0x3] %vm74, %v73
    %s76 = scalar_lea.vmem [#allocation1], 14
    %s77 = smov 3
    %v78 = vld [vmem:[%s76] ss:$16 sm:%s77]
    %79 = vrot.lane.b32.xlu0 %v78, 112
    %v80 = vpop.permute.xlu0 %79
    %vm81 = vcmask 982912
    %82 = vst.msk [vmem:[#allocation0] sm:$0x3] %vm81, %v80
    %s83 = scalar_lea.vmem [#allocation1], 13
    %s84 = smov 3
    %v85 = vld [vmem:[%s83] ss:$16 sm:%s84]
    %86 = vrot.lane.b32.xlu0 %v85, 104
    %v87 = vpop.permute.xlu0 %86
    %vm88 = vcmask 917312
    %89 = vst.msk [vmem:[#allocation0] sm:$0x3] %vm88, %v87
    %s90 = scalar_lea.vmem [#allocation1], 12
    %s91 = smov 3
    %v92 = vld [vmem:[%s90] ss:$16 sm:%s91]
    %93 = vrot.lane.b32.xlu0 %v92, 96
    %v94 = vpop.permute.xlu0 %93
    %vm95 = vcmask 851712
    %96 = vst.msk [vmem:[#allocation0] sm:$0x3] %vm95, %v94
    %s97 = scalar_lea.vmem [#allocation1], 11
    %s98 = smov 3
    %v99 = vld [vmem:[%s97] ss:$16 sm:%s98]
    %100 = vrot.lane.b32.xlu0 %v99, 88
    %v101 = vpop.permute.xlu0 %100
    %vm102 = vcmask 786112
    %103 = vst.msk [vmem:[#allocation0] sm:$0x3] %vm102, %v101
    %s104 = scalar_lea.vmem [#allocation1], 10
    %s105 = smov 3
    %v106 = vld [vmem:[%s104] ss:$16 sm:%s105]
    %107 = vrot.lane.b32.xlu0 %v106, 80
    %v108 = vpop.permute.xlu0 %107
    %vm109 = vcmask 720512
    %110 = vst.msk [vmem:[#allocation0] sm:$0x3] %vm109, %v108
    %s111 = scalar_lea.vmem [#allocation1], 9
    %s112 = smov 3
    %v113 = vld [vmem:[%s111] ss:$16 sm:%s112]
    %114 = vrot.lane.b32.xlu0 %v113, 72
    %v115 = vpop.permute.xlu0 %114
    %vm116 = vcmask 654912
    %117 = vst.msk [vmem:[#allocation0] sm:$0x3] %vm116, %v115
    %s118 = scalar_lea.vmem [#allocation1], 8
    %s119 = smov 3
    %v120 = vld [vmem:[%s118] ss:$16 sm:%s119]
    %121 = vrot.lane.b32.xlu0 %v120, 64
    %v122 = vpop.permute.xlu0 %121
    %vm123 = vcmask 589312
    %124 = vst.msk [vmem:[#allocation0] sm:$0x3] %vm123, %v122
    %s125 = scalar_lea.vmem [#allocation1], 7
    %s126 = smov 3
    %v127 = vld [vmem:[%s125] ss:$16 sm:%s126]
    %128 = vrot.lane.b32.xlu0 %v127, 56
    %v129 = vpop.permute.xlu0 %128
    %vm130 = vcmask 523712
    %131 = vst.msk [vmem:[#allocation0] sm:$0x3] %vm130, %v129
    %s132 = scalar_lea.vmem [#allocation1], 6
    %s133 = smov 3
    %v134 = vld [vmem:[%s132] ss:$16 sm:%s133]
    %135 = vrot.lane.b32.xlu0 %v134, 48
    %v136 = vpop.permute.xlu0 %135
    %vm137 = vcmask 458112
    %138 = vst.msk [vmem:[#allocation0] sm:$0x3] %vm137, %v136
    %s139 = scalar_lea.vmem [#allocation1], 5
    %s140 = smov 3
    %v141 = vld [vmem:[%s139] ss:$16 sm:%s140]
    %142 = vrot.lane.b32.xlu0 %v141, 40
    %v143 = vpop.permute.xlu0 %142
    %vm144 = vcmask 392512
    %145 = vst.msk [vmem:[#allocation0] sm:$0x3] %vm144, %v143
    %s146 = scalar_lea.vmem [#allocation1], 4
    %s147 = smov 3
    %v148 = vld [vmem:[%s146] ss:$16 sm:%s147]
    %149 = vrot.lane.b32.xlu0 %v148, 32
    %v150 = vpop.permute.xlu0 %149
    %vm151 = vcmask 326912
    %152 = vst.msk [vmem:[#allocation0] sm:$0x3] %vm151, %v150
    %s153 = scalar_lea.vmem [#allocation1], 3
    %s154 = smov 3
    %v155 = vld [vmem:[%s153] ss:$16 sm:%s154]
    %156 = vrot.lane.b32.xlu0 %v155, 24
    %v157 = vpop.permute.xlu0 %156
    %vm158 = vcmask 261312
    %159 = vst.msk [vmem:[#allocation0] sm:$0x3] %vm158, %v157
    %s160 = scalar_lea.vmem [#allocation1], 2
    %s161 = smov 3
    %v162 = vld [vmem:[%s160] ss:$16 sm:%s161]
    %163 = vrot.lane.b32.xlu0 %v162, 16
    %v164 = vpop.permute.xlu0 %163
    %vm165 = vcmask 195712
    %166 = vst.msk [vmem:[#allocation0] sm:$0x3] %vm165, %v164
    %s167 = scalar_lea.vmem [#allocation1], 1
    %s168 = smov 3
    %v169 = vld [vmem:[%s167] ss:$16 sm:%s168]
    %170 = vrot.lane.b32.xlu0 %v169, 8
    %v171 = vpop.permute.xlu0 %170
    %vm172 = vcmask 130112
    %173 = vst.msk [vmem:[#allocation0] sm:$0x3] %vm172, %v171
    %s175 = smul.u32 1, 2
    %s176 = sshllo.u32 0, %s175
    %s177 = sshrl.u32 %s175, 1
    %v178 = vld [vmem:[#allocation0] sm:%s176]
    %v179 = vpack.c.bf16 0.0, %v178
    %s180 = sshllo.u32 0, %s177
    %181 = vst [vmem:[%s1] sm:%s180] %v179

// kernel: squeeze.17
$region0: #{squeeze.17}
  %s0 = inlined_call_operand.vmem [shape: bf16[1,32,32], index: 0, kind: input, shape index: {}]
  %s1 = inlined_call_operand.vmem [shape: bf16[1024], index: 1, kind: output, shape index: {}]
  $region1: #{squeeze.17} parent=0
    #allocation0 [shape = 'u8[4096]{0}', space=vmem, size = 0x1000, scoped, tag = 'scoped mem for output reshape']
    #allocation1 [shape = 'u8[16384]{0}', space=vmem, size = 0x4000, scoped, tag = 'scoped mem for input reshape']
    %s3 = smul.u32 4, 2
    %s4 = sshllo.u32 0, %s3
    %s5 = smul.addr 4, 3
    %s6 = scalar_lea.vmem %s0, %s5
    %s7 = sshrl.u32 %s4, 1
    %s8 = sor.u32 %s4, %s7
    %s9 = sand.u32 %s8, 85
    %s10 = sshrl.u32 %s9, 1
    %s11 = sor.u32 %s9, %s10
    %s12 = sand.u32 51, %s11
    %s13 = sshrl.u32 %s12, 2
    %s14 = sor.u32 %s12, %s13
    %s15 = sand.u32 15, %s14
    %v16 = vld [vmem:[%s6] sm:%s15]
    %v17 = vunpack.c.l.bf16 %v16
    %v18 = vunpack.c.h.bf16 %v16
    %s19 = scalar_lea.vmem [#allocation1], 24
    %20 = vst [vmem:[%s19] sm:%s4] %v17
    %s21 = smul.addr 4, 2
    %s22 = scalar_lea.vmem %s0, %s21
    %s23 = sshrl.u32 %s4, 1
    %s24 = sor.u32 %s4, %s23
    %s25 = sand.u32 %s24, 85
    %s26 = sshrl.u32 %s25, 1
    %s27 = sor.u32 %s25, %s26
    %s28 = sand.u32 51, %s27
    %s29 = sshrl.u32 %s28, 2
    %s30 = sor.u32 %s28, %s29
    %s31 = sand.u32 15, %s30
    %v32 = vld [vmem:[%s22] sm:%s31]
    %v33 = vunpack.c.l.bf16 %v32
    %v34 = vunpack.c.h.bf16 %v32
    %s35 = scalar_lea.vmem [#allocation1], 16
    %36 = vst [vmem:[%s35] sm:%s4] %v33
    %s37 = scalar_lea.vmem %s0, 4
    %s38 = sshrl.u32 %s4, 1
    %s39 = sor.u32 %s4, %s38
    %s40 = sand.u32 %s39, 85
    %s41 = sshrl.u32 %s40, 1
    %s42 = sor.u32 %s40, %s41
    %s43 = sand.u32 51, %s42
    %s44 = sshrl.u32 %s43, 2
    %s45 = sor.u32 %s43, %s44
    %s46 = sand.u32 15, %s45
    %v47 = vld [vmem:[%s37] sm:%s46]
    %v48 = vunpack.c.l.bf16 %v47
    %v49 = vunpack.c.h.bf16 %v47
    %s50 = scalar_lea.vmem [#allocation1], 8
    %51 = vst [vmem:[%s50] sm:%s4] %v48
    %s52 = sshrl.u32 %s4, 1
    %s53 = sor.u32 %s4, %s52
    %s54 = sand.u32 %s53, 85
    %s55 = sshrl.u32 %s54, 1
    %s56 = sor.u32 %s54, %s55
    %s57 = sand.u32 51, %s56
    %s58 = sshrl.u32 %s57, 2
    %s59 = sor.u32 %s57, %s58
    %s60 = sand.u32 15, %s59
    %v61 = vld [vmem:[%s0] sm:%s60]
    %v62 = vunpack.c.l.bf16 %v61
    %v63 = vunpack.c.h.bf16 %v61
    %64 = vst [vmem:[#allocation1] sm:%s4] %v62
    %v65 = vld [vmem:[#allocation1] ss:$4 sm:$0xff]
    %vm66 = vcmask 261120
    %67 = vst.msk [vmem:[#allocation0] sm:$0xff] %vm66, %v65
    %s68 = scalar_lea.vmem [#allocation1], 3
    %v69 = vld [vmem:[%s68] ss:$4 sm:$0xff]
    %70 = vrot.lane.b32.xlu0 %v69, 96
    %v71 = vpop.permute.xlu0 %70
    %vm72 = vcmask 1048320
    %73 = vst.msk [vmem:[#allocation0] sm:$0xff] %vm72, %v71
    %s74 = scalar_lea.vmem [#allocation1], 2
    %v75 = vld [vmem:[%s74] ss:$4 sm:$0xff]
    %76 = vrot.lane.b32.xlu0 %v75, 64
    %v77 = vpop.permute.xlu0 %76
    %vm78 = vcmask 785920
    %79 = vst.msk [vmem:[#allocation0] sm:$0xff] %vm78, %v77
    %s80 = scalar_lea.vmem [#allocation1], 1
    %v81 = vld [vmem:[%s80] ss:$4 sm:$0xff]
    %82 = vrot.lane.b32.xlu0 %v81, 32
    %v83 = vpop.permute.xlu0 %82
    %vm84 = vcmask 523520
    %85 = vst.msk [vmem:[#allocation0] sm:$0xff] %vm84, %v83
    %s87 = smul.u32 4, 2
    %s88 = sshllo.u32 0, %s87
    %s89 = sshrl.u32 %s87, 1
    %v90 = vld [vmem:[#allocation0] sm:%s88]
    %v91 = vpack.c.bf16 0.0, %v90
    %s92 = sshllo.u32 0, %s89
    %93 = vst [vmem:[%s1] sm:%s92] %v91

// kernel: distiller_forward.13
$region0: #{distiller_forward.13}
  #allocation0 [shape = 'u32[]', space=smem, size = 0x4, offset = 0x4, fixed_abs, tag = 'smem constant byte address 0x4 - core index']
  #allocation1 [shape = 'u32[144,128]{1,0:T(1,128)}', space=vmem, size = 0x12000, scoped, tag = 'internal scratch']
  %s0 = inlined_call_operand.vmem [shape: bf16[64,128], index: 0, kind: input, shape index: {}]
  %s1 = inlined_call_operand.vmem [shape: bf16[64,128], index: 1, kind: input, shape index: {}]
  %s2 = inlined_call_operand.vmem [shape: f32[64,128], index: 2, kind: input, shape index: {}]
  %s3 = inlined_call_operand.hbm [shape: f32[1,1], index: 3, kind: output, shape index: {}]
  %s4 = sld [smem:[#allocation0]]
  $region26: #{distiller_forward.13} parent=0
    _
  %s6 = ssub.s32 1, %s4
  %s7 = scalar_select 0, %s6, %s4
  $region1: #{distiller_forward.13} parent=0
    #allocation2 [shape = 'u8[512]{0}', space=vmem, size = 0x400, scoped, tag = 'output window, operand 0, single buffered']
    #allocation3 [shape = 's32[1]{0}', space=sflag, size = 0x4, scoped, tag = 'scoped memory for distiller_forward.13']
    %8 = vsyncpa [#allocation3], 0
    // Predicated region
    $region2: #{distiller_forward.13} parent=1 // pred_check
      _
    $region3: #{distiller_forward.13} parent=1 // pred_check_branch
      %10 = sbr.rel (0) target = $region5
    $region4: #{distiller_forward.13} parent=1 // pred_region
      _
    $region5: #{distiller_forward.13} parent=1 // pred_fallthru
      _
    // Predicated region
    $region6: #{distiller_forward.13} parent=1 // pred_check
      _
    $region7: #{distiller_forward.13} parent=1 // pred_check_branch
      %12 = sbr.rel (0) target = $region9
    $region8: #{distiller_forward.13} parent=1 // pred_region
      _
    $region9: #{distiller_forward.13} parent=1 // pred_fallthru
      _
    // Predicated region
    $region10: #{distiller_forward.13} parent=1 // pred_check
      _
    $region11: #{distiller_forward.13} parent=1 // pred_check_branch
      %14 = sbr.rel (0) target = $region13
    $region12: #{distiller_forward.13} parent=1 // pred_region
      _
    $region13: #{distiller_forward.13} parent=1 // pred_fallthru
      _
    %p15 = scmp.eq.s32.totalorder 0, 0
    // Predicated region
    $region14: #{distiller_forward.13} parent=1 // pred_check
      %p16 = pneg %p15
    $region15: #{distiller_forward.13} parent=1 // pred_check_branch
      %18 = sbr.rel (%p16) target = $region17
    $region16: #{distiller_forward.13} parent=1 // pred_region
      %vm19 = vcmask 0
      %20 = vst.msk [vmem:[#allocation2] sm:$0x1] %vm19, 0.0
    $region17: #{distiller_forward.13} parent=1 // pred_fallthru
      _
    %v21 = vld [vmem:[%s0] sm:$0xf]
    %v22 = vld [vmem:[%s0 + $0x4] sm:$0xf]
    %v23 = vld [vmem:[%s0 + $0x8] sm:$0xf]
    %v24 = vld [vmem:[%s0 + $0xc] sm:$0xf]
    %v25 = vld [vmem:[%s0 + $0x10] sm:$0xf]
    %v26 = vld [vmem:[%s0 + $0x14] sm:$0xf]
    %v27 = vld [vmem:[%s0 + $0x18] sm:$0xf]
    %v28 = vld [vmem:[%s0 + $0x1c] sm:$0xf]
    %v29 = vunpack.c.l.bf16 %v21
    %v30 = vunpack.c.l.bf16 %v22
    %v31 = vunpack.c.l.bf16 %v23
    %v32 = vunpack.c.l.bf16 %v24
    %v33 = vunpack.c.l.bf16 %v25
    %v34 = vunpack.c.l.bf16 %v26
    %v35 = vunpack.c.l.bf16 %v27
    %v36 = vunpack.c.l.bf16 %v28
    %v37 = vld [vmem:[%s1] sm:$0xf]
    %v38 = vld [vmem:[%s1 + $0x4] sm:$0xf]
    %v39 = vld [vmem:[%s1 + $0x8] sm:$0xf]
    %v40 = vld [vmem:[%s1 + $0xc] sm:$0xf]
    %v41 = vld [vmem:[%s1 + $0x10] sm:$0xf]
    %v42 = vld [vmem:[%s1 + $0x14] sm:$0xf]
    %v43 = vld [vmem:[%s1 + $0x18] sm:$0xf]
    %v44 = vld [vmem:[%s1 + $0x1c] sm:$0xf]
    %v45 = vunpack.c.l.bf16 %v37
    %v46 = vunpack.c.l.bf16 %v38
    %v47 = vunpack.c.l.bf16 %v39
    %v48 = vunpack.c.l.bf16 %v40
    %v49 = vunpack.c.l.bf16 %v41
    %v50 = vunpack.c.l.bf16 %v42
    %v51 = vunpack.c.l.bf16 %v43
    %v52 = vunpack.c.l.bf16 %v44
    %v53 = vsub.f32 %v29, %v45
    %v54 = vsub.f32 %v30, %v46
    %v55 = vsub.f32 %v31, %v47
    %v56 = vsub.f32 %v32, %v48
    %v57 = vsub.f32 %v33, %v49
    %v58 = vsub.f32 %v34, %v50
    %v59 = vsub.f32 %v35, %v51
    %v60 = vsub.f32 %v36, %v52
    %v61 = vld [vmem:[%s2] sm:$0xff]
    %v62 = vld [vmem:[%s2 + $0x8] sm:$0xff]
    %v63 = vld [vmem:[%s2 + $0x10] sm:$0xff]
    %v64 = vld [vmem:[%s2 + $0x18] sm:$0xff]
    %v65 = vld [vmem:[%s2 + $0x20] sm:$0xff]
    %v66 = vld [vmem:[%s2 + $0x28] sm:$0xff]
    %v67 = vld [vmem:[%s2 + $0x30] sm:$0xff]
    %v68 = vld [vmem:[%s2 + $0x38] sm:$0xff]
    %v69 = vmul.f32 %v61, %v53
    %v70 = vmul.f32 %v62, %v54
    %v71 = vmul.f32 %v63, %v55
    %v72 = vmul.f32 %v64, %v56
    %v73 = vmul.f32 %v65, %v57
    %v74 = vmul.f32 %v66, %v58
    %v75 = vmul.f32 %v67, %v59
    %v76 = vmul.f32 %v68, %v60
    %v77 = vmul.f32 %v69, %v53
    %v78 = vmul.f32 %v70, %v54
    %v79 = vmul.f32 %v71, %v55
    %v80 = vmul.f32 %v72, %v56
    %v81 = vmul.f32 %v73, %v57
    %v82 = vmul.f32 %v74, %v58
    %v83 = vmul.f32 %v75, %v59
    %v84 = vmul.f32 %v76, %v60
    %85 = vadd.xlane.f32.xlu0 %v77
    %v86 = vpop.xlane.xlu0 %85
    %87 = vadd.xlane.f32.xlu0 %v78
    %v88 = vpop.xlane.xlu0 %87
    %89 = vadd.xlane.f32.xlu0 %v79
    %v90 = vpop.xlane.xlu0 %89
    %91 = vadd.xlane.f32.xlu0 %v80
    %v92 = vpop.xlane.xlu0 %91
    %93 = vadd.xlane.f32.xlu0 %v81
    %v94 = vpop.xlane.xlu0 %93
    %95 = vadd.xlane.f32.xlu0 %v82
    %v96 = vpop.xlane.xlu0 %95
    %97 = vadd.xlane.f32.xlu0 %v83
    %v98 = vpop.xlane.xlu0 %97
    %99 = vadd.xlane.f32.xlu0 %v84
    %v100 = vpop.xlane.xlu0 %99
    %v101 = vld [vmem:[#allocation2] sm:$0x1]
    %v102 = vadd.f32 %v86, %v88
    %v103 = vadd.f32 %v102, %v90
    %v104 = vadd.f32 %v103, %v92
    %v105 = vadd.f32 %v104, %v94
    %v106 = vadd.f32 %v105, %v96
    %v107 = vadd.f32 %v106, %v98
    %v108 = vadd.f32 %v107, %v100
    %v109 = vrot.slane %v108, 4
    %v110 = vadd.f32 %v108, %v109
    %v111 = vrot.slane %v110, 2
    %v112 = vadd.f32 %v110, %v111
    %v113 = vrot.slane %v112, 1
    %v114 = vadd.f32 %v112, %v113
    %v115 = vadd.f32 %v101, %v114
    %vm116 = vcmask 0
    %117 = vst.msk [vmem:[#allocation2] sm:$0x1] %vm116, %v115
    // Predicated region
    $region18: #{distiller_forward.13} parent=1 // pred_check
      _
    $region19: #{distiller_forward.13} parent=1 // pred_check_branch
      %119 = sbr.rel (0) target = $region21
    $region20: #{distiller_forward.13} parent=1 // pred_region
      %s121 = ssub.s32 16, 16
      %122 = vsyncadd [#allocation3], %s121
      %s124 = sshll.u32 [#allocation2], 4
      %s125 = int_to_ptr.vmem [resolvable:$true] %s124
      %127 = dma.vmem_to_hbm [thread:$0]  %s125, 16, %s3, [#allocation3]
    $region21: #{distiller_forward.13} parent=1 // pred_fallthru
      _
    // Predicated region
    $region22: #{distiller_forward.13} parent=1 // pred_check
      _
    $region23: #{distiller_forward.13} parent=1 // pred_check_branch
      %129 = sbr.rel (0) target = $region25
    $region24: #{distiller_forward.13} parent=1 // pred_region
      %130 = dma.done [#allocation3], 16
    $region25: #{distiller_forward.13} parent=1 // pred_fallthru
      _
    %131 = vsyncpa [#allocation3], 1

// kernel: distiller_forward.12
$region0: #{distiller_forward.12}
  #allocation0 [shape = 'u32[]', space=smem, size = 0x4, offset = 0x4, fixed_abs, tag = 'smem constant byte address 0x4 - core index']
  #allocation1 [shape = 'u32[144,128]{1,0:T(1,128)}', space=vmem, size = 0x12000, scoped, tag = 'internal scratch']
  %s0 = inlined_call_operand.vmem [shape: bf16[2,8,32], index: 0, kind: input, shape index: {}]
  %s1 = inlined_call_operand.vmem [shape: f32[2,8], index: 1, kind: input, shape index: {}]
  %s2 = inlined_call_operand.vmem [shape: f32[2,32,8], index: 2, kind: input, shape index: {}]
  %s3 = inlined_call_operand.vmem [shape: f32[2,1,8], index: 3, kind: input, shape index: {}]
  %s4 = inlined_call_operand.vmem [shape: f32[2,8], index: 4, kind: input, shape index: {}]
  %s5 = inlined_call_operand.hbm [shape: f32[2,8], index: 5, kind: output, shape index: {0}]
  %s6 = inlined_call_operand.hbm [shape: f32[1,1], index: 6, kind: output, shape index: {1}]
  %s7 = inlined_call_operand.hbm [shape: f32[1,1], index: 7, kind: output, shape index: {2}]
  %8 = xla_tuple %s5, %s6, %s7
  %s9 = sld [smem:[#allocation0]]
  $region46: #{distiller_forward.12} parent=0
    _
  %s11 = ssub.s32 1, %s9
  %s12 = scalar_select 0, %s11, %s9
  $region1: #{distiller_forward.12} parent=0
    #allocation2 [shape = 'u8[1024]{0}', space=vmem, size = 0x400, scoped, tag = 'output window, operand 0, single buffered']
    #allocation3 [shape = 's32[1]{0}', space=sflag, size = 0x4, scoped, tag = 'scoped memory for distiller_forward.12']
    #allocation4 [shape = 'u8[512]{0}', space=vmem, size = 0x400, scoped, tag = 'output window, operand 1, single buffered']
    #allocation5 [shape = 's32[1]{0}', space=sflag, size = 0x4, scoped, tag = 'scoped memory for distiller_forward.12']
    #allocation6 [shape = 'u8[512]{0}', space=vmem, size = 0x400, scoped, tag = 'output window, operand 2, single buffered']
    %13 = vsyncpa [#allocation3], 0
    %14 = vsyncpa [#allocation5], 0
    // Predicated region
    $region2: #{distiller_forward.12} parent=1 // pred_check
      _
    $region3: #{distiller_forward.12} parent=1 // pred_check_branch
      %16 = sbr.rel (0) target = $region5
    $region4: #{distiller_forward.12} parent=1 // pred_region
      _
    $region5: #{distiller_forward.12} parent=1 // pred_fallthru
      _
    // Predicated region
    $region6: #{distiller_forward.12} parent=1 // pred_check
      _
    $region7: #{distiller_forward.12} parent=1 // pred_check_branch
      %18 = sbr.rel (0) target = $region9
    $region8: #{distiller_forward.12} parent=1 // pred_region
      _
    $region9: #{distiller_forward.12} parent=1 // pred_fallthru
      _
    // Predicated region
    $region10: #{distiller_forward.12} parent=1 // pred_check
      _
    $region11: #{distiller_forward.12} parent=1 // pred_check_branch
      %20 = sbr.rel (0) target = $region13
    $region12: #{distiller_forward.12} parent=1 // pred_region
      _
    $region13: #{distiller_forward.12} parent=1 // pred_fallthru
      _
    // Predicated region
    $region14: #{distiller_forward.12} parent=1 // pred_check
      _
    $region15: #{distiller_forward.12} parent=1 // pred_check_branch
      %22 = sbr.rel (0) target = $region17
    $region16: #{distiller_forward.12} parent=1 // pred_region
      _
    $region17: #{distiller_forward.12} parent=1 // pred_fallthru
      _
    // Predicated region
    $region18: #{distiller_forward.12} parent=1 // pred_check
      _
    $region19: #{distiller_forward.12} parent=1 // pred_check_branch
      %24 = sbr.rel (0) target = $region21
    $region20: #{distiller_forward.12} parent=1 // pred_region
      _
    $region21: #{distiller_forward.12} parent=1 // pred_fallthru
      _
    %v25 = vld [vmem:[%s1] sm:$0x3]
    %v26 = vld [vmem:[%s0] sm:$0xf]
    %v27 = vunpack.c.l.bf16 %v26
    %vm28 = vcmask 64512
    %v30 = vsel %vm28, %v25, 0
    %32 = vmatprep.subr.mxu0 0.0
    %33 = vmatpush1.msra.mxu0 %v27
    %34 = vmatprep.subr.mxu0 0.0
    %35 = vmatpush1.msra.mxu0 0.0
    %36 = vmatprep.subr.mxu0 0.0
    %37 = vmatpush1.msra.mxu0 0.0
    %38 = vmatprep.subr.mxu0 0.0
    %39 = vmatpush1.msra.mxu0 0.0
    %40 = vmatprep.subr.mxu0 0.0
    %41 = vmatpush1.msra.mxu0 0.0
    %42 = vmatprep.subr.mxu0 0.0
    %43 = vmatpush1.msra.mxu0 0.0
    %44 = vmatprep.subr.mxu0 0.0
    %45 = vmatpush1.msra.mxu0 0.0
    %46 = vmatprep.subr.mxu0 0.0
    %47 = vmatpush1.msra.mxu0 0.0
    %48 = vmatprep.subr.mxu0 0.0
    %49 = vmatpush1.msra.mxu0 0.0
    %50 = vmatprep.subr.mxu0 0.0
    %51 = vmatpush1.msra.mxu0 0.0
    %52 = vmatprep.subr.mxu0 0.0
    %53 = vmatpush1.msra.mxu0 0.0
    %54 = vmatprep.subr.mxu0 0.0
    %55 = vmatpush1.msra.mxu0 0.0
    %56 = vmatprep.subr.mxu0 0.0
    %57 = vmatpush1.msra.mxu0 0.0
    %58 = vmatprep.subr.mxu0 0.0
    %59 = vmatpush1.msra.mxu0 0.0
    %60 = vmatprep.subr.mxu0 0.0
    %61 = vmatpush1.msra.mxu0 0.0
    %62 = vmatprep.subr.mxu0 0.0
    %63 = vmatpush1.msra.mxu0 0.0
    %64 = vmatprep.subr.mxu0 0.0
    %65 = vmatpush1.msra.mxu0 0.0
    %66 = vmatprep.subr.mxu0 0.0
    %67 = vmatpush1.msra.mxu0 0.0
    %68 = vmatprep.subr.mxu0 0.0
    %69 = vmatpush1.msra.mxu0 0.0
    %70 = vmatprep.subr.mxu0 0.0
    %71 = vmatpush1.msra.mxu0 0.0
    %72 = vmatprep.subr.mxu0 0.0
    %73 = vmatpush1.msra.mxu0 0.0
    %74 = vmatprep.subr.mxu0 0.0
    %75 = vmatpush1.msra.mxu0 0.0
    %76 = vmatprep.subr.mxu0 0.0
    %77 = vmatpush1.msra.mxu0 0.0
    %78 = vmatprep.subr.mxu0 0.0
    %79 = vmatpush1.msra.mxu0 0.0
    %80 = vmatprep.subr.mxu0 0.0
    %81 = vmatpush1.msra.mxu0 0.0
    %82 = vmatprep.subr.mxu0 0.0
    %83 = vmatpush1.msra.mxu0 0.0
    %84 = vmatprep.subr.mxu0 0.0
    %85 = vmatpush1.msra.mxu0 0.0
    %86 = vmatprep.subr.mxu0 0.0
    %87 = vmatpush1.msra.mxu0 0.0
    %88 = vmatprep.subr.mxu0 0.0
    %89 = vmatpush1.msra.mxu0 0.0
    %90 = vmatprep.subr.mxu0 0.0
    %91 = vmatpush1.msra.mxu0 0.0
    %92 = vmatprep.subr.mxu0 0.0
    %93 = vmatpush1.msra.mxu0 0.0
    %94 = vmatprep.subr.mxu0 0.0
    %95 = vmatpush1.msra.mxu0 0.0
    %96 = vmatprep.mubr.f32.mxu0 0.0
    %97 = vmatmul.mubr.f32.gmra.mrb[0].mxu0 %v30
    %v98 = vpop.f32.mrb[0].mxu0
    %v99 = vadd.f32 0.0, %v98
    %v100 = vpop.f32.mrb[0].mxu0
    %101 = vdwg.mxu0
    %s102 = scalar_lea.vmem %s0, 4
    %v103 = vld [vmem:[%s102] sm:$0xf]
    %v104 = vunpack.c.l.bf16 %v103
    %105 = vmatprep.subr.mxu0 0.0
    %106 = vmatpush1.msra.mxu0 %v104
    %107 = vmatprep.subr.mxu0 0.0
    %108 = vmatpush1.msra.mxu0 0.0
    %109 = vmatprep.subr.mxu0 0.0
    %110 = vmatpush1.msra.mxu0 0.0
    %111 = vmatprep.subr.mxu0 0.0
    %112 = vmatpush1.msra.mxu0 0.0
    %113 = vmatprep.subr.mxu0 0.0
    %114 = vmatpush1.msra.mxu0 0.0
    %115 = vmatprep.subr.mxu0 0.0
    %116 = vmatpush1.msra.mxu0 0.0
    %117 = vmatprep.subr.mxu0 0.0
    %118 = vmatpush1.msra.mxu0 0.0
    %119 = vmatprep.subr.mxu0 0.0
    %120 = vmatpush1.msra.mxu0 0.0
    %121 = vmatprep.subr.mxu0 0.0
    %122 = vmatpush1.msra.mxu0 0.0
    %123 = vmatprep.subr.mxu0 0.0
    %124 = vmatpush1.msra.mxu0 0.0
    %125 = vmatprep.subr.mxu0 0.0
    %126 = vmatpush1.msra.mxu0 0.0
    %127 = vmatprep.subr.mxu0 0.0
    %128 = vmatpush1.msra.mxu0 0.0
    %129 = vmatprep.subr.mxu0 0.0
    %130 = vmatpush1.msra.mxu0 0.0
    %131 = vmatprep.subr.mxu0 0.0
    %132 = vmatpush1.msra.mxu0 0.0
    %133 = vmatprep.subr.mxu0 0.0
    %134 = vmatpush1.msra.mxu0 0.0
    %135 = vmatprep.subr.mxu0 0.0
    %136 = vmatpush1.msra.mxu0 0.0
    %137 = vmatprep.subr.mxu0 0.0
    %138 = vmatpush1.msra.mxu0 0.0
    %139 = vmatprep.subr.mxu0 0.0
    %140 = vmatpush1.msra.mxu0 0.0
    %141 = vmatprep.subr.mxu0 0.0
    %142 = vmatpush1.msra.mxu0 0.0
    %143 = vmatprep.subr.mxu0 0.0
    %144 = vmatpush1.msra.mxu0 0.0
    %145 = vmatprep.subr.mxu0 0.0
    %146 = vmatpush1.msra.mxu0 0.0
    %147 = vmatprep.subr.mxu0 0.0
    %148 = vmatpush1.msra.mxu0 0.0
    %149 = vmatprep.subr.mxu0 0.0
    %150 = vmatpush1.msra.mxu0 0.0
    %151 = vmatprep.subr.mxu0 0.0
    %152 = vmatpush1.msra.mxu0 0.0
    %153 = vmatprep.subr.mxu0 0.0
    %154 = vmatpush1.msra.mxu0 0.0
    %155 = vmatprep.subr.mxu0 0.0
    %156 = vmatpush1.msra.mxu0 0.0
    %157 = vmatprep.subr.mxu0 0.0
    %158 = vmatpush1.msra.mxu0 0.0
    %159 = vmatprep.subr.mxu0 0.0
    %160 = vmatpush1.msra.mxu0 0.0
    %161 = vmatprep.subr.mxu0 0.0
    %162 = vmatpush1.msra.mxu0 0.0
    %163 = vmatprep.subr.mxu0 0.0
    %164 = vmatpush1.msra.mxu0 0.0
    %165 = vmatprep.subr.mxu0 0.0
    %166 = vmatpush1.msra.mxu0 0.0
    %167 = vmatprep.subr.mxu0 0.0
    %168 = vmatpush1.msra.mxu0 0.0
    %169 = vmatprep.mubr.f32.mxu0 0.0
    %170 = vmatmul.mubr.f32.gmra.mrb[0].mxu0 %v30
    %v171 = vpop.f32.mrb[0].mxu0
    %v172 = vadd.f32 0.0, %v171
    %v173 = vpop.f32.mrb[0].mxu0
    %174 = vdwg.mxu0
    %v175 = vld [vmem:[%s2] sm:$0xff]
    %v176 = vld [vmem:[%s2 + $0x8] sm:$0xff]
    %v177 = vld [vmem:[%s2 + $0x10] sm:$0xff]
    %v178 = vld [vmem:[%s2 + $0x18] sm:$0xff]
    %v179 = vld [vmem:[%s3] sm:$0x1]
    %v181 = vlaneseq
    %v182 = vshrl.u32 %v181, 7
    %v183 = vsub.s32 0, %v182
    %v184 = vrot.slane %v179, %v183
    %vm186 = vcmask 261120
    %v188 = vsel %vm186, %v99, 0
    %190 = vmatprep.subr.mxu0 0.0
    %191 = vmatpush1.msra.mxu0 %v175
    %192 = vmatprep.subr.mxu0 0.0
    %193 = vmatpush1.msra.mxu0 %v176
    %194 = vmatprep.subr.mxu0 0.0
    %195 = vmatpush1.msra.mxu0 %v177
    %196 = vmatprep.subr.mxu0 0.0
    %197 = vmatpush1.msra.mxu0 %v178
    %198 = vmatprep.subr.mxu0 0.0
    %199 = vmatpush1.msra.mxu0 0.0
    %200 = vmatprep.subr.mxu0 0.0
    %201 = vmatpush1.msra.mxu0 0.0
    %202 = vmatprep.subr.mxu0 0.0
    %203 = vmatpush1.msra.mxu0 0.0
    %204 = vmatprep.subr.mxu0 0.0
    %205 = vmatpush1.msra.mxu0 0.0
    %206 = vmatprep.subr.mxu0 0.0
    %207 = vmatpush1.msra.mxu0 0.0
    %208 = vmatprep.subr.mxu0 0.0
    %209 = vmatpush1.msra.mxu0 0.0
    %210 = vmatprep.subr.mxu0 0.0
    %211 = vmatpush1.msra.mxu0 0.0
    %212 = vmatprep.subr.mxu0 0.0
    %213 = vmatpush1.msra.mxu0 0.0
    %214 = vmatprep.subr.mxu0 0.0
    %215 = vmatpush1.msra.mxu0 0.0
    %216 = vmatprep.subr.mxu0 0.0
    %217 = vmatpush1.msra.mxu0 0.0
    %218 = vmatprep.subr.mxu0 0.0
    %219 = vmatpush1.msra.mxu0 0.0
    %220 = vmatprep.subr.mxu0 0.0
    %221 = vmatpush1.msra.mxu0 0.0
    %222 = vmatprep.subr.mxu0 0.0
    %223 = vmatpush1.msra.mxu0 0.0
    %224 = vmatprep.subr.mxu0 0.0
    %225 = vmatpush1.msra.mxu0 0.0
    %226 = vmatprep.subr.mxu0 0.0
    %227 = vmatpush1.msra.mxu0 0.0
    %228 = vmatprep.subr.mxu0 0.0
    %229 = vmatpush1.msra.mxu0 0.0
    %230 = vmatprep.subr.mxu0 0.0
    %231 = vmatpush1.msra.mxu0 0.0
    %232 = vmatprep.subr.mxu0 0.0
    %233 = vmatpush1.msra.mxu0 0.0
    %234 = vmatprep.subr.mxu0 0.0
    %235 = vmatpush1.msra.mxu0 0.0
    %236 = vmatprep.subr.mxu0 0.0
    %237 = vmatpush1.msra.mxu0 0.0
    %238 = vmatprep.subr.mxu0 0.0
    %239 = vmatpush1.msra.mxu0 0.0
    %240 = vmatprep.subr.mxu0 0.0
    %241 = vmatpush1.msra.mxu0 0.0
    %242 = vmatprep.subr.mxu0 0.0
    %243 = vmatpush1.msra.mxu0 0.0
    %244 = vmatprep.subr.mxu0 0.0
    %245 = vmatpush1.msra.mxu0 0.0
    %246 = vmatprep.subr.mxu0 0.0
    %247 = vmatpush1.msra.mxu0 0.0
    %248 = vmatprep.subr.mxu0 0.0
    %249 = vmatpush1.msra.mxu0 0.0
    %250 = vmatprep.subr.mxu0 0.0
    %251 = vmatpush1.msra.mxu0 0.0
    %252 = vmatprep.subr.mxu0 0.0
    %253 = vmatpush1.msra.mxu0 0.0
    %254 = vmatprep.mubr.f32.mxu0 0.0
    %255 = vmatmul.mubr.f32.gmra.mrb[0].mxu0 %v188
    %v256 = vpop.f32.mrb[0].mxu0
    %v257 = vadd.f32 %v184, %v256
    %v258 = vpop.f32.mrb[0].mxu0
    %259 = vdwg.mxu0
    %s260 = scalar_lea.vmem %s2, 32
    %v261 = vld [vmem:[%s260] sm:$0xff]
    %v262 = vld [vmem:[%s260 + $0x8] sm:$0xff]
    %v263 = vld [vmem:[%s260 + $0x10] sm:$0xff]
    %v264 = vld [vmem:[%s260 + $0x18] sm:$0xff]
    %s265 = scalar_lea.vmem %s3, 1
    %v266 = vld [vmem:[%s265] sm:$0x1]
    %v268 = vlaneseq
    %v269 = vshrl.u32 %v268, 7
    %v270 = vsub.s32 0, %v269
    %v271 = vrot.slane %v266, %v270
    %v274 = vsel %vm186, %v172, 0
    %276 = vmatprep.subr.mxu0 0.0
    %277 = vmatpush1.msra.mxu0 %v261
    %278 = vmatprep.subr.mxu0 0.0
    %279 = vmatpush1.msra.mxu0 %v262
    %280 = vmatprep.subr.mxu0 0.0
    %281 = vmatpush1.msra.mxu0 %v263
    %282 = vmatprep.subr.mxu0 0.0
    %283 = vmatpush1.msra.mxu0 %v264
    %284 = vmatprep.subr.mxu0 0.0
    %285 = vmatpush1.msra.mxu0 0.0
    %286 = vmatprep.subr.mxu0 0.0
    %287 = vmatpush1.msra.mxu0 0.0
    %288 = vmatprep.subr.mxu0 0.0
    %289 = vmatpush1.msra.mxu0 0.0
    %290 = vmatprep.subr.mxu0 0.0
    %291 = vmatpush1.msra.mxu0 0.0
    %292 = vmatprep.subr.mxu0 0.0
    %293 = vmatpush1.msra.mxu0 0.0
    %294 = vmatprep.subr.mxu0 0.0
    %295 = vmatpush1.msra.mxu0 0.0
    %296 = vmatprep.subr.mxu0 0.0
    %297 = vmatpush1.msra.mxu0 0.0
    %298 = vmatprep.subr.mxu0 0.0
    %299 = vmatpush1.msra.mxu0 0.0
    %300 = vmatprep.subr.mxu0 0.0
    %301 = vmatpush1.msra.mxu0 0.0
    %302 = vmatprep.subr.mxu0 0.0
    %303 = vmatpush1.msra.mxu0 0.0
    %304 = vmatprep.subr.mxu0 0.0
    %305 = vmatpush1.msra.mxu0 0.0
    %306 = vmatprep.subr.mxu0 0.0
    %307 = vmatpush1.msra.mxu0 0.0
    %308 = vmatprep.subr.mxu0 0.0
    %309 = vmatpush1.msra.mxu0 0.0
    %310 = vmatprep.subr.mxu0 0.0
    %311 = vmatpush1.msra.mxu0 0.0
    %312 = vmatprep.subr.mxu0 0.0
    %313 = vmatpush1.msra.mxu0 0.0
    %314 = vmatprep.subr.mxu0 0.0
    %315 = vmatpush1.msra.mxu0 0.0
    %316 = vmatprep.subr.mxu0 0.0
    %317 = vmatpush1.msra.mxu0 0.0
    %318 = vmatprep.subr.mxu0 0.0
    %319 = vmatpush1.msra.mxu0 0.0
    %320 = vmatprep.subr.mxu0 0.0
    %321 = vmatpush1.msra.mxu0 0.0
    %322 = vmatprep.subr.mxu0 0.0
    %323 = vmatpush1.msra.mxu0 0.0
    %324 = vmatprep.subr.mxu0 0.0
    %325 = vmatpush1.msra.mxu0 0.0
    %326 = vmatprep.subr.mxu0 0.0
    %327 = vmatpush1.msra.mxu0 0.0
    %328 = vmatprep.subr.mxu0 0.0
    %329 = vmatpush1.msra.mxu0 0.0
    %330 = vmatprep.subr.mxu0 0.0
    %331 = vmatpush1.msra.mxu0 0.0
    %332 = vmatprep.subr.mxu0 0.0
    %333 = vmatpush1.msra.mxu0 0.0
    %334 = vmatprep.subr.mxu0 0.0
    %335 = vmatpush1.msra.mxu0 0.0
    %336 = vmatprep.subr.mxu0 0.0
    %337 = vmatpush1.msra.mxu0 0.0
    %338 = vmatprep.subr.mxu0 0.0
    %339 = vmatpush1.msra.mxu0 0.0
    %340 = vmatprep.mubr.f32.mxu0 0.0
    %341 = vmatmul.mubr.f32.gmra.mrb[0].mxu0 %v274
    %v342 = vpop.f32.mrb[0].mxu0
    %v343 = vadd.f32 %v271, %v342
    %v344 = vpop.f32.mrb[0].mxu0
    %345 = vdwg.mxu0
    %vm346 = vcmask 58368
    %347 = vst.msk [vmem:[#allocation2] sm:$0x3] %vm346, %v257
    %v348 = vld [vmem:[%s4] sm:$0x3]
    %v349 = vsel %vm346, %v257, -inf
    %350 = vmax.xlane.f32.xlu0 %v349
    %v351 = vpop.xlane.xlu0 %350
    %v352 = vsub.f32 %v257, %v351
    %v353 = vmul.f32 %v352, 1.442695
    %v354 = vpow.pop %v353
    %v355 = vsel %vm346, %v354, 0.0
    %356 = vadd.xlane.f32.xlu0 %v355
    %v357 = vpop.xlane.xlu0 %356
    %v358 = vlog2.pop %v357
    %v359 = vmul.f32 %v358, 0.6931472
    %v360 = vadd.f32 %v359, %v351
    %v361 = vmul.f32 %v348, %v257
    %v362 = vsel %vm346, %v361, 0.0
    %363 = vadd.xlane.f32.xlu0 %v362
    %v364 = vpop.xlane.xlu0 %363
    %v365 = vsub.f32 %v360, %v364
    %vm366 = vcmask 1041408
    %v367 = vsel %vm366, %v365, 0.0
    %v368 = vrot.slane %v367, 4
    %v369 = vadd.f32 %v367, %v368
    %v370 = vrot.slane %v369, 2
    %v371 = vadd.f32 %v369, %v370
    %v372 = vrot.slane %v371, 1
    %v373 = vadd.f32 %v371, %v372
    %v374 = vmul.f32 %v373, 0.5
    %vm375 = vcmask 0
    %376 = vst.msk [vmem:[#allocation4] sm:$0x1] %vm375, %v374
    %v377 = vmul.f32 %v257, 0.25
    %v378 = vmul.f32 %v343, 0.25
    %v379 = vmul.f32 %v351, 0.25
    %v380 = vsel %vm346, %v378, -inf
    %381 = vmax.xlane.f32.xlu0 %v380
    %v382 = vpop.xlane.xlu0 %381
    %v383 = vsub.f32 %v377, %v379
    %v384 = vmul.f32 %v383, 1.442695
    %v385 = vpow.pop %v384
    %v386 = vsel %vm346, %v385, 0.0
    %387 = vadd.xlane.f32.xlu0 %v386
    %v388 = vpop.xlane.xlu0 %387
    %v389 = vlog2.pop %v388
    %v390 = vmul.f32 %v389, 0.6931472
    %v391 = vadd.f32 %v390, %v379
    %v392 = vsub.f32 %v377, %v391
    %v393 = vsub.f32 %v378, %v382
    %v394 = vmul.f32 %v393, 1.442695
    %v395 = vpow.pop %v394
    %v396 = vsel %vm346, %v395, 0.0
    %397 = vadd.xlane.f32.xlu0 %v396
    %v398 = vpop.xlane.xlu0 %397
    %v399 = vlog2.pop %v398
    %v400 = vmul.f32 %v399, 0.6931472
    %v401 = vadd.f32 %v400, %v382
    %v402 = vsub.f32 %v378, %v401
    %v403 = vmul.f32 %v402, 1.442695
    %v404 = vpow.pop %v403
    %v405 = vsub.f32 %v402, %v392
    %v406 = vmul.f32 %v404, %v405
    %v407 = vsel %vm346, %v406, 0.0
    %408 = vadd.xlane.f32.xlu0 %v407
    %v409 = vpop.xlane.xlu0 %408
    %v410 = vsel %vm366, %v409, 0.0
    %v411 = vrot.slane %v410, 4
    %v412 = vadd.f32 %v410, %v411
    %v413 = vrot.slane %v412, 2
    %v414 = vadd.f32 %v412, %v413
    %v415 = vrot.slane %v414, 1
    %v416 = vadd.f32 %v414, %v415
    %v417 = vmul.f32 %v416, 8.0
    %418 = vst.msk [vmem:[#allocation6] sm:$0x1] %vm375, %v417
    // Predicated region
    $region22: #{distiller_forward.12} parent=1 // pred_check
      _
    $region23: #{distiller_forward.12} parent=1 // pred_check_branch
      %420 = sbr.rel (0) target = $region25
    $region24: #{distiller_forward.12} parent=1 // pred_region
      %s422 = ssub.s32 32, 32
      %423 = vsyncadd [#allocation3], %s422
      %s425 = sshll.u32 [#allocation2], 4
      %s426 = int_to_ptr.vmem [resolvable:$true] %s425
      %428 = dma.vmem_to_hbm [thread:$0]  %s426, 32, %s5, [#allocation3]
    $region25: #{distiller_forward.12} parent=1 // pred_fallthru
      _
    // Predicated region
    $region26: #{distiller_forward.12} parent=1 // pred_check
      _
    $region27: #{distiller_forward.12} parent=1 // pred_check_branch
      %430 = sbr.rel (0) target = $region29
    $region28: #{distiller_forward.12} parent=1 // pred_region
      %s432 = ssub.s32 16, 16
      %433 = vsyncadd [#allocation5], %s432
      %s435 = sshll.u32 [#allocation4], 4
      %s436 = int_to_ptr.vmem [resolvable:$true] %s435
      %438 = dma.vmem_to_hbm [thread:$0]  %s436, 16, %s6, [#allocation5]
    $region29: #{distiller_forward.12} parent=1 // pred_fallthru
      _
    // Predicated region
    $region30: #{distiller_forward.12} parent=1 // pred_check
      _
    $region31: #{distiller_forward.12} parent=1 // pred_check_branch
      %440 = sbr.rel (0) target = $region33
    $region32: #{distiller_forward.12} parent=1 // pred_region
      %s442 = ssub.s32 16, 16
      %443 = vsyncadd [#allocation5], %s442
      %s445 = sshll.u32 [#allocation6], 4
      %s446 = int_to_ptr.vmem [resolvable:$true] %s445
      %448 = dma.vmem_to_hbm [thread:$0]  %s446, 16, %s7, [#allocation5]
    $region33: #{distiller_forward.12} parent=1 // pred_fallthru
      _
    // Predicated region
    $region34: #{distiller_forward.12} parent=1 // pred_check
      _
    $region35: #{distiller_forward.12} parent=1 // pred_check_branch
      %450 = sbr.rel (0) target = $region37
    $region36: #{distiller_forward.12} parent=1 // pred_region
      %451 = dma.done [#allocation3], 32
    $region37: #{distiller_forward.12} parent=1 // pred_fallthru
      _
    // Predicated region
    $region38: #{distiller_forward.12} parent=1 // pred_check
      _
    $region39: #{distiller_forward.12} parent=1 // pred_check_branch
      %453 = sbr.rel (0) target = $region41
    $region40: #{distiller_forward.12} parent=1 // pred_region
      %454 = dma.done [#allocation5], 16
    $region41: #{distiller_forward.12} parent=1 // pred_fallthru
      _
    // Predicated region
    $region42: #{distiller_forward.12} parent=1 // pred_check
      _
    $region43: #{distiller_forward.12} parent=1 // pred_check_branch
      %456 = sbr.rel (0) target = $region45
    $region44: #{distiller_forward.12} parent=1 // pred_region
      %457 = dma.done [#allocation5], 16
    $region45: #{distiller_forward.12} parent=1 // pred_fallthru
      _
    %458 = vsyncpa [#allocation3], 1
    %459 = vsyncpa [#allocation5], 1

</llo_original>
